<compile_context>
chip_gen: v6e
topology: v6e:2x2x1
jax: 0.10.0
libtpu: 0.0.40
codegen_flags: <defaults>
</compile_context>

<pallas_src>
import jax
import jax.numpy as jnp
from jax.experimental import pallas as pl
from jax.experimental.pallas import tpu as pltpu

# --- small, forward-consistent shapes ---
D_MODEL = 32
N_HEAD = 4
D_HEAD = D_MODEL // N_HEAD
CONTEXT_LEN = 8
VOCAB_SIZE = 16
N_BLOCKS = 6
D_FF = 4 * D_MODEL
LN_EPS = 1e-12
V_PAD = 128          # pad lm-head lanes to 128 -> dense stores
BATCH = 2


def _layernorm(x, gamma, beta):
    # matches reference layer_norm: unbiased var (N-1), divide by (var + eps), NOT sqrt
    d = x.shape[-1]
    mean = jnp.mean(x, axis=-1, keepdims=True)
    var = jnp.sum((x - mean) ** 2, axis=-1, keepdims=True) * (1.0 / (d - 1))
    return gamma * ((x - mean) / (var + LN_EPS)) + beta


def gpt_fwd_kernel(src_ref, tok_ref, pos_ref,
                   ln1g_ref, ln1b_ref, wqkv_ref, bqkv_ref, wo_ref, bo_ref,
                   ln2g_ref, ln2b_ref, w1_ref, b1_ref, w2_ref, b2_ref,
                   lmw_ref, lmb_ref, o_ref):
    """Full GPT forward (embedding + 6 blocks + lm head) in one invocation."""
    BT = src_ref.shape[0]
    T = CONTEXT_LEN
    B = BT // T
    D = D_MODEL
    H = N_HEAD
    Dh = D_HEAD
    scale = float(D) ** -0.5                       # reference scales by d_model**-0.5

    # --- fused embedding: one-hot(BT,V) @ tok_emb(V,D) is an exact row gather in f32
    vocab_iota = jax.lax.broadcasted_iota(jnp.int32, (BT, VOCAB_SIZE), 1)
    onehot = (src_ref[...] == vocab_iota).astype(jnp.float32)
    x = jnp.dot(onehot, tok_ref[...], preferred_element_type=jnp.float32) + pos_ref[...]

    # --- causal additive mask bias: built ONCE, reused by every layer (broadcasts over B*H)
    row = jax.lax.broadcasted_iota(jnp.int32, (T, T), 0)
    col = jax.lax.broadcasted_iota(jnp.int32, (T, T), 1)
    mask_bias = jnp.where(col <= row, 0.0, -jnp.inf).astype(jnp.float32)

    def split_heads(slab):
        # (BT, H*Dh) -> (H*B, T, Dh); lane slices + major-axis concat (no transposes)
        return jnp.concatenate(
            [slab[:, h * Dh:(h + 1) * Dh].reshape(B, T, Dh) for h in range(H)], axis=0)

    for l in range(N_BLOCKS):                      # static unroll; weights stay in VMEM
        # --- ln1 + multi-head self attention ---
        ln1 = _layernorm(x, ln1g_ref[l], ln1b_ref[l])                       # (BT, D) f32
        # ONE lane-dense (BT,32)x(32,96) matmul for q|k|v of all heads
        qkv = jnp.dot(ln1.astype(jnp.bfloat16), wqkv_ref[l],
                      preferred_element_type=jnp.float32) + bqkv_ref[l]     # (BT, 96)

        q = split_heads(qkv[:, 0:D])               # (H*B, T, Dh)
        k = split_heads(qkv[:, D:2 * D])
        v = split_heads(qkv[:, 2 * D:3 * D])

        # attention batched over all B*H = 8 heads at once
        s = jnp.einsum('ntd,nsd->nts', q, k,
                       preferred_element_type=jnp.float32) * scale          # (HB, T, T)
        s = s + mask_bias                          # diagonal always unmasked -> safe
        s = s - jnp.max(s, axis=-1, keepdims=True)
        p = jnp.exp(s)
        p = p / jnp.sum(p, axis=-1, keepdims=True)
        o_h = jnp.einsum('nts,nsd->ntd', p, v,
                         preferred_element_type=jnp.float32)                # (HB, T, Dh)

        # merge heads back to (BT, H*Dh) (cheap lane concat) and apply Wo as ONE matmul
        o2d = jnp.concatenate(
            [o_h[h * B:(h + 1) * B].reshape(BT, Dh) for h in range(H)], axis=-1)
        attn = jnp.dot(o2d.astype(jnp.bfloat16), wo_ref[l],
                       preferred_element_type=jnp.float32) + bo_ref[l]      # (BT, D)
        out1 = x + attn

        # --- ln2 + feed-forward ---
        ln2 = _layernorm(out1, ln2g_ref[l], ln2b_ref[l])
        h1 = jnp.maximum(
            jnp.dot(ln2.astype(jnp.bfloat16), w1_ref[l],
                    preferred_element_type=jnp.float32) + b1_ref[l], 0.0)
        ff = jnp.dot(h1.astype(jnp.bfloat16), w2_ref[l],
                     preferred_element_type=jnp.float32) + b2_ref[l]

        # NOTE: reference adds the ORIGINAL x here (not out1)
        x = x + ff

    # lm head, padded to 128 output lanes for a dense store
    logits = jnp.dot(x.astype(jnp.bfloat16), lmw_ref[...],
                     preferred_element_type=jnp.float32) + lmb_ref[...]
    o_ref[...] = logits.astype(o_ref.dtype)


def init_params(key):
    def nrm(k, shape, scale=0.02):
        return (scale * jax.random.normal(k, shape)).astype(jnp.float32)

    keys = jax.random.split(key, 4)
    params = {
        "tok_emb": nrm(keys[0], (VOCAB_SIZE, D_MODEL), 1.0),
        "pos_emb": nrm(keys[1], (CONTEXT_LEN, D_MODEL), 1.0),
        "lm_w": nrm(keys[2], (D_MODEL, VOCAB_SIZE)),
        "lm_b": nrm(keys[3], (1, VOCAB_SIZE)),
        "blocks": [],
    }
    for i in range(N_BLOCKS):
        bk = jax.random.split(jax.random.fold_in(key, i), 12)
        blk = dict(
            ln1_g=jnp.ones((1, D_MODEL), jnp.float32),
            ln1_b=jnp.zeros((1, D_MODEL), jnp.float32),
            wq=nrm(bk[0], (D_MODEL, D_MODEL)), bq=nrm(bk[1], (D_MODEL,)),
            wk=nrm(bk[2], (D_MODEL, D_MODEL)), bkk=nrm(bk[3], (D_MODEL,)),
            wv=nrm(bk[4], (D_MODEL, D_MODEL)), bv=nrm(bk[5], (D_MODEL,)),
            wo=nrm(bk[6], (D_MODEL, D_MODEL)), bo=nrm(bk[7], (1, D_MODEL)),
            ln2_g=jnp.ones((1, D_MODEL), jnp.float32),
            ln2_b=jnp.zeros((1, D_MODEL), jnp.float32),
            w1=nrm(bk[8], (D_MODEL, D_FF)), b1=nrm(bk[9], (1, D_FF)),
            w2=nrm(bk[10], (D_FF, D_MODEL)), b2=nrm(bk[11], (1, D_MODEL)),
        )
        params["blocks"].append(blk)
    return params


def pack_params(params, batch=BATCH):
    """Stack per-layer weights on a leading layer axis, lane-dense & bf16 where hot."""
    blocks = params["blocks"]

    # fused QKV: (L, D, 3*H*Dh) = (L, 32, 96); columns ordered [q heads | k heads | v heads]
    wqkv = jnp.stack([jnp.concatenate([b["wq"], b["wk"], b["wv"]], axis=1)
                      for b in blocks])                                     # (L, D, 96)
    bqkv = jnp.stack([jnp.concatenate([b["bq"], b["bkk"], b["bv"]]).reshape(1, 3 * D_MODEL)
                      for b in blocks])                                     # (L, 1, 96)

    lm_w = jnp.zeros((D_MODEL, V_PAD), jnp.float32).at[:, :VOCAB_SIZE].set(params["lm_w"])
    lm_b = jnp.zeros((1, V_PAD), jnp.float32).at[:, :VOCAB_SIZE].set(params["lm_b"])

    return {
        "tok_emb": params["tok_emb"].astype(jnp.float32),                   # (V, D) f32 (exact gather)
        "pos_bt": jnp.tile(params["pos_emb"][:CONTEXT_LEN], (batch, 1)),    # (BT, D) f32
        "ln1g": jnp.stack([b["ln1_g"] for b in blocks]),                    # (L, 1, D)
        "ln1b": jnp.stack([b["ln1_b"] for b in blocks]),
        "wqkv": wqkv.astype(jnp.bfloat16),                                  # (L, D, 96) bf16
        "bqkv": bqkv.astype(jnp.float32),                                   # (L, 1, 96) f32
        "wo": jnp.stack([b["wo"] for b in blocks]).astype(jnp.bfloat16),    # (L, D, D) bf16
        "bo": jnp.stack([b["bo"] for b in blocks]),                         # (L, 1, D)
        "ln2g": jnp.stack([b["ln2_g"] for b in blocks]),
        "ln2b": jnp.stack([b["ln2_b"] for b in blocks]),
        "w1": jnp.stack([b["w1"] for b in blocks]).astype(jnp.bfloat16),    # (L, D, 4D) bf16
        "b1": jnp.stack([b["b1"] for b in blocks]),                         # (L, 1, 4D)
        "w2": jnp.stack([b["w2"] for b in blocks]).astype(jnp.bfloat16),    # (L, 4D, D) bf16
        "b2": jnp.stack([b["b2"] for b in blocks]),                         # (L, 1, D)
        "lm_w_pad": lm_w.astype(jnp.bfloat16),                              # (D, 128) bf16
        "lm_b_pad": lm_b,                                                   # (1, 128) f32
    }


@jax.jit
def gpt_forward(src, packed):
    """src: int32 [B, T]; returns (logits [B, T, vocab], loss=None)."""
    B, T = src.shape
    src2d = src.reshape(B * T, 1).astype(jnp.int32)     # tokens go straight into the kernel

    args = (src2d, packed["tok_emb"], packed["pos_bt"],
            packed["ln1g"], packed["ln1b"], packed["wqkv"], packed["bqkv"],
            packed["wo"], packed["bo"], packed["ln2g"], packed["ln2b"],
            packed["w1"], packed["b1"], packed["w2"], packed["b2"],
            packed["lm_w_pad"], packed["lm_b_pad"])

    vmem = pl.BlockSpec(memory_space=pltpu.MemorySpace.VMEM)
    logits_pad = pl.pallas_call(
        gpt_fwd_kernel,
        out_shape=jax.ShapeDtypeStruct((B * T, V_PAD), jnp.float32),
        in_specs=[vmem] * len(args),
        out_specs=vmem,
    )(*args)

    logits = logits_pad[:, :VOCAB_SIZE].reshape(B, T, VOCAB_SIZE)
    # TODO(synk): cross-entropy loss path (trg is not None) and generate() sampling
    # are not implemented here; reference is exercised with trg=None -> loss=None.
    return logits, None


if __name__ == "__main__":
    key = jax.random.PRNGKey(0)
    pkey, dkey = jax.random.split(key)
    params = init_params(pkey)
    packed = pack_params(params, batch=BATCH)
    src = jax.random.randint(dkey, (BATCH, CONTEXT_LEN), 0, VOCAB_SIZE, dtype=jnp.int32)

    logits, loss = gpt_forward(src, packed)
    logits = jax.block_until_ready(logits)

    assert logits.shape == (BATCH, CONTEXT_LEN, VOCAB_SIZE), logits.shape
    assert loss is None
    assert bool(jnp.all(jnp.isfinite(logits)))
    print("KERNEL_OK")
</pallas_src>

<mosaic_0001>
module attributes {stable_mosaic.version = 11 : i64} {
  func.func @gpt_fwd_kernel(%arg0: memref<16x1xi32, #tpu.memory_space<vmem>>, %arg1: memref<16x32xf32, #tpu.memory_space<vmem>>, %arg2: memref<16x32xf32, #tpu.memory_space<vmem>>, %arg3: memref<6x1x32xf32, #tpu.memory_space<vmem>>, %arg4: memref<6x1x32xf32, #tpu.memory_space<vmem>>, %arg5: memref<6x32x96xbf16, #tpu.memory_space<vmem>>, %arg6: memref<6x1x96xf32, #tpu.memory_space<vmem>>, %arg7: memref<6x32x32xbf16, #tpu.memory_space<vmem>>, %arg8: memref<6x1x32xf32, #tpu.memory_space<vmem>>, %arg9: memref<6x1x32xf32, #tpu.memory_space<vmem>>, %arg10: memref<6x1x32xf32, #tpu.memory_space<vmem>>, %arg11: memref<6x32x128xbf16, #tpu.memory_space<vmem>>, %arg12: memref<6x1x128xf32, #tpu.memory_space<vmem>>, %arg13: memref<6x128x32xbf16, #tpu.memory_space<vmem>>, %arg14: memref<6x1x32xf32, #tpu.memory_space<vmem>>, %arg15: memref<32x128xbf16, #tpu.memory_space<vmem>>, %arg16: memref<1x128xf32, #tpu.memory_space<vmem>>, %arg17: memref<16x128xf32, #tpu.memory_space<vmem>>) attributes {dimension_semantics = [], scalar_prefetch = 0 : i64, scratch_operands = 0 : i64, tpu.core_type = #tpu.core_type<tc>} {
    %0 = tpu.iota {dimensions = array<i32: 1>} : vector<16x16xi32>
    %c0 = arith.constant 0 : index
    %c0_0 = arith.constant 0 : index
    %1 = vector.load %arg0[%c0, %c0_0] : memref<16x1xi32, #tpu.memory_space<vmem>>, vector<16x1xi32>
    %2 = vector.broadcast %1 : vector<16x1xi32> to vector<16x16xi32>
    %3 = arith.cmpi eq, %2, %0 : vector<16x16xi32>
    %4 = arith.extui %3 : vector<16x16xi1> to vector<16x16xi32>
    %5 = arith.sitofp %4 : vector<16x16xi32> to vector<16x16xf32>
    %c0_1 = arith.constant 0 : index
    %c0_2 = arith.constant 0 : index
    %6 = vector.load %arg1[%c0_1, %c0_2] : memref<16x32xf32, #tpu.memory_space<vmem>>, vector<16x32xf32>
    %cst = arith.constant dense<0.000000e+00> : vector<16x32xf32>
    %7 = tpu.matmul %5, %6, %cst {dimension_numbers = #tpu.dot_dimension_numbers<[1], [0], [0], [1], [0, 0, 1, 1], [], []>} : vector<16x16xf32>, vector<16x32xf32>, vector<16x32xf32> -> vector<16x32xf32>
    %c0_3 = arith.constant 0 : index
    %c0_4 = arith.constant 0 : index
    %8 = vector.load %arg2[%c0_3, %c0_4] : memref<16x32xf32, #tpu.memory_space<vmem>>, vector<16x32xf32>
    %9 = arith.addf %7, %8 : vector<16x32xf32>
    %10 = tpu.iota {dimensions = array<i32: 0>} : vector<8x8xi32>
    %11 = tpu.iota {dimensions = array<i32: 1>} : vector<8x8xi32>
    %12 = arith.cmpi sle, %11, %10 : vector<8x8xi32>
    %cst_5 = arith.constant 0.000000e+00 : f32
    %cst_6 = arith.constant 0xFF800000 : f32
    %13 = vector.broadcast %cst_5 : f32 to vector<8x8xf32>
    %14 = vector.broadcast %cst_6 : f32 to vector<8x8xf32>
    %15 = arith.select %12, %13, %14 : vector<8x8xi1>, vector<8x8xf32>
    %c0_7 = arith.constant 0 : index
    %c0_8 = arith.constant 0 : index
    %c0_9 = arith.constant 0 : index
    %16 = vector.load %arg3[%c0_7, %c0_8, %c0_9] : memref<6x1x32xf32, #tpu.memory_space<vmem>>, vector<1x1x32xf32>
    %17 = vector.shape_cast %16 : vector<1x1x32xf32> to vector<1x32xf32>
    %c0_10 = arith.constant 0 : index
    %c0_11 = arith.constant 0 : index
    %c0_12 = arith.constant 0 : index
    %18 = vector.load %arg4[%c0_10, %c0_11, %c0_12] : memref<6x1x32xf32, #tpu.memory_space<vmem>>, vector<1x1x32xf32>
    %19 = vector.shape_cast %18 : vector<1x1x32xf32> to vector<1x32xf32>
    %cst_13 = arith.constant dense<0.000000e+00> : vector<16xf32>
    %20 = vector.multi_reduction <add>, %9, %cst_13 [1] : vector<16x32xf32> to vector<16xf32>
    %21 = vector.shape_cast %20 : vector<16xf32> to vector<16x1xf32>
    %cst_14 = arith.constant 3.200000e+01 : f32
    %22 = vector.broadcast %cst_14 : f32 to vector<16x1xf32>
    %23 = arith.divf %21, %22 : vector<16x1xf32>
    %24 = vector.broadcast %23 : vector<16x1xf32> to vector<16x32xf32>
    %25 = arith.subf %9, %24 : vector<16x32xf32>
    %26 = arith.mulf %25, %25 : vector<16x32xf32>
    %cst_15 = arith.constant dense<0.000000e+00> : vector<16xf32>
    %27 = vector.multi_reduction <add>, %26, %cst_15 [1] : vector<16x32xf32> to vector<16xf32>
    %28 = vector.shape_cast %27 : vector<16xf32> to vector<16x1xf32>
    %cst_16 = arith.constant 0.0322580636 : f32
    %29 = vector.broadcast %cst_16 : f32 to vector<16x1xf32>
    %30 = arith.mulf %28, %29 : vector<16x1xf32>
    %31 = vector.broadcast %23 : vector<16x1xf32> to vector<16x32xf32>
    %32 = arith.subf %9, %31 : vector<16x32xf32>
    %cst_17 = arith.constant 9.99999996E-13 : f32
    %33 = vector.broadcast %cst_17 : f32 to vector<16x1xf32>
    %34 = arith.addf %30, %33 : vector<16x1xf32>
    %35 = vector.broadcast %34 : vector<16x1xf32> to vector<16x32xf32>
    %36 = arith.divf %32, %35 : vector<16x32xf32>
    %37 = vector.broadcast %17 : vector<1x32xf32> to vector<16x32xf32>
    %38 = arith.mulf %37, %36 : vector<16x32xf32>
    %39 = vector.broadcast %19 : vector<1x32xf32> to vector<16x32xf32>
    %40 = arith.addf %38, %39 : vector<16x32xf32>
    %41 = arith.truncf %40 : vector<16x32xf32> to vector<16x32xbf16>
    %c0_18 = arith.constant 0 : index
    %c0_19 = arith.constant 0 : index
    %c0_20 = arith.constant 0 : index
    %42 = vector.load %arg5[%c0_18, %c0_19, %c0_20] : memref<6x32x96xbf16, #tpu.memory_space<vmem>>, vector<1x32x96xbf16>
    %43 = vector.shape_cast %42 : vector<1x32x96xbf16> to vector<32x96xbf16>
    %cst_21 = arith.constant dense<0.000000e+00> : vector<16x96xf32>
    %44 = tpu.matmul %41, %43, %cst_21 {dimension_numbers = #tpu.dot_dimension_numbers<[1], [0], [0], [1], [0, 0, 1, 1], [], []>} : vector<16x32xbf16>, vector<32x96xbf16>, vector<16x96xf32> -> vector<16x96xf32>
    %c0_22 = arith.constant 0 : index
    %c0_23 = arith.constant 0 : index
    %c0_24 = arith.constant 0 : index
    %45 = vector.load %arg6[%c0_22, %c0_23, %c0_24] : memref<6x1x96xf32, #tpu.memory_space<vmem>>, vector<1x1x96xf32>
    %46 = vector.shape_cast %45 : vector<1x1x96xf32> to vector<1x96xf32>
    %47 = vector.broadcast %46 : vector<1x96xf32> to vector<16x96xf32>
    %48 = arith.addf %44, %47 : vector<16x96xf32>
    %49 = vector.extract_strided_slice %48 {offsets = [0, 0], sizes = [16, 32], strides = [1, 1]} : vector<16x96xf32> to vector<16x32xf32>
    %50 = vector.extract_strided_slice %49 {offsets = [0, 0], sizes = [16, 8], strides = [1, 1]} : vector<16x32xf32> to vector<16x8xf32>
    %51 = vector.shape_cast %50 : vector<16x8xf32> to vector<2x8x8xf32>
    %52 = vector.extract_strided_slice %49 {offsets = [0, 8], sizes = [16, 8], strides = [1, 1]} : vector<16x32xf32> to vector<16x8xf32>
    %53 = vector.shape_cast %52 : vector<16x8xf32> to vector<2x8x8xf32>
    %54 = vector.extract_strided_slice %49 {offsets = [0, 16], sizes = [16, 8], strides = [1, 1]} : vector<16x32xf32> to vector<16x8xf32>
    %55 = vector.shape_cast %54 : vector<16x8xf32> to vector<2x8x8xf32>
    %56 = vector.extract_strided_slice %49 {offsets = [0, 24], sizes = [16, 8], strides = [1, 1]} : vector<16x32xf32> to vector<16x8xf32>
    %57 = vector.shape_cast %56 : vector<16x8xf32> to vector<2x8x8xf32>
    %58 = tpu.concatenate %51, %53, %55, %57 in 0 : vector<2x8x8xf32>, vector<2x8x8xf32>, vector<2x8x8xf32>, vector<2x8x8xf32> -> vector<8x8x8xf32>
    %59 = vector.extract_strided_slice %48 {offsets = [0, 32], sizes = [16, 32], strides = [1, 1]} : vector<16x96xf32> to vector<16x32xf32>
    %60 = vector.extract_strided_slice %59 {offsets = [0, 0], sizes = [16, 8], strides = [1, 1]} : vector<16x32xf32> to vector<16x8xf32>
    %61 = vector.shape_cast %60 : vector<16x8xf32> to vector<2x8x8xf32>
    %62 = vector.extract_strided_slice %59 {offsets = [0, 8], sizes = [16, 8], strides = [1, 1]} : vector<16x32xf32> to vector<16x8xf32>
    %63 = vector.shape_cast %62 : vector<16x8xf32> to vector<2x8x8xf32>
    %64 = vector.extract_strided_slice %59 {offsets = [0, 16], sizes = [16, 8], strides = [1, 1]} : vector<16x32xf32> to vector<16x8xf32>
    %65 = vector.shape_cast %64 : vector<16x8xf32> to vector<2x8x8xf32>
    %66 = vector.extract_strided_slice %59 {offsets = [0, 24], sizes = [16, 8], strides = [1, 1]} : vector<16x32xf32> to vector<16x8xf32>
    %67 = vector.shape_cast %66 : vector<16x8xf32> to vector<2x8x8xf32>
    %68 = tpu.concatenate %61, %63, %65, %67 in 0 : vector<2x8x8xf32>, vector<2x8x8xf32>, vector<2x8x8xf32>, vector<2x8x8xf32> -> vector<8x8x8xf32>
    %69 = vector.extract_strided_slice %48 {offsets = [0, 64], sizes = [16, 32], strides = [1, 1]} : vector<16x96xf32> to vector<16x32xf32>
    %70 = vector.extract_strided_slice %69 {offsets = [0, 0], sizes = [16, 8], strides = [1, 1]} : vector<16x32xf32> to vector<16x8xf32>
    %71 = vector.shape_cast %70 : vector<16x8xf32> to vector<2x8x8xf32>
    %72 = vector.extract_strided_slice %69 {offsets = [0, 8], sizes = [16, 8], strides = [1, 1]} : vector<16x32xf32> to vector<16x8xf32>
    %73 = vector.shape_cast %72 : vector<16x8xf32> to vector<2x8x8xf32>
    %74 = vector.extract_strided_slice %69 {offsets = [0, 16], sizes = [16, 8], strides = [1, 1]} : vector<16x32xf32> to vector<16x8xf32>
    %75 = vector.shape_cast %74 : vector<16x8xf32> to vector<2x8x8xf32>
    %76 = vector.extract_strided_slice %69 {offsets = [0, 24], sizes = [16, 8], strides = [1, 1]} : vector<16x32xf32> to vector<16x8xf32>
    %77 = vector.shape_cast %76 : vector<16x8xf32> to vector<2x8x8xf32>
    %78 = tpu.concatenate %71, %73, %75, %77 in 0 : vector<2x8x8xf32>, vector<2x8x8xf32>, vector<2x8x8xf32>, vector<2x8x8xf32> -> vector<8x8x8xf32>
    "tpu.trace_start"() <{level = 10 : i32, message = "ntd,nsd->nts"}> : () -> ()
    %cst_25 = arith.constant dense<0.000000e+00> : vector<8x8x8xf32>
    %79 = tpu.matmul %58, %68, %cst_25 {dimension_numbers = #tpu.dot_dimension_numbers<[2], [2], [1], [1], [0, 0, 0, 1, 1, 1], [0], [0]>} : vector<8x8x8xf32>, vector<8x8x8xf32>, vector<8x8x8xf32> -> vector<8x8x8xf32>
    "tpu.trace_stop"() : () -> ()
    %cst_26 = arith.constant 0.176776692 : f32
    %80 = vector.broadcast %cst_26 : f32 to vector<8x8x8xf32>
    %81 = arith.mulf %79, %80 : vector<8x8x8xf32>
    %82 = vector.shape_cast %15 : vector<8x8xf32> to vector<1x8x8xf32>
    %83 = vector.broadcast %82 : vector<1x8x8xf32> to vector<8x8x8xf32>
    %84 = arith.addf %81, %83 : vector<8x8x8xf32>
    %cst_27 = arith.constant dense<0xFF800000> : vector<8x8xf32>
    %85 = vector.multi_reduction <maximumf>, %84, %cst_27 [2] : vector<8x8x8xf32> to vector<8x8xf32>
    %86 = vector.shape_cast %85 : vector<8x8xf32> to vector<8x8x1xf32>
    %87 = vector.broadcast %86 : vector<8x8x1xf32> to vector<8x8x8xf32>
    %88 = arith.subf %84, %87 : vector<8x8x8xf32>
    %89 = math.exp %88 : vector<8x8x8xf32>
    %cst_28 = arith.constant dense<0.000000e+00> : vector<8x8xf32>
    %90 = vector.multi_reduction <add>, %89, %cst_28 [2] : vector<8x8x8xf32> to vector<8x8xf32>
    %91 = vector.shape_cast %90 : vector<8x8xf32> to vector<8x8x1xf32>
    %92 = vector.broadcast %91 : vector<8x8x1xf32> to vector<8x8x8xf32>
    %93 = arith.divf %89, %92 : vector<8x8x8xf32>
    "tpu.trace_start"() <{level = 10 : i32, message = "nts,nsd->ntd"}> : () -> ()
    %cst_29 = arith.constant dense<0.000000e+00> : vector<8x8x8xf32>
    %94 = tpu.matmul %93, %78, %cst_29 {dimension_numbers = #tpu.dot_dimension_numbers<[2], [1], [1], [2], [0, 0, 0, 1, 1, 2], [0], [0]>} : vector<8x8x8xf32>, vector<8x8x8xf32>, vector<8x8x8xf32> -> vector<8x8x8xf32>
    "tpu.trace_stop"() : () -> ()
    %95 = vector.extract_strided_slice %94 {offsets = [0, 0, 0], sizes = [2, 8, 8], strides = [1, 1, 1]} : vector<8x8x8xf32> to vector<2x8x8xf32>
    %96 = vector.shape_cast %95 : vector<2x8x8xf32> to vector<16x8xf32>
    %97 = vector.extract_strided_slice %94 {offsets = [2, 0, 0], sizes = [2, 8, 8], strides = [1, 1, 1]} : vector<8x8x8xf32> to vector<2x8x8xf32>
    %98 = vector.shape_cast %97 : vector<2x8x8xf32> to vector<16x8xf32>
    %99 = vector.extract_strided_slice %94 {offsets = [4, 0, 0], sizes = [2, 8, 8], strides = [1, 1, 1]} : vector<8x8x8xf32> to vector<2x8x8xf32>
    %100 = vector.shape_cast %99 : vector<2x8x8xf32> to vector<16x8xf32>
    %101 = vector.extract_strided_slice %94 {offsets = [6, 0, 0], sizes = [2, 8, 8], strides = [1, 1, 1]} : vector<8x8x8xf32> to vector<2x8x8xf32>
    %102 = vector.shape_cast %101 : vector<2x8x8xf32> to vector<16x8xf32>
    %103 = tpu.concatenate %96, %98, %100, %102 in 1 : vector<16x8xf32>, vector<16x8xf32>, vector<16x8xf32>, vector<16x8xf32> -> vector<16x32xf32>
    %104 = arith.truncf %103 : vector<16x32xf32> to vector<16x32xbf16>
    %c0_30 = arith.constant 0 : index
    %c0_31 = arith.constant 0 : index
    %c0_32 = arith.constant 0 : index
    %105 = vector.load %arg7[%c0_30, %c0_31, %c0_32] : memref<6x32x32xbf16, #tpu.memory_space<vmem>>, vector<1x32x32xbf16>
    %106 = vector.shape_cast %105 : vector<1x32x32xbf16> to vector<32x32xbf16>
    %cst_33 = arith.constant dense<0.000000e+00> : vector<16x32xf32>
    %107 = tpu.matmul %104, %106, %cst_33 {dimension_numbers = #tpu.dot_dimension_numbers<[1], [0], [0], [1], [0, 0, 1, 1], [], []>} : vector<16x32xbf16>, vector<32x32xbf16>, vector<16x32xf32> -> vector<16x32xf32>
    %c0_34 = arith.constant 0 : index
    %c0_35 = arith.constant 0 : index
    %c0_36 = arith.constant 0 : index
    %108 = vector.load %arg8[%c0_34, %c0_35, %c0_36] : memref<6x1x32xf32, #tpu.memory_space<vmem>>, vector<1x1x32xf32>
    %109 = vector.shape_cast %108 : vector<1x1x32xf32> to vector<1x32xf32>
    %110 = vector.broadcast %109 : vector<1x32xf32> to vector<16x32xf32>
    %111 = arith.addf %107, %110 : vector<16x32xf32>
    %112 = arith.addf %9, %111 : vector<16x32xf32>
    %c0_37 = arith.constant 0 : index
    %c0_38 = arith.constant 0 : index
    %c0_39 = arith.constant 0 : index
    %113 = vector.load %arg9[%c0_37, %c0_38, %c0_39] : memref<6x1x32xf32, #tpu.memory_space<vmem>>, vector<1x1x32xf32>
    %114 = vector.shape_cast %113 : vector<1x1x32xf32> to vector<1x32xf32>
    %c0_40 = arith.constant 0 : index
    %c0_41 = arith.constant 0 : index
    %c0_42 = arith.constant 0 : index
    %115 = vector.load %arg10[%c0_40, %c0_41, %c0_42] : memref<6x1x32xf32, #tpu.memory_space<vmem>>, vector<1x1x32xf32>
    %116 = vector.shape_cast %115 : vector<1x1x32xf32> to vector<1x32xf32>
    %cst_43 = arith.constant dense<0.000000e+00> : vector<16xf32>
    %117 = vector.multi_reduction <add>, %112, %cst_43 [1] : vector<16x32xf32> to vector<16xf32>
    %118 = vector.shape_cast %117 : vector<16xf32> to vector<16x1xf32>
    %cst_44 = arith.constant 3.200000e+01 : f32
    %119 = vector.broadcast %cst_44 : f32 to vector<16x1xf32>
    %120 = arith.divf %118, %119 : vector<16x1xf32>
    %121 = vector.broadcast %120 : vector<16x1xf32> to vector<16x32xf32>
    %122 = arith.subf %112, %121 : vector<16x32xf32>
    %123 = arith.mulf %122, %122 : vector<16x32xf32>
    %cst_45 = arith.constant dense<0.000000e+00> : vector<16xf32>
    %124 = vector.multi_reduction <add>, %123, %cst_45 [1] : vector<16x32xf32> to vector<16xf32>
    %125 = vector.shape_cast %124 : vector<16xf32> to vector<16x1xf32>
    %cst_46 = arith.constant 0.0322580636 : f32
    %126 = vector.broadcast %cst_46 : f32 to vector<16x1xf32>
    %127 = arith.mulf %125, %126 : vector<16x1xf32>
    %128 = vector.broadcast %120 : vector<16x1xf32> to vector<16x32xf32>
    %129 = arith.subf %112, %128 : vector<16x32xf32>
    %cst_47 = arith.constant 9.99999996E-13 : f32
    %130 = vector.broadcast %cst_47 : f32 to vector<16x1xf32>
    %131 = arith.addf %127, %130 : vector<16x1xf32>
    %132 = vector.broadcast %131 : vector<16x1xf32> to vector<16x32xf32>
    %133 = arith.divf %129, %132 : vector<16x32xf32>
    %134 = vector.broadcast %114 : vector<1x32xf32> to vector<16x32xf32>
    %135 = arith.mulf %134, %133 : vector<16x32xf32>
    %136 = vector.broadcast %116 : vector<1x32xf32> to vector<16x32xf32>
    %137 = arith.addf %135, %136 : vector<16x32xf32>
    %138 = arith.truncf %137 : vector<16x32xf32> to vector<16x32xbf16>
    %c0_48 = arith.constant 0 : index
    %c0_49 = arith.constant 0 : index
    %c0_50 = arith.constant 0 : index
    %139 = vector.load %arg11[%c0_48, %c0_49, %c0_50] : memref<6x32x128xbf16, #tpu.memory_space<vmem>>, vector<1x32x128xbf16>
    %140 = vector.shape_cast %139 : vector<1x32x128xbf16> to vector<32x128xbf16>
    %cst_51 = arith.constant dense<0.000000e+00> : vector<16x128xf32>
    %141 = tpu.matmul %138, %140, %cst_51 {dimension_numbers = #tpu.dot_dimension_numbers<[1], [0], [0], [1], [0, 0, 1, 1], [], []>} : vector<16x32xbf16>, vector<32x128xbf16>, vector<16x128xf32> -> vector<16x128xf32>
    %c0_52 = arith.constant 0 : index
    %c0_53 = arith.constant 0 : index
    %c0_54 = arith.constant 0 : index
    %142 = vector.load %arg12[%c0_52, %c0_53, %c0_54] : memref<6x1x128xf32, #tpu.memory_space<vmem>>, vector<1x1x128xf32>
    %143 = vector.shape_cast %142 : vector<1x1x128xf32> to vector<1x128xf32>
    %144 = vector.broadcast %143 : vector<1x128xf32> to vector<16x128xf32>
    %145 = arith.addf %141, %144 : vector<16x128xf32>
    %cst_55 = arith.constant 0.000000e+00 : f32
    %146 = vector.broadcast %cst_55 : f32 to vector<16x128xf32>
    %147 = arith.maximumf %145, %146 : vector<16x128xf32>
    %148 = arith.truncf %147 : vector<16x128xf32> to vector<16x128xbf16>
    %c0_56 = arith.constant 0 : index
    %c0_57 = arith.constant 0 : index
    %c0_58 = arith.constant 0 : index
    %149 = vector.load %arg13[%c0_56, %c0_57, %c0_58] : memref<6x128x32xbf16, #tpu.memory_space<vmem>>, vector<1x128x32xbf16>
    %150 = vector.shape_cast %149 : vector<1x128x32xbf16> to vector<128x32xbf16>
    %cst_59 = arith.constant dense<0.000000e+00> : vector<16x32xf32>
    %151 = tpu.matmul %148, %150, %cst_59 {dimension_numbers = #tpu.dot_dimension_numbers<[1], [0], [0], [1], [0, 0, 1, 1], [], []>} : vector<16x128xbf16>, vector<128x32xbf16>, vector<16x32xf32> -> vector<16x32xf32>
    %c0_60 = arith.constant 0 : index
    %c0_61 = arith.constant 0 : index
    %c0_62 = arith.constant 0 : index
    %152 = vector.load %arg14[%c0_60, %c0_61, %c0_62] : memref<6x1x32xf32, #tpu.memory_space<vmem>>, vector<1x1x32xf32>
    %153 = vector.shape_cast %152 : vector<1x1x32xf32> to vector<1x32xf32>
    %154 = vector.broadcast %153 : vector<1x32xf32> to vector<16x32xf32>
    %155 = arith.addf %151, %154 : vector<16x32xf32>
    %156 = arith.addf %9, %155 : vector<16x32xf32>
    %c1 = arith.constant 1 : index
    %c0_63 = arith.constant 0 : index
    %c0_64 = arith.constant 0 : index
    %157 = vector.load %arg3[%c1, %c0_63, %c0_64] : memref<6x1x32xf32, #tpu.memory_space<vmem>>, vector<1x1x32xf32>
    %158 = vector.shape_cast %157 : vector<1x1x32xf32> to vector<1x32xf32>
    %c1_65 = arith.constant 1 : index
    %c0_66 = arith.constant 0 : index
    %c0_67 = arith.constant 0 : index
    %159 = vector.load %arg4[%c1_65, %c0_66, %c0_67] : memref<6x1x32xf32, #tpu.memory_space<vmem>>, vector<1x1x32xf32>
    %160 = vector.shape_cast %159 : vector<1x1x32xf32> to vector<1x32xf32>
    %cst_68 = arith.constant dense<0.000000e+00> : vector<16xf32>
    %161 = vector.multi_reduction <add>, %156, %cst_68 [1] : vector<16x32xf32> to vector<16xf32>
    %162 = vector.shape_cast %161 : vector<16xf32> to vector<16x1xf32>
    %cst_69 = arith.constant 3.200000e+01 : f32
    %163 = vector.broadcast %cst_69 : f32 to vector<16x1xf32>
    %164 = arith.divf %162, %163 : vector<16x1xf32>
    %165 = vector.broadcast %164 : vector<16x1xf32> to vector<16x32xf32>
    %166 = arith.subf %156, %165 : vector<16x32xf32>
    %167 = arith.mulf %166, %166 : vector<16x32xf32>
    %cst_70 = arith.constant dense<0.000000e+00> : vector<16xf32>
    %168 = vector.multi_reduction <add>, %167, %cst_70 [1] : vector<16x32xf32> to vector<16xf32>
    %169 = vector.shape_cast %168 : vector<16xf32> to vector<16x1xf32>
    %cst_71 = arith.constant 0.0322580636 : f32
    %170 = vector.broadcast %cst_71 : f32 to vector<16x1xf32>
    %171 = arith.mulf %169, %170 : vector<16x1xf32>
    %172 = vector.broadcast %164 : vector<16x1xf32> to vector<16x32xf32>
    %173 = arith.subf %156, %172 : vector<16x32xf32>
    %cst_72 = arith.constant 9.99999996E-13 : f32
    %174 = vector.broadcast %cst_72 : f32 to vector<16x1xf32>
    %175 = arith.addf %171, %174 : vector<16x1xf32>
    %176 = vector.broadcast %175 : vector<16x1xf32> to vector<16x32xf32>
    %177 = arith.divf %173, %176 : vector<16x32xf32>
    %178 = vector.broadcast %158 : vector<1x32xf32> to vector<16x32xf32>
    %179 = arith.mulf %178, %177 : vector<16x32xf32>
    %180 = vector.broadcast %160 : vector<1x32xf32> to vector<16x32xf32>
    %181 = arith.addf %179, %180 : vector<16x32xf32>
    %182 = arith.truncf %181 : vector<16x32xf32> to vector<16x32xbf16>
    %c1_73 = arith.constant 1 : index
    %c0_74 = arith.constant 0 : index
    %c0_75 = arith.constant 0 : index
    %183 = vector.load %arg5[%c1_73, %c0_74, %c0_75] : memref<6x32x96xbf16, #tpu.memory_space<vmem>>, vector<1x32x96xbf16>
    %184 = vector.shape_cast %183 : vector<1x32x96xbf16> to vector<32x96xbf16>
    %cst_76 = arith.constant dense<0.000000e+00> : vector<16x96xf32>
    %185 = tpu.matmul %182, %184, %cst_76 {dimension_numbers = #tpu.dot_dimension_numbers<[1], [0], [0], [1], [0, 0, 1, 1], [], []>} : vector<16x32xbf16>, vector<32x96xbf16>, vector<16x96xf32> -> vector<16x96xf32>
    %c1_77 = arith.constant 1 : index
    %c0_78 = arith.constant 0 : index
    %c0_79 = arith.constant 0 : index
    %186 = vector.load %arg6[%c1_77, %c0_78, %c0_79] : memref<6x1x96xf32, #tpu.memory_space<vmem>>, vector<1x1x96xf32>
    %187 = vector.shape_cast %186 : vector<1x1x96xf32> to vector<1x96xf32>
    %188 = vector.broadcast %187 : vector<1x96xf32> to vector<16x96xf32>
    %189 = arith.addf %185, %188 : vector<16x96xf32>
    %190 = vector.extract_strided_slice %189 {offsets = [0, 0], sizes = [16, 32], strides = [1, 1]} : vector<16x96xf32> to vector<16x32xf32>
    %191 = vector.extract_strided_slice %190 {offsets = [0, 0], sizes = [16, 8], strides = [1, 1]} : vector<16x32xf32> to vector<16x8xf32>
    %192 = vector.shape_cast %191 : vector<16x8xf32> to vector<2x8x8xf32>
    %193 = vector.extract_strided_slice %190 {offsets = [0, 8], sizes = [16, 8], strides = [1, 1]} : vector<16x32xf32> to vector<16x8xf32>
    %194 = vector.shape_cast %193 : vector<16x8xf32> to vector<2x8x8xf32>
    %195 = vector.extract_strided_slice %190 {offsets = [0, 16], sizes = [16, 8], strides = [1, 1]} : vector<16x32xf32> to vector<16x8xf32>
    %196 = vector.shape_cast %195 : vector<16x8xf32> to vector<2x8x8xf32>
    %197 = vector.extract_strided_slice %190 {offsets = [0, 24], sizes = [16, 8], strides = [1, 1]} : vector<16x32xf32> to vector<16x8xf32>
    %198 = vector.shape_cast %197 : vector<16x8xf32> to vector<2x8x8xf32>
    %199 = tpu.concatenate %192, %194, %196, %198 in 0 : vector<2x8x8xf32>, vector<2x8x8xf32>, vector<2x8x8xf32>, vector<2x8x8xf32> -> vector<8x8x8xf32>
    %200 = vector.extract_strided_slice %189 {offsets = [0, 32], sizes = [16, 32], strides = [1, 1]} : vector<16x96xf32> to vector<16x32xf32>
    %201 = vector.extract_strided_slice %200 {offsets = [0, 0], sizes = [16, 8], strides = [1, 1]} : vector<16x32xf32> to vector<16x8xf32>
    %202 = vector.shape_cast %201 : vector<16x8xf32> to vector<2x8x8xf32>
    %203 = vector.extract_strided_slice %200 {offsets = [0, 8], sizes = [16, 8], strides = [1, 1]} : vector<16x32xf32> to vector<16x8xf32>
    %204 = vector.shape_cast %203 : vector<16x8xf32> to vector<2x8x8xf32>
    %205 = vector.extract_strided_slice %200 {offsets = [0, 16], sizes = [16, 8], strides = [1, 1]} : vector<16x32xf32> to vector<16x8xf32>
    %206 = vector.shape_cast %205 : vector<16x8xf32> to vector<2x8x8xf32>
    %207 = vector.extract_strided_slice %200 {offsets = [0, 24], sizes = [16, 8], strides = [1, 1]} : vector<16x32xf32> to vector<16x8xf32>
    %208 = vector.shape_cast %207 : vector<16x8xf32> to vector<2x8x8xf32>
    %209 = tpu.concatenate %202, %204, %206, %208 in 0 : vector<2x8x8xf32>, vector<2x8x8xf32>, vector<2x8x8xf32>, vector<2x8x8xf32> -> vector<8x8x8xf32>
    %210 = vector.extract_strided_slice %189 {offsets = [0, 64], sizes = [16, 32], strides = [1, 1]} : vector<16x96xf32> to vector<16x32xf32>
    %211 = vector.extract_strided_slice %210 {offsets = [0, 0], sizes = [16, 8], strides = [1, 1]} : vector<16x32xf32> to vector<16x8xf32>
    %212 = vector.shape_cast %211 : vector<16x8xf32> to vector<2x8x8xf32>
    %213 = vector.extract_strided_slice %210 {offsets = [0, 8], sizes = [16, 8], strides = [1, 1]} : vector<16x32xf32> to vector<16x8xf32>
    %214 = vector.shape_cast %213 : vector<16x8xf32> to vector<2x8x8xf32>
    %215 = vector.extract_strided_slice %210 {offsets = [0, 16], sizes = [16, 8], strides = [1, 1]} : vector<16x32xf32> to vector<16x8xf32>
    %216 = vector.shape_cast %215 : vector<16x8xf32> to vector<2x8x8xf32>
    %217 = vector.extract_strided_slice %210 {offsets = [0, 24], sizes = [16, 8], strides = [1, 1]} : vector<16x32xf32> to vector<16x8xf32>
    %218 = vector.shape_cast %217 : vector<16x8xf32> to vector<2x8x8xf32>
    %219 = tpu.concatenate %212, %214, %216, %218 in 0 : vector<2x8x8xf32>, vector<2x8x8xf32>, vector<2x8x8xf32>, vector<2x8x8xf32> -> vector<8x8x8xf32>
    "tpu.trace_start"() <{level = 10 : i32, message = "ntd,nsd->nts"}> : () -> ()
    %cst_80 = arith.constant dense<0.000000e+00> : vector<8x8x8xf32>
    %220 = tpu.matmul %199, %209, %cst_80 {dimension_numbers = #tpu.dot_dimension_numbers<[2], [2], [1], [1], [0, 0, 0, 1, 1, 1], [0], [0]>} : vector<8x8x8xf32>, vector<8x8x8xf32>, vector<8x8x8xf32> -> vector<8x8x8xf32>
    "tpu.trace_stop"() : () -> ()
    %cst_81 = arith.constant 0.176776692 : f32
    %221 = vector.broadcast %cst_81 : f32 to vector<8x8x8xf32>
    %222 = arith.mulf %220, %221 : vector<8x8x8xf32>
    %223 = vector.shape_cast %15 : vector<8x8xf32> to vector<1x8x8xf32>
    %224 = vector.broadcast %223 : vector<1x8x8xf32> to vector<8x8x8xf32>
    %225 = arith.addf %222, %224 : vector<8x8x8xf32>
    %cst_82 = arith.constant dense<0xFF800000> : vector<8x8xf32>
    %226 = vector.multi_reduction <maximumf>, %225, %cst_82 [2] : vector<8x8x8xf32> to vector<8x8xf32>
    %227 = vector.shape_cast %226 : vector<8x8xf32> to vector<8x8x1xf32>
    %228 = vector.broadcast %227 : vector<8x8x1xf32> to vector<8x8x8xf32>
    %229 = arith.subf %225, %228 : vector<8x8x8xf32>
    %230 = math.exp %229 : vector<8x8x8xf32>
    %cst_83 = arith.constant dense<0.000000e+00> : vector<8x8xf32>
    %231 = vector.multi_reduction <add>, %230, %cst_83 [2] : vector<8x8x8xf32> to vector<8x8xf32>
    %232 = vector.shape_cast %231 : vector<8x8xf32> to vector<8x8x1xf32>
    %233 = vector.broadcast %232 : vector<8x8x1xf32> to vector<8x8x8xf32>
    %234 = arith.divf %230, %233 : vector<8x8x8xf32>
    "tpu.trace_start"() <{level = 10 : i32, message = "nts,nsd->ntd"}> : () -> ()
    %cst_84 = arith.constant dense<0.000000e+00> : vector<8x8x8xf32>
    %235 = tpu.matmul %234, %219, %cst_84 {dimension_numbers = #tpu.dot_dimension_numbers<[2], [1], [1], [2], [0, 0, 0, 1, 1, 2], [0], [0]>} : vector<8x8x8xf32>, vector<8x8x8xf32>, vector<8x8x8xf32> -> vector<8x8x8xf32>
    "tpu.trace_stop"() : () -> ()
    %236 = vector.extract_strided_slice %235 {offsets = [0, 0, 0], sizes = [2, 8, 8], strides = [1, 1, 1]} : vector<8x8x8xf32> to vector<2x8x8xf32>
    %237 = vector.shape_cast %236 : vector<2x8x8xf32> to vector<16x8xf32>
    %238 = vector.extract_strided_slice %235 {offsets = [2, 0, 0], sizes = [2, 8, 8], strides = [1, 1, 1]} : vector<8x8x8xf32> to vector<2x8x8xf32>
    %239 = vector.shape_cast %238 : vector<2x8x8xf32> to vector<16x8xf32>
    %240 = vector.extract_strided_slice %235 {offsets = [4, 0, 0], sizes = [2, 8, 8], strides = [1, 1, 1]} : vector<8x8x8xf32> to vector<2x8x8xf32>
    %241 = vector.shape_cast %240 : vector<2x8x8xf32> to vector<16x8xf32>
    %242 = vector.extract_strided_slice %235 {offsets = [6, 0, 0], sizes = [2, 8, 8], strides = [1, 1, 1]} : vector<8x8x8xf32> to vector<2x8x8xf32>
    %243 = vector.shape_cast %242 : vector<2x8x8xf32> to vector<16x8xf32>
    %244 = tpu.concatenate %237, %239, %241, %243 in 1 : vector<16x8xf32>, vector<16x8xf32>, vector<16x8xf32>, vector<16x8xf32> -> vector<16x32xf32>
    %245 = arith.truncf %244 : vector<16x32xf32> to vector<16x32xbf16>
    %c1_85 = arith.constant 1 : index
    %c0_86 = arith.constant 0 : index
    %c0_87 = arith.constant 0 : index
    %246 = vector.load %arg7[%c1_85, %c0_86, %c0_87] : memref<6x32x32xbf16, #tpu.memory_space<vmem>>, vector<1x32x32xbf16>
    %247 = vector.shape_cast %246 : vector<1x32x32xbf16> to vector<32x32xbf16>
    %cst_88 = arith.constant dense<0.000000e+00> : vector<16x32xf32>
    %248 = tpu.matmul %245, %247, %cst_88 {dimension_numbers = #tpu.dot_dimension_numbers<[1], [0], [0], [1], [0, 0, 1, 1], [], []>} : vector<16x32xbf16>, vector<32x32xbf16>, vector<16x32xf32> -> vector<16x32xf32>
    %c1_89 = arith.constant 1 : index
    %c0_90 = arith.constant 0 : index
    %c0_91 = arith.constant 0 : index
    %249 = vector.load %arg8[%c1_89, %c0_90, %c0_91] : memref<6x1x32xf32, #tpu.memory_space<vmem>>, vector<1x1x32xf32>
    %250 = vector.shape_cast %249 : vector<1x1x32xf32> to vector<1x32xf32>
    %251 = vector.broadcast %250 : vector<1x32xf32> to vector<16x32xf32>
    %252 = arith.addf %248, %251 : vector<16x32xf32>
    %253 = arith.addf %156, %252 : vector<16x32xf32>
    %c1_92 = arith.constant 1 : index
    %c0_93 = arith.constant 0 : index
    %c0_94 = arith.constant 0 : index
    %254 = vector.load %arg9[%c1_92, %c0_93, %c0_94] : memref<6x1x32xf32, #tpu.memory_space<vmem>>, vector<1x1x32xf32>
    %255 = vector.shape_cast %254 : vector<1x1x32xf32> to vector<1x32xf32>
    %c1_95 = arith.constant 1 : index
    %c0_96 = arith.constant 0 : index
    %c0_97 = arith.constant 0 : index
    %256 = vector.load %arg10[%c1_95, %c0_96, %c0_97] : memref<6x1x32xf32, #tpu.memory_space<vmem>>, vector<1x1x32xf32>
    %257 = vector.shape_cast %256 : vector<1x1x32xf32> to vector<1x32xf32>
    %cst_98 = arith.constant dense<0.000000e+00> : vector<16xf32>
    %258 = vector.multi_reduction <add>, %253, %cst_98 [1] : vector<16x32xf32> to vector<16xf32>
    %259 = vector.shape_cast %258 : vector<16xf32> to vector<16x1xf32>
    %cst_99 = arith.constant 3.200000e+01 : f32
    %260 = vector.broadcast %cst_99 : f32 to vector<16x1xf32>
    %261 = arith.divf %259, %260 : vector<16x1xf32>
    %262 = vector.broadcast %261 : vector<16x1xf32> to vector<16x32xf32>
    %263 = arith.subf %253, %262 : vector<16x32xf32>
    %264 = arith.mulf %263, %263 : vector<16x32xf32>
    %cst_100 = arith.constant dense<0.000000e+00> : vector<16xf32>
    %265 = vector.multi_reduction <add>, %264, %cst_100 [1] : vector<16x32xf32> to vector<16xf32>
    %266 = vector.shape_cast %265 : vector<16xf32> to vector<16x1xf32>
    %cst_101 = arith.constant 0.0322580636 : f32
    %267 = vector.broadcast %cst_101 : f32 to vector<16x1xf32>
    %268 = arith.mulf %266, %267 : vector<16x1xf32>
    %269 = vector.broadcast %261 : vector<16x1xf32> to vector<16x32xf32>
    %270 = arith.subf %253, %269 : vector<16x32xf32>
    %cst_102 = arith.constant 9.99999996E-13 : f32
    %271 = vector.broadcast %cst_102 : f32 to vector<16x1xf32>
    %272 = arith.addf %268, %271 : vector<16x1xf32>
    %273 = vector.broadcast %272 : vector<16x1xf32> to vector<16x32xf32>
    %274 = arith.divf %270, %273 : vector<16x32xf32>
    %275 = vector.broadcast %255 : vector<1x32xf32> to vector<16x32xf32>
    %276 = arith.mulf %275, %274 : vector<16x32xf32>
    %277 = vector.broadcast %257 : vector<1x32xf32> to vector<16x32xf32>
    %278 = arith.addf %276, %277 : vector<16x32xf32>
    %279 = arith.truncf %278 : vector<16x32xf32> to vector<16x32xbf16>
    %c1_103 = arith.constant 1 : index
    %c0_104 = arith.constant 0 : index
    %c0_105 = arith.constant 0 : index
    %280 = vector.load %arg11[%c1_103, %c0_104, %c0_105] : memref<6x32x128xbf16, #tpu.memory_space<vmem>>, vector<1x32x128xbf16>
    %281 = vector.shape_cast %280 : vector<1x32x128xbf16> to vector<32x128xbf16>
    %cst_106 = arith.constant dense<0.000000e+00> : vector<16x128xf32>
    %282 = tpu.matmul %279, %281, %cst_106 {dimension_numbers = #tpu.dot_dimension_numbers<[1], [0], [0], [1], [0, 0, 1, 1], [], []>} : vector<16x32xbf16>, vector<32x128xbf16>, vector<16x128xf32> -> vector<16x128xf32>
    %c1_107 = arith.constant 1 : index
    %c0_108 = arith.constant 0 : index
    %c0_109 = arith.constant 0 : index
    %283 = vector.load %arg12[%c1_107, %c0_108, %c0_109] : memref<6x1x128xf32, #tpu.memory_space<vmem>>, vector<1x1x128xf32>
    %284 = vector.shape_cast %283 : vector<1x1x128xf32> to vector<1x128xf32>
    %285 = vector.broadcast %284 : vector<1x128xf32> to vector<16x128xf32>
    %286 = arith.addf %282, %285 : vector<16x128xf32>
    %cst_110 = arith.constant 0.000000e+00 : f32
    %287 = vector.broadcast %cst_110 : f32 to vector<16x128xf32>
    %288 = arith.maximumf %286, %287 : vector<16x128xf32>
    %289 = arith.truncf %288 : vector<16x128xf32> to vector<16x128xbf16>
    %c1_111 = arith.constant 1 : index
    %c0_112 = arith.constant 0 : index
    %c0_113 = arith.constant 0 : index
    %290 = vector.load %arg13[%c1_111, %c0_112, %c0_113] : memref<6x128x32xbf16, #tpu.memory_space<vmem>>, vector<1x128x32xbf16>
    %291 = vector.shape_cast %290 : vector<1x128x32xbf16> to vector<128x32xbf16>
    %cst_114 = arith.constant dense<0.000000e+00> : vector<16x32xf32>
    %292 = tpu.matmul %289, %291, %cst_114 {dimension_numbers = #tpu.dot_dimension_numbers<[1], [0], [0], [1], [0, 0, 1, 1], [], []>} : vector<16x128xbf16>, vector<128x32xbf16>, vector<16x32xf32> -> vector<16x32xf32>
    %c1_115 = arith.constant 1 : index
    %c0_116 = arith.constant 0 : index
    %c0_117 = arith.constant 0 : index
    %293 = vector.load %arg14[%c1_115, %c0_116, %c0_117] : memref<6x1x32xf32, #tpu.memory_space<vmem>>, vector<1x1x32xf32>
    %294 = vector.shape_cast %293 : vector<1x1x32xf32> to vector<1x32xf32>
    %295 = vector.broadcast %294 : vector<1x32xf32> to vector<16x32xf32>
    %296 = arith.addf %292, %295 : vector<16x32xf32>
    %297 = arith.addf %156, %296 : vector<16x32xf32>
    %c2 = arith.constant 2 : index
    %c0_118 = arith.constant 0 : index
    %c0_119 = arith.constant 0 : index
    %298 = vector.load %arg3[%c2, %c0_118, %c0_119] : memref<6x1x32xf32, #tpu.memory_space<vmem>>, vector<1x1x32xf32>
    %299 = vector.shape_cast %298 : vector<1x1x32xf32> to vector<1x32xf32>
    %c2_120 = arith.constant 2 : index
    %c0_121 = arith.constant 0 : index
    %c0_122 = arith.constant 0 : index
    %300 = vector.load %arg4[%c2_120, %c0_121, %c0_122] : memref<6x1x32xf32, #tpu.memory_space<vmem>>, vector<1x1x32xf32>
    %301 = vector.shape_cast %300 : vector<1x1x32xf32> to vector<1x32xf32>
    %cst_123 = arith.constant dense<0.000000e+00> : vector<16xf32>
    %302 = vector.multi_reduction <add>, %297, %cst_123 [1] : vector<16x32xf32> to vector<16xf32>
    %303 = vector.shape_cast %302 : vector<16xf32> to vector<16x1xf32>
    %cst_124 = arith.constant 3.200000e+01 : f32
    %304 = vector.broadcast %cst_124 : f32 to vector<16x1xf32>
    %305 = arith.divf %303, %304 : vector<16x1xf32>
    %306 = vector.broadcast %305 : vector<16x1xf32> to vector<16x32xf32>
    %307 = arith.subf %297, %306 : vector<16x32xf32>
    %308 = arith.mulf %307, %307 : vector<16x32xf32>
    %cst_125 = arith.constant dense<0.000000e+00> : vector<16xf32>
    %309 = vector.multi_reduction <add>, %308, %cst_125 [1] : vector<16x32xf32> to vector<16xf32>
    %310 = vector.shape_cast %309 : vector<16xf32> to vector<16x1xf32>
    %cst_126 = arith.constant 0.0322580636 : f32
    %311 = vector.broadcast %cst_126 : f32 to vector<16x1xf32>
    %312 = arith.mulf %310, %311 : vector<16x1xf32>
    %313 = vector.broadcast %305 : vector<16x1xf32> to vector<16x32xf32>
    %314 = arith.subf %297, %313 : vector<16x32xf32>
    %cst_127 = arith.constant 9.99999996E-13 : f32
    %315 = vector.broadcast %cst_127 : f32 to vector<16x1xf32>
    %316 = arith.addf %312, %315 : vector<16x1xf32>
    %317 = vector.broadcast %316 : vector<16x1xf32> to vector<16x32xf32>
    %318 = arith.divf %314, %317 : vector<16x32xf32>
    %319 = vector.broadcast %299 : vector<1x32xf32> to vector<16x32xf32>
    %320 = arith.mulf %319, %318 : vector<16x32xf32>
    %321 = vector.broadcast %301 : vector<1x32xf32> to vector<16x32xf32>
    %322 = arith.addf %320, %321 : vector<16x32xf32>
    %323 = arith.truncf %322 : vector<16x32xf32> to vector<16x32xbf16>
    %c2_128 = arith.constant 2 : index
    %c0_129 = arith.constant 0 : index
    %c0_130 = arith.constant 0 : index
    %324 = vector.load %arg5[%c2_128, %c0_129, %c0_130] : memref<6x32x96xbf16, #tpu.memory_space<vmem>>, vector<1x32x96xbf16>
    %325 = vector.shape_cast %324 : vector<1x32x96xbf16> to vector<32x96xbf16>
    %cst_131 = arith.constant dense<0.000000e+00> : vector<16x96xf32>
    %326 = tpu.matmul %323, %325, %cst_131 {dimension_numbers = #tpu.dot_dimension_numbers<[1], [0], [0], [1], [0, 0, 1, 1], [], []>} : vector<16x32xbf16>, vector<32x96xbf16>, vector<16x96xf32> -> vector<16x96xf32>
    %c2_132 = arith.constant 2 : index
    %c0_133 = arith.constant 0 : index
    %c0_134 = arith.constant 0 : index
    %327 = vector.load %arg6[%c2_132, %c0_133, %c0_134] : memref<6x1x96xf32, #tpu.memory_space<vmem>>, vector<1x1x96xf32>
    %328 = vector.shape_cast %327 : vector<1x1x96xf32> to vector<1x96xf32>
    %329 = vector.broadcast %328 : vector<1x96xf32> to vector<16x96xf32>
    %330 = arith.addf %326, %329 : vector<16x96xf32>
    %331 = vector.extract_strided_slice %330 {offsets = [0, 0], sizes = [16, 32], strides = [1, 1]} : vector<16x96xf32> to vector<16x32xf32>
    %332 = vector.extract_strided_slice %331 {offsets = [0, 0], sizes = [16, 8], strides = [1, 1]} : vector<16x32xf32> to vector<16x8xf32>
    %333 = vector.shape_cast %332 : vector<16x8xf32> to vector<2x8x8xf32>
    %334 = vector.extract_strided_slice %331 {offsets = [0, 8], sizes = [16, 8], strides = [1, 1]} : vector<16x32xf32> to vector<16x8xf32>
    %335 = vector.shape_cast %334 : vector<16x8xf32> to vector<2x8x8xf32>
    %336 = vector.extract_strided_slice %331 {offsets = [0, 16], sizes = [16, 8], strides = [1, 1]} : vector<16x32xf32> to vector<16x8xf32>
    %337 = vector.shape_cast %336 : vector<16x8xf32> to vector<2x8x8xf32>
    %338 = vector.extract_strided_slice %331 {offsets = [0, 24], sizes = [16, 8], strides = [1, 1]} : vector<16x32xf32> to vector<16x8xf32>
    %339 = vector.shape_cast %338 : vector<16x8xf32> to vector<2x8x8xf32>
    %340 = tpu.concatenate %333, %335, %337, %339 in 0 : vector<2x8x8xf32>, vector<2x8x8xf32>, vector<2x8x8xf32>, vector<2x8x8xf32> -> vector<8x8x8xf32>
    %341 = vector.extract_strided_slice %330 {offsets = [0, 32], sizes = [16, 32], strides = [1, 1]} : vector<16x96xf32> to vector<16x32xf32>
    %342 = vector.extract_strided_slice %341 {offsets = [0, 0], sizes = [16, 8], strides = [1, 1]} : vector<16x32xf32> to vector<16x8xf32>
    %343 = vector.shape_cast %342 : vector<16x8xf32> to vector<2x8x8xf32>
    %344 = vector.extract_strided_slice %341 {offsets = [0, 8], sizes = [16, 8], strides = [1, 1]} : vector<16x32xf32> to vector<16x8xf32>
    %345 = vector.shape_cast %344 : vector<16x8xf32> to vector<2x8x8xf32>
    %346 = vector.extract_strided_slice %341 {offsets = [0, 16], sizes = [16, 8], strides = [1, 1]} : vector<16x32xf32> to vector<16x8xf32>
    %347 = vector.shape_cast %346 : vector<16x8xf32> to vector<2x8x8xf32>
    %348 = vector.extract_strided_slice %341 {offsets = [0, 24], sizes = [16, 8], strides = [1, 1]} : vector<16x32xf32> to vector<16x8xf32>
    %349 = vector.shape_cast %348 : vector<16x8xf32> to vector<2x8x8xf32>
    %350 = tpu.concatenate %343, %345, %347, %349 in 0 : vector<2x8x8xf32>, vector<2x8x8xf32>, vector<2x8x8xf32>, vector<2x8x8xf32> -> vector<8x8x8xf32>
    %351 = vector.extract_strided_slice %330 {offsets = [0, 64], sizes = [16, 32], strides = [1, 1]} : vector<16x96xf32> to vector<16x32xf32>
    %352 = vector.extract_strided_slice %351 {offsets = [0, 0], sizes = [16, 8], strides = [1, 1]} : vector<16x32xf32> to vector<16x8xf32>
    %353 = vector.shape_cast %352 : vector<16x8xf32> to vector<2x8x8xf32>
    %354 = vector.extract_strided_slice %351 {offsets = [0, 8], sizes = [16, 8], strides = [1, 1]} : vector<16x32xf32> to vector<16x8xf32>
    %355 = vector.shape_cast %354 : vector<16x8xf32> to vector<2x8x8xf32>
    %356 = vector.extract_strided_slice %351 {offsets = [0, 16], sizes = [16, 8], strides = [1, 1]} : vector<16x32xf32> to vector<16x8xf32>
    %357 = vector.shape_cast %356 : vector<16x8xf32> to vector<2x8x8xf32>
    %358 = vector.extract_strided_slice %351 {offsets = [0, 24], sizes = [16, 8], strides = [1, 1]} : vector<16x32xf32> to vector<16x8xf32>
    %359 = vector.shape_cast %358 : vector<16x8xf32> to vector<2x8x8xf32>
    %360 = tpu.concatenate %353, %355, %357, %359 in 0 : vector<2x8x8xf32>, vector<2x8x8xf32>, vector<2x8x8xf32>, vector<2x8x8xf32> -> vector<8x8x8xf32>
    "tpu.trace_start"() <{level = 10 : i32, message = "ntd,nsd->nts"}> : () -> ()
    %cst_135 = arith.constant dense<0.000000e+00> : vector<8x8x8xf32>
    %361 = tpu.matmul %340, %350, %cst_135 {dimension_numbers = #tpu.dot_dimension_numbers<[2], [2], [1], [1], [0, 0, 0, 1, 1, 1], [0], [0]>} : vector<8x8x8xf32>, vector<8x8x8xf32>, vector<8x8x8xf32> -> vector<8x8x8xf32>
    "tpu.trace_stop"() : () -> ()
    %cst_136 = arith.constant 0.176776692 : f32
    %362 = vector.broadcast %cst_136 : f32 to vector<8x8x8xf32>
    %363 = arith.mulf %361, %362 : vector<8x8x8xf32>
    %364 = vector.shape_cast %15 : vector<8x8xf32> to vector<1x8x8xf32>
    %365 = vector.broadcast %364 : vector<1x8x8xf32> to vector<8x8x8xf32>
    %366 = arith.addf %363, %365 : vector<8x8x8xf32>
    %cst_137 = arith.constant dense<0xFF800000> : vector<8x8xf32>
    %367 = vector.multi_reduction <maximumf>, %366, %cst_137 [2] : vector<8x8x8xf32> to vector<8x8xf32>
    %368 = vector.shape_cast %367 : vector<8x8xf32> to vector<8x8x1xf32>
    %369 = vector.broadcast %368 : vector<8x8x1xf32> to vector<8x8x8xf32>
    %370 = arith.subf %366, %369 : vector<8x8x8xf32>
    %371 = math.exp %370 : vector<8x8x8xf32>
    %cst_138 = arith.constant dense<0.000000e+00> : vector<8x8xf32>
    %372 = vector.multi_reduction <add>, %371, %cst_138 [2] : vector<8x8x8xf32> to vector<8x8xf32>
    %373 = vector.shape_cast %372 : vector<8x8xf32> to vector<8x8x1xf32>
    %374 = vector.broadcast %373 : vector<8x8x1xf32> to vector<8x8x8xf32>
    %375 = arith.divf %371, %374 : vector<8x8x8xf32>
    "tpu.trace_start"() <{level = 10 : i32, message = "nts,nsd->ntd"}> : () -> ()
    %cst_139 = arith.constant dense<0.000000e+00> : vector<8x8x8xf32>
    %376 = tpu.matmul %375, %360, %cst_139 {dimension_numbers = #tpu.dot_dimension_numbers<[2], [1], [1], [2], [0, 0, 0, 1, 1, 2], [0], [0]>} : vector<8x8x8xf32>, vector<8x8x8xf32>, vector<8x8x8xf32> -> vector<8x8x8xf32>
    "tpu.trace_stop"() : () -> ()
    %377 = vector.extract_strided_slice %376 {offsets = [0, 0, 0], sizes = [2, 8, 8], strides = [1, 1, 1]} : vector<8x8x8xf32> to vector<2x8x8xf32>
    %378 = vector.shape_cast %377 : vector<2x8x8xf32> to vector<16x8xf32>
    %379 = vector.extract_strided_slice %376 {offsets = [2, 0, 0], sizes = [2, 8, 8], strides = [1, 1, 1]} : vector<8x8x8xf32> to vector<2x8x8xf32>
    %380 = vector.shape_cast %379 : vector<2x8x8xf32> to vector<16x8xf32>
    %381 = vector.extract_strided_slice %376 {offsets = [4, 0, 0], sizes = [2, 8, 8], strides = [1, 1, 1]} : vector<8x8x8xf32> to vector<2x8x8xf32>
    %382 = vector.shape_cast %381 : vector<2x8x8xf32> to vector<16x8xf32>
    %383 = vector.extract_strided_slice %376 {offsets = [6, 0, 0], sizes = [2, 8, 8], strides = [1, 1, 1]} : vector<8x8x8xf32> to vector<2x8x8xf32>
    %384 = vector.shape_cast %383 : vector<2x8x8xf32> to vector<16x8xf32>
    %385 = tpu.concatenate %378, %380, %382, %384 in 1 : vector<16x8xf32>, vector<16x8xf32>, vector<16x8xf32>, vector<16x8xf32> -> vector<16x32xf32>
    %386 = arith.truncf %385 : vector<16x32xf32> to vector<16x32xbf16>
    %c2_140 = arith.constant 2 : index
    %c0_141 = arith.constant 0 : index
    %c0_142 = arith.constant 0 : index
    %387 = vector.load %arg7[%c2_140, %c0_141, %c0_142] : memref<6x32x32xbf16, #tpu.memory_space<vmem>>, vector<1x32x32xbf16>
    %388 = vector.shape_cast %387 : vector<1x32x32xbf16> to vector<32x32xbf16>
    %cst_143 = arith.constant dense<0.000000e+00> : vector<16x32xf32>
    %389 = tpu.matmul %386, %388, %cst_143 {dimension_numbers = #tpu.dot_dimension_numbers<[1], [0], [0], [1], [0, 0, 1, 1], [], []>} : vector<16x32xbf16>, vector<32x32xbf16>, vector<16x32xf32> -> vector<16x32xf32>
    %c2_144 = arith.constant 2 : index
    %c0_145 = arith.constant 0 : index
    %c0_146 = arith.constant 0 : index
    %390 = vector.load %arg8[%c2_144, %c0_145, %c0_146] : memref<6x1x32xf32, #tpu.memory_space<vmem>>, vector<1x1x32xf32>
    %391 = vector.shape_cast %390 : vector<1x1x32xf32> to vector<1x32xf32>
    %392 = vector.broadcast %391 : vector<1x32xf32> to vector<16x32xf32>
    %393 = arith.addf %389, %392 : vector<16x32xf32>
    %394 = arith.addf %297, %393 : vector<16x32xf32>
    %c2_147 = arith.constant 2 : index
    %c0_148 = arith.constant 0 : index
    %c0_149 = arith.constant 0 : index
    %395 = vector.load %arg9[%c2_147, %c0_148, %c0_149] : memref<6x1x32xf32, #tpu.memory_space<vmem>>, vector<1x1x32xf32>
    %396 = vector.shape_cast %395 : vector<1x1x32xf32> to vector<1x32xf32>
    %c2_150 = arith.constant 2 : index
    %c0_151 = arith.constant 0 : index
    %c0_152 = arith.constant 0 : index
    %397 = vector.load %arg10[%c2_150, %c0_151, %c0_152] : memref<6x1x32xf32, #tpu.memory_space<vmem>>, vector<1x1x32xf32>
    %398 = vector.shape_cast %397 : vector<1x1x32xf32> to vector<1x32xf32>
    %cst_153 = arith.constant dense<0.000000e+00> : vector<16xf32>
    %399 = vector.multi_reduction <add>, %394, %cst_153 [1] : vector<16x32xf32> to vector<16xf32>
    %400 = vector.shape_cast %399 : vector<16xf32> to vector<16x1xf32>
    %cst_154 = arith.constant 3.200000e+01 : f32
    %401 = vector.broadcast %cst_154 : f32 to vector<16x1xf32>
    %402 = arith.divf %400, %401 : vector<16x1xf32>
    %403 = vector.broadcast %402 : vector<16x1xf32> to vector<16x32xf32>
    %404 = arith.subf %394, %403 : vector<16x32xf32>
    %405 = arith.mulf %404, %404 : vector<16x32xf32>
    %cst_155 = arith.constant dense<0.000000e+00> : vector<16xf32>
    %406 = vector.multi_reduction <add>, %405, %cst_155 [1] : vector<16x32xf32> to vector<16xf32>
    %407 = vector.shape_cast %406 : vector<16xf32> to vector<16x1xf32>
    %cst_156 = arith.constant 0.0322580636 : f32
    %408 = vector.broadcast %cst_156 : f32 to vector<16x1xf32>
    %409 = arith.mulf %407, %408 : vector<16x1xf32>
    %410 = vector.broadcast %402 : vector<16x1xf32> to vector<16x32xf32>
    %411 = arith.subf %394, %410 : vector<16x32xf32>
    %cst_157 = arith.constant 9.99999996E-13 : f32
    %412 = vector.broadcast %cst_157 : f32 to vector<16x1xf32>
    %413 = arith.addf %409, %412 : vector<16x1xf32>
    %414 = vector.broadcast %413 : vector<16x1xf32> to vector<16x32xf32>
    %415 = arith.divf %411, %414 : vector<16x32xf32>
    %416 = vector.broadcast %396 : vector<1x32xf32> to vector<16x32xf32>
    %417 = arith.mulf %416, %415 : vector<16x32xf32>
    %418 = vector.broadcast %398 : vector<1x32xf32> to vector<16x32xf32>
    %419 = arith.addf %417, %418 : vector<16x32xf32>
    %420 = arith.truncf %419 : vector<16x32xf32> to vector<16x32xbf16>
    %c2_158 = arith.constant 2 : index
    %c0_159 = arith.constant 0 : index
    %c0_160 = arith.constant 0 : index
    %421 = vector.load %arg11[%c2_158, %c0_159, %c0_160] : memref<6x32x128xbf16, #tpu.memory_space<vmem>>, vector<1x32x128xbf16>
    %422 = vector.shape_cast %421 : vector<1x32x128xbf16> to vector<32x128xbf16>
    %cst_161 = arith.constant dense<0.000000e+00> : vector<16x128xf32>
    %423 = tpu.matmul %420, %422, %cst_161 {dimension_numbers = #tpu.dot_dimension_numbers<[1], [0], [0], [1], [0, 0, 1, 1], [], []>} : vector<16x32xbf16>, vector<32x128xbf16>, vector<16x128xf32> -> vector<16x128xf32>
    %c2_162 = arith.constant 2 : index
    %c0_163 = arith.constant 0 : index
    %c0_164 = arith.constant 0 : index
    %424 = vector.load %arg12[%c2_162, %c0_163, %c0_164] : memref<6x1x128xf32, #tpu.memory_space<vmem>>, vector<1x1x128xf32>
    %425 = vector.shape_cast %424 : vector<1x1x128xf32> to vector<1x128xf32>
    %426 = vector.broadcast %425 : vector<1x128xf32> to vector<16x128xf32>
    %427 = arith.addf %423, %426 : vector<16x128xf32>
    %cst_165 = arith.constant 0.000000e+00 : f32
    %428 = vector.broadcast %cst_165 : f32 to vector<16x128xf32>
    %429 = arith.maximumf %427, %428 : vector<16x128xf32>
    %430 = arith.truncf %429 : vector<16x128xf32> to vector<16x128xbf16>
    %c2_166 = arith.constant 2 : index
    %c0_167 = arith.constant 0 : index
    %c0_168 = arith.constant 0 : index
    %431 = vector.load %arg13[%c2_166, %c0_167, %c0_168] : memref<6x128x32xbf16, #tpu.memory_space<vmem>>, vector<1x128x32xbf16>
    %432 = vector.shape_cast %431 : vector<1x128x32xbf16> to vector<128x32xbf16>
    %cst_169 = arith.constant dense<0.000000e+00> : vector<16x32xf32>
    %433 = tpu.matmul %430, %432, %cst_169 {dimension_numbers = #tpu.dot_dimension_numbers<[1], [0], [0], [1], [0, 0, 1, 1], [], []>} : vector<16x128xbf16>, vector<128x32xbf16>, vector<16x32xf32> -> vector<16x32xf32>
    %c2_170 = arith.constant 2 : index
    %c0_171 = arith.constant 0 : index
    %c0_172 = arith.constant 0 : index
    %434 = vector.load %arg14[%c2_170, %c0_171, %c0_172] : memref<6x1x32xf32, #tpu.memory_space<vmem>>, vector<1x1x32xf32>
    %435 = vector.shape_cast %434 : vector<1x1x32xf32> to vector<1x32xf32>
    %436 = vector.broadcast %435 : vector<1x32xf32> to vector<16x32xf32>
    %437 = arith.addf %433, %436 : vector<16x32xf32>
    %438 = arith.addf %297, %437 : vector<16x32xf32>
    %c3 = arith.constant 3 : index
    %c0_173 = arith.constant 0 : index
    %c0_174 = arith.constant 0 : index
    %439 = vector.load %arg3[%c3, %c0_173, %c0_174] : memref<6x1x32xf32, #tpu.memory_space<vmem>>, vector<1x1x32xf32>
    %440 = vector.shape_cast %439 : vector<1x1x32xf32> to vector<1x32xf32>
    %c3_175 = arith.constant 3 : index
    %c0_176 = arith.constant 0 : index
    %c0_177 = arith.constant 0 : index
    %441 = vector.load %arg4[%c3_175, %c0_176, %c0_177] : memref<6x1x32xf32, #tpu.memory_space<vmem>>, vector<1x1x32xf32>
    %442 = vector.shape_cast %441 : vector<1x1x32xf32> to vector<1x32xf32>
    %cst_178 = arith.constant dense<0.000000e+00> : vector<16xf32>
    %443 = vector.multi_reduction <add>, %438, %cst_178 [1] : vector<16x32xf32> to vector<16xf32>
    %444 = vector.shape_cast %443 : vector<16xf32> to vector<16x1xf32>
    %cst_179 = arith.constant 3.200000e+01 : f32
    %445 = vector.broadcast %cst_179 : f32 to vector<16x1xf32>
    %446 = arith.divf %444, %445 : vector<16x1xf32>
    %447 = vector.broadcast %446 : vector<16x1xf32> to vector<16x32xf32>
    %448 = arith.subf %438, %447 : vector<16x32xf32>
    %449 = arith.mulf %448, %448 : vector<16x32xf32>
    %cst_180 = arith.constant dense<0.000000e+00> : vector<16xf32>
    %450 = vector.multi_reduction <add>, %449, %cst_180 [1] : vector<16x32xf32> to vector<16xf32>
    %451 = vector.shape_cast %450 : vector<16xf32> to vector<16x1xf32>
    %cst_181 = arith.constant 0.0322580636 : f32
    %452 = vector.broadcast %cst_181 : f32 to vector<16x1xf32>
    %453 = arith.mulf %451, %452 : vector<16x1xf32>
    %454 = vector.broadcast %446 : vector<16x1xf32> to vector<16x32xf32>
    %455 = arith.subf %438, %454 : vector<16x32xf32>
    %cst_182 = arith.constant 9.99999996E-13 : f32
    %456 = vector.broadcast %cst_182 : f32 to vector<16x1xf32>
    %457 = arith.addf %453, %456 : vector<16x1xf32>
    %458 = vector.broadcast %457 : vector<16x1xf32> to vector<16x32xf32>
    %459 = arith.divf %455, %458 : vector<16x32xf32>
    %460 = vector.broadcast %440 : vector<1x32xf32> to vector<16x32xf32>
    %461 = arith.mulf %460, %459 : vector<16x32xf32>
    %462 = vector.broadcast %442 : vector<1x32xf32> to vector<16x32xf32>
    %463 = arith.addf %461, %462 : vector<16x32xf32>
    %464 = arith.truncf %463 : vector<16x32xf32> to vector<16x32xbf16>
    %c3_183 = arith.constant 3 : index
    %c0_184 = arith.constant 0 : index
    %c0_185 = arith.constant 0 : index
    %465 = vector.load %arg5[%c3_183, %c0_184, %c0_185] : memref<6x32x96xbf16, #tpu.memory_space<vmem>>, vector<1x32x96xbf16>
    %466 = vector.shape_cast %465 : vector<1x32x96xbf16> to vector<32x96xbf16>
    %cst_186 = arith.constant dense<0.000000e+00> : vector<16x96xf32>
    %467 = tpu.matmul %464, %466, %cst_186 {dimension_numbers = #tpu.dot_dimension_numbers<[1], [0], [0], [1], [0, 0, 1, 1], [], []>} : vector<16x32xbf16>, vector<32x96xbf16>, vector<16x96xf32> -> vector<16x96xf32>
    %c3_187 = arith.constant 3 : index
    %c0_188 = arith.constant 0 : index
    %c0_189 = arith.constant 0 : index
    %468 = vector.load %arg6[%c3_187, %c0_188, %c0_189] : memref<6x1x96xf32, #tpu.memory_space<vmem>>, vector<1x1x96xf32>
    %469 = vector.shape_cast %468 : vector<1x1x96xf32> to vector<1x96xf32>
    %470 = vector.broadcast %469 : vector<1x96xf32> to vector<16x96xf32>
    %471 = arith.addf %467, %470 : vector<16x96xf32>
    %472 = vector.extract_strided_slice %471 {offsets = [0, 0], sizes = [16, 32], strides = [1, 1]} : vector<16x96xf32> to vector<16x32xf32>
    %473 = vector.extract_strided_slice %472 {offsets = [0, 0], sizes = [16, 8], strides = [1, 1]} : vector<16x32xf32> to vector<16x8xf32>
    %474 = vector.shape_cast %473 : vector<16x8xf32> to vector<2x8x8xf32>
    %475 = vector.extract_strided_slice %472 {offsets = [0, 8], sizes = [16, 8], strides = [1, 1]} : vector<16x32xf32> to vector<16x8xf32>
    %476 = vector.shape_cast %475 : vector<16x8xf32> to vector<2x8x8xf32>
    %477 = vector.extract_strided_slice %472 {offsets = [0, 16], sizes = [16, 8], strides = [1, 1]} : vector<16x32xf32> to vector<16x8xf32>
    %478 = vector.shape_cast %477 : vector<16x8xf32> to vector<2x8x8xf32>
    %479 = vector.extract_strided_slice %472 {offsets = [0, 24], sizes = [16, 8], strides = [1, 1]} : vector<16x32xf32> to vector<16x8xf32>
    %480 = vector.shape_cast %479 : vector<16x8xf32> to vector<2x8x8xf32>
    %481 = tpu.concatenate %474, %476, %478, %480 in 0 : vector<2x8x8xf32>, vector<2x8x8xf32>, vector<2x8x8xf32>, vector<2x8x8xf32> -> vector<8x8x8xf32>
    %482 = vector.extract_strided_slice %471 {offsets = [0, 32], sizes = [16, 32], strides = [1, 1]} : vector<16x96xf32> to vector<16x32xf32>
    %483 = vector.extract_strided_slice %482 {offsets = [0, 0], sizes = [16, 8], strides = [1, 1]} : vector<16x32xf32> to vector<16x8xf32>
    %484 = vector.shape_cast %483 : vector<16x8xf32> to vector<2x8x8xf32>
    %485 = vector.extract_strided_slice %482 {offsets = [0, 8], sizes = [16, 8], strides = [1, 1]} : vector<16x32xf32> to vector<16x8xf32>
    %486 = vector.shape_cast %485 : vector<16x8xf32> to vector<2x8x8xf32>
    %487 = vector.extract_strided_slice %482 {offsets = [0, 16], sizes = [16, 8], strides = [1, 1]} : vector<16x32xf32> to vector<16x8xf32>
    %488 = vector.shape_cast %487 : vector<16x8xf32> to vector<2x8x8xf32>
    %489 = vector.extract_strided_slice %482 {offsets = [0, 24], sizes = [16, 8], strides = [1, 1]} : vector<16x32xf32> to vector<16x8xf32>
    %490 = vector.shape_cast %489 : vector<16x8xf32> to vector<2x8x8xf32>
    %491 = tpu.concatenate %484, %486, %488, %490 in 0 : vector<2x8x8xf32>, vector<2x8x8xf32>, vector<2x8x8xf32>, vector<2x8x8xf32> -> vector<8x8x8xf32>
    %492 = vector.extract_strided_slice %471 {offsets = [0, 64], sizes = [16, 32], strides = [1, 1]} : vector<16x96xf32> to vector<16x32xf32>
    %493 = vector.extract_strided_slice %492 {offsets = [0, 0], sizes = [16, 8], strides = [1, 1]} : vector<16x32xf32> to vector<16x8xf32>
    %494 = vector.shape_cast %493 : vector<16x8xf32> to vector<2x8x8xf32>
    %495 = vector.extract_strided_slice %492 {offsets = [0, 8], sizes = [16, 8], strides = [1, 1]} : vector<16x32xf32> to vector<16x8xf32>
    %496 = vector.shape_cast %495 : vector<16x8xf32> to vector<2x8x8xf32>
    %497 = vector.extract_strided_slice %492 {offsets = [0, 16], sizes = [16, 8], strides = [1, 1]} : vector<16x32xf32> to vector<16x8xf32>
    %498 = vector.shape_cast %497 : vector<16x8xf32> to vector<2x8x8xf32>
    %499 = vector.extract_strided_slice %492 {offsets = [0, 24], sizes = [16, 8], strides = [1, 1]} : vector<16x32xf32> to vector<16x8xf32>
    %500 = vector.shape_cast %499 : vector<16x8xf32> to vector<2x8x8xf32>
    %501 = tpu.concatenate %494, %496, %498, %500 in 0 : vector<2x8x8xf32>, vector<2x8x8xf32>, vector<2x8x8xf32>, vector<2x8x8xf32> -> vector<8x8x8xf32>
    "tpu.trace_start"() <{level = 10 : i32, message = "ntd,nsd->nts"}> : () -> ()
    %cst_190 = arith.constant dense<0.000000e+00> : vector<8x8x8xf32>
    %502 = tpu.matmul %481, %491, %cst_190 {dimension_numbers = #tpu.dot_dimension_numbers<[2], [2], [1], [1], [0, 0, 0, 1, 1, 1], [0], [0]>} : vector<8x8x8xf32>, vector<8x8x8xf32>, vector<8x8x8xf32> -> vector<8x8x8xf32>
    "tpu.trace_stop"() : () -> ()
    %cst_191 = arith.constant 0.176776692 : f32
    %503 = vector.broadcast %cst_191 : f32 to vector<8x8x8xf32>
    %504 = arith.mulf %502, %503 : vector<8x8x8xf32>
    %505 = vector.shape_cast %15 : vector<8x8xf32> to vector<1x8x8xf32>
    %506 = vector.broadcast %505 : vector<1x8x8xf32> to vector<8x8x8xf32>
    %507 = arith.addf %504, %506 : vector<8x8x8xf32>
    %cst_192 = arith.constant dense<0xFF800000> : vector<8x8xf32>
    %508 = vector.multi_reduction <maximumf>, %507, %cst_192 [2] : vector<8x8x8xf32> to vector<8x8xf32>
    %509 = vector.shape_cast %508 : vector<8x8xf32> to vector<8x8x1xf32>
    %510 = vector.broadcast %509 : vector<8x8x1xf32> to vector<8x8x8xf32>
    %511 = arith.subf %507, %510 : vector<8x8x8xf32>
    %512 = math.exp %511 : vector<8x8x8xf32>
    %cst_193 = arith.constant dense<0.000000e+00> : vector<8x8xf32>
    %513 = vector.multi_reduction <add>, %512, %cst_193 [2] : vector<8x8x8xf32> to vector<8x8xf32>
    %514 = vector.shape_cast %513 : vector<8x8xf32> to vector<8x8x1xf32>
    %515 = vector.broadcast %514 : vector<8x8x1xf32> to vector<8x8x8xf32>
    %516 = arith.divf %512, %515 : vector<8x8x8xf32>
    "tpu.trace_start"() <{level = 10 : i32, message = "nts,nsd->ntd"}> : () -> ()
    %cst_194 = arith.constant dense<0.000000e+00> : vector<8x8x8xf32>
    %517 = tpu.matmul %516, %501, %cst_194 {dimension_numbers = #tpu.dot_dimension_numbers<[2], [1], [1], [2], [0, 0, 0, 1, 1, 2], [0], [0]>} : vector<8x8x8xf32>, vector<8x8x8xf32>, vector<8x8x8xf32> -> vector<8x8x8xf32>
    "tpu.trace_stop"() : () -> ()
    %518 = vector.extract_strided_slice %517 {offsets = [0, 0, 0], sizes = [2, 8, 8], strides = [1, 1, 1]} : vector<8x8x8xf32> to vector<2x8x8xf32>
    %519 = vector.shape_cast %518 : vector<2x8x8xf32> to vector<16x8xf32>
    %520 = vector.extract_strided_slice %517 {offsets = [2, 0, 0], sizes = [2, 8, 8], strides = [1, 1, 1]} : vector<8x8x8xf32> to vector<2x8x8xf32>
    %521 = vector.shape_cast %520 : vector<2x8x8xf32> to vector<16x8xf32>
    %522 = vector.extract_strided_slice %517 {offsets = [4, 0, 0], sizes = [2, 8, 8], strides = [1, 1, 1]} : vector<8x8x8xf32> to vector<2x8x8xf32>
    %523 = vector.shape_cast %522 : vector<2x8x8xf32> to vector<16x8xf32>
    %524 = vector.extract_strided_slice %517 {offsets = [6, 0, 0], sizes = [2, 8, 8], strides = [1, 1, 1]} : vector<8x8x8xf32> to vector<2x8x8xf32>
    %525 = vector.shape_cast %524 : vector<2x8x8xf32> to vector<16x8xf32>
    %526 = tpu.concatenate %519, %521, %523, %525 in 1 : vector<16x8xf32>, vector<16x8xf32>, vector<16x8xf32>, vector<16x8xf32> -> vector<16x32xf32>
    %527 = arith.truncf %526 : vector<16x32xf32> to vector<16x32xbf16>
    %c3_195 = arith.constant 3 : index
    %c0_196 = arith.constant 0 : index
    %c0_197 = arith.constant 0 : index
    %528 = vector.load %arg7[%c3_195, %c0_196, %c0_197] : memref<6x32x32xbf16, #tpu.memory_space<vmem>>, vector<1x32x32xbf16>
    %529 = vector.shape_cast %528 : vector<1x32x32xbf16> to vector<32x32xbf16>
    %cst_198 = arith.constant dense<0.000000e+00> : vector<16x32xf32>
    %530 = tpu.matmul %527, %529, %cst_198 {dimension_numbers = #tpu.dot_dimension_numbers<[1], [0], [0], [1], [0, 0, 1, 1], [], []>} : vector<16x32xbf16>, vector<32x32xbf16>, vector<16x32xf32> -> vector<16x32xf32>
    %c3_199 = arith.constant 3 : index
    %c0_200 = arith.constant 0 : index
    %c0_201 = arith.constant 0 : index
    %531 = vector.load %arg8[%c3_199, %c0_200, %c0_201] : memref<6x1x32xf32, #tpu.memory_space<vmem>>, vector<1x1x32xf32>
    %532 = vector.shape_cast %531 : vector<1x1x32xf32> to vector<1x32xf32>
    %533 = vector.broadcast %532 : vector<1x32xf32> to vector<16x32xf32>
    %534 = arith.addf %530, %533 : vector<16x32xf32>
    %535 = arith.addf %438, %534 : vector<16x32xf32>
    %c3_202 = arith.constant 3 : index
    %c0_203 = arith.constant 0 : index
    %c0_204 = arith.constant 0 : index
    %536 = vector.load %arg9[%c3_202, %c0_203, %c0_204] : memref<6x1x32xf32, #tpu.memory_space<vmem>>, vector<1x1x32xf32>
    %537 = vector.shape_cast %536 : vector<1x1x32xf32> to vector<1x32xf32>
    %c3_205 = arith.constant 3 : index
    %c0_206 = arith.constant 0 : index
    %c0_207 = arith.constant 0 : index
    %538 = vector.load %arg10[%c3_205, %c0_206, %c0_207] : memref<6x1x32xf32, #tpu.memory_space<vmem>>, vector<1x1x32xf32>
    %539 = vector.shape_cast %538 : vector<1x1x32xf32> to vector<1x32xf32>
    %cst_208 = arith.constant dense<0.000000e+00> : vector<16xf32>
    %540 = vector.multi_reduction <add>, %535, %cst_208 [1] : vector<16x32xf32> to vector<16xf32>
    %541 = vector.shape_cast %540 : vector<16xf32> to vector<16x1xf32>
    %cst_209 = arith.constant 3.200000e+01 : f32
    %542 = vector.broadcast %cst_209 : f32 to vector<16x1xf32>
    %543 = arith.divf %541, %542 : vector<16x1xf32>
    %544 = vector.broadcast %543 : vector<16x1xf32> to vector<16x32xf32>
    %545 = arith.subf %535, %544 : vector<16x32xf32>
    %546 = arith.mulf %545, %545 : vector<16x32xf32>
    %cst_210 = arith.constant dense<0.000000e+00> : vector<16xf32>
    %547 = vector.multi_reduction <add>, %546, %cst_210 [1] : vector<16x32xf32> to vector<16xf32>
    %548 = vector.shape_cast %547 : vector<16xf32> to vector<16x1xf32>
    %cst_211 = arith.constant 0.0322580636 : f32
    %549 = vector.broadcast %cst_211 : f32 to vector<16x1xf32>
    %550 = arith.mulf %548, %549 : vector<16x1xf32>
    %551 = vector.broadcast %543 : vector<16x1xf32> to vector<16x32xf32>
    %552 = arith.subf %535, %551 : vector<16x32xf32>
    %cst_212 = arith.constant 9.99999996E-13 : f32
    %553 = vector.broadcast %cst_212 : f32 to vector<16x1xf32>
    %554 = arith.addf %550, %553 : vector<16x1xf32>
    %555 = vector.broadcast %554 : vector<16x1xf32> to vector<16x32xf32>
    %556 = arith.divf %552, %555 : vector<16x32xf32>
    %557 = vector.broadcast %537 : vector<1x32xf32> to vector<16x32xf32>
    %558 = arith.mulf %557, %556 : vector<16x32xf32>
    %559 = vector.broadcast %539 : vector<1x32xf32> to vector<16x32xf32>
    %560 = arith.addf %558, %559 : vector<16x32xf32>
    %561 = arith.truncf %560 : vector<16x32xf32> to vector<16x32xbf16>
    %c3_213 = arith.constant 3 : index
    %c0_214 = arith.constant 0 : index
    %c0_215 = arith.constant 0 : index
    %562 = vector.load %arg11[%c3_213, %c0_214, %c0_215] : memref<6x32x128xbf16, #tpu.memory_space<vmem>>, vector<1x32x128xbf16>
    %563 = vector.shape_cast %562 : vector<1x32x128xbf16> to vector<32x128xbf16>
    %cst_216 = arith.constant dense<0.000000e+00> : vector<16x128xf32>
    %564 = tpu.matmul %561, %563, %cst_216 {dimension_numbers = #tpu.dot_dimension_numbers<[1], [0], [0], [1], [0, 0, 1, 1], [], []>} : vector<16x32xbf16>, vector<32x128xbf16>, vector<16x128xf32> -> vector<16x128xf32>
    %c3_217 = arith.constant 3 : index
    %c0_218 = arith.constant 0 : index
    %c0_219 = arith.constant 0 : index
    %565 = vector.load %arg12[%c3_217, %c0_218, %c0_219] : memref<6x1x128xf32, #tpu.memory_space<vmem>>, vector<1x1x128xf32>
    %566 = vector.shape_cast %565 : vector<1x1x128xf32> to vector<1x128xf32>
    %567 = vector.broadcast %566 : vector<1x128xf32> to vector<16x128xf32>
    %568 = arith.addf %564, %567 : vector<16x128xf32>
    %cst_220 = arith.constant 0.000000e+00 : f32
    %569 = vector.broadcast %cst_220 : f32 to vector<16x128xf32>
    %570 = arith.maximumf %568, %569 : vector<16x128xf32>
    %571 = arith.truncf %570 : vector<16x128xf32> to vector<16x128xbf16>
    %c3_221 = arith.constant 3 : index
    %c0_222 = arith.constant 0 : index
    %c0_223 = arith.constant 0 : index
    %572 = vector.load %arg13[%c3_221, %c0_222, %c0_223] : memref<6x128x32xbf16, #tpu.memory_space<vmem>>, vector<1x128x32xbf16>
    %573 = vector.shape_cast %572 : vector<1x128x32xbf16> to vector<128x32xbf16>
    %cst_224 = arith.constant dense<0.000000e+00> : vector<16x32xf32>
    %574 = tpu.matmul %571, %573, %cst_224 {dimension_numbers = #tpu.dot_dimension_numbers<[1], [0], [0], [1], [0, 0, 1, 1], [], []>} : vector<16x128xbf16>, vector<128x32xbf16>, vector<16x32xf32> -> vector<16x32xf32>
    %c3_225 = arith.constant 3 : index
    %c0_226 = arith.constant 0 : index
    %c0_227 = arith.constant 0 : index
    %575 = vector.load %arg14[%c3_225, %c0_226, %c0_227] : memref<6x1x32xf32, #tpu.memory_space<vmem>>, vector<1x1x32xf32>
    %576 = vector.shape_cast %575 : vector<1x1x32xf32> to vector<1x32xf32>
    %577 = vector.broadcast %576 : vector<1x32xf32> to vector<16x32xf32>
    %578 = arith.addf %574, %577 : vector<16x32xf32>
    %579 = arith.addf %438, %578 : vector<16x32xf32>
    %c4 = arith.constant 4 : index
    %c0_228 = arith.constant 0 : index
    %c0_229 = arith.constant 0 : index
    %580 = vector.load %arg3[%c4, %c0_228, %c0_229] : memref<6x1x32xf32, #tpu.memory_space<vmem>>, vector<1x1x32xf32>
    %581 = vector.shape_cast %580 : vector<1x1x32xf32> to vector<1x32xf32>
    %c4_230 = arith.constant 4 : index
    %c0_231 = arith.constant 0 : index
    %c0_232 = arith.constant 0 : index
    %582 = vector.load %arg4[%c4_230, %c0_231, %c0_232] : memref<6x1x32xf32, #tpu.memory_space<vmem>>, vector<1x1x32xf32>
    %583 = vector.shape_cast %582 : vector<1x1x32xf32> to vector<1x32xf32>
    %cst_233 = arith.constant dense<0.000000e+00> : vector<16xf32>
    %584 = vector.multi_reduction <add>, %579, %cst_233 [1] : vector<16x32xf32> to vector<16xf32>
    %585 = vector.shape_cast %584 : vector<16xf32> to vector<16x1xf32>
    %cst_234 = arith.constant 3.200000e+01 : f32
    %586 = vector.broadcast %cst_234 : f32 to vector<16x1xf32>
    %587 = arith.divf %585, %586 : vector<16x1xf32>
    %588 = vector.broadcast %587 : vector<16x1xf32> to vector<16x32xf32>
    %589 = arith.subf %579, %588 : vector<16x32xf32>
    %590 = arith.mulf %589, %589 : vector<16x32xf32>
    %cst_235 = arith.constant dense<0.000000e+00> : vector<16xf32>
    %591 = vector.multi_reduction <add>, %590, %cst_235 [1] : vector<16x32xf32> to vector<16xf32>
    %592 = vector.shape_cast %591 : vector<16xf32> to vector<16x1xf32>
    %cst_236 = arith.constant 0.0322580636 : f32
    %593 = vector.broadcast %cst_236 : f32 to vector<16x1xf32>
    %594 = arith.mulf %592, %593 : vector<16x1xf32>
    %595 = vector.broadcast %587 : vector<16x1xf32> to vector<16x32xf32>
    %596 = arith.subf %579, %595 : vector<16x32xf32>
    %cst_237 = arith.constant 9.99999996E-13 : f32
    %597 = vector.broadcast %cst_237 : f32 to vector<16x1xf32>
    %598 = arith.addf %594, %597 : vector<16x1xf32>
    %599 = vector.broadcast %598 : vector<16x1xf32> to vector<16x32xf32>
    %600 = arith.divf %596, %599 : vector<16x32xf32>
    %601 = vector.broadcast %581 : vector<1x32xf32> to vector<16x32xf32>
    %602 = arith.mulf %601, %600 : vector<16x32xf32>
    %603 = vector.broadcast %583 : vector<1x32xf32> to vector<16x32xf32>
    %604 = arith.addf %602, %603 : vector<16x32xf32>
    %605 = arith.truncf %604 : vector<16x32xf32> to vector<16x32xbf16>
    %c4_238 = arith.constant 4 : index
    %c0_239 = arith.constant 0 : index
    %c0_240 = arith.constant 0 : index
    %606 = vector.load %arg5[%c4_238, %c0_239, %c0_240] : memref<6x32x96xbf16, #tpu.memory_space<vmem>>, vector<1x32x96xbf16>
    %607 = vector.shape_cast %606 : vector<1x32x96xbf16> to vector<32x96xbf16>
    %cst_241 = arith.constant dense<0.000000e+00> : vector<16x96xf32>
    %608 = tpu.matmul %605, %607, %cst_241 {dimension_numbers = #tpu.dot_dimension_numbers<[1], [0], [0], [1], [0, 0, 1, 1], [], []>} : vector<16x32xbf16>, vector<32x96xbf16>, vector<16x96xf32> -> vector<16x96xf32>
    %c4_242 = arith.constant 4 : index
    %c0_243 = arith.constant 0 : index
    %c0_244 = arith.constant 0 : index
    %609 = vector.load %arg6[%c4_242, %c0_243, %c0_244] : memref<6x1x96xf32, #tpu.memory_space<vmem>>, vector<1x1x96xf32>
    %610 = vector.shape_cast %609 : vector<1x1x96xf32> to vector<1x96xf32>
    %611 = vector.broadcast %610 : vector<1x96xf32> to vector<16x96xf32>
    %612 = arith.addf %608, %611 : vector<16x96xf32>
    %613 = vector.extract_strided_slice %612 {offsets = [0, 0], sizes = [16, 32], strides = [1, 1]} : vector<16x96xf32> to vector<16x32xf32>
    %614 = vector.extract_strided_slice %613 {offsets = [0, 0], sizes = [16, 8], strides = [1, 1]} : vector<16x32xf32> to vector<16x8xf32>
    %615 = vector.shape_cast %614 : vector<16x8xf32> to vector<2x8x8xf32>
    %616 = vector.extract_strided_slice %613 {offsets = [0, 8], sizes = [16, 8], strides = [1, 1]} : vector<16x32xf32> to vector<16x8xf32>
    %617 = vector.shape_cast %616 : vector<16x8xf32> to vector<2x8x8xf32>
    %618 = vector.extract_strided_slice %613 {offsets = [0, 16], sizes = [16, 8], strides = [1, 1]} : vector<16x32xf32> to vector<16x8xf32>
    %619 = vector.shape_cast %618 : vector<16x8xf32> to vector<2x8x8xf32>
    %620 = vector.extract_strided_slice %613 {offsets = [0, 24], sizes = [16, 8], strides = [1, 1]} : vector<16x32xf32> to vector<16x8xf32>
    %621 = vector.shape_cast %620 : vector<16x8xf32> to vector<2x8x8xf32>
    %622 = tpu.concatenate %615, %617, %619, %621 in 0 : vector<2x8x8xf32>, vector<2x8x8xf32>, vector<2x8x8xf32>, vector<2x8x8xf32> -> vector<8x8x8xf32>
    %623 = vector.extract_strided_slice %612 {offsets = [0, 32], sizes = [16, 32], strides = [1, 1]} : vector<16x96xf32> to vector<16x32xf32>
    %624 = vector.extract_strided_slice %623 {offsets = [0, 0], sizes = [16, 8], strides = [1, 1]} : vector<16x32xf32> to vector<16x8xf32>
    %625 = vector.shape_cast %624 : vector<16x8xf32> to vector<2x8x8xf32>
    %626 = vector.extract_strided_slice %623 {offsets = [0, 8], sizes = [16, 8], strides = [1, 1]} : vector<16x32xf32> to vector<16x8xf32>
    %627 = vector.shape_cast %626 : vector<16x8xf32> to vector<2x8x8xf32>
    %628 = vector.extract_strided_slice %623 {offsets = [0, 16], sizes = [16, 8], strides = [1, 1]} : vector<16x32xf32> to vector<16x8xf32>
    %629 = vector.shape_cast %628 : vector<16x8xf32> to vector<2x8x8xf32>
    %630 = vector.extract_strided_slice %623 {offsets = [0, 24], sizes = [16, 8], strides = [1, 1]} : vector<16x32xf32> to vector<16x8xf32>
    %631 = vector.shape_cast %630 : vector<16x8xf32> to vector<2x8x8xf32>
    %632 = tpu.concatenate %625, %627, %629, %631 in 0 : vector<2x8x8xf32>, vector<2x8x8xf32>, vector<2x8x8xf32>, vector<2x8x8xf32> -> vector<8x8x8xf32>
    %633 = vector.extract_strided_slice %612 {offsets = [0, 64], sizes = [16, 32], strides = [1, 1]} : vector<16x96xf32> to vector<16x32xf32>
    %634 = vector.extract_strided_slice %633 {offsets = [0, 0], sizes = [16, 8], strides = [1, 1]} : vector<16x32xf32> to vector<16x8xf32>
    %635 = vector.shape_cast %634 : vector<16x8xf32> to vector<2x8x8xf32>
    %636 = vector.extract_strided_slice %633 {offsets = [0, 8], sizes = [16, 8], strides = [1, 1]} : vector<16x32xf32> to vector<16x8xf32>
    %637 = vector.shape_cast %636 : vector<16x8xf32> to vector<2x8x8xf32>
    %638 = vector.extract_strided_slice %633 {offsets = [0, 16], sizes = [16, 8], strides = [1, 1]} : vector<16x32xf32> to vector<16x8xf32>
    %639 = vector.shape_cast %638 : vector<16x8xf32> to vector<2x8x8xf32>
    %640 = vector.extract_strided_slice %633 {offsets = [0, 24], sizes = [16, 8], strides = [1, 1]} : vector<16x32xf32> to vector<16x8xf32>
    %641 = vector.shape_cast %640 : vector<16x8xf32> to vector<2x8x8xf32>
    %642 = tpu.concatenate %635, %637, %639, %641 in 0 : vector<2x8x8xf32>, vector<2x8x8xf32>, vector<2x8x8xf32>, vector<2x8x8xf32> -> vector<8x8x8xf32>
    "tpu.trace_start"() <{level = 10 : i32, message = "ntd,nsd->nts"}> : () -> ()
    %cst_245 = arith.constant dense<0.000000e+00> : vector<8x8x8xf32>
    %643 = tpu.matmul %622, %632, %cst_245 {dimension_numbers = #tpu.dot_dimension_numbers<[2], [2], [1], [1], [0, 0, 0, 1, 1, 1], [0], [0]>} : vector<8x8x8xf32>, vector<8x8x8xf32>, vector<8x8x8xf32> -> vector<8x8x8xf32>
    "tpu.trace_stop"() : () -> ()
    %cst_246 = arith.constant 0.176776692 : f32
    %644 = vector.broadcast %cst_246 : f32 to vector<8x8x8xf32>
    %645 = arith.mulf %643, %644 : vector<8x8x8xf32>
    %646 = vector.shape_cast %15 : vector<8x8xf32> to vector<1x8x8xf32>
    %647 = vector.broadcast %646 : vector<1x8x8xf32> to vector<8x8x8xf32>
    %648 = arith.addf %645, %647 : vector<8x8x8xf32>
    %cst_247 = arith.constant dense<0xFF800000> : vector<8x8xf32>
    %649 = vector.multi_reduction <maximumf>, %648, %cst_247 [2] : vector<8x8x8xf32> to vector<8x8xf32>
    %650 = vector.shape_cast %649 : vector<8x8xf32> to vector<8x8x1xf32>
    %651 = vector.broadcast %650 : vector<8x8x1xf32> to vector<8x8x8xf32>
    %652 = arith.subf %648, %651 : vector<8x8x8xf32>
    %653 = math.exp %652 : vector<8x8x8xf32>
    %cst_248 = arith.constant dense<0.000000e+00> : vector<8x8xf32>
    %654 = vector.multi_reduction <add>, %653, %cst_248 [2] : vector<8x8x8xf32> to vector<8x8xf32>
    %655 = vector.shape_cast %654 : vector<8x8xf32> to vector<8x8x1xf32>
    %656 = vector.broadcast %655 : vector<8x8x1xf32> to vector<8x8x8xf32>
    %657 = arith.divf %653, %656 : vector<8x8x8xf32>
    "tpu.trace_start"() <{level = 10 : i32, message = "nts,nsd->ntd"}> : () -> ()
    %cst_249 = arith.constant dense<0.000000e+00> : vector<8x8x8xf32>
    %658 = tpu.matmul %657, %642, %cst_249 {dimension_numbers = #tpu.dot_dimension_numbers<[2], [1], [1], [2], [0, 0, 0, 1, 1, 2], [0], [0]>} : vector<8x8x8xf32>, vector<8x8x8xf32>, vector<8x8x8xf32> -> vector<8x8x8xf32>
    "tpu.trace_stop"() : () -> ()
    %659 = vector.extract_strided_slice %658 {offsets = [0, 0, 0], sizes = [2, 8, 8], strides = [1, 1, 1]} : vector<8x8x8xf32> to vector<2x8x8xf32>
    %660 = vector.shape_cast %659 : vector<2x8x8xf32> to vector<16x8xf32>
    %661 = vector.extract_strided_slice %658 {offsets = [2, 0, 0], sizes = [2, 8, 8], strides = [1, 1, 1]} : vector<8x8x8xf32> to vector<2x8x8xf32>
    %662 = vector.shape_cast %661 : vector<2x8x8xf32> to vector<16x8xf32>
    %663 = vector.extract_strided_slice %658 {offsets = [4, 0, 0], sizes = [2, 8, 8], strides = [1, 1, 1]} : vector<8x8x8xf32> to vector<2x8x8xf32>
    %664 = vector.shape_cast %663 : vector<2x8x8xf32> to vector<16x8xf32>
    %665 = vector.extract_strided_slice %658 {offsets = [6, 0, 0], sizes = [2, 8, 8], strides = [1, 1, 1]} : vector<8x8x8xf32> to vector<2x8x8xf32>
    %666 = vector.shape_cast %665 : vector<2x8x8xf32> to vector<16x8xf32>
    %667 = tpu.concatenate %660, %662, %664, %666 in 1 : vector<16x8xf32>, vector<16x8xf32>, vector<16x8xf32>, vector<16x8xf32> -> vector<16x32xf32>
    %668 = arith.truncf %667 : vector<16x32xf32> to vector<16x32xbf16>
    %c4_250 = arith.constant 4 : index
    %c0_251 = arith.constant 0 : index
    %c0_252 = arith.constant 0 : index
    %669 = vector.load %arg7[%c4_250, %c0_251, %c0_252] : memref<6x32x32xbf16, #tpu.memory_space<vmem>>, vector<1x32x32xbf16>
    %670 = vector.shape_cast %669 : vector<1x32x32xbf16> to vector<32x32xbf16>
    %cst_253 = arith.constant dense<0.000000e+00> : vector<16x32xf32>
    %671 = tpu.matmul %668, %670, %cst_253 {dimension_numbers = #tpu.dot_dimension_numbers<[1], [0], [0], [1], [0, 0, 1, 1], [], []>} : vector<16x32xbf16>, vector<32x32xbf16>, vector<16x32xf32> -> vector<16x32xf32>
    %c4_254 = arith.constant 4 : index
    %c0_255 = arith.constant 0 : index
    %c0_256 = arith.constant 0 : index
    %672 = vector.load %arg8[%c4_254, %c0_255, %c0_256] : memref<6x1x32xf32, #tpu.memory_space<vmem>>, vector<1x1x32xf32>
    %673 = vector.shape_cast %672 : vector<1x1x32xf32> to vector<1x32xf32>
    %674 = vector.broadcast %673 : vector<1x32xf32> to vector<16x32xf32>
    %675 = arith.addf %671, %674 : vector<16x32xf32>
    %676 = arith.addf %579, %675 : vector<16x32xf32>
    %c4_257 = arith.constant 4 : index
    %c0_258 = arith.constant 0 : index
    %c0_259 = arith.constant 0 : index
    %677 = vector.load %arg9[%c4_257, %c0_258, %c0_259] : memref<6x1x32xf32, #tpu.memory_space<vmem>>, vector<1x1x32xf32>
    %678 = vector.shape_cast %677 : vector<1x1x32xf32> to vector<1x32xf32>
    %c4_260 = arith.constant 4 : index
    %c0_261 = arith.constant 0 : index
    %c0_262 = arith.constant 0 : index
    %679 = vector.load %arg10[%c4_260, %c0_261, %c0_262] : memref<6x1x32xf32, #tpu.memory_space<vmem>>, vector<1x1x32xf32>
    %680 = vector.shape_cast %679 : vector<1x1x32xf32> to vector<1x32xf32>
    %cst_263 = arith.constant dense<0.000000e+00> : vector<16xf32>
    %681 = vector.multi_reduction <add>, %676, %cst_263 [1] : vector<16x32xf32> to vector<16xf32>
    %682 = vector.shape_cast %681 : vector<16xf32> to vector<16x1xf32>
    %cst_264 = arith.constant 3.200000e+01 : f32
    %683 = vector.broadcast %cst_264 : f32 to vector<16x1xf32>
    %684 = arith.divf %682, %683 : vector<16x1xf32>
    %685 = vector.broadcast %684 : vector<16x1xf32> to vector<16x32xf32>
    %686 = arith.subf %676, %685 : vector<16x32xf32>
    %687 = arith.mulf %686, %686 : vector<16x32xf32>
    %cst_265 = arith.constant dense<0.000000e+00> : vector<16xf32>
    %688 = vector.multi_reduction <add>, %687, %cst_265 [1] : vector<16x32xf32> to vector<16xf32>
    %689 = vector.shape_cast %688 : vector<16xf32> to vector<16x1xf32>
    %cst_266 = arith.constant 0.0322580636 : f32
    %690 = vector.broadcast %cst_266 : f32 to vector<16x1xf32>
    %691 = arith.mulf %689, %690 : vector<16x1xf32>
    %692 = vector.broadcast %684 : vector<16x1xf32> to vector<16x32xf32>
    %693 = arith.subf %676, %692 : vector<16x32xf32>
    %cst_267 = arith.constant 9.99999996E-13 : f32
    %694 = vector.broadcast %cst_267 : f32 to vector<16x1xf32>
    %695 = arith.addf %691, %694 : vector<16x1xf32>
    %696 = vector.broadcast %695 : vector<16x1xf32> to vector<16x32xf32>
    %697 = arith.divf %693, %696 : vector<16x32xf32>
    %698 = vector.broadcast %678 : vector<1x32xf32> to vector<16x32xf32>
    %699 = arith.mulf %698, %697 : vector<16x32xf32>
    %700 = vector.broadcast %680 : vector<1x32xf32> to vector<16x32xf32>
    %701 = arith.addf %699, %700 : vector<16x32xf32>
    %702 = arith.truncf %701 : vector<16x32xf32> to vector<16x32xbf16>
    %c4_268 = arith.constant 4 : index
    %c0_269 = arith.constant 0 : index
    %c0_270 = arith.constant 0 : index
    %703 = vector.load %arg11[%c4_268, %c0_269, %c0_270] : memref<6x32x128xbf16, #tpu.memory_space<vmem>>, vector<1x32x128xbf16>
    %704 = vector.shape_cast %703 : vector<1x32x128xbf16> to vector<32x128xbf16>
    %cst_271 = arith.constant dense<0.000000e+00> : vector<16x128xf32>
    %705 = tpu.matmul %702, %704, %cst_271 {dimension_numbers = #tpu.dot_dimension_numbers<[1], [0], [0], [1], [0, 0, 1, 1], [], []>} : vector<16x32xbf16>, vector<32x128xbf16>, vector<16x128xf32> -> vector<16x128xf32>
    %c4_272 = arith.constant 4 : index
    %c0_273 = arith.constant 0 : index
    %c0_274 = arith.constant 0 : index
    %706 = vector.load %arg12[%c4_272, %c0_273, %c0_274] : memref<6x1x128xf32, #tpu.memory_space<vmem>>, vector<1x1x128xf32>
    %707 = vector.shape_cast %706 : vector<1x1x128xf32> to vector<1x128xf32>
    %708 = vector.broadcast %707 : vector<1x128xf32> to vector<16x128xf32>
    %709 = arith.addf %705, %708 : vector<16x128xf32>
    %cst_275 = arith.constant 0.000000e+00 : f32
    %710 = vector.broadcast %cst_275 : f32 to vector<16x128xf32>
    %711 = arith.maximumf %709, %710 : vector<16x128xf32>
    %712 = arith.truncf %711 : vector<16x128xf32> to vector<16x128xbf16>
    %c4_276 = arith.constant 4 : index
    %c0_277 = arith.constant 0 : index
    %c0_278 = arith.constant 0 : index
    %713 = vector.load %arg13[%c4_276, %c0_277, %c0_278] : memref<6x128x32xbf16, #tpu.memory_space<vmem>>, vector<1x128x32xbf16>
    %714 = vector.shape_cast %713 : vector<1x128x32xbf16> to vector<128x32xbf16>
    %cst_279 = arith.constant dense<0.000000e+00> : vector<16x32xf32>
    %715 = tpu.matmul %712, %714, %cst_279 {dimension_numbers = #tpu.dot_dimension_numbers<[1], [0], [0], [1], [0, 0, 1, 1], [], []>} : vector<16x128xbf16>, vector<128x32xbf16>, vector<16x32xf32> -> vector<16x32xf32>
    %c4_280 = arith.constant 4 : index
    %c0_281 = arith.constant 0 : index
    %c0_282 = arith.constant 0 : index
    %716 = vector.load %arg14[%c4_280, %c0_281, %c0_282] : memref<6x1x32xf32, #tpu.memory_space<vmem>>, vector<1x1x32xf32>
    %717 = vector.shape_cast %716 : vector<1x1x32xf32> to vector<1x32xf32>
    %718 = vector.broadcast %717 : vector<1x32xf32> to vector<16x32xf32>
    %719 = arith.addf %715, %718 : vector<16x32xf32>
    %720 = arith.addf %579, %719 : vector<16x32xf32>
    %c5 = arith.constant 5 : index
    %c0_283 = arith.constant 0 : index
    %c0_284 = arith.constant 0 : index
    %721 = vector.load %arg3[%c5, %c0_283, %c0_284] : memref<6x1x32xf32, #tpu.memory_space<vmem>>, vector<1x1x32xf32>
    %722 = vector.shape_cast %721 : vector<1x1x32xf32> to vector<1x32xf32>
    %c5_285 = arith.constant 5 : index
    %c0_286 = arith.constant 0 : index
    %c0_287 = arith.constant 0 : index
    %723 = vector.load %arg4[%c5_285, %c0_286, %c0_287] : memref<6x1x32xf32, #tpu.memory_space<vmem>>, vector<1x1x32xf32>
    %724 = vector.shape_cast %723 : vector<1x1x32xf32> to vector<1x32xf32>
    %cst_288 = arith.constant dense<0.000000e+00> : vector<16xf32>
    %725 = vector.multi_reduction <add>, %720, %cst_288 [1] : vector<16x32xf32> to vector<16xf32>
    %726 = vector.shape_cast %725 : vector<16xf32> to vector<16x1xf32>
    %cst_289 = arith.constant 3.200000e+01 : f32
    %727 = vector.broadcast %cst_289 : f32 to vector<16x1xf32>
    %728 = arith.divf %726, %727 : vector<16x1xf32>
    %729 = vector.broadcast %728 : vector<16x1xf32> to vector<16x32xf32>
    %730 = arith.subf %720, %729 : vector<16x32xf32>
    %731 = arith.mulf %730, %730 : vector<16x32xf32>
    %cst_290 = arith.constant dense<0.000000e+00> : vector<16xf32>
    %732 = vector.multi_reduction <add>, %731, %cst_290 [1] : vector<16x32xf32> to vector<16xf32>
    %733 = vector.shape_cast %732 : vector<16xf32> to vector<16x1xf32>
    %cst_291 = arith.constant 0.0322580636 : f32
    %734 = vector.broadcast %cst_291 : f32 to vector<16x1xf32>
    %735 = arith.mulf %733, %734 : vector<16x1xf32>
    %736 = vector.broadcast %728 : vector<16x1xf32> to vector<16x32xf32>
    %737 = arith.subf %720, %736 : vector<16x32xf32>
    %cst_292 = arith.constant 9.99999996E-13 : f32
    %738 = vector.broadcast %cst_292 : f32 to vector<16x1xf32>
    %739 = arith.addf %735, %738 : vector<16x1xf32>
    %740 = vector.broadcast %739 : vector<16x1xf32> to vector<16x32xf32>
    %741 = arith.divf %737, %740 : vector<16x32xf32>
    %742 = vector.broadcast %722 : vector<1x32xf32> to vector<16x32xf32>
    %743 = arith.mulf %742, %741 : vector<16x32xf32>
    %744 = vector.broadcast %724 : vector<1x32xf32> to vector<16x32xf32>
    %745 = arith.addf %743, %744 : vector<16x32xf32>
    %746 = arith.truncf %745 : vector<16x32xf32> to vector<16x32xbf16>
    %c5_293 = arith.constant 5 : index
    %c0_294 = arith.constant 0 : index
    %c0_295 = arith.constant 0 : index
    %747 = vector.load %arg5[%c5_293, %c0_294, %c0_295] : memref<6x32x96xbf16, #tpu.memory_space<vmem>>, vector<1x32x96xbf16>
    %748 = vector.shape_cast %747 : vector<1x32x96xbf16> to vector<32x96xbf16>
    %cst_296 = arith.constant dense<0.000000e+00> : vector<16x96xf32>
    %749 = tpu.matmul %746, %748, %cst_296 {dimension_numbers = #tpu.dot_dimension_numbers<[1], [0], [0], [1], [0, 0, 1, 1], [], []>} : vector<16x32xbf16>, vector<32x96xbf16>, vector<16x96xf32> -> vector<16x96xf32>
    %c5_297 = arith.constant 5 : index
    %c0_298 = arith.constant 0 : index
    %c0_299 = arith.constant 0 : index
    %750 = vector.load %arg6[%c5_297, %c0_298, %c0_299] : memref<6x1x96xf32, #tpu.memory_space<vmem>>, vector<1x1x96xf32>
    %751 = vector.shape_cast %750 : vector<1x1x96xf32> to vector<1x96xf32>
    %752 = vector.broadcast %751 : vector<1x96xf32> to vector<16x96xf32>
    %753 = arith.addf %749, %752 : vector<16x96xf32>
    %754 = vector.extract_strided_slice %753 {offsets = [0, 0], sizes = [16, 32], strides = [1, 1]} : vector<16x96xf32> to vector<16x32xf32>
    %755 = vector.extract_strided_slice %754 {offsets = [0, 0], sizes = [16, 8], strides = [1, 1]} : vector<16x32xf32> to vector<16x8xf32>
    %756 = vector.shape_cast %755 : vector<16x8xf32> to vector<2x8x8xf32>
    %757 = vector.extract_strided_slice %754 {offsets = [0, 8], sizes = [16, 8], strides = [1, 1]} : vector<16x32xf32> to vector<16x8xf32>
    %758 = vector.shape_cast %757 : vector<16x8xf32> to vector<2x8x8xf32>
    %759 = vector.extract_strided_slice %754 {offsets = [0, 16], sizes = [16, 8], strides = [1, 1]} : vector<16x32xf32> to vector<16x8xf32>
    %760 = vector.shape_cast %759 : vector<16x8xf32> to vector<2x8x8xf32>
    %761 = vector.extract_strided_slice %754 {offsets = [0, 24], sizes = [16, 8], strides = [1, 1]} : vector<16x32xf32> to vector<16x8xf32>
    %762 = vector.shape_cast %761 : vector<16x8xf32> to vector<2x8x8xf32>
    %763 = tpu.concatenate %756, %758, %760, %762 in 0 : vector<2x8x8xf32>, vector<2x8x8xf32>, vector<2x8x8xf32>, vector<2x8x8xf32> -> vector<8x8x8xf32>
    %764 = vector.extract_strided_slice %753 {offsets = [0, 32], sizes = [16, 32], strides = [1, 1]} : vector<16x96xf32> to vector<16x32xf32>
    %765 = vector.extract_strided_slice %764 {offsets = [0, 0], sizes = [16, 8], strides = [1, 1]} : vector<16x32xf32> to vector<16x8xf32>
    %766 = vector.shape_cast %765 : vector<16x8xf32> to vector<2x8x8xf32>
    %767 = vector.extract_strided_slice %764 {offsets = [0, 8], sizes = [16, 8], strides = [1, 1]} : vector<16x32xf32> to vector<16x8xf32>
    %768 = vector.shape_cast %767 : vector<16x8xf32> to vector<2x8x8xf32>
    %769 = vector.extract_strided_slice %764 {offsets = [0, 16], sizes = [16, 8], strides = [1, 1]} : vector<16x32xf32> to vector<16x8xf32>
    %770 = vector.shape_cast %769 : vector<16x8xf32> to vector<2x8x8xf32>
    %771 = vector.extract_strided_slice %764 {offsets = [0, 24], sizes = [16, 8], strides = [1, 1]} : vector<16x32xf32> to vector<16x8xf32>
    %772 = vector.shape_cast %771 : vector<16x8xf32> to vector<2x8x8xf32>
    %773 = tpu.concatenate %766, %768, %770, %772 in 0 : vector<2x8x8xf32>, vector<2x8x8xf32>, vector<2x8x8xf32>, vector<2x8x8xf32> -> vector<8x8x8xf32>
    %774 = vector.extract_strided_slice %753 {offsets = [0, 64], sizes = [16, 32], strides = [1, 1]} : vector<16x96xf32> to vector<16x32xf32>
    %775 = vector.extract_strided_slice %774 {offsets = [0, 0], sizes = [16, 8], strides = [1, 1]} : vector<16x32xf32> to vector<16x8xf32>
    %776 = vector.shape_cast %775 : vector<16x8xf32> to vector<2x8x8xf32>
    %777 = vector.extract_strided_slice %774 {offsets = [0, 8], sizes = [16, 8], strides = [1, 1]} : vector<16x32xf32> to vector<16x8xf32>
    %778 = vector.shape_cast %777 : vector<16x8xf32> to vector<2x8x8xf32>
    %779 = vector.extract_strided_slice %774 {offsets = [0, 16], sizes = [16, 8], strides = [1, 1]} : vector<16x32xf32> to vector<16x8xf32>
    %780 = vector.shape_cast %779 : vector<16x8xf32> to vector<2x8x8xf32>
    %781 = vector.extract_strided_slice %774 {offsets = [0, 24], sizes = [16, 8], strides = [1, 1]} : vector<16x32xf32> to vector<16x8xf32>
    %782 = vector.shape_cast %781 : vector<16x8xf32> to vector<2x8x8xf32>
    %783 = tpu.concatenate %776, %778, %780, %782 in 0 : vector<2x8x8xf32>, vector<2x8x8xf32>, vector<2x8x8xf32>, vector<2x8x8xf32> -> vector<8x8x8xf32>
    "tpu.trace_start"() <{level = 10 : i32, message = "ntd,nsd->nts"}> : () -> ()
    %cst_300 = arith.constant dense<0.000000e+00> : vector<8x8x8xf32>
    %784 = tpu.matmul %763, %773, %cst_300 {dimension_numbers = #tpu.dot_dimension_numbers<[2], [2], [1], [1], [0, 0, 0, 1, 1, 1], [0], [0]>} : vector<8x8x8xf32>, vector<8x8x8xf32>, vector<8x8x8xf32> -> vector<8x8x8xf32>
    "tpu.trace_stop"() : () -> ()
    %cst_301 = arith.constant 0.176776692 : f32
    %785 = vector.broadcast %cst_301 : f32 to vector<8x8x8xf32>
    %786 = arith.mulf %784, %785 : vector<8x8x8xf32>
    %787 = vector.shape_cast %15 : vector<8x8xf32> to vector<1x8x8xf32>
    %788 = vector.broadcast %787 : vector<1x8x8xf32> to vector<8x8x8xf32>
    %789 = arith.addf %786, %788 : vector<8x8x8xf32>
    %cst_302 = arith.constant dense<0xFF800000> : vector<8x8xf32>
    %790 = vector.multi_reduction <maximumf>, %789, %cst_302 [2] : vector<8x8x8xf32> to vector<8x8xf32>
    %791 = vector.shape_cast %790 : vector<8x8xf32> to vector<8x8x1xf32>
    %792 = vector.broadcast %791 : vector<8x8x1xf32> to vector<8x8x8xf32>
    %793 = arith.subf %789, %792 : vector<8x8x8xf32>
    %794 = math.exp %793 : vector<8x8x8xf32>
    %cst_303 = arith.constant dense<0.000000e+00> : vector<8x8xf32>
    %795 = vector.multi_reduction <add>, %794, %cst_303 [2] : vector<8x8x8xf32> to vector<8x8xf32>
    %796 = vector.shape_cast %795 : vector<8x8xf32> to vector<8x8x1xf32>
    %797 = vector.broadcast %796 : vector<8x8x1xf32> to vector<8x8x8xf32>
    %798 = arith.divf %794, %797 : vector<8x8x8xf32>
    "tpu.trace_start"() <{level = 10 : i32, message = "nts,nsd->ntd"}> : () -> ()
    %cst_304 = arith.constant dense<0.000000e+00> : vector<8x8x8xf32>
    %799 = tpu.matmul %798, %783, %cst_304 {dimension_numbers = #tpu.dot_dimension_numbers<[2], [1], [1], [2], [0, 0, 0, 1, 1, 2], [0], [0]>} : vector<8x8x8xf32>, vector<8x8x8xf32>, vector<8x8x8xf32> -> vector<8x8x8xf32>
    "tpu.trace_stop"() : () -> ()
    %800 = vector.extract_strided_slice %799 {offsets = [0, 0, 0], sizes = [2, 8, 8], strides = [1, 1, 1]} : vector<8x8x8xf32> to vector<2x8x8xf32>
    %801 = vector.shape_cast %800 : vector<2x8x8xf32> to vector<16x8xf32>
    %802 = vector.extract_strided_slice %799 {offsets = [2, 0, 0], sizes = [2, 8, 8], strides = [1, 1, 1]} : vector<8x8x8xf32> to vector<2x8x8xf32>
    %803 = vector.shape_cast %802 : vector<2x8x8xf32> to vector<16x8xf32>
    %804 = vector.extract_strided_slice %799 {offsets = [4, 0, 0], sizes = [2, 8, 8], strides = [1, 1, 1]} : vector<8x8x8xf32> to vector<2x8x8xf32>
    %805 = vector.shape_cast %804 : vector<2x8x8xf32> to vector<16x8xf32>
    %806 = vector.extract_strided_slice %799 {offsets = [6, 0, 0], sizes = [2, 8, 8], strides = [1, 1, 1]} : vector<8x8x8xf32> to vector<2x8x8xf32>
    %807 = vector.shape_cast %806 : vector<2x8x8xf32> to vector<16x8xf32>
    %808 = tpu.concatenate %801, %803, %805, %807 in 1 : vector<16x8xf32>, vector<16x8xf32>, vector<16x8xf32>, vector<16x8xf32> -> vector<16x32xf32>
    %809 = arith.truncf %808 : vector<16x32xf32> to vector<16x32xbf16>
    %c5_305 = arith.constant 5 : index
    %c0_306 = arith.constant 0 : index
    %c0_307 = arith.constant 0 : index
    %810 = vector.load %arg7[%c5_305, %c0_306, %c0_307] : memref<6x32x32xbf16, #tpu.memory_space<vmem>>, vector<1x32x32xbf16>
    %811 = vector.shape_cast %810 : vector<1x32x32xbf16> to vector<32x32xbf16>
    %cst_308 = arith.constant dense<0.000000e+00> : vector<16x32xf32>
    %812 = tpu.matmul %809, %811, %cst_308 {dimension_numbers = #tpu.dot_dimension_numbers<[1], [0], [0], [1], [0, 0, 1, 1], [], []>} : vector<16x32xbf16>, vector<32x32xbf16>, vector<16x32xf32> -> vector<16x32xf32>
    %c5_309 = arith.constant 5 : index
    %c0_310 = arith.constant 0 : index
    %c0_311 = arith.constant 0 : index
    %813 = vector.load %arg8[%c5_309, %c0_310, %c0_311] : memref<6x1x32xf32, #tpu.memory_space<vmem>>, vector<1x1x32xf32>
    %814 = vector.shape_cast %813 : vector<1x1x32xf32> to vector<1x32xf32>
    %815 = vector.broadcast %814 : vector<1x32xf32> to vector<16x32xf32>
    %816 = arith.addf %812, %815 : vector<16x32xf32>
    %817 = arith.addf %720, %816 : vector<16x32xf32>
    %c5_312 = arith.constant 5 : index
    %c0_313 = arith.constant 0 : index
    %c0_314 = arith.constant 0 : index
    %818 = vector.load %arg9[%c5_312, %c0_313, %c0_314] : memref<6x1x32xf32, #tpu.memory_space<vmem>>, vector<1x1x32xf32>
    %819 = vector.shape_cast %818 : vector<1x1x32xf32> to vector<1x32xf32>
    %c5_315 = arith.constant 5 : index
    %c0_316 = arith.constant 0 : index
    %c0_317 = arith.constant 0 : index
    %820 = vector.load %arg10[%c5_315, %c0_316, %c0_317] : memref<6x1x32xf32, #tpu.memory_space<vmem>>, vector<1x1x32xf32>
    %821 = vector.shape_cast %820 : vector<1x1x32xf32> to vector<1x32xf32>
    %cst_318 = arith.constant dense<0.000000e+00> : vector<16xf32>
    %822 = vector.multi_reduction <add>, %817, %cst_318 [1] : vector<16x32xf32> to vector<16xf32>
    %823 = vector.shape_cast %822 : vector<16xf32> to vector<16x1xf32>
    %cst_319 = arith.constant 3.200000e+01 : f32
    %824 = vector.broadcast %cst_319 : f32 to vector<16x1xf32>
    %825 = arith.divf %823, %824 : vector<16x1xf32>
    %826 = vector.broadcast %825 : vector<16x1xf32> to vector<16x32xf32>
    %827 = arith.subf %817, %826 : vector<16x32xf32>
    %828 = arith.mulf %827, %827 : vector<16x32xf32>
    %cst_320 = arith.constant dense<0.000000e+00> : vector<16xf32>
    %829 = vector.multi_reduction <add>, %828, %cst_320 [1] : vector<16x32xf32> to vector<16xf32>
    %830 = vector.shape_cast %829 : vector<16xf32> to vector<16x1xf32>
    %cst_321 = arith.constant 0.0322580636 : f32
    %831 = vector.broadcast %cst_321 : f32 to vector<16x1xf32>
    %832 = arith.mulf %830, %831 : vector<16x1xf32>
    %833 = vector.broadcast %825 : vector<16x1xf32> to vector<16x32xf32>
    %834 = arith.subf %817, %833 : vector<16x32xf32>
    %cst_322 = arith.constant 9.99999996E-13 : f32
    %835 = vector.broadcast %cst_322 : f32 to vector<16x1xf32>
    %836 = arith.addf %832, %835 : vector<16x1xf32>
    %837 = vector.broadcast %836 : vector<16x1xf32> to vector<16x32xf32>
    %838 = arith.divf %834, %837 : vector<16x32xf32>
    %839 = vector.broadcast %819 : vector<1x32xf32> to vector<16x32xf32>
    %840 = arith.mulf %839, %838 : vector<16x32xf32>
    %841 = vector.broadcast %821 : vector<1x32xf32> to vector<16x32xf32>
    %842 = arith.addf %840, %841 : vector<16x32xf32>
    %843 = arith.truncf %842 : vector<16x32xf32> to vector<16x32xbf16>
    %c5_323 = arith.constant 5 : index
    %c0_324 = arith.constant 0 : index
    %c0_325 = arith.constant 0 : index
    %844 = vector.load %arg11[%c5_323, %c0_324, %c0_325] : memref<6x32x128xbf16, #tpu.memory_space<vmem>>, vector<1x32x128xbf16>
    %845 = vector.shape_cast %844 : vector<1x32x128xbf16> to vector<32x128xbf16>
    %cst_326 = arith.constant dense<0.000000e+00> : vector<16x128xf32>
    %846 = tpu.matmul %843, %845, %cst_326 {dimension_numbers = #tpu.dot_dimension_numbers<[1], [0], [0], [1], [0, 0, 1, 1], [], []>} : vector<16x32xbf16>, vector<32x128xbf16>, vector<16x128xf32> -> vector<16x128xf32>
    %c5_327 = arith.constant 5 : index
    %c0_328 = arith.constant 0 : index
    %c0_329 = arith.constant 0 : index
    %847 = vector.load %arg12[%c5_327, %c0_328, %c0_329] : memref<6x1x128xf32, #tpu.memory_space<vmem>>, vector<1x1x128xf32>
    %848 = vector.shape_cast %847 : vector<1x1x128xf32> to vector<1x128xf32>
    %849 = vector.broadcast %848 : vector<1x128xf32> to vector<16x128xf32>
    %850 = arith.addf %846, %849 : vector<16x128xf32>
    %cst_330 = arith.constant 0.000000e+00 : f32
    %851 = vector.broadcast %cst_330 : f32 to vector<16x128xf32>
    %852 = arith.maximumf %850, %851 : vector<16x128xf32>
    %853 = arith.truncf %852 : vector<16x128xf32> to vector<16x128xbf16>
    %c5_331 = arith.constant 5 : index
    %c0_332 = arith.constant 0 : index
    %c0_333 = arith.constant 0 : index
    %854 = vector.load %arg13[%c5_331, %c0_332, %c0_333] : memref<6x128x32xbf16, #tpu.memory_space<vmem>>, vector<1x128x32xbf16>
    %855 = vector.shape_cast %854 : vector<1x128x32xbf16> to vector<128x32xbf16>
    %cst_334 = arith.constant dense<0.000000e+00> : vector<16x32xf32>
    %856 = tpu.matmul %853, %855, %cst_334 {dimension_numbers = #tpu.dot_dimension_numbers<[1], [0], [0], [1], [0, 0, 1, 1], [], []>} : vector<16x128xbf16>, vector<128x32xbf16>, vector<16x32xf32> -> vector<16x32xf32>
    %c5_335 = arith.constant 5 : index
    %c0_336 = arith.constant 0 : index
    %c0_337 = arith.constant 0 : index
    %857 = vector.load %arg14[%c5_335, %c0_336, %c0_337] : memref<6x1x32xf32, #tpu.memory_space<vmem>>, vector<1x1x32xf32>
    %858 = vector.shape_cast %857 : vector<1x1x32xf32> to vector<1x32xf32>
    %859 = vector.broadcast %858 : vector<1x32xf32> to vector<16x32xf32>
    %860 = arith.addf %856, %859 : vector<16x32xf32>
    %861 = arith.addf %720, %860 : vector<16x32xf32>
    %862 = arith.truncf %861 : vector<16x32xf32> to vector<16x32xbf16>
    %c0_338 = arith.constant 0 : index
    %c0_339 = arith.constant 0 : index
    %863 = vector.load %arg15[%c0_338, %c0_339] : memref<32x128xbf16, #tpu.memory_space<vmem>>, vector<32x128xbf16>
    %cst_340 = arith.constant dense<0.000000e+00> : vector<16x128xf32>
    %864 = tpu.matmul %862, %863, %cst_340 {dimension_numbers = #tpu.dot_dimension_numbers<[1], [0], [0], [1], [0, 0, 1, 1], [], []>} : vector<16x32xbf16>, vector<32x128xbf16>, vector<16x128xf32> -> vector<16x128xf32>
    %c0_341 = arith.constant 0 : index
    %c0_342 = arith.constant 0 : index
    %865 = vector.load %arg16[%c0_341, %c0_342] : memref<1x128xf32, #tpu.memory_space<vmem>>, vector<1x128xf32>
    %866 = vector.broadcast %865 : vector<1x128xf32> to vector<16x128xf32>
    %867 = arith.addf %864, %866 : vector<16x128xf32>
    %c0_343 = arith.constant 0 : index
    %c0_344 = arith.constant 0 : index
    %868 = vector.load %arg17[%c0_343, %c0_344] : memref<16x128xf32, #tpu.memory_space<vmem>>, vector<16x128xf32>
    tpu.vector_store %arg17[%c0_343, %c0_344], %867 {strides = array<i32>} : memref<16x128xf32, #tpu.memory_space<vmem>>, vector<16x128xf32>,
    return
  }
}

</mosaic_0001>

<llo_original>
// kernel: gpt_forward.1
$region0: #{gpt_forward.1}
  #allocation0 [shape = 'u32[]', space=smem, size = 0x4, offset = 0x4, fixed_abs, tag = 'smem constant byte address 0x4 - core index']
  #allocation1 [shape = 'u32[144,128]{1,0:T(1,128)}', space=vmem, size = 0x12000, scoped, tag = 'internal scratch']
  %s0 = inlined_call_operand.vmem [shape: s32[16,1], index: 0, kind: input, shape index: {}]
  %s1 = inlined_call_operand.vmem [shape: f32[16,32], index: 1, kind: input, shape index: {}]
  %s2 = inlined_call_operand.vmem [shape: f32[16,32], index: 2, kind: input, shape index: {}]
  %s3 = inlined_call_operand.vmem [shape: f32[6,1,32], index: 3, kind: input, shape index: {}]
  %s4 = inlined_call_operand.vmem [shape: f32[6,1,32], index: 4, kind: input, shape index: {}]
  %s5 = inlined_call_operand.vmem [shape: bf16[6,32,96], index: 5, kind: input, shape index: {}]
  %s6 = inlined_call_operand.vmem [shape: f32[6,1,96], index: 6, kind: input, shape index: {}]
  %s7 = inlined_call_operand.vmem [shape: bf16[6,32,32], index: 7, kind: input, shape index: {}]
  %s8 = inlined_call_operand.vmem [shape: f32[6,1,32], index: 8, kind: input, shape index: {}]
  %s9 = inlined_call_operand.vmem [shape: f32[6,1,32], index: 9, kind: input, shape index: {}]
  %s10 = inlined_call_operand.vmem [shape: f32[6,1,32], index: 10, kind: input, shape index: {}]
  %s11 = inlined_call_operand.vmem [shape: bf16[6,32,128], index: 11, kind: input, shape index: {}]
  %s12 = inlined_call_operand.vmem [shape: f32[6,1,128], index: 12, kind: input, shape index: {}]
  %s13 = inlined_call_operand.vmem [shape: bf16[6,128,32], index: 13, kind: input, shape index: {}]
  %s14 = inlined_call_operand.vmem [shape: f32[6,1,32], index: 14, kind: input, shape index: {}]
  %s15 = inlined_call_operand.vmem [shape: bf16[32,128], index: 15, kind: input, shape index: {}]
  %s16 = inlined_call_operand.vmem [shape: f32[1,128], index: 16, kind: input, shape index: {}]
  %s17 = inlined_call_operand.vmem [shape: f32[16,128], index: 17, kind: output, shape index: {}]
  %s18 = sld [smem:[#allocation0]]
  $region78: #{gpt_forward.1} parent=0
    _
  %s20 = ssub.s32 1, %s18
  %s21 = scalar_select 0, %s20, %s18
  // Predicated region
  $region2: #{gpt_forward.1} parent=0 // pred_check
    _
  $region3: #{gpt_forward.1} parent=0 // pred_check_branch
    %23 = sbr.rel (0) target = $region5
  $region4: #{gpt_forward.1} parent=0 // pred_region
    _
  $region5: #{gpt_forward.1} parent=0 // pred_fallthru
    _
  // Predicated region
  $region6: #{gpt_forward.1} parent=0 // pred_check
    _
  $region7: #{gpt_forward.1} parent=0 // pred_check_branch
    %25 = sbr.rel (0) target = $region9
  $region8: #{gpt_forward.1} parent=0 // pred_region
    _
  $region9: #{gpt_forward.1} parent=0 // pred_fallthru
    _
  // Predicated region
  $region10: #{gpt_forward.1} parent=0 // pred_check
    _
  $region11: #{gpt_forward.1} parent=0 // pred_check_branch
    %27 = sbr.rel (0) target = $region13
  $region12: #{gpt_forward.1} parent=0 // pred_region
    _
  $region13: #{gpt_forward.1} parent=0 // pred_fallthru
    _
  // Predicated region
  $region14: #{gpt_forward.1} parent=0 // pred_check
    _
  $region15: #{gpt_forward.1} parent=0 // pred_check_branch
    %29 = sbr.rel (0) target = $region17
  $region16: #{gpt_forward.1} parent=0 // pred_region
    _
  $region17: #{gpt_forward.1} parent=0 // pred_fallthru
    _
  // Predicated region
  $region18: #{gpt_forward.1} parent=0 // pred_check
    _
  $region19: #{gpt_forward.1} parent=0 // pred_check_branch
    %31 = sbr.rel (0) target = $region21
  $region20: #{gpt_forward.1} parent=0 // pred_region
    _
  $region21: #{gpt_forward.1} parent=0 // pred_fallthru
    _
  // Predicated region
  $region22: #{gpt_forward.1} parent=0 // pred_check
    _
  $region23: #{gpt_forward.1} parent=0 // pred_check_branch
    %33 = sbr.rel (0) target = $region25
  $region24: #{gpt_forward.1} parent=0 // pred_region
    _
  $region25: #{gpt_forward.1} parent=0 // pred_fallthru
    _
  // Predicated region
  $region26: #{gpt_forward.1} parent=0 // pred_check
    _
  $region27: #{gpt_forward.1} parent=0 // pred_check_branch
    %35 = sbr.rel (0) target = $region29
  $region28: #{gpt_forward.1} parent=0 // pred_region
    _
  $region29: #{gpt_forward.1} parent=0 // pred_fallthru
    _
  // Predicated region
  $region30: #{gpt_forward.1} parent=0 // pred_check
    _
  $region31: #{gpt_forward.1} parent=0 // pred_check_branch
    %37 = sbr.rel (0) target = $region33
  $region32: #{gpt_forward.1} parent=0 // pred_region
    _
  $region33: #{gpt_forward.1} parent=0 // pred_fallthru
    _
  // Predicated region
  $region34: #{gpt_forward.1} parent=0 // pred_check
    _
  $region35: #{gpt_forward.1} parent=0 // pred_check_branch
    %39 = sbr.rel (0) target = $region37
  $region36: #{gpt_forward.1} parent=0 // pred_region
    _
  $region37: #{gpt_forward.1} parent=0 // pred_fallthru
    _
  // Predicated region
  $region38: #{gpt_forward.1} parent=0 // pred_check
    _
  $region39: #{gpt_forward.1} parent=0 // pred_check_branch
    %41 = sbr.rel (0) target = $region41
  $region40: #{gpt_forward.1} parent=0 // pred_region
    _
  $region41: #{gpt_forward.1} parent=0 // pred_fallthru
    _
  // Predicated region
  $region42: #{gpt_forward.1} parent=0 // pred_check
    _
  $region43: #{gpt_forward.1} parent=0 // pred_check_branch
    %43 = sbr.rel (0) target = $region45
  $region44: #{gpt_forward.1} parent=0 // pred_region
    _
  $region45: #{gpt_forward.1} parent=0 // pred_fallthru
    _
  // Predicated region
  $region46: #{gpt_forward.1} parent=0 // pred_check
    _
  $region47: #{gpt_forward.1} parent=0 // pred_check_branch
    %45 = sbr.rel (0) target = $region49
  $region48: #{gpt_forward.1} parent=0 // pred_region
    _
  $region49: #{gpt_forward.1} parent=0 // pred_fallthru
    _
  // Predicated region
  $region50: #{gpt_forward.1} parent=0 // pred_check
    _
  $region51: #{gpt_forward.1} parent=0 // pred_check_branch
    %47 = sbr.rel (0) target = $region53
  $region52: #{gpt_forward.1} parent=0 // pred_region
    _
  $region53: #{gpt_forward.1} parent=0 // pred_fallthru
    _
  // Predicated region
  $region54: #{gpt_forward.1} parent=0 // pred_check
    _
  $region55: #{gpt_forward.1} parent=0 // pred_check_branch
    %49 = sbr.rel (0) target = $region57
  $region56: #{gpt_forward.1} parent=0 // pred_region
    _
  $region57: #{gpt_forward.1} parent=0 // pred_fallthru
    _
  // Predicated region
  $region58: #{gpt_forward.1} parent=0 // pred_check
    _
  $region59: #{gpt_forward.1} parent=0 // pred_check_branch
    %51 = sbr.rel (0) target = $region61
  $region60: #{gpt_forward.1} parent=0 // pred_region
    _
  $region61: #{gpt_forward.1} parent=0 // pred_fallthru
    _
  // Predicated region
  $region62: #{gpt_forward.1} parent=0 // pred_check
    _
  $region63: #{gpt_forward.1} parent=0 // pred_check_branch
    %53 = sbr.rel (0) target = $region65
  $region64: #{gpt_forward.1} parent=0 // pred_region
    _
  $region65: #{gpt_forward.1} parent=0 // pred_fallthru
    _
  // Predicated region
  $region66: #{gpt_forward.1} parent=0 // pred_check
    _
  $region67: #{gpt_forward.1} parent=0 // pred_check_branch
    %55 = sbr.rel (0) target = $region69
  $region68: #{gpt_forward.1} parent=0 // pred_region
    _
  $region69: #{gpt_forward.1} parent=0 // pred_fallthru
    _
  %v57 = vlaneseq
  %v58 = vand.u32 %v57, 127
  %v59 = vld [vmem:[%s0] sm:$0xff]
  %v60 = vld [vmem:[%s0 + $0x8] sm:$0xff]
  %61 = vset.pattern.permute.xlu0 0
  %62 = vperm.xlu0 %61, %v59
  %v63 = vpop.permute.xlu0 %62
  %64 = vset.pattern.permute.xlu0 0
  %65 = vperm.xlu0 %64, %v60
  %v66 = vpop.permute.xlu0 %65
  %vm67 = vcmp.eq.s32.totalorder %v63, %v58
  %vm68 = vcmp.eq.s32.totalorder %v66, %v58
  %v69 = vsel %vm67, 1, 0
  %v70 = vsel %vm68, 1, 0
  %v71 = vcvt.s32.f32 %v69
  %v72 = vcvt.s32.f32 %v70
  %v73 = vld [vmem:[%s1] sm:$0xff]
  %v74 = vld [vmem:[%s1 + $0x8] sm:$0xff]
  %v75 = vld [vmem:[%s2] sm:$0xff]
  %v76 = vld [vmem:[%s2 + $0x8] sm:$0xff]
  %vm77 = vcmask 130048
  %v79 = vsel %vm77, %v71, 0
  %v82 = vsel %vm77, %v72, 0
  %84 = vmatprep.subr.mxu0 0.0
  %85 = vmatpush1.msra.mxu0 0.0
  %86 = vmatprep.subr.mxu0 0.0
  %87 = vmatpush1.msra.mxu0 0.0
  %88 = vmatprep.subr.mxu0 0.0
  %89 = vmatpush1.msra.mxu0 0.0
  %90 = vmatprep.subr.mxu0 0.0
  %91 = vmatpush1.msra.mxu0 0.0
  %92 = vmatprep.subr.mxu0 0.0
  %93 = vmatpush1.msra.mxu0 0.0
  %94 = vmatprep.subr.mxu0 0.0
  %95 = vmatpush1.msra.mxu0 0.0
  %96 = vmatprep.subr.mxu0 0.0
  %97 = vmatpush1.msra.mxu0 0.0
  %98 = vmatprep.subr.mxu0 0.0
  %99 = vmatpush1.msra.mxu0 0.0
  %100 = vmatprep.subr.mxu0 0.0
  %101 = vmatpush1.msra.mxu0 0.0
  %102 = vmatprep.subr.mxu0 0.0
  %103 = vmatpush1.msra.mxu0 0.0
  %104 = vmatprep.subr.mxu0 0.0
  %105 = vmatpush1.msra.mxu0 0.0
  %106 = vmatprep.subr.mxu0 0.0
  %107 = vmatpush1.msra.mxu0 0.0
  %108 = vmatprep.subr.mxu0 0.0
  %109 = vmatpush1.msra.mxu0 0.0
  %110 = vmatprep.subr.mxu0 0.0
  %111 = vmatpush1.msra.mxu0 0.0
  %112 = vmatprep.subr.mxu0 0.0
  %113 = vmatpush1.msra.mxu0 %v74
  %114 = vmatprep.subr.mxu0 0.0
  %115 = vmatpush1.msra.mxu0 %v73
  %116 = vmatprep.subr.mxu0 0.0
  %117 = vmatpush2.msra.mxu0 0.0
  %118 = vmatprep.subr.mxu0 0.0
  %119 = vmatpush2.msra.mxu0 0.0
  %120 = vmatprep.subr.mxu0 0.0
  %121 = vmatpush2.msra.mxu0 0.0
  %122 = vmatprep.subr.mxu0 0.0
  %123 = vmatpush2.msra.mxu0 0.0
  %124 = vmatprep.subr.mxu0 0.0
  %125 = vmatpush2.msra.mxu0 0.0
  %126 = vmatprep.subr.mxu0 0.0
  %127 = vmatpush2.msra.mxu0 0.0
  %128 = vmatprep.subr.mxu0 0.0
  %129 = vmatpush2.msra.mxu0 0.0
  %130 = vmatprep.subr.mxu0 0.0
  %131 = vmatpush2.msra.mxu0 0.0
  %132 = vmatprep.subr.mxu0 0.0
  %133 = vmatpush2.msra.mxu0 0.0
  %134 = vmatprep.subr.mxu0 0.0
  %135 = vmatpush2.msra.mxu0 0.0
  %136 = vmatprep.subr.mxu0 0.0
  %137 = vmatpush2.msra.mxu0 0.0
  %138 = vmatprep.subr.mxu0 0.0
  %139 = vmatpush2.msra.mxu0 0.0
  %140 = vmatprep.subr.mxu0 0.0
  %141 = vmatpush2.msra.mxu0 0.0
  %142 = vmatprep.subr.mxu0 0.0
  %143 = vmatpush2.msra.mxu0 0.0
  %144 = vmatprep.subr.mxu0 0.0
  %145 = vmatpush2.msra.mxu0 0.0
  %146 = vmatprep.subr.mxu0 0.0
  %147 = vmatpush2.msra.mxu0 0.0
  %148 = vmatprep.mubr.f32.mxu0 0.0
  %149 = vmatmul.mubr.f32.gmra.mxu0 %v79
  %v150 = vpop.f32.mrf.mxu0
  %v151 = vadd.f32 %v75, %v150
  %v152 = vpop.f32.mrf.mxu0
  %153 = vmatprep.mubr.f32.mxu0 0.0
  %154 = vmatmul.mubr.f32.gmra.mxu0 %v82
  %v155 = vpop.f32.mrf.mxu0
  %v156 = vadd.f32 %v76, %v155
  %v157 = vpop.f32.mrf.mxu0
  %158 = vdwg.mxu0
  %v159 = vlaneseq
  %v160 = vshrl.u32 %v159, 7
  %vm161 = vcmp.le.s32.totalorder %v58, %v160
  %v162 = vsel %vm161, 0.0, -inf
  %v163 = vld [vmem:[%s3] sm:$0x1]
  %v164 = vld [vmem:[%s4] sm:$0x1]
  %vm165 = vcmask 261120
  %v166 = vsel %vm165, %v151, 0.0
  %167 = vadd.xlane.f32.xlu0 %v166
  %v168 = vpop.xlane.xlu0 %167
  %v169 = vsel %vm165, %v156, 0.0
  %170 = vadd.xlane.f32.xlu0 %v169
  %v171 = vpop.xlane.xlu0 %170
  %v172 = vrcp.pop 32.0
  %v173 = vmul.f32 %v168, %v172
  %v174 = vmul.f32 %v171, %v172
  %v175 = vsub.f32 %v151, %v173
  %v176 = vsub.f32 %v156, %v174
  %v177 = vmul.f32 %v175, %v175
  %v178 = vmul.f32 %v176, %v176
  %v179 = vsel %vm165, %v177, 0.0
  %180 = vadd.xlane.f32.xlu0 %v179
  %v181 = vpop.xlane.xlu0 %180
  %v182 = vsel %vm165, %v178, 0.0
  %183 = vadd.xlane.f32.xlu0 %v182
  %v184 = vpop.xlane.xlu0 %183
  %v185 = vmul.f32 %v181, 0.032258064
  %v186 = vmul.f32 %v184, 0.032258064
  %v187 = vadd.f32 %v185, 1e-12
  %v188 = vadd.f32 %v186, 1e-12
  %v189 = vrcp.pop %v187
  %v190 = vmul.f32 %v175, %v189
  %v191 = vrcp.pop %v188
  %v192 = vmul.f32 %v176, %v191
  %v194 = vlaneseq
  %v195 = vshrl.u32 %v194, 7
  %v196 = vsub.s32 0, %v195
  %v197 = vrot.slane %v163, %v196
  %v199 = vmul.f32 %v197, %v190
  %v200 = vmul.f32 %v197, %v192
  %v202 = vlaneseq
  %v203 = vshrl.u32 %v202, 7
  %v204 = vsub.s32 0, %v203
  %v205 = vrot.slane %v164, %v204
  %v207 = vadd.f32 %v199, %v205
  %v208 = vadd.f32 %v200, %v205
  %v209 = vpack.c.bf16 %v208, %v207
  %v210 = vld [vmem:[%s5] sm:$0xf]
  %v211 = vld [vmem:[%s5 + $0x4] sm:$0xf]
  %v212 = vld [vmem:[%s5 + $0x8] sm:$0xf]
  %v213 = vld [vmem:[%s5 + $0xc] sm:$0xf]
  %v214 = vld [vmem:[%s6] sm:$0x1]
  %v216 = vlaneseq
  %v217 = vshrl.u32 %v216, 7
  %v218 = vsub.s32 0, %v217
  %v219 = vrot.slane %v214, %v218
  %v225 = vunpack.c.l.b16 %v210
  %v226 = vunpack.c.l.b16 %v211
  %v227 = vunpack.c.l.b16 %v212
  %v228 = vunpack.c.l.b16 %v213
  %v229 = vpack.c.b16 %v226, %v225
  %v230 = vpack.c.b16 %v228, %v227
  %v234 = vsel %vm165, %v209, 0
  %236 = vmatprep.subr.bf16.mxu0 0
  %237 = vmatpush1.bf16.msra.mxu0 0
  %238 = vmatprep.subr.bf16.mxu0 0
  %239 = vmatpush1.bf16.msra.mxu0 0
  %240 = vmatprep.subr.bf16.mxu0 0
  %241 = vmatpush1.bf16.msra.mxu0 0
  %242 = vmatprep.subr.bf16.mxu0 0
  %243 = vmatpush1.bf16.msra.mxu0 0
  %244 = vmatprep.subr.bf16.mxu0 0
  %245 = vmatpush1.bf16.msra.mxu0 0
  %246 = vmatprep.subr.bf16.mxu0 0
  %247 = vmatpush1.bf16.msra.mxu0 0
  %248 = vmatprep.subr.bf16.mxu0 0
  %249 = vmatpush1.bf16.msra.mxu0 %v230
  %250 = vmatprep.subr.bf16.mxu0 0
  %251 = vmatpush1.bf16.msra.mxu0 %v229
  %252 = vmatprep.subr.bf16.mxu0 0
  %253 = vmatpush2.bf16.msra.mxu0 0
  %254 = vmatprep.subr.bf16.mxu0 0
  %255 = vmatpush2.bf16.msra.mxu0 0
  %256 = vmatprep.subr.bf16.mxu0 0
  %257 = vmatpush2.bf16.msra.mxu0 0
  %258 = vmatprep.subr.bf16.mxu0 0
  %259 = vmatpush2.bf16.msra.mxu0 0
  %260 = vmatprep.subr.bf16.mxu0 0
  %261 = vmatpush2.bf16.msra.mxu0 0
  %262 = vmatprep.subr.bf16.mxu0 0
  %263 = vmatpush2.bf16.msra.mxu0 0
  %264 = vmatprep.subr.bf16.mxu0 0
  %265 = vmatpush2.bf16.msra.mxu0 0
  %266 = vmatprep.subr.bf16.mxu0 0
  %267 = vmatpush2.bf16.msra.mxu0 0
  %268 = vmatprep.mubr.bf16.mxu0 0
  %269 = vmatmul.mubr.bf16.gmra.mxu0 %v234
  %v270 = vpop.f32.mrf.mxu0
  %v271 = vadd.f32 %v219, %v270
  %v272 = vpop.f32.mrf.mxu0
  %v273 = vpop.f32.mrf.mxu0
  %v274 = vadd.f32 %v219, %v273
  %v275 = vpop.f32.mrf.mxu0
  %276 = vdwg.mxu0
  %279 = vrot.lane.b32.xlu0 %v271, 120
  %v280 = vpop.permute.xlu0 %279
  %281 = vrot.lane.b32.xlu0 %v274, 120
  %v282 = vpop.permute.xlu0 %281
  %283 = vrot.lane.b32.xlu0 %v271, 112
  %v284 = vpop.permute.xlu0 %283
  %285 = vrot.lane.b32.xlu0 %v274, 112
  %v286 = vpop.permute.xlu0 %285
  %287 = vrot.lane.b32.xlu0 %v271, 104
  %v288 = vpop.permute.xlu0 %287
  %289 = vrot.lane.b32.xlu0 %v274, 104
  %v290 = vpop.permute.xlu0 %289
  %291 = vrot.lane.b32.xlu0 %v271, 96
  %v292 = vpop.permute.xlu0 %291
  %vm293 = vcmask 64512
  %v294 = vsel %vm293, %v271, 0
  %v296 = vsel %vm293, %v292, 0
  %298 = vmatprep.subr.mxu0 0.0
  %299 = vmatpush1.xpose.msra.mxu0 0.0
  %300 = vmatprep.subr.mxu0 0.0
  %301 = vmatpush1.xpose.msra.mxu0 0.0
  %302 = vmatprep.subr.mxu0 0.0
  %303 = vmatpush1.xpose.msra.mxu0 0.0
  %304 = vmatprep.subr.mxu0 0.0
  %305 = vmatpush1.xpose.msra.mxu0 0.0
  %306 = vmatprep.subr.mxu0 0.0
  %307 = vmatpush1.xpose.msra.mxu0 0.0
  %308 = vmatprep.subr.mxu0 0.0
  %309 = vmatpush1.xpose.msra.mxu0 0.0
  %310 = vmatprep.subr.mxu0 0.0
  %311 = vmatpush1.xpose.msra.mxu0 0.0
  %312 = vmatprep.subr.mxu0 0.0
  %313 = vmatpush1.xpose.msra.mxu0 0.0
  %314 = vmatprep.subr.mxu0 0.0
  %315 = vmatpush1.xpose.msra.mxu0 0.0
  %316 = vmatprep.subr.mxu0 0.0
  %317 = vmatpush1.xpose.msra.mxu0 0.0
  %318 = vmatprep.subr.mxu0 0.0
  %319 = vmatpush1.xpose.msra.mxu0 0.0
  %320 = vmatprep.subr.mxu0 0.0
  %321 = vmatpush1.xpose.msra.mxu0 0.0
  %322 = vmatprep.subr.mxu0 0.0
  %323 = vmatpush1.xpose.msra.mxu0 0.0
  %324 = vmatprep.subr.mxu0 0.0
  %325 = vmatpush1.xpose.msra.mxu0 0.0
  %326 = vmatprep.subr.mxu0 0.0
  %327 = vmatpush1.xpose.msra.mxu0 0.0
  %328 = vmatprep.subr.mxu0 0.0
  %329 = vmatpush1.xpose.msra.mxu0 %v296
  %330 = vmatprep.subr.mxu0 0.0
  %331 = vmatpush2.xpose.msra.mxu0 0.0
  %332 = vmatprep.subr.mxu0 0.0
  %333 = vmatpush2.xpose.msra.mxu0 0.0
  %334 = vmatprep.subr.mxu0 0.0
  %335 = vmatpush2.xpose.msra.mxu0 0.0
  %336 = vmatprep.subr.mxu0 0.0
  %337 = vmatpush2.xpose.msra.mxu0 0.0
  %338 = vmatprep.subr.mxu0 0.0
  %339 = vmatpush2.xpose.msra.mxu0 0.0
  %340 = vmatprep.subr.mxu0 0.0
  %341 = vmatpush2.xpose.msra.mxu0 0.0
  %342 = vmatprep.subr.mxu0 0.0
  %343 = vmatpush2.xpose.msra.mxu0 0.0
  %344 = vmatprep.subr.mxu0 0.0
  %345 = vmatpush2.xpose.msra.mxu0 0.0
  %346 = vmatprep.subr.mxu0 0.0
  %347 = vmatpush2.xpose.msra.mxu0 0.0
  %348 = vmatprep.subr.mxu0 0.0
  %349 = vmatpush2.xpose.msra.mxu0 0.0
  %350 = vmatprep.subr.mxu0 0.0
  %351 = vmatpush2.xpose.msra.mxu0 0.0
  %352 = vmatprep.subr.mxu0 0.0
  %353 = vmatpush2.xpose.msra.mxu0 0.0
  %354 = vmatprep.subr.mxu0 0.0
  %355 = vmatpush2.xpose.msra.mxu0 0.0
  %356 = vmatprep.subr.mxu0 0.0
  %357 = vmatpush2.xpose.msra.mxu0 0.0
  %358 = vmatprep.subr.mxu0 0.0
  %359 = vmatpush2.xpose.msra.mxu0 0.0
  %360 = vmatprep.subr.mxu0 0.0
  %361 = vmatpush2.xpose.msra.mxu0 0.0
  %362 = vmatprep.mubr.f32.mxu0 0.0
  %363 = vmatmul.mubr.f32.gmra.mxu0 %v294
  %v364 = vpop.f32.mrf.mxu0
  %v365 = vadd.f32 0.0, %v364
  %v366 = vpop.f32.mrf.mxu0
  %367 = vdwg.mxu0
  %368 = vrot.lane.b32.xlu0 %v274, 96
  %v369 = vpop.permute.xlu0 %368
  %v370 = vsel %vm293, %v274, 0
  %v372 = vsel %vm293, %v369, 0
  %374 = vmatprep.subr.mxu0 0.0
  %375 = vmatpush1.xpose.msra.mxu0 0.0
  %376 = vmatprep.subr.mxu0 0.0
  %377 = vmatpush1.xpose.msra.mxu0 0.0
  %378 = vmatprep.subr.mxu0 0.0
  %379 = vmatpush1.xpose.msra.mxu0 0.0
  %380 = vmatprep.subr.mxu0 0.0
  %381 = vmatpush1.xpose.msra.mxu0 0.0
  %382 = vmatprep.subr.mxu0 0.0
  %383 = vmatpush1.xpose.msra.mxu0 0.0
  %384 = vmatprep.subr.mxu0 0.0
  %385 = vmatpush1.xpose.msra.mxu0 0.0
  %386 = vmatprep.subr.mxu0 0.0
  %387 = vmatpush1.xpose.msra.mxu0 0.0
  %388 = vmatprep.subr.mxu0 0.0
  %389 = vmatpush1.xpose.msra.mxu0 0.0
  %390 = vmatprep.subr.mxu0 0.0
  %391 = vmatpush1.xpose.msra.mxu0 0.0
  %392 = vmatprep.subr.mxu0 0.0
  %393 = vmatpush1.xpose.msra.mxu0 0.0
  %394 = vmatprep.subr.mxu0 0.0
  %395 = vmatpush1.xpose.msra.mxu0 0.0
  %396 = vmatprep.subr.mxu0 0.0
  %397 = vmatpush1.xpose.msra.mxu0 0.0
  %398 = vmatprep.subr.mxu0 0.0
  %399 = vmatpush1.xpose.msra.mxu0 0.0
  %400 = vmatprep.subr.mxu0 0.0
  %401 = vmatpush1.xpose.msra.mxu0 0.0
  %402 = vmatprep.subr.mxu0 0.0
  %403 = vmatpush1.xpose.msra.mxu0 0.0
  %404 = vmatprep.subr.mxu0 0.0
  %405 = vmatpush1.xpose.msra.mxu0 %v372
  %406 = vmatprep.subr.mxu0 0.0
  %407 = vmatpush2.xpose.msra.mxu0 0.0
  %408 = vmatprep.subr.mxu0 0.0
  %409 = vmatpush2.xpose.msra.mxu0 0.0
  %410 = vmatprep.subr.mxu0 0.0
  %411 = vmatpush2.xpose.msra.mxu0 0.0
  %412 = vmatprep.subr.mxu0 0.0
  %413 = vmatpush2.xpose.msra.mxu0 0.0
  %414 = vmatprep.subr.mxu0 0.0
  %415 = vmatpush2.xpose.msra.mxu0 0.0
  %416 = vmatprep.subr.mxu0 0.0
  %417 = vmatpush2.xpose.msra.mxu0 0.0
  %418 = vmatprep.subr.mxu0 0.0
  %419 = vmatpush2.xpose.msra.mxu0 0.0
  %420 = vmatprep.subr.mxu0 0.0
  %421 = vmatpush2.xpose.msra.mxu0 0.0
  %422 = vmatprep.subr.mxu0 0.0
  %423 = vmatpush2.xpose.msra.mxu0 0.0
  %424 = vmatprep.subr.mxu0 0.0
  %425 = vmatpush2.xpose.msra.mxu0 0.0
  %426 = vmatprep.subr.mxu0 0.0
  %427 = vmatpush2.xpose.msra.mxu0 0.0
  %428 = vmatprep.subr.mxu0 0.0
  %429 = vmatpush2.xpose.msra.mxu0 0.0
  %430 = vmatprep.subr.mxu0 0.0
  %431 = vmatpush2.xpose.msra.mxu0 0.0
  %432 = vmatprep.subr.mxu0 0.0
  %433 = vmatpush2.xpose.msra.mxu0 0.0
  %434 = vmatprep.subr.mxu0 0.0
  %435 = vmatpush2.xpose.msra.mxu0 0.0
  %436 = vmatprep.subr.mxu0 0.0
  %437 = vmatpush2.xpose.msra.mxu0 0.0
  %438 = vmatprep.mubr.f32.mxu0 0.0
  %439 = vmatmul.mubr.f32.gmra.mxu0 %v370
  %v440 = vpop.f32.mrf.mxu0
  %v441 = vadd.f32 0.0, %v440
  %v442 = vpop.f32.mrf.mxu0
  %443 = vdwg.mxu0
  %444 = vrot.lane.b32.xlu0 %v280, 96
  %v445 = vpop.permute.xlu0 %444
  %v446 = vsel %vm293, %v280, 0
  %v448 = vsel %vm293, %v445, 0
  %450 = vmatprep.subr.mxu0 0.0
  %451 = vmatpush1.xpose.msra.mxu0 0.0
  %452 = vmatprep.subr.mxu0 0.0
  %453 = vmatpush1.xpose.msra.mxu0 0.0
  %454 = vmatprep.subr.mxu0 0.0
  %455 = vmatpush1.xpose.msra.mxu0 0.0
  %456 = vmatprep.subr.mxu0 0.0
  %457 = vmatpush1.xpose.msra.mxu0 0.0
  %458 = vmatprep.subr.mxu0 0.0
  %459 = vmatpush1.xpose.msra.mxu0 0.0
  %460 = vmatprep.subr.mxu0 0.0
  %461 = vmatpush1.xpose.msra.mxu0 0.0
  %462 = vmatprep.subr.mxu0 0.0
  %463 = vmatpush1.xpose.msra.mxu0 0.0
  %464 = vmatprep.subr.mxu0 0.0
  %465 = vmatpush1.xpose.msra.mxu0 0.0
  %466 = vmatprep.subr.mxu0 0.0
  %467 = vmatpush1.xpose.msra.mxu0 0.0
  %468 = vmatprep.subr.mxu0 0.0
  %469 = vmatpush1.xpose.msra.mxu0 0.0
  %470 = vmatprep.subr.mxu0 0.0
  %471 = vmatpush1.xpose.msra.mxu0 0.0
  %472 = vmatprep.subr.mxu0 0.0
  %473 = vmatpush1.xpose.msra.mxu0 0.0
  %474 = vmatprep.subr.mxu0 0.0
  %475 = vmatpush1.xpose.msra.mxu0 0.0
  %476 = vmatprep.subr.mxu0 0.0
  %477 = vmatpush1.xpose.msra.mxu0 0.0
  %478 = vmatprep.subr.mxu0 0.0
  %479 = vmatpush1.xpose.msra.mxu0 0.0
  %480 = vmatprep.subr.mxu0 0.0
  %481 = vmatpush1.xpose.msra.mxu0 %v448
  %482 = vmatprep.subr.mxu0 0.0
  %483 = vmatpush2.xpose.msra.mxu0 0.0
  %484 = vmatprep.subr.mxu0 0.0
  %485 = vmatpush2.xpose.msra.mxu0 0.0
  %486 = vmatprep.subr.mxu0 0.0
  %487 = vmatpush2.xpose.msra.mxu0 0.0
  %488 = vmatprep.subr.mxu0 0.0
  %489 = vmatpush2.xpose.msra.mxu0 0.0
  %490 = vmatprep.subr.mxu0 0.0
  %491 = vmatpush2.xpose.msra.mxu0 0.0
  %492 = vmatprep.subr.mxu0 0.0
  %493 = vmatpush2.xpose.msra.mxu0 0.0
  %494 = vmatprep.subr.mxu0 0.0
  %495 = vmatpush2.xpose.msra.mxu0 0.0
  %496 = vmatprep.subr.mxu0 0.0
  %497 = vmatpush2.xpose.msra.mxu0 0.0
  %498 = vmatprep.subr.mxu0 0.0
  %499 = vmatpush2.xpose.msra.mxu0 0.0
  %500 = vmatprep.subr.mxu0 0.0
  %501 = vmatpush2.xpose.msra.mxu0 0.0
  %502 = vmatprep.subr.mxu0 0.0
  %503 = vmatpush2.xpose.msra.mxu0 0.0
  %504 = vmatprep.subr.mxu0 0.0
  %505 = vmatpush2.xpose.msra.mxu0 0.0
  %506 = vmatprep.subr.mxu0 0.0
  %507 = vmatpush2.xpose.msra.mxu0 0.0
  %508 = vmatprep.subr.mxu0 0.0
  %509 = vmatpush2.xpose.msra.mxu0 0.0
  %510 = vmatprep.subr.mxu0 0.0
  %511 = vmatpush2.xpose.msra.mxu0 0.0
  %512 = vmatprep.subr.mxu0 0.0
  %513 = vmatpush2.xpose.msra.mxu0 0.0
  %514 = vmatprep.mubr.f32.mxu0 0.0
  %515 = vmatmul.mubr.f32.gmra.mxu0 %v446
  %v516 = vpop.f32.mrf.mxu0
  %v517 = vadd.f32 0.0, %v516
  %v518 = vpop.f32.mrf.mxu0
  %519 = vdwg.mxu0
  %520 = vrot.lane.b32.xlu0 %v282, 96
  %v521 = vpop.permute.xlu0 %520
  %v522 = vsel %vm293, %v282, 0
  %v524 = vsel %vm293, %v521, 0
  %526 = vmatprep.subr.mxu0 0.0
  %527 = vmatpush1.xpose.msra.mxu0 0.0
  %528 = vmatprep.subr.mxu0 0.0
  %529 = vmatpush1.xpose.msra.mxu0 0.0
  %530 = vmatprep.subr.mxu0 0.0
  %531 = vmatpush1.xpose.msra.mxu0 0.0
  %532 = vmatprep.subr.mxu0 0.0
  %533 = vmatpush1.xpose.msra.mxu0 0.0
  %534 = vmatprep.subr.mxu0 0.0
  %535 = vmatpush1.xpose.msra.mxu0 0.0
  %536 = vmatprep.subr.mxu0 0.0
  %537 = vmatpush1.xpose.msra.mxu0 0.0
  %538 = vmatprep.subr.mxu0 0.0
  %539 = vmatpush1.xpose.msra.mxu0 0.0
  %540 = vmatprep.subr.mxu0 0.0
  %541 = vmatpush1.xpose.msra.mxu0 0.0
  %542 = vmatprep.subr.mxu0 0.0
  %543 = vmatpush1.xpose.msra.mxu0 0.0
  %544 = vmatprep.subr.mxu0 0.0
  %545 = vmatpush1.xpose.msra.mxu0 0.0
  %546 = vmatprep.subr.mxu0 0.0
  %547 = vmatpush1.xpose.msra.mxu0 0.0
  %548 = vmatprep.subr.mxu0 0.0
  %549 = vmatpush1.xpose.msra.mxu0 0.0
  %550 = vmatprep.subr.mxu0 0.0
  %551 = vmatpush1.xpose.msra.mxu0 0.0
  %552 = vmatprep.subr.mxu0 0.0
  %553 = vmatpush1.xpose.msra.mxu0 0.0
  %554 = vmatprep.subr.mxu0 0.0
  %555 = vmatpush1.xpose.msra.mxu0 0.0
  %556 = vmatprep.subr.mxu0 0.0
  %557 = vmatpush1.xpose.msra.mxu0 %v524
  %558 = vmatprep.subr.mxu0 0.0
  %559 = vmatpush2.xpose.msra.mxu0 0.0
  %560 = vmatprep.subr.mxu0 0.0
  %561 = vmatpush2.xpose.msra.mxu0 0.0
  %562 = vmatprep.subr.mxu0 0.0
  %563 = vmatpush2.xpose.msra.mxu0 0.0
  %564 = vmatprep.subr.mxu0 0.0
  %565 = vmatpush2.xpose.msra.mxu0 0.0
  %566 = vmatprep.subr.mxu0 0.0
  %567 = vmatpush2.xpose.msra.mxu0 0.0
  %568 = vmatprep.subr.mxu0 0.0
  %569 = vmatpush2.xpose.msra.mxu0 0.0
  %570 = vmatprep.subr.mxu0 0.0
  %571 = vmatpush2.xpose.msra.mxu0 0.0
  %572 = vmatprep.subr.mxu0 0.0
  %573 = vmatpush2.xpose.msra.mxu0 0.0
  %574 = vmatprep.subr.mxu0 0.0
  %575 = vmatpush2.xpose.msra.mxu0 0.0
  %576 = vmatprep.subr.mxu0 0.0
  %577 = vmatpush2.xpose.msra.mxu0 0.0
  %578 = vmatprep.subr.mxu0 0.0
  %579 = vmatpush2.xpose.msra.mxu0 0.0
  %580 = vmatprep.subr.mxu0 0.0
  %581 = vmatpush2.xpose.msra.mxu0 0.0
  %582 = vmatprep.subr.mxu0 0.0
  %583 = vmatpush2.xpose.msra.mxu0 0.0
  %584 = vmatprep.subr.mxu0 0.0
  %585 = vmatpush2.xpose.msra.mxu0 0.0
  %586 = vmatprep.subr.mxu0 0.0
  %587 = vmatpush2.xpose.msra.mxu0 0.0
  %588 = vmatprep.subr.mxu0 0.0
  %589 = vmatpush2.xpose.msra.mxu0 0.0
  %590 = vmatprep.mubr.f32.mxu0 0.0
  %591 = vmatmul.mubr.f32.gmra.mxu0 %v522
  %v592 = vpop.f32.mrf.mxu0
  %v593 = vadd.f32 0.0, %v592
  %v594 = vpop.f32.mrf.mxu0
  %595 = vdwg.mxu0
  %596 = vrot.lane.b32.xlu0 %v284, 96
  %v597 = vpop.permute.xlu0 %596
  %v598 = vsel %vm293, %v284, 0
  %v600 = vsel %vm293, %v597, 0
  %602 = vmatprep.subr.mxu0 0.0
  %603 = vmatpush1.xpose.msra.mxu0 0.0
  %604 = vmatprep.subr.mxu0 0.0
  %605 = vmatpush1.xpose.msra.mxu0 0.0
  %606 = vmatprep.subr.mxu0 0.0
  %607 = vmatpush1.xpose.msra.mxu0 0.0
  %608 = vmatprep.subr.mxu0 0.0
  %609 = vmatpush1.xpose.msra.mxu0 0.0
  %610 = vmatprep.subr.mxu0 0.0
  %611 = vmatpush1.xpose.msra.mxu0 0.0
  %612 = vmatprep.subr.mxu0 0.0
  %613 = vmatpush1.xpose.msra.mxu0 0.0
  %614 = vmatprep.subr.mxu0 0.0
  %615 = vmatpush1.xpose.msra.mxu0 0.0
  %616 = vmatprep.subr.mxu0 0.0
  %617 = vmatpush1.xpose.msra.mxu0 0.0
  %618 = vmatprep.subr.mxu0 0.0
  %619 = vmatpush1.xpose.msra.mxu0 0.0
  %620 = vmatprep.subr.mxu0 0.0
  %621 = vmatpush1.xpose.msra.mxu0 0.0
  %622 = vmatprep.subr.mxu0 0.0
  %623 = vmatpush1.xpose.msra.mxu0 0.0
  %624 = vmatprep.subr.mxu0 0.0
  %625 = vmatpush1.xpose.msra.mxu0 0.0
  %626 = vmatprep.subr.mxu0 0.0
  %627 = vmatpush1.xpose.msra.mxu0 0.0
  %628 = vmatprep.subr.mxu0 0.0
  %629 = vmatpush1.xpose.msra.mxu0 0.0
  %630 = vmatprep.subr.mxu0 0.0
  %631 = vmatpush1.xpose.msra.mxu0 0.0
  %632 = vmatprep.subr.mxu0 0.0
  %633 = vmatpush1.xpose.msra.mxu0 %v600
  %634 = vmatprep.subr.mxu0 0.0
  %635 = vmatpush2.xpose.msra.mxu0 0.0
  %636 = vmatprep.subr.mxu0 0.0
  %637 = vmatpush2.xpose.msra.mxu0 0.0
  %638 = vmatprep.subr.mxu0 0.0
  %639 = vmatpush2.xpose.msra.mxu0 0.0
  %640 = vmatprep.subr.mxu0 0.0
  %641 = vmatpush2.xpose.msra.mxu0 0.0
  %642 = vmatprep.subr.mxu0 0.0
  %643 = vmatpush2.xpose.msra.mxu0 0.0
  %644 = vmatprep.subr.mxu0 0.0
  %645 = vmatpush2.xpose.msra.mxu0 0.0
  %646 = vmatprep.subr.mxu0 0.0
  %647 = vmatpush2.xpose.msra.mxu0 0.0
  %648 = vmatprep.subr.mxu0 0.0
  %649 = vmatpush2.xpose.msra.mxu0 0.0
  %650 = vmatprep.subr.mxu0 0.0
  %651 = vmatpush2.xpose.msra.mxu0 0.0
  %652 = vmatprep.subr.mxu0 0.0
  %653 = vmatpush2.xpose.msra.mxu0 0.0
  %654 = vmatprep.subr.mxu0 0.0
  %655 = vmatpush2.xpose.msra.mxu0 0.0
  %656 = vmatprep.subr.mxu0 0.0
  %657 = vmatpush2.xpose.msra.mxu0 0.0
  %658 = vmatprep.subr.mxu0 0.0
  %659 = vmatpush2.xpose.msra.mxu0 0.0
  %660 = vmatprep.subr.mxu0 0.0
  %661 = vmatpush2.xpose.msra.mxu0 0.0
  %662 = vmatprep.subr.mxu0 0.0
  %663 = vmatpush2.xpose.msra.mxu0 0.0
  %664 = vmatprep.subr.mxu0 0.0
  %665 = vmatpush2.xpose.msra.mxu0 0.0
  %666 = vmatprep.mubr.f32.mxu0 0.0
  %667 = vmatmul.mubr.f32.gmra.mxu0 %v598
  %v668 = vpop.f32.mrf.mxu0
  %v669 = vadd.f32 0.0, %v668
  %v670 = vpop.f32.mrf.mxu0
  %671 = vdwg.mxu0
  %672 = vrot.lane.b32.xlu0 %v286, 96
  %v673 = vpop.permute.xlu0 %672
  %v674 = vsel %vm293, %v286, 0
  %v676 = vsel %vm293, %v673, 0
  %678 = vmatprep.subr.mxu0 0.0
  %679 = vmatpush1.xpose.msra.mxu0 0.0
  %680 = vmatprep.subr.mxu0 0.0
  %681 = vmatpush1.xpose.msra.mxu0 0.0
  %682 = vmatprep.subr.mxu0 0.0
  %683 = vmatpush1.xpose.msra.mxu0 0.0
  %684 = vmatprep.subr.mxu0 0.0
  %685 = vmatpush1.xpose.msra.mxu0 0.0
  %686 = vmatprep.subr.mxu0 0.0
  %687 = vmatpush1.xpose.msra.mxu0 0.0
  %688 = vmatprep.subr.mxu0 0.0
  %689 = vmatpush1.xpose.msra.mxu0 0.0
  %690 = vmatprep.subr.mxu0 0.0
  %691 = vmatpush1.xpose.msra.mxu0 0.0
  %692 = vmatprep.subr.mxu0 0.0
  %693 = vmatpush1.xpose.msra.mxu0 0.0
  %694 = vmatprep.subr.mxu0 0.0
  %695 = vmatpush1.xpose.msra.mxu0 0.0
  %696 = vmatprep.subr.mxu0 0.0
  %697 = vmatpush1.xpose.msra.mxu0 0.0
  %698 = vmatprep.subr.mxu0 0.0
  %699 = vmatpush1.xpose.msra.mxu0 0.0
  %700 = vmatprep.subr.mxu0 0.0
  %701 = vmatpush1.xpose.msra.mxu0 0.0
  %702 = vmatprep.subr.mxu0 0.0
  %703 = vmatpush1.xpose.msra.mxu0 0.0
  %704 = vmatprep.subr.mxu0 0.0
  %705 = vmatpush1.xpose.msra.mxu0 0.0
  %706 = vmatprep.subr.mxu0 0.0
  %707 = vmatpush1.xpose.msra.mxu0 0.0
  %708 = vmatprep.subr.mxu0 0.0
  %709 = vmatpush1.xpose.msra.mxu0 %v676
  %710 = vmatprep.subr.mxu0 0.0
  %711 = vmatpush2.xpose.msra.mxu0 0.0
  %712 = vmatprep.subr.mxu0 0.0
  %713 = vmatpush2.xpose.msra.mxu0 0.0
  %714 = vmatprep.subr.mxu0 0.0
  %715 = vmatpush2.xpose.msra.mxu0 0.0
  %716 = vmatprep.subr.mxu0 0.0
  %717 = vmatpush2.xpose.msra.mxu0 0.0
  %718 = vmatprep.subr.mxu0 0.0
  %719 = vmatpush2.xpose.msra.mxu0 0.0
  %720 = vmatprep.subr.mxu0 0.0
  %721 = vmatpush2.xpose.msra.mxu0 0.0
  %722 = vmatprep.subr.mxu0 0.0
  %723 = vmatpush2.xpose.msra.mxu0 0.0
  %724 = vmatprep.subr.mxu0 0.0
  %725 = vmatpush2.xpose.msra.mxu0 0.0
  %726 = vmatprep.subr.mxu0 0.0
  %727 = vmatpush2.xpose.msra.mxu0 0.0
  %728 = vmatprep.subr.mxu0 0.0
  %729 = vmatpush2.xpose.msra.mxu0 0.0
  %730 = vmatprep.subr.mxu0 0.0
  %731 = vmatpush2.xpose.msra.mxu0 0.0
  %732 = vmatprep.subr.mxu0 0.0
  %733 = vmatpush2.xpose.msra.mxu0 0.0
  %734 = vmatprep.subr.mxu0 0.0
  %735 = vmatpush2.xpose.msra.mxu0 0.0
  %736 = vmatprep.subr.mxu0 0.0
  %737 = vmatpush2.xpose.msra.mxu0 0.0
  %738 = vmatprep.subr.mxu0 0.0
  %739 = vmatpush2.xpose.msra.mxu0 0.0
  %740 = vmatprep.subr.mxu0 0.0
  %741 = vmatpush2.xpose.msra.mxu0 0.0
  %742 = vmatprep.mubr.f32.mxu0 0.0
  %743 = vmatmul.mubr.f32.gmra.mxu0 %v674
  %v744 = vpop.f32.mrf.mxu0
  %v745 = vadd.f32 0.0, %v744
  %v746 = vpop.f32.mrf.mxu0
  %747 = vdwg.mxu0
  %748 = vrot.lane.b32.xlu0 %v288, 96
  %v749 = vpop.permute.xlu0 %748
  %v750 = vsel %vm293, %v288, 0
  %v752 = vsel %vm293, %v749, 0
  %754 = vmatprep.subr.mxu0 0.0
  %755 = vmatpush1.xpose.msra.mxu0 0.0
  %756 = vmatprep.subr.mxu0 0.0
  %757 = vmatpush1.xpose.msra.mxu0 0.0
  %758 = vmatprep.subr.mxu0 0.0
  %759 = vmatpush1.xpose.msra.mxu0 0.0
  %760 = vmatprep.subr.mxu0 0.0
  %761 = vmatpush1.xpose.msra.mxu0 0.0
  %762 = vmatprep.subr.mxu0 0.0
  %763 = vmatpush1.xpose.msra.mxu0 0.0
  %764 = vmatprep.subr.mxu0 0.0
  %765 = vmatpush1.xpose.msra.mxu0 0.0
  %766 = vmatprep.subr.mxu0 0.0
  %767 = vmatpush1.xpose.msra.mxu0 0.0
  %768 = vmatprep.subr.mxu0 0.0
  %769 = vmatpush1.xpose.msra.mxu0 0.0
  %770 = vmatprep.subr.mxu0 0.0
  %771 = vmatpush1.xpose.msra.mxu0 0.0
  %772 = vmatprep.subr.mxu0 0.0
  %773 = vmatpush1.xpose.msra.mxu0 0.0
  %774 = vmatprep.subr.mxu0 0.0
  %775 = vmatpush1.xpose.msra.mxu0 0.0
  %776 = vmatprep.subr.mxu0 0.0
  %777 = vmatpush1.xpose.msra.mxu0 0.0
  %778 = vmatprep.subr.mxu0 0.0
  %779 = vmatpush1.xpose.msra.mxu0 0.0
  %780 = vmatprep.subr.mxu0 0.0
  %781 = vmatpush1.xpose.msra.mxu0 0.0
  %782 = vmatprep.subr.mxu0 0.0
  %783 = vmatpush1.xpose.msra.mxu0 0.0
  %784 = vmatprep.subr.mxu0 0.0
  %785 = vmatpush1.xpose.msra.mxu0 %v752
  %786 = vmatprep.subr.mxu0 0.0
  %787 = vmatpush2.xpose.msra.mxu0 0.0
  %788 = vmatprep.subr.mxu0 0.0
  %789 = vmatpush2.xpose.msra.mxu0 0.0
  %790 = vmatprep.subr.mxu0 0.0
  %791 = vmatpush2.xpose.msra.mxu0 0.0
  %792 = vmatprep.subr.mxu0 0.0
  %793 = vmatpush2.xpose.msra.mxu0 0.0
  %794 = vmatprep.subr.mxu0 0.0
  %795 = vmatpush2.xpose.msra.mxu0 0.0
  %796 = vmatprep.subr.mxu0 0.0
  %797 = vmatpush2.xpose.msra.mxu0 0.0
  %798 = vmatprep.subr.mxu0 0.0
  %799 = vmatpush2.xpose.msra.mxu0 0.0
  %800 = vmatprep.subr.mxu0 0.0
  %801 = vmatpush2.xpose.msra.mxu0 0.0
  %802 = vmatprep.subr.mxu0 0.0
  %803 = vmatpush2.xpose.msra.mxu0 0.0
  %804 = vmatprep.subr.mxu0 0.0
  %805 = vmatpush2.xpose.msra.mxu0 0.0
  %806 = vmatprep.subr.mxu0 0.0
  %807 = vmatpush2.xpose.msra.mxu0 0.0
  %808 = vmatprep.subr.mxu0 0.0
  %809 = vmatpush2.xpose.msra.mxu0 0.0
  %810 = vmatprep.subr.mxu0 0.0
  %811 = vmatpush2.xpose.msra.mxu0 0.0
  %812 = vmatprep.subr.mxu0 0.0
  %813 = vmatpush2.xpose.msra.mxu0 0.0
  %814 = vmatprep.subr.mxu0 0.0
  %815 = vmatpush2.xpose.msra.mxu0 0.0
  %816 = vmatprep.subr.mxu0 0.0
  %817 = vmatpush2.xpose.msra.mxu0 0.0
  %818 = vmatprep.mubr.f32.mxu0 0.0
  %819 = vmatmul.mubr.f32.gmra.mxu0 %v750
  %v820 = vpop.f32.mrf.mxu0
  %v821 = vadd.f32 0.0, %v820
  %v822 = vpop.f32.mrf.mxu0
  %823 = vdwg.mxu0
  %824 = vrot.lane.b32.xlu0 %v290, 96
  %v825 = vpop.permute.xlu0 %824
  %v826 = vsel %vm293, %v290, 0
  %v828 = vsel %vm293, %v825, 0
  %830 = vmatprep.subr.mxu0 0.0
  %831 = vmatpush1.xpose.msra.mxu0 0.0
  %832 = vmatprep.subr.mxu0 0.0
  %833 = vmatpush1.xpose.msra.mxu0 0.0
  %834 = vmatprep.subr.mxu0 0.0
  %835 = vmatpush1.xpose.msra.mxu0 0.0
  %836 = vmatprep.subr.mxu0 0.0
  %837 = vmatpush1.xpose.msra.mxu0 0.0
  %838 = vmatprep.subr.mxu0 0.0
  %839 = vmatpush1.xpose.msra.mxu0 0.0
  %840 = vmatprep.subr.mxu0 0.0
  %841 = vmatpush1.xpose.msra.mxu0 0.0
  %842 = vmatprep.subr.mxu0 0.0
  %843 = vmatpush1.xpose.msra.mxu0 0.0
  %844 = vmatprep.subr.mxu0 0.0
  %845 = vmatpush1.xpose.msra.mxu0 0.0
  %846 = vmatprep.subr.mxu0 0.0
  %847 = vmatpush1.xpose.msra.mxu0 0.0
  %848 = vmatprep.subr.mxu0 0.0
  %849 = vmatpush1.xpose.msra.mxu0 0.0
  %850 = vmatprep.subr.mxu0 0.0
  %851 = vmatpush1.xpose.msra.mxu0 0.0
  %852 = vmatprep.subr.mxu0 0.0
  %853 = vmatpush1.xpose.msra.mxu0 0.0
  %854 = vmatprep.subr.mxu0 0.0
  %855 = vmatpush1.xpose.msra.mxu0 0.0
  %856 = vmatprep.subr.mxu0 0.0
  %857 = vmatpush1.xpose.msra.mxu0 0.0
  %858 = vmatprep.subr.mxu0 0.0
  %859 = vmatpush1.xpose.msra.mxu0 0.0
  %860 = vmatprep.subr.mxu0 0.0
  %861 = vmatpush1.xpose.msra.mxu0 %v828
  %862 = vmatprep.subr.mxu0 0.0
  %863 = vmatpush2.xpose.msra.mxu0 0.0
  %864 = vmatprep.subr.mxu0 0.0
  %865 = vmatpush2.xpose.msra.mxu0 0.0
  %866 = vmatprep.subr.mxu0 0.0
  %867 = vmatpush2.xpose.msra.mxu0 0.0
  %868 = vmatprep.subr.mxu0 0.0
  %869 = vmatpush2.xpose.msra.mxu0 0.0
  %870 = vmatprep.subr.mxu0 0.0
  %871 = vmatpush2.xpose.msra.mxu0 0.0
  %872 = vmatprep.subr.mxu0 0.0
  %873 = vmatpush2.xpose.msra.mxu0 0.0
  %874 = vmatprep.subr.mxu0 0.0
  %875 = vmatpush2.xpose.msra.mxu0 0.0
  %876 = vmatprep.subr.mxu0 0.0
  %877 = vmatpush2.xpose.msra.mxu0 0.0
  %878 = vmatprep.subr.mxu0 0.0
  %879 = vmatpush2.xpose.msra.mxu0 0.0
  %880 = vmatprep.subr.mxu0 0.0
  %881 = vmatpush2.xpose.msra.mxu0 0.0
  %882 = vmatprep.subr.mxu0 0.0
  %883 = vmatpush2.xpose.msra.mxu0 0.0
  %884 = vmatprep.subr.mxu0 0.0
  %885 = vmatpush2.xpose.msra.mxu0 0.0
  %886 = vmatprep.subr.mxu0 0.0
  %887 = vmatpush2.xpose.msra.mxu0 0.0
  %888 = vmatprep.subr.mxu0 0.0
  %889 = vmatpush2.xpose.msra.mxu0 0.0
  %890 = vmatprep.subr.mxu0 0.0
  %891 = vmatpush2.xpose.msra.mxu0 0.0
  %892 = vmatprep.subr.mxu0 0.0
  %893 = vmatpush2.xpose.msra.mxu0 0.0
  %894 = vmatprep.mubr.f32.mxu0 0.0
  %895 = vmatmul.mubr.f32.gmra.mxu0 %v826
  %v896 = vpop.f32.mrf.mxu0
  %v897 = vadd.f32 0.0, %v896
  %v898 = vpop.f32.mrf.mxu0
  %899 = vdwg.mxu0
  %v900 = vmul.f32 %v365, 0.17677669
  %v901 = vmul.f32 %v441, 0.17677669
  %v902 = vmul.f32 %v517, 0.17677669
  %v903 = vmul.f32 %v593, 0.17677669
  %v904 = vmul.f32 %v669, 0.17677669
  %v905 = vmul.f32 %v745, 0.17677669
  %v906 = vmul.f32 %v821, 0.17677669
  %v907 = vmul.f32 %v897, 0.17677669
  %v908 = vadd.f32 %v900, %v162
  %v909 = vadd.f32 %v901, %v162
  %v910 = vadd.f32 %v902, %v162
  %v911 = vadd.f32 %v903, %v162
  %v912 = vadd.f32 %v904, %v162
  %v913 = vadd.f32 %v905, %v162
  %v914 = vadd.f32 %v906, %v162
  %v915 = vadd.f32 %v907, %v162
  %v916 = vsel %vm293, %v908, -inf
  %917 = vmax.xlane.f32.xlu0 %v916
  %v918 = vpop.xlane.xlu0 %917
  %v919 = vsel %vm293, %v909, -inf
  %920 = vmax.xlane.f32.xlu0 %v919
  %v921 = vpop.xlane.xlu0 %920
  %v922 = vsel %vm293, %v910, -inf
  %923 = vmax.xlane.f32.xlu0 %v922
  %v924 = vpop.xlane.xlu0 %923
  %v925 = vsel %vm293, %v911, -inf
  %926 = vmax.xlane.f32.xlu0 %v925
  %v927 = vpop.xlane.xlu0 %926
  %v928 = vsel %vm293, %v912, -inf
  %929 = vmax.xlane.f32.xlu0 %v928
  %v930 = vpop.xlane.xlu0 %929
  %v931 = vsel %vm293, %v913, -inf
  %932 = vmax.xlane.f32.xlu0 %v931
  %v933 = vpop.xlane.xlu0 %932
  %v934 = vsel %vm293, %v914, -inf
  %935 = vmax.xlane.f32.xlu0 %v934
  %v936 = vpop.xlane.xlu0 %935
  %v937 = vsel %vm293, %v915, -inf
  %938 = vmax.xlane.f32.xlu0 %v937
  %v939 = vpop.xlane.xlu0 %938
  %v940 = vsub.f32 %v908, %v918
  %v941 = vsub.f32 %v909, %v921
  %v942 = vsub.f32 %v910, %v924
  %v943 = vsub.f32 %v911, %v927
  %v944 = vsub.f32 %v912, %v930
  %v945 = vsub.f32 %v913, %v933
  %v946 = vsub.f32 %v914, %v936
  %v947 = vsub.f32 %v915, %v939
  %v948 = vmul.f32 %v940, 1.442695
  %v949 = vpow.pop %v948
  %v950 = vmul.f32 %v941, 1.442695
  %v951 = vpow.pop %v950
  %v952 = vmul.f32 %v942, 1.442695
  %v953 = vpow.pop %v952
  %v954 = vmul.f32 %v943, 1.442695
  %v955 = vpow.pop %v954
  %v956 = vmul.f32 %v944, 1.442695
  %v957 = vpow.pop %v956
  %v958 = vmul.f32 %v945, 1.442695
  %v959 = vpow.pop %v958
  %v960 = vmul.f32 %v946, 1.442695
  %v961 = vpow.pop %v960
  %v962 = vmul.f32 %v947, 1.442695
  %v963 = vpow.pop %v962
  %v964 = vsel %vm293, %v949, 0.0
  %965 = vadd.xlane.f32.xlu0 %v964
  %v966 = vpop.xlane.xlu0 %965
  %v967 = vsel %vm293, %v951, 0.0
  %968 = vadd.xlane.f32.xlu0 %v967
  %v969 = vpop.xlane.xlu0 %968
  %v970 = vsel %vm293, %v953, 0.0
  %971 = vadd.xlane.f32.xlu0 %v970
  %v972 = vpop.xlane.xlu0 %971
  %v973 = vsel %vm293, %v955, 0.0
  %974 = vadd.xlane.f32.xlu0 %v973
  %v975 = vpop.xlane.xlu0 %974
  %v976 = vsel %vm293, %v957, 0.0
  %977 = vadd.xlane.f32.xlu0 %v976
  %v978 = vpop.xlane.xlu0 %977
  %v979 = vsel %vm293, %v959, 0.0
  %980 = vadd.xlane.f32.xlu0 %v979
  %v981 = vpop.xlane.xlu0 %980
  %v982 = vsel %vm293, %v961, 0.0
  %983 = vadd.xlane.f32.xlu0 %v982
  %v984 = vpop.xlane.xlu0 %983
  %v985 = vsel %vm293, %v963, 0.0
  %986 = vadd.xlane.f32.xlu0 %v985
  %v987 = vpop.xlane.xlu0 %986
  %v988 = vrcp.pop %v966
  %v989 = vmul.f32 %v949, %v988
  %v990 = vrcp.pop %v969
  %v991 = vmul.f32 %v951, %v990
  %v992 = vrcp.pop %v972
  %v993 = vmul.f32 %v953, %v992
  %v994 = vrcp.pop %v975
  %v995 = vmul.f32 %v955, %v994
  %v996 = vrcp.pop %v978
  %v997 = vmul.f32 %v957, %v996
  %v998 = vrcp.pop %v981
  %v999 = vmul.f32 %v959, %v998
  %v1000 = vrcp.pop %v984
  %v1001 = vmul.f32 %v961, %v1000
  %v1002 = vrcp.pop %v987
  %v1003 = vmul.f32 %v963, %v1002
  %1004 = vrot.lane.b32.xlu0 %v271, 64
  %v1005 = vpop.permute.xlu0 %1004
  %v1008 = vsel %vm293, %v989, 0
  %1010 = vmatprep.subr.mxu0 0.0
  %1011 = vmatpush1.msra.mxu0 0.0
  %1012 = vmatprep.subr.mxu0 0.0
  %1013 = vmatpush1.msra.mxu0 0.0
  %1014 = vmatprep.subr.mxu0 0.0
  %1015 = vmatpush1.msra.mxu0 0.0
  %1016 = vmatprep.subr.mxu0 0.0
  %1017 = vmatpush1.msra.mxu0 0.0
  %1018 = vmatprep.subr.mxu0 0.0
  %1019 = vmatpush1.msra.mxu0 0.0
  %1020 = vmatprep.subr.mxu0 0.0
  %1021 = vmatpush1.msra.mxu0 0.0
  %1022 = vmatprep.subr.mxu0 0.0
  %1023 = vmatpush1.msra.mxu0 0.0
  %1024 = vmatprep.subr.mxu0 0.0
  %1025 = vmatpush1.msra.mxu0 0.0
  %1026 = vmatprep.subr.mxu0 0.0
  %1027 = vmatpush1.msra.mxu0 0.0
  %1028 = vmatprep.subr.mxu0 0.0
  %1029 = vmatpush1.msra.mxu0 0.0
  %1030 = vmatprep.subr.mxu0 0.0
  %1031 = vmatpush1.msra.mxu0 0.0
  %1032 = vmatprep.subr.mxu0 0.0
  %1033 = vmatpush1.msra.mxu0 0.0
  %1034 = vmatprep.subr.mxu0 0.0
  %1035 = vmatpush1.msra.mxu0 0.0
  %1036 = vmatprep.subr.mxu0 0.0
  %1037 = vmatpush1.msra.mxu0 0.0
  %1038 = vmatprep.subr.mxu0 0.0
  %1039 = vmatpush1.msra.mxu0 0.0
  %1040 = vmatprep.subr.mxu0 0.0
  %1041 = vmatpush1.msra.mxu0 %v1005
  %1042 = vmatprep.subr.mxu0 0.0
  %1043 = vmatpush2.msra.mxu0 0.0
  %1044 = vmatprep.subr.mxu0 0.0
  %1045 = vmatpush2.msra.mxu0 0.0
  %1046 = vmatprep.subr.mxu0 0.0
  %1047 = vmatpush2.msra.mxu0 0.0
  %1048 = vmatprep.subr.mxu0 0.0
  %1049 = vmatpush2.msra.mxu0 0.0
  %1050 = vmatprep.subr.mxu0 0.0
  %1051 = vmatpush2.msra.mxu0 0.0
  %1052 = vmatprep.subr.mxu0 0.0
  %1053 = vmatpush2.msra.mxu0 0.0
  %1054 = vmatprep.subr.mxu0 0.0
  %1055 = vmatpush2.msra.mxu0 0.0
  %1056 = vmatprep.subr.mxu0 0.0
  %1057 = vmatpush2.msra.mxu0 0.0
  %1058 = vmatprep.subr.mxu0 0.0
  %1059 = vmatpush2.msra.mxu0 0.0
  %1060 = vmatprep.subr.mxu0 0.0
  %1061 = vmatpush2.msra.mxu0 0.0
  %1062 = vmatprep.subr.mxu0 0.0
  %1063 = vmatpush2.msra.mxu0 0.0
  %1064 = vmatprep.subr.mxu0 0.0
  %1065 = vmatpush2.msra.mxu0 0.0
  %1066 = vmatprep.subr.mxu0 0.0
  %1067 = vmatpush2.msra.mxu0 0.0
  %1068 = vmatprep.subr.mxu0 0.0
  %1069 = vmatpush2.msra.mxu0 0.0
  %1070 = vmatprep.subr.mxu0 0.0
  %1071 = vmatpush2.msra.mxu0 0.0
  %1072 = vmatprep.subr.mxu0 0.0
  %1073 = vmatpush2.msra.mxu0 0.0
  %1074 = vmatprep.mubr.f32.mxu0 0.0
  %1075 = vmatmul.mubr.f32.gmra.mxu0 %v1008
  %v1076 = vpop.f32.mrf.mxu0
  %v1077 = vadd.f32 0.0, %v1076
  %v1078 = vpop.f32.mrf.mxu0
  %1079 = vdwg.mxu0
  %1080 = vrot.lane.b32.xlu0 %v274, 64
  %v1081 = vpop.permute.xlu0 %1080
  %v1084 = vsel %vm293, %v991, 0
  %1086 = vmatprep.subr.mxu0 0.0
  %1087 = vmatpush1.msra.mxu0 0.0
  %1088 = vmatprep.subr.mxu0 0.0
  %1089 = vmatpush1.msra.mxu0 0.0
  %1090 = vmatprep.subr.mxu0 0.0
  %1091 = vmatpush1.msra.mxu0 0.0
  %1092 = vmatprep.subr.mxu0 0.0
  %1093 = vmatpush1.msra.mxu0 0.0
  %1094 = vmatprep.subr.mxu0 0.0
  %1095 = vmatpush1.msra.mxu0 0.0
  %1096 = vmatprep.subr.mxu0 0.0
  %1097 = vmatpush1.msra.mxu0 0.0
  %1098 = vmatprep.subr.mxu0 0.0
  %1099 = vmatpush1.msra.mxu0 0.0
  %1100 = vmatprep.subr.mxu0 0.0
  %1101 = vmatpush1.msra.mxu0 0.0
  %1102 = vmatprep.subr.mxu0 0.0
  %1103 = vmatpush1.msra.mxu0 0.0
  %1104 = vmatprep.subr.mxu0 0.0
  %1105 = vmatpush1.msra.mxu0 0.0
  %1106 = vmatprep.subr.mxu0 0.0
  %1107 = vmatpush1.msra.mxu0 0.0
  %1108 = vmatprep.subr.mxu0 0.0
  %1109 = vmatpush1.msra.mxu0 0.0
  %1110 = vmatprep.subr.mxu0 0.0
  %1111 = vmatpush1.msra.mxu0 0.0
  %1112 = vmatprep.subr.mxu0 0.0
  %1113 = vmatpush1.msra.mxu0 0.0
  %1114 = vmatprep.subr.mxu0 0.0
  %1115 = vmatpush1.msra.mxu0 0.0
  %1116 = vmatprep.subr.mxu0 0.0
  %1117 = vmatpush1.msra.mxu0 %v1081
  %1118 = vmatprep.subr.mxu0 0.0
  %1119 = vmatpush2.msra.mxu0 0.0
  %1120 = vmatprep.subr.mxu0 0.0
  %1121 = vmatpush2.msra.mxu0 0.0
  %1122 = vmatprep.subr.mxu0 0.0
  %1123 = vmatpush2.msra.mxu0 0.0
  %1124 = vmatprep.subr.mxu0 0.0
  %1125 = vmatpush2.msra.mxu0 0.0
  %1126 = vmatprep.subr.mxu0 0.0
  %1127 = vmatpush2.msra.mxu0 0.0
  %1128 = vmatprep.subr.mxu0 0.0
  %1129 = vmatpush2.msra.mxu0 0.0
  %1130 = vmatprep.subr.mxu0 0.0
  %1131 = vmatpush2.msra.mxu0 0.0
  %1132 = vmatprep.subr.mxu0 0.0
  %1133 = vmatpush2.msra.mxu0 0.0
  %1134 = vmatprep.subr.mxu0 0.0
  %1135 = vmatpush2.msra.mxu0 0.0
  %1136 = vmatprep.subr.mxu0 0.0
  %1137 = vmatpush2.msra.mxu0 0.0
  %1138 = vmatprep.subr.mxu0 0.0
  %1139 = vmatpush2.msra.mxu0 0.0
  %1140 = vmatprep.subr.mxu0 0.0
  %1141 = vmatpush2.msra.mxu0 0.0
  %1142 = vmatprep.subr.mxu0 0.0
  %1143 = vmatpush2.msra.mxu0 0.0
  %1144 = vmatprep.subr.mxu0 0.0
  %1145 = vmatpush2.msra.mxu0 0.0
  %1146 = vmatprep.subr.mxu0 0.0
  %1147 = vmatpush2.msra.mxu0 0.0
  %1148 = vmatprep.subr.mxu0 0.0
  %1149 = vmatpush2.msra.mxu0 0.0
  %1150 = vmatprep.mubr.f32.mxu0 0.0
  %1151 = vmatmul.mubr.f32.gmra.mxu0 %v1084
  %v1152 = vpop.f32.mrf.mxu0
  %v1153 = vadd.f32 0.0, %v1152
  %v1154 = vpop.f32.mrf.mxu0
  %1155 = vdwg.mxu0
  %1156 = vrot.lane.b32.xlu0 %v280, 64
  %v1157 = vpop.permute.xlu0 %1156
  %v1160 = vsel %vm293, %v993, 0
  %1162 = vmatprep.subr.mxu0 0.0
  %1163 = vmatpush1.msra.mxu0 0.0
  %1164 = vmatprep.subr.mxu0 0.0
  %1165 = vmatpush1.msra.mxu0 0.0
  %1166 = vmatprep.subr.mxu0 0.0
  %1167 = vmatpush1.msra.mxu0 0.0
  %1168 = vmatprep.subr.mxu0 0.0
  %1169 = vmatpush1.msra.mxu0 0.0
  %1170 = vmatprep.subr.mxu0 0.0
  %1171 = vmatpush1.msra.mxu0 0.0
  %1172 = vmatprep.subr.mxu0 0.0
  %1173 = vmatpush1.msra.mxu0 0.0
  %1174 = vmatprep.subr.mxu0 0.0
  %1175 = vmatpush1.msra.mxu0 0.0
  %1176 = vmatprep.subr.mxu0 0.0
  %1177 = vmatpush1.msra.mxu0 0.0
  %1178 = vmatprep.subr.mxu0 0.0
  %1179 = vmatpush1.msra.mxu0 0.0
  %1180 = vmatprep.subr.mxu0 0.0
  %1181 = vmatpush1.msra.mxu0 0.0
  %1182 = vmatprep.subr.mxu0 0.0
  %1183 = vmatpush1.msra.mxu0 0.0
  %1184 = vmatprep.subr.mxu0 0.0
  %1185 = vmatpush1.msra.mxu0 0.0
  %1186 = vmatprep.subr.mxu0 0.0
  %1187 = vmatpush1.msra.mxu0 0.0
  %1188 = vmatprep.subr.mxu0 0.0
  %1189 = vmatpush1.msra.mxu0 0.0
  %1190 = vmatprep.subr.mxu0 0.0
  %1191 = vmatpush1.msra.mxu0 0.0
  %1192 = vmatprep.subr.mxu0 0.0
  %1193 = vmatpush1.msra.mxu0 %v1157
  %1194 = vmatprep.subr.mxu0 0.0
  %1195 = vmatpush2.msra.mxu0 0.0
  %1196 = vmatprep.subr.mxu0 0.0
  %1197 = vmatpush2.msra.mxu0 0.0
  %1198 = vmatprep.subr.mxu0 0.0
  %1199 = vmatpush2.msra.mxu0 0.0
  %1200 = vmatprep.subr.mxu0 0.0
  %1201 = vmatpush2.msra.mxu0 0.0
  %1202 = vmatprep.subr.mxu0 0.0
  %1203 = vmatpush2.msra.mxu0 0.0
  %1204 = vmatprep.subr.mxu0 0.0
  %1205 = vmatpush2.msra.mxu0 0.0
  %1206 = vmatprep.subr.mxu0 0.0
  %1207 = vmatpush2.msra.mxu0 0.0
  %1208 = vmatprep.subr.mxu0 0.0
  %1209 = vmatpush2.msra.mxu0 0.0
  %1210 = vmatprep.subr.mxu0 0.0
  %1211 = vmatpush2.msra.mxu0 0.0
  %1212 = vmatprep.subr.mxu0 0.0
  %1213 = vmatpush2.msra.mxu0 0.0
  %1214 = vmatprep.subr.mxu0 0.0
  %1215 = vmatpush2.msra.mxu0 0.0
  %1216 = vmatprep.subr.mxu0 0.0
  %1217 = vmatpush2.msra.mxu0 0.0
  %1218 = vmatprep.subr.mxu0 0.0
  %1219 = vmatpush2.msra.mxu0 0.0
  %1220 = vmatprep.subr.mxu0 0.0
  %1221 = vmatpush2.msra.mxu0 0.0
  %1222 = vmatprep.subr.mxu0 0.0
  %1223 = vmatpush2.msra.mxu0 0.0
  %1224 = vmatprep.subr.mxu0 0.0
  %1225 = vmatpush2.msra.mxu0 0.0
  %1226 = vmatprep.mubr.f32.mxu0 0.0
  %1227 = vmatmul.mubr.f32.gmra.mxu0 %v1160
  %v1228 = vpop.f32.mrf.mxu0
  %v1229 = vadd.f32 0.0, %v1228
  %v1230 = vpop.f32.mrf.mxu0
  %1231 = vdwg.mxu0
  %1232 = vrot.lane.b32.xlu0 %v282, 64
  %v1233 = vpop.permute.xlu0 %1232
  %v1236 = vsel %vm293, %v995, 0
  %1238 = vmatprep.subr.mxu0 0.0
  %1239 = vmatpush1.msra.mxu0 0.0
  %1240 = vmatprep.subr.mxu0 0.0
  %1241 = vmatpush1.msra.mxu0 0.0
  %1242 = vmatprep.subr.mxu0 0.0
  %1243 = vmatpush1.msra.mxu0 0.0
  %1244 = vmatprep.subr.mxu0 0.0
  %1245 = vmatpush1.msra.mxu0 0.0
  %1246 = vmatprep.subr.mxu0 0.0
  %1247 = vmatpush1.msra.mxu0 0.0
  %1248 = vmatprep.subr.mxu0 0.0
  %1249 = vmatpush1.msra.mxu0 0.0
  %1250 = vmatprep.subr.mxu0 0.0
  %1251 = vmatpush1.msra.mxu0 0.0
  %1252 = vmatprep.subr.mxu0 0.0
  %1253 = vmatpush1.msra.mxu0 0.0
  %1254 = vmatprep.subr.mxu0 0.0
  %1255 = vmatpush1.msra.mxu0 0.0
  %1256 = vmatprep.subr.mxu0 0.0
  %1257 = vmatpush1.msra.mxu0 0.0
  %1258 = vmatprep.subr.mxu0 0.0
  %1259 = vmatpush1.msra.mxu0 0.0
  %1260 = vmatprep.subr.mxu0 0.0
  %1261 = vmatpush1.msra.mxu0 0.0
  %1262 = vmatprep.subr.mxu0 0.0
  %1263 = vmatpush1.msra.mxu0 0.0
  %1264 = vmatprep.subr.mxu0 0.0
  %1265 = vmatpush1.msra.mxu0 0.0
  %1266 = vmatprep.subr.mxu0 0.0
  %1267 = vmatpush1.msra.mxu0 0.0
  %1268 = vmatprep.subr.mxu0 0.0
  %1269 = vmatpush1.msra.mxu0 %v1233
  %1270 = vmatprep.subr.mxu0 0.0
  %1271 = vmatpush2.msra.mxu0 0.0
  %1272 = vmatprep.subr.mxu0 0.0
  %1273 = vmatpush2.msra.mxu0 0.0
  %1274 = vmatprep.subr.mxu0 0.0
  %1275 = vmatpush2.msra.mxu0 0.0
  %1276 = vmatprep.subr.mxu0 0.0
  %1277 = vmatpush2.msra.mxu0 0.0
  %1278 = vmatprep.subr.mxu0 0.0
  %1279 = vmatpush2.msra.mxu0 0.0
  %1280 = vmatprep.subr.mxu0 0.0
  %1281 = vmatpush2.msra.mxu0 0.0
  %1282 = vmatprep.subr.mxu0 0.0
  %1283 = vmatpush2.msra.mxu0 0.0
  %1284 = vmatprep.subr.mxu0 0.0
  %1285 = vmatpush2.msra.mxu0 0.0
  %1286 = vmatprep.subr.mxu0 0.0
  %1287 = vmatpush2.msra.mxu0 0.0
  %1288 = vmatprep.subr.mxu0 0.0
  %1289 = vmatpush2.msra.mxu0 0.0
  %1290 = vmatprep.subr.mxu0 0.0
  %1291 = vmatpush2.msra.mxu0 0.0
  %1292 = vmatprep.subr.mxu0 0.0
  %1293 = vmatpush2.msra.mxu0 0.0
  %1294 = vmatprep.subr.mxu0 0.0
  %1295 = vmatpush2.msra.mxu0 0.0
  %1296 = vmatprep.subr.mxu0 0.0
  %1297 = vmatpush2.msra.mxu0 0.0
  %1298 = vmatprep.subr.mxu0 0.0
  %1299 = vmatpush2.msra.mxu0 0.0
  %1300 = vmatprep.subr.mxu0 0.0
  %1301 = vmatpush2.msra.mxu0 0.0
  %1302 = vmatprep.mubr.f32.mxu0 0.0
  %1303 = vmatmul.mubr.f32.gmra.mxu0 %v1236
  %v1304 = vpop.f32.mrf.mxu0
  %v1305 = vadd.f32 0.0, %v1304
  %v1306 = vpop.f32.mrf.mxu0
  %1307 = vdwg.mxu0
  %1308 = vrot.lane.b32.xlu0 %v284, 64
  %v1309 = vpop.permute.xlu0 %1308
  %v1312 = vsel %vm293, %v997, 0
  %1314 = vmatprep.subr.mxu0 0.0
  %1315 = vmatpush1.msra.mxu0 0.0
  %1316 = vmatprep.subr.mxu0 0.0
  %1317 = vmatpush1.msra.mxu0 0.0
  %1318 = vmatprep.subr.mxu0 0.0
  %1319 = vmatpush1.msra.mxu0 0.0
  %1320 = vmatprep.subr.mxu0 0.0
  %1321 = vmatpush1.msra.mxu0 0.0
  %1322 = vmatprep.subr.mxu0 0.0
  %1323 = vmatpush1.msra.mxu0 0.0
  %1324 = vmatprep.subr.mxu0 0.0
  %1325 = vmatpush1.msra.mxu0 0.0
  %1326 = vmatprep.subr.mxu0 0.0
  %1327 = vmatpush1.msra.mxu0 0.0
  %1328 = vmatprep.subr.mxu0 0.0
  %1329 = vmatpush1.msra.mxu0 0.0
  %1330 = vmatprep.subr.mxu0 0.0
  %1331 = vmatpush1.msra.mxu0 0.0
  %1332 = vmatprep.subr.mxu0 0.0
  %1333 = vmatpush1.msra.mxu0 0.0
  %1334 = vmatprep.subr.mxu0 0.0
  %1335 = vmatpush1.msra.mxu0 0.0
  %1336 = vmatprep.subr.mxu0 0.0
  %1337 = vmatpush1.msra.mxu0 0.0
  %1338 = vmatprep.subr.mxu0 0.0
  %1339 = vmatpush1.msra.mxu0 0.0
  %1340 = vmatprep.subr.mxu0 0.0
  %1341 = vmatpush1.msra.mxu0 0.0
  %1342 = vmatprep.subr.mxu0 0.0
  %1343 = vmatpush1.msra.mxu0 0.0
  %1344 = vmatprep.subr.mxu0 0.0
  %1345 = vmatpush1.msra.mxu0 %v1309
  %1346 = vmatprep.subr.mxu0 0.0
  %1347 = vmatpush2.msra.mxu0 0.0
  %1348 = vmatprep.subr.mxu0 0.0
  %1349 = vmatpush2.msra.mxu0 0.0
  %1350 = vmatprep.subr.mxu0 0.0
  %1351 = vmatpush2.msra.mxu0 0.0
  %1352 = vmatprep.subr.mxu0 0.0
  %1353 = vmatpush2.msra.mxu0 0.0
  %1354 = vmatprep.subr.mxu0 0.0
  %1355 = vmatpush2.msra.mxu0 0.0
  %1356 = vmatprep.subr.mxu0 0.0
  %1357 = vmatpush2.msra.mxu0 0.0
  %1358 = vmatprep.subr.mxu0 0.0
  %1359 = vmatpush2.msra.mxu0 0.0
  %1360 = vmatprep.subr.mxu0 0.0
  %1361 = vmatpush2.msra.mxu0 0.0
  %1362 = vmatprep.subr.mxu0 0.0
  %1363 = vmatpush2.msra.mxu0 0.0
  %1364 = vmatprep.subr.mxu0 0.0
  %1365 = vmatpush2.msra.mxu0 0.0
  %1366 = vmatprep.subr.mxu0 0.0
  %1367 = vmatpush2.msra.mxu0 0.0
  %1368 = vmatprep.subr.mxu0 0.0
  %1369 = vmatpush2.msra.mxu0 0.0
  %1370 = vmatprep.subr.mxu0 0.0
  %1371 = vmatpush2.msra.mxu0 0.0
  %1372 = vmatprep.subr.mxu0 0.0
  %1373 = vmatpush2.msra.mxu0 0.0
  %1374 = vmatprep.subr.mxu0 0.0
  %1375 = vmatpush2.msra.mxu0 0.0
  %1376 = vmatprep.subr.mxu0 0.0
  %1377 = vmatpush2.msra.mxu0 0.0
  %1378 = vmatprep.mubr.f32.mxu0 0.0
  %1379 = vmatmul.mubr.f32.gmra.mxu0 %v1312
  %v1380 = vpop.f32.mrf.mxu0
  %v1381 = vadd.f32 0.0, %v1380
  %v1382 = vpop.f32.mrf.mxu0
  %1383 = vdwg.mxu0
  %1384 = vrot.lane.b32.xlu0 %v286, 64
  %v1385 = vpop.permute.xlu0 %1384
  %v1388 = vsel %vm293, %v999, 0
  %1390 = vmatprep.subr.mxu0 0.0
  %1391 = vmatpush1.msra.mxu0 0.0
  %1392 = vmatprep.subr.mxu0 0.0
  %1393 = vmatpush1.msra.mxu0 0.0
  %1394 = vmatprep.subr.mxu0 0.0
  %1395 = vmatpush1.msra.mxu0 0.0
  %1396 = vmatprep.subr.mxu0 0.0
  %1397 = vmatpush1.msra.mxu0 0.0
  %1398 = vmatprep.subr.mxu0 0.0
  %1399 = vmatpush1.msra.mxu0 0.0
  %1400 = vmatprep.subr.mxu0 0.0
  %1401 = vmatpush1.msra.mxu0 0.0
  %1402 = vmatprep.subr.mxu0 0.0
  %1403 = vmatpush1.msra.mxu0 0.0
  %1404 = vmatprep.subr.mxu0 0.0
  %1405 = vmatpush1.msra.mxu0 0.0
  %1406 = vmatprep.subr.mxu0 0.0
  %1407 = vmatpush1.msra.mxu0 0.0
  %1408 = vmatprep.subr.mxu0 0.0
  %1409 = vmatpush1.msra.mxu0 0.0
  %1410 = vmatprep.subr.mxu0 0.0
  %1411 = vmatpush1.msra.mxu0 0.0
  %1412 = vmatprep.subr.mxu0 0.0
  %1413 = vmatpush1.msra.mxu0 0.0
  %1414 = vmatprep.subr.mxu0 0.0
  %1415 = vmatpush1.msra.mxu0 0.0
  %1416 = vmatprep.subr.mxu0 0.0
  %1417 = vmatpush1.msra.mxu0 0.0
  %1418 = vmatprep.subr.mxu0 0.0
  %1419 = vmatpush1.msra.mxu0 0.0
  %1420 = vmatprep.subr.mxu0 0.0
  %1421 = vmatpush1.msra.mxu0 %v1385
  %1422 = vmatprep.subr.mxu0 0.0
  %1423 = vmatpush2.msra.mxu0 0.0
  %1424 = vmatprep.subr.mxu0 0.0
  %1425 = vmatpush2.msra.mxu0 0.0
  %1426 = vmatprep.subr.mxu0 0.0
  %1427 = vmatpush2.msra.mxu0 0.0
  %1428 = vmatprep.subr.mxu0 0.0
  %1429 = vmatpush2.msra.mxu0 0.0
  %1430 = vmatprep.subr.mxu0 0.0
  %1431 = vmatpush2.msra.mxu0 0.0
  %1432 = vmatprep.subr.mxu0 0.0
  %1433 = vmatpush2.msra.mxu0 0.0
  %1434 = vmatprep.subr.mxu0 0.0
  %1435 = vmatpush2.msra.mxu0 0.0
  %1436 = vmatprep.subr.mxu0 0.0
  %1437 = vmatpush2.msra.mxu0 0.0
  %1438 = vmatprep.subr.mxu0 0.0
  %1439 = vmatpush2.msra.mxu0 0.0
  %1440 = vmatprep.subr.mxu0 0.0
  %1441 = vmatpush2.msra.mxu0 0.0
  %1442 = vmatprep.subr.mxu0 0.0
  %1443 = vmatpush2.msra.mxu0 0.0
  %1444 = vmatprep.subr.mxu0 0.0
  %1445 = vmatpush2.msra.mxu0 0.0
  %1446 = vmatprep.subr.mxu0 0.0
  %1447 = vmatpush2.msra.mxu0 0.0
  %1448 = vmatprep.subr.mxu0 0.0
  %1449 = vmatpush2.msra.mxu0 0.0
  %1450 = vmatprep.subr.mxu0 0.0
  %1451 = vmatpush2.msra.mxu0 0.0
  %1452 = vmatprep.subr.mxu0 0.0
  %1453 = vmatpush2.msra.mxu0 0.0
  %1454 = vmatprep.mubr.f32.mxu0 0.0
  %1455 = vmatmul.mubr.f32.gmra.mxu0 %v1388
  %v1456 = vpop.f32.mrf.mxu0
  %v1457 = vadd.f32 0.0, %v1456
  %v1458 = vpop.f32.mrf.mxu0
  %1459 = vdwg.mxu0
  %1460 = vrot.lane.b32.xlu0 %v288, 64
  %v1461 = vpop.permute.xlu0 %1460
  %v1464 = vsel %vm293, %v1001, 0
  %1466 = vmatprep.subr.mxu0 0.0
  %1467 = vmatpush1.msra.mxu0 0.0
  %1468 = vmatprep.subr.mxu0 0.0
  %1469 = vmatpush1.msra.mxu0 0.0
  %1470 = vmatprep.subr.mxu0 0.0
  %1471 = vmatpush1.msra.mxu0 0.0
  %1472 = vmatprep.subr.mxu0 0.0
  %1473 = vmatpush1.msra.mxu0 0.0
  %1474 = vmatprep.subr.mxu0 0.0
  %1475 = vmatpush1.msra.mxu0 0.0
  %1476 = vmatprep.subr.mxu0 0.0
  %1477 = vmatpush1.msra.mxu0 0.0
  %1478 = vmatprep.subr.mxu0 0.0
  %1479 = vmatpush1.msra.mxu0 0.0
  %1480 = vmatprep.subr.mxu0 0.0
  %1481 = vmatpush1.msra.mxu0 0.0
  %1482 = vmatprep.subr.mxu0 0.0
  %1483 = vmatpush1.msra.mxu0 0.0
  %1484 = vmatprep.subr.mxu0 0.0
  %1485 = vmatpush1.msra.mxu0 0.0
  %1486 = vmatprep.subr.mxu0 0.0
  %1487 = vmatpush1.msra.mxu0 0.0
  %1488 = vmatprep.subr.mxu0 0.0
  %1489 = vmatpush1.msra.mxu0 0.0
  %1490 = vmatprep.subr.mxu0 0.0
  %1491 = vmatpush1.msra.mxu0 0.0
  %1492 = vmatprep.subr.mxu0 0.0
  %1493 = vmatpush1.msra.mxu0 0.0
  %1494 = vmatprep.subr.mxu0 0.0
  %1495 = vmatpush1.msra.mxu0 0.0
  %1496 = vmatprep.subr.mxu0 0.0
  %1497 = vmatpush1.msra.mxu0 %v1461
  %1498 = vmatprep.subr.mxu0 0.0
  %1499 = vmatpush2.msra.mxu0 0.0
  %1500 = vmatprep.subr.mxu0 0.0
  %1501 = vmatpush2.msra.mxu0 0.0
  %1502 = vmatprep.subr.mxu0 0.0
  %1503 = vmatpush2.msra.mxu0 0.0
  %1504 = vmatprep.subr.mxu0 0.0
  %1505 = vmatpush2.msra.mxu0 0.0
  %1506 = vmatprep.subr.mxu0 0.0
  %1507 = vmatpush2.msra.mxu0 0.0
  %1508 = vmatprep.subr.mxu0 0.0
  %1509 = vmatpush2.msra.mxu0 0.0
  %1510 = vmatprep.subr.mxu0 0.0
  %1511 = vmatpush2.msra.mxu0 0.0
  %1512 = vmatprep.subr.mxu0 0.0
  %1513 = vmatpush2.msra.mxu0 0.0
  %1514 = vmatprep.subr.mxu0 0.0
  %1515 = vmatpush2.msra.mxu0 0.0
  %1516 = vmatprep.subr.mxu0 0.0
  %1517 = vmatpush2.msra.mxu0 0.0
  %1518 = vmatprep.subr.mxu0 0.0
  %1519 = vmatpush2.msra.mxu0 0.0
  %1520 = vmatprep.subr.mxu0 0.0
  %1521 = vmatpush2.msra.mxu0 0.0
  %1522 = vmatprep.subr.mxu0 0.0
  %1523 = vmatpush2.msra.mxu0 0.0
  %1524 = vmatprep.subr.mxu0 0.0
  %1525 = vmatpush2.msra.mxu0 0.0
  %1526 = vmatprep.subr.mxu0 0.0
  %1527 = vmatpush2.msra.mxu0 0.0
  %1528 = vmatprep.subr.mxu0 0.0
  %1529 = vmatpush2.msra.mxu0 0.0
  %1530 = vmatprep.mubr.f32.mxu0 0.0
  %1531 = vmatmul.mubr.f32.gmra.mxu0 %v1464
  %v1532 = vpop.f32.mrf.mxu0
  %v1533 = vadd.f32 0.0, %v1532
  %v1534 = vpop.f32.mrf.mxu0
  %1535 = vdwg.mxu0
  %1536 = vrot.lane.b32.xlu0 %v290, 64
  %v1537 = vpop.permute.xlu0 %1536
  %v1540 = vsel %vm293, %v1003, 0
  %1542 = vmatprep.subr.mxu0 0.0
  %1543 = vmatpush1.msra.mxu0 0.0
  %1544 = vmatprep.subr.mxu0 0.0
  %1545 = vmatpush1.msra.mxu0 0.0
  %1546 = vmatprep.subr.mxu0 0.0
  %1547 = vmatpush1.msra.mxu0 0.0
  %1548 = vmatprep.subr.mxu0 0.0
  %1549 = vmatpush1.msra.mxu0 0.0
  %1550 = vmatprep.subr.mxu0 0.0
  %1551 = vmatpush1.msra.mxu0 0.0
  %1552 = vmatprep.subr.mxu0 0.0
  %1553 = vmatpush1.msra.mxu0 0.0
  %1554 = vmatprep.subr.mxu0 0.0
  %1555 = vmatpush1.msra.mxu0 0.0
  %1556 = vmatprep.subr.mxu0 0.0
  %1557 = vmatpush1.msra.mxu0 0.0
  %1558 = vmatprep.subr.mxu0 0.0
  %1559 = vmatpush1.msra.mxu0 0.0
  %1560 = vmatprep.subr.mxu0 0.0
  %1561 = vmatpush1.msra.mxu0 0.0
  %1562 = vmatprep.subr.mxu0 0.0
  %1563 = vmatpush1.msra.mxu0 0.0
  %1564 = vmatprep.subr.mxu0 0.0
  %1565 = vmatpush1.msra.mxu0 0.0
  %1566 = vmatprep.subr.mxu0 0.0
  %1567 = vmatpush1.msra.mxu0 0.0
  %1568 = vmatprep.subr.mxu0 0.0
  %1569 = vmatpush1.msra.mxu0 0.0
  %1570 = vmatprep.subr.mxu0 0.0
  %1571 = vmatpush1.msra.mxu0 0.0
  %1572 = vmatprep.subr.mxu0 0.0
  %1573 = vmatpush1.msra.mxu0 %v1537
  %1574 = vmatprep.subr.mxu0 0.0
  %1575 = vmatpush2.msra.mxu0 0.0
  %1576 = vmatprep.subr.mxu0 0.0
  %1577 = vmatpush2.msra.mxu0 0.0
  %1578 = vmatprep.subr.mxu0 0.0
  %1579 = vmatpush2.msra.mxu0 0.0
  %1580 = vmatprep.subr.mxu0 0.0
  %1581 = vmatpush2.msra.mxu0 0.0
  %1582 = vmatprep.subr.mxu0 0.0
  %1583 = vmatpush2.msra.mxu0 0.0
  %1584 = vmatprep.subr.mxu0 0.0
  %1585 = vmatpush2.msra.mxu0 0.0
  %1586 = vmatprep.subr.mxu0 0.0
  %1587 = vmatpush2.msra.mxu0 0.0
  %1588 = vmatprep.subr.mxu0 0.0
  %1589 = vmatpush2.msra.mxu0 0.0
  %1590 = vmatprep.subr.mxu0 0.0
  %1591 = vmatpush2.msra.mxu0 0.0
  %1592 = vmatprep.subr.mxu0 0.0
  %1593 = vmatpush2.msra.mxu0 0.0
  %1594 = vmatprep.subr.mxu0 0.0
  %1595 = vmatpush2.msra.mxu0 0.0
  %1596 = vmatprep.subr.mxu0 0.0
  %1597 = vmatpush2.msra.mxu0 0.0
  %1598 = vmatprep.subr.mxu0 0.0
  %1599 = vmatpush2.msra.mxu0 0.0
  %1600 = vmatprep.subr.mxu0 0.0
  %1601 = vmatpush2.msra.mxu0 0.0
  %1602 = vmatprep.subr.mxu0 0.0
  %1603 = vmatpush2.msra.mxu0 0.0
  %1604 = vmatprep.subr.mxu0 0.0
  %1605 = vmatpush2.msra.mxu0 0.0
  %1606 = vmatprep.mubr.f32.mxu0 0.0
  %1607 = vmatmul.mubr.f32.gmra.mxu0 %v1540
  %v1608 = vpop.f32.mrf.mxu0
  %v1609 = vadd.f32 0.0, %v1608
  %v1610 = vpop.f32.mrf.mxu0
  %1611 = vdwg.mxu0
  %1614 = vrot.lane.b32.xlu0 %v1229, 8
  %v1615 = vpop.permute.xlu0 %1614
  %1616 = vrot.lane.b32.xlu0 %v1305, 8
  %v1617 = vpop.permute.xlu0 %1616
  %1622 = vrot.lane.b32.xlu0 %v1381, 16
  %v1623 = vpop.permute.xlu0 %1622
  %1624 = vrot.lane.b32.xlu0 %v1457, 16
  %v1625 = vpop.permute.xlu0 %1624
  %1630 = vrot.lane.b32.xlu0 %v1533, 24
  %v1631 = vpop.permute.xlu0 %1630
  %1632 = vrot.lane.b32.xlu0 %v1609, 24
  %v1633 = vpop.permute.xlu0 %1632
  %v1636 = vsel %vm293, %v1077, %v1615
  %v1637 = vsel %vm293, %v1153, %v1617
  %v1638 = vsel %vm77, %v1636, %v1623
  %v1639 = vsel %vm77, %v1637, %v1625
  %vm1640 = vcmask 195584
  %v1641 = vsel %vm1640, %v1638, %v1631
  %v1642 = vsel %vm1640, %v1639, %v1633
  %v1643 = vpack.c.bf16 %v1642, %v1641
  %v1644 = vld [vmem:[%s7] sm:$0xf]
  %v1645 = vld [vmem:[%s7 + $0x4] sm:$0xf]
  %v1646 = vld [vmem:[%s7 + $0x8] sm:$0xf]
  %v1647 = vld [vmem:[%s7 + $0xc] sm:$0xf]
  %v1648 = vld [vmem:[%s8] sm:$0x1]
  %v1650 = vlaneseq
  %v1651 = vshrl.u32 %v1650, 7
  %v1652 = vsub.s32 0, %v1651
  %v1653 = vrot.slane %v1648, %v1652
  %v1659 = vunpack.c.l.b16 %v1644
  %v1660 = vunpack.c.l.b16 %v1645
  %v1661 = vunpack.c.l.b16 %v1646
  %v1662 = vunpack.c.l.b16 %v1647
  %v1663 = vpack.c.b16 %v1660, %v1659
  %v1664 = vpack.c.b16 %v1662, %v1661
  %v1668 = vsel %vm165, %v1643, 0
  %1670 = vmatprep.subr.bf16.mxu0 0
  %1671 = vmatpush1.bf16.msra.mxu0 0
  %1672 = vmatprep.subr.bf16.mxu0 0
  %1673 = vmatpush1.bf16.msra.mxu0 0
  %1674 = vmatprep.subr.bf16.mxu0 0
  %1675 = vmatpush1.bf16.msra.mxu0 0
  %1676 = vmatprep.subr.bf16.mxu0 0
  %1677 = vmatpush1.bf16.msra.mxu0 0
  %1678 = vmatprep.subr.bf16.mxu0 0
  %1679 = vmatpush1.bf16.msra.mxu0 0
  %1680 = vmatprep.subr.bf16.mxu0 0
  %1681 = vmatpush1.bf16.msra.mxu0 0
  %1682 = vmatprep.subr.bf16.mxu0 0
  %1683 = vmatpush1.bf16.msra.mxu0 %v1664
  %1684 = vmatprep.subr.bf16.mxu0 0
  %1685 = vmatpush1.bf16.msra.mxu0 %v1663
  %1686 = vmatprep.subr.bf16.mxu0 0
  %1687 = vmatpush2.bf16.msra.mxu0 0
  %1688 = vmatprep.subr.bf16.mxu0 0
  %1689 = vmatpush2.bf16.msra.mxu0 0
  %1690 = vmatprep.subr.bf16.mxu0 0
  %1691 = vmatpush2.bf16.msra.mxu0 0
  %1692 = vmatprep.subr.bf16.mxu0 0
  %1693 = vmatpush2.bf16.msra.mxu0 0
  %1694 = vmatprep.subr.bf16.mxu0 0
  %1695 = vmatpush2.bf16.msra.mxu0 0
  %1696 = vmatprep.subr.bf16.mxu0 0
  %1697 = vmatpush2.bf16.msra.mxu0 0
  %1698 = vmatprep.subr.bf16.mxu0 0
  %1699 = vmatpush2.bf16.msra.mxu0 0
  %1700 = vmatprep.subr.bf16.mxu0 0
  %1701 = vmatpush2.bf16.msra.mxu0 0
  %1702 = vmatprep.mubr.bf16.mxu0 0
  %1703 = vmatmul.mubr.bf16.gmra.mxu0 %v1668
  %v1704 = vpop.f32.mrf.mxu0
  %v1705 = vadd.f32 %v1653, %v1704
  %v1706 = vpop.f32.mrf.mxu0
  %v1707 = vpop.f32.mrf.mxu0
  %v1708 = vadd.f32 %v1653, %v1707
  %v1709 = vpop.f32.mrf.mxu0
  %1710 = vdwg.mxu0
  %v1711 = vadd.f32 %v151, %v1705
  %v1712 = vadd.f32 %v156, %v1708
  %v1713 = vld [vmem:[%s9] sm:$0x1]
  %v1714 = vld [vmem:[%s10] sm:$0x1]
  %v1715 = vsel %vm165, %v1711, 0.0
  %1716 = vadd.xlane.f32.xlu0 %v1715
  %v1717 = vpop.xlane.xlu0 %1716
  %v1718 = vsel %vm165, %v1712, 0.0
  %1719 = vadd.xlane.f32.xlu0 %v1718
  %v1720 = vpop.xlane.xlu0 %1719
  %v1721 = vmul.f32 %v1717, %v172
  %v1722 = vmul.f32 %v1720, %v172
  %v1723 = vsub.f32 %v1711, %v1721
  %v1724 = vsub.f32 %v1712, %v1722
  %v1725 = vmul.f32 %v1723, %v1723
  %v1726 = vmul.f32 %v1724, %v1724
  %v1727 = vsel %vm165, %v1725, 0.0
  %1728 = vadd.xlane.f32.xlu0 %v1727
  %v1729 = vpop.xlane.xlu0 %1728
  %v1730 = vsel %vm165, %v1726, 0.0
  %1731 = vadd.xlane.f32.xlu0 %v1730
  %v1732 = vpop.xlane.xlu0 %1731
  %v1733 = vmul.f32 %v1729, 0.032258064
  %v1734 = vmul.f32 %v1732, 0.032258064
  %v1735 = vadd.f32 %v1733, 1e-12
  %v1736 = vadd.f32 %v1734, 1e-12
  %v1737 = vrcp.pop %v1735
  %v1738 = vmul.f32 %v1723, %v1737
  %v1739 = vrcp.pop %v1736
  %v1740 = vmul.f32 %v1724, %v1739
  %v1742 = vlaneseq
  %v1743 = vshrl.u32 %v1742, 7
  %v1744 = vsub.s32 0, %v1743
  %v1745 = vrot.slane %v1713, %v1744
  %v1747 = vmul.f32 %v1745, %v1738
  %v1748 = vmul.f32 %v1745, %v1740
  %v1750 = vlaneseq
  %v1751 = vshrl.u32 %v1750, 7
  %v1752 = vsub.s32 0, %v1751
  %v1753 = vrot.slane %v1714, %v1752
  %v1755 = vadd.f32 %v1747, %v1753
  %v1756 = vadd.f32 %v1748, %v1753
  %v1757 = vpack.c.bf16 %v1756, %v1755
  %v1758 = vld [vmem:[%s11] sm:$0xf]
  %v1759 = vld [vmem:[%s11 + $0x4] sm:$0xf]
  %v1760 = vld [vmem:[%s11 + $0x8] sm:$0xf]
  %v1761 = vld [vmem:[%s11 + $0xc] sm:$0xf]
  %v1762 = vld [vmem:[%s12] sm:$0x1]
  %v1764 = vlaneseq
  %v1765 = vshrl.u32 %v1764, 7
  %v1766 = vsub.s32 0, %v1765
  %v1767 = vrot.slane %v1762, %v1766
  %v1773 = vunpack.c.l.b16 %v1758
  %v1774 = vunpack.c.l.b16 %v1759
  %v1775 = vunpack.c.l.b16 %v1760
  %v1776 = vunpack.c.l.b16 %v1761
  %v1777 = vpack.c.b16 %v1774, %v1773
  %v1778 = vpack.c.b16 %v1776, %v1775
  %v1782 = vsel %vm165, %v1757, 0
  %1784 = vmatprep.subr.bf16.mxu0 0
  %1785 = vmatpush1.bf16.msra.mxu0 0
  %1786 = vmatprep.subr.bf16.mxu0 0
  %1787 = vmatpush1.bf16.msra.mxu0 0
  %1788 = vmatprep.subr.bf16.mxu0 0
  %1789 = vmatpush1.bf16.msra.mxu0 0
  %1790 = vmatprep.subr.bf16.mxu0 0
  %1791 = vmatpush1.bf16.msra.mxu0 0
  %1792 = vmatprep.subr.bf16.mxu0 0
  %1793 = vmatpush1.bf16.msra.mxu0 0
  %1794 = vmatprep.subr.bf16.mxu0 0
  %1795 = vmatpush1.bf16.msra.mxu0 0
  %1796 = vmatprep.subr.bf16.mxu0 0
  %1797 = vmatpush1.bf16.msra.mxu0 %v1778
  %1798 = vmatprep.subr.bf16.mxu0 0
  %1799 = vmatpush1.bf16.msra.mxu0 %v1777
  %1800 = vmatprep.subr.bf16.mxu0 0
  %1801 = vmatpush2.bf16.msra.mxu0 0
  %1802 = vmatprep.subr.bf16.mxu0 0
  %1803 = vmatpush2.bf16.msra.mxu0 0
  %1804 = vmatprep.subr.bf16.mxu0 0
  %1805 = vmatpush2.bf16.msra.mxu0 0
  %1806 = vmatprep.subr.bf16.mxu0 0
  %1807 = vmatpush2.bf16.msra.mxu0 0
  %1808 = vmatprep.subr.bf16.mxu0 0
  %1809 = vmatpush2.bf16.msra.mxu0 0
  %1810 = vmatprep.subr.bf16.mxu0 0
  %1811 = vmatpush2.bf16.msra.mxu0 0
  %1812 = vmatprep.subr.bf16.mxu0 0
  %1813 = vmatpush2.bf16.msra.mxu0 0
  %1814 = vmatprep.subr.bf16.mxu0 0
  %1815 = vmatpush2.bf16.msra.mxu0 0
  %1816 = vmatprep.mubr.bf16.mxu0 0
  %1817 = vmatmul.mubr.bf16.gmra.mxu0 %v1782
  %v1818 = vpop.f32.mrf.mxu0
  %v1819 = vadd.f32 %v1767, %v1818
  %v1820 = vpop.f32.mrf.mxu0
  %v1821 = vpop.f32.mrf.mxu0
  %v1822 = vadd.f32 %v1767, %v1821
  %v1823 = vpop.f32.mrf.mxu0
  %1824 = vdwg.mxu0
  %v1825 = vmax.f32 %v1819, 0.0
  %v1826 = vmax.f32 %v1822, 0.0
  %v1827 = vpack.c.bf16 %v1826, %v1825
  %v1828 = vld [vmem:[%s13] sm:$0xf]
  %v1829 = vld [vmem:[%s13 + $0x4] sm:$0xf]
  %v1830 = vld [vmem:[%s13 + $0x8] sm:$0xf]
  %v1831 = vld [vmem:[%s13 + $0xc] sm:$0xf]
  %v1832 = vld [vmem:[%s13 + $0x10] sm:$0xf]
  %v1833 = vld [vmem:[%s13 + $0x14] sm:$0xf]
  %v1834 = vld [vmem:[%s13 + $0x18] sm:$0xf]
  %v1835 = vld [vmem:[%s13 + $0x1c] sm:$0xf]
  %v1836 = vld [vmem:[%s13 + $0x20] sm:$0xf]
  %v1837 = vld [vmem:[%s13 + $0x24] sm:$0xf]
  %v1838 = vld [vmem:[%s13 + $0x28] sm:$0xf]
  %v1839 = vld [vmem:[%s13 + $0x2c] sm:$0xf]
  %v1840 = vld [vmem:[%s13 + $0x30] sm:$0xf]
  %v1841 = vld [vmem:[%s13 + $0x34] sm:$0xf]
  %v1842 = vld [vmem:[%s13 + $0x38] sm:$0xf]
  %v1843 = vld [vmem:[%s13 + $0x3c] sm:$0xf]
  %v1844 = vld [vmem:[%s14] sm:$0x1]
  %v1846 = vlaneseq
  %v1847 = vshrl.u32 %v1846, 7
  %v1848 = vsub.s32 0, %v1847
  %v1849 = vrot.slane %v1844, %v1848
  %v1867 = vunpack.c.l.b16 %v1828
  %v1868 = vunpack.c.l.b16 %v1829
  %v1869 = vunpack.c.l.b16 %v1830
  %v1870 = vunpack.c.l.b16 %v1831
  %v1871 = vunpack.c.l.b16 %v1832
  %v1872 = vunpack.c.l.b16 %v1833
  %v1873 = vunpack.c.l.b16 %v1834
  %v1874 = vunpack.c.l.b16 %v1835
  %v1875 = vunpack.c.l.b16 %v1836
  %v1876 = vunpack.c.l.b16 %v1837
  %v1877 = vunpack.c.l.b16 %v1838
  %v1878 = vunpack.c.l.b16 %v1839
  %v1879 = vunpack.c.l.b16 %v1840
  %v1880 = vunpack.c.l.b16 %v1841
  %v1881 = vunpack.c.l.b16 %v1842
  %v1882 = vunpack.c.l.b16 %v1843
  %v1883 = vpack.c.b16 %v1868, %v1867
  %v1884 = vpack.c.b16 %v1870, %v1869
  %v1885 = vpack.c.b16 %v1872, %v1871
  %v1886 = vpack.c.b16 %v1874, %v1873
  %v1887 = vpack.c.b16 %v1876, %v1875
  %v1888 = vpack.c.b16 %v1878, %v1877
  %v1889 = vpack.c.b16 %v1880, %v1879
  %v1890 = vpack.c.b16 %v1882, %v1881
  %1899 = vmatprep.subr.bf16.mxu0 0
  %1900 = vmatpush1.bf16.msra.mxu0 %v1890
  %1901 = vmatprep.subr.bf16.mxu0 0
  %1902 = vmatpush1.bf16.msra.mxu0 %v1889
  %1903 = vmatprep.subr.bf16.mxu0 0
  %1904 = vmatpush1.bf16.msra.mxu0 %v1888
  %1905 = vmatprep.subr.bf16.mxu0 0
  %1906 = vmatpush1.bf16.msra.mxu0 %v1887
  %1907 = vmatprep.subr.bf16.mxu0 0
  %1908 = vmatpush1.bf16.msra.mxu0 %v1886
  %1909 = vmatprep.subr.bf16.mxu0 0
  %1910 = vmatpush1.bf16.msra.mxu0 %v1885
  %1911 = vmatprep.subr.bf16.mxu0 0
  %1912 = vmatpush1.bf16.msra.mxu0 %v1884
  %1913 = vmatprep.subr.bf16.mxu0 0
  %1914 = vmatpush1.bf16.msra.mxu0 %v1883
  %1915 = vmatprep.subr.bf16.mxu0 0
  %1916 = vmatpush2.bf16.msra.mxu0 0
  %1917 = vmatprep.subr.bf16.mxu0 0
  %1918 = vmatpush2.bf16.msra.mxu0 0
  %1919 = vmatprep.subr.bf16.mxu0 0
  %1920 = vmatpush2.bf16.msra.mxu0 0
  %1921 = vmatprep.subr.bf16.mxu0 0
  %1922 = vmatpush2.bf16.msra.mxu0 0
  %1923 = vmatprep.subr.bf16.mxu0 0
  %1924 = vmatpush2.bf16.msra.mxu0 0
  %1925 = vmatprep.subr.bf16.mxu0 0
  %1926 = vmatpush2.bf16.msra.mxu0 0
  %1927 = vmatprep.subr.bf16.mxu0 0
  %1928 = vmatpush2.bf16.msra.mxu0 0
  %1929 = vmatprep.subr.bf16.mxu0 0
  %1930 = vmatpush2.bf16.msra.mxu0 0
  %1931 = vmatprep.mubr.bf16.mxu0 0
  %1932 = vmatmul.mubr.bf16.gmra.mxu0 %v1827
  %v1933 = vpop.f32.mrf.mxu0
  %v1934 = vadd.f32 %v1849, %v1933
  %v1935 = vpop.f32.mrf.mxu0
  %v1936 = vpop.f32.mrf.mxu0
  %v1937 = vadd.f32 %v1849, %v1936
  %v1938 = vpop.f32.mrf.mxu0
  %1939 = vdwg.mxu0
  %v1940 = vadd.f32 %v151, %v1934
  %v1941 = vadd.f32 %v156, %v1937
  %s1942 = scalar_lea.vmem %s3, 1
  %v1943 = vld [vmem:[%s1942] sm:$0x1]
  %s1944 = scalar_lea.vmem %s4, 1
  %v1945 = vld [vmem:[%s1944] sm:$0x1]
  %v1946 = vsel %vm165, %v1940, 0.0
  %1947 = vadd.xlane.f32.xlu0 %v1946
  %v1948 = vpop.xlane.xlu0 %1947
  %v1949 = vsel %vm165, %v1941, 0.0
  %1950 = vadd.xlane.f32.xlu0 %v1949
  %v1951 = vpop.xlane.xlu0 %1950
  %v1952 = vmul.f32 %v1948, %v172
  %v1953 = vmul.f32 %v1951, %v172
  %v1954 = vsub.f32 %v1940, %v1952
  %v1955 = vsub.f32 %v1941, %v1953
  %v1956 = vmul.f32 %v1954, %v1954
  %v1957 = vmul.f32 %v1955, %v1955
  %v1958 = vsel %vm165, %v1956, 0.0
  %1959 = vadd.xlane.f32.xlu0 %v1958
  %v1960 = vpop.xlane.xlu0 %1959
  %v1961 = vsel %vm165, %v1957, 0.0
  %1962 = vadd.xlane.f32.xlu0 %v1961
  %v1963 = vpop.xlane.xlu0 %1962
  %v1964 = vmul.f32 %v1960, 0.032258064
  %v1965 = vmul.f32 %v1963, 0.032258064
  %v1966 = vadd.f32 %v1964, 1e-12
  %v1967 = vadd.f32 %v1965, 1e-12
  %v1968 = vrcp.pop %v1966
  %v1969 = vmul.f32 %v1954, %v1968
  %v1970 = vrcp.pop %v1967
  %v1971 = vmul.f32 %v1955, %v1970
  %v1973 = vlaneseq
  %v1974 = vshrl.u32 %v1973, 7
  %v1975 = vsub.s32 0, %v1974
  %v1976 = vrot.slane %v1943, %v1975
  %v1978 = vmul.f32 %v1976, %v1969
  %v1979 = vmul.f32 %v1976, %v1971
  %v1981 = vlaneseq
  %v1982 = vshrl.u32 %v1981, 7
  %v1983 = vsub.s32 0, %v1982
  %v1984 = vrot.slane %v1945, %v1983
  %v1986 = vadd.f32 %v1978, %v1984
  %v1987 = vadd.f32 %v1979, %v1984
  %v1988 = vpack.c.bf16 %v1987, %v1986
  %s1989 = scalar_lea.vmem %s5, 16
  %v1990 = vld [vmem:[%s1989] sm:$0xf]
  %v1991 = vld [vmem:[%s1989 + $0x4] sm:$0xf]
  %v1992 = vld [vmem:[%s1989 + $0x8] sm:$0xf]
  %v1993 = vld [vmem:[%s1989 + $0xc] sm:$0xf]
  %s1994 = scalar_lea.vmem %s6, 1
  %v1995 = vld [vmem:[%s1994] sm:$0x1]
  %v1997 = vlaneseq
  %v1998 = vshrl.u32 %v1997, 7
  %v1999 = vsub.s32 0, %v1998
  %v2000 = vrot.slane %v1995, %v1999
  %v2006 = vunpack.c.l.b16 %v1990
  %v2007 = vunpack.c.l.b16 %v1991
  %v2008 = vunpack.c.l.b16 %v1992
  %v2009 = vunpack.c.l.b16 %v1993
  %v2010 = vpack.c.b16 %v2007, %v2006
  %v2011 = vpack.c.b16 %v2009, %v2008
  %v2015 = vsel %vm165, %v1988, 0
  %2017 = vmatprep.subr.bf16.mxu0 0
  %2018 = vmatpush1.bf16.msra.mxu0 0
  %2019 = vmatprep.subr.bf16.mxu0 0
  %2020 = vmatpush1.bf16.msra.mxu0 0
  %2021 = vmatprep.subr.bf16.mxu0 0
  %2022 = vmatpush1.bf16.msra.mxu0 0
  %2023 = vmatprep.subr.bf16.mxu0 0
  %2024 = vmatpush1.bf16.msra.mxu0 0
  %2025 = vmatprep.subr.bf16.mxu0 0
  %2026 = vmatpush1.bf16.msra.mxu0 0
  %2027 = vmatprep.subr.bf16.mxu0 0
  %2028 = vmatpush1.bf16.msra.mxu0 0
  %2029 = vmatprep.subr.bf16.mxu0 0
  %2030 = vmatpush1.bf16.msra.mxu0 %v2011
  %2031 = vmatprep.subr.bf16.mxu0 0
  %2032 = vmatpush1.bf16.msra.mxu0 %v2010
  %2033 = vmatprep.subr.bf16.mxu0 0
  %2034 = vmatpush2.bf16.msra.mxu0 0
  %2035 = vmatprep.subr.bf16.mxu0 0
  %2036 = vmatpush2.bf16.msra.mxu0 0
  %2037 = vmatprep.subr.bf16.mxu0 0
  %2038 = vmatpush2.bf16.msra.mxu0 0
  %2039 = vmatprep.subr.bf16.mxu0 0
  %2040 = vmatpush2.bf16.msra.mxu0 0
  %2041 = vmatprep.subr.bf16.mxu0 0
  %2042 = vmatpush2.bf16.msra.mxu0 0
  %2043 = vmatprep.subr.bf16.mxu0 0
  %2044 = vmatpush2.bf16.msra.mxu0 0
  %2045 = vmatprep.subr.bf16.mxu0 0
  %2046 = vmatpush2.bf16.msra.mxu0 0
  %2047 = vmatprep.subr.bf16.mxu0 0
  %2048 = vmatpush2.bf16.msra.mxu0 0
  %2049 = vmatprep.mubr.bf16.mxu0 0
  %2050 = vmatmul.mubr.bf16.gmra.mxu0 %v2015
  %v2051 = vpop.f32.mrf.mxu0
  %v2052 = vadd.f32 %v2000, %v2051
  %v2053 = vpop.f32.mrf.mxu0
  %v2054 = vpop.f32.mrf.mxu0
  %v2055 = vadd.f32 %v2000, %v2054
  %v2056 = vpop.f32.mrf.mxu0
  %2057 = vdwg.mxu0
  %2060 = vrot.lane.b32.xlu0 %v2052, 120
  %v2061 = vpop.permute.xlu0 %2060
  %2062 = vrot.lane.b32.xlu0 %v2055, 120
  %v2063 = vpop.permute.xlu0 %2062
  %2064 = vrot.lane.b32.xlu0 %v2052, 112
  %v2065 = vpop.permute.xlu0 %2064
  %2066 = vrot.lane.b32.xlu0 %v2055, 112
  %v2067 = vpop.permute.xlu0 %2066
  %2068 = vrot.lane.b32.xlu0 %v2052, 104
  %v2069 = vpop.permute.xlu0 %2068
  %2070 = vrot.lane.b32.xlu0 %v2055, 104
  %v2071 = vpop.permute.xlu0 %2070
  %2072 = vrot.lane.b32.xlu0 %v2052, 96
  %v2073 = vpop.permute.xlu0 %2072
  %v2074 = vsel %vm293, %v2052, 0
  %v2076 = vsel %vm293, %v2073, 0
  %2078 = vmatprep.subr.mxu0 0.0
  %2079 = vmatpush1.xpose.msra.mxu0 0.0
  %2080 = vmatprep.subr.mxu0 0.0
  %2081 = vmatpush1.xpose.msra.mxu0 0.0
  %2082 = vmatprep.subr.mxu0 0.0
  %2083 = vmatpush1.xpose.msra.mxu0 0.0
  %2084 = vmatprep.subr.mxu0 0.0
  %2085 = vmatpush1.xpose.msra.mxu0 0.0
  %2086 = vmatprep.subr.mxu0 0.0
  %2087 = vmatpush1.xpose.msra.mxu0 0.0
  %2088 = vmatprep.subr.mxu0 0.0
  %2089 = vmatpush1.xpose.msra.mxu0 0.0
  %2090 = vmatprep.subr.mxu0 0.0
  %2091 = vmatpush1.xpose.msra.mxu0 0.0
  %2092 = vmatprep.subr.mxu0 0.0
  %2093 = vmatpush1.xpose.msra.mxu0 0.0
  %2094 = vmatprep.subr.mxu0 0.0
  %2095 = vmatpush1.xpose.msra.mxu0 0.0
  %2096 = vmatprep.subr.mxu0 0.0
  %2097 = vmatpush1.xpose.msra.mxu0 0.0
  %2098 = vmatprep.subr.mxu0 0.0
  %2099 = vmatpush1.xpose.msra.mxu0 0.0
  %2100 = vmatprep.subr.mxu0 0.0
  %2101 = vmatpush1.xpose.msra.mxu0 0.0
  %2102 = vmatprep.subr.mxu0 0.0
  %2103 = vmatpush1.xpose.msra.mxu0 0.0
  %2104 = vmatprep.subr.mxu0 0.0
  %2105 = vmatpush1.xpose.msra.mxu0 0.0
  %2106 = vmatprep.subr.mxu0 0.0
  %2107 = vmatpush1.xpose.msra.mxu0 0.0
  %2108 = vmatprep.subr.mxu0 0.0
  %2109 = vmatpush1.xpose.msra.mxu0 %v2076
  %2110 = vmatprep.subr.mxu0 0.0
  %2111 = vmatpush2.xpose.msra.mxu0 0.0
  %2112 = vmatprep.subr.mxu0 0.0
  %2113 = vmatpush2.xpose.msra.mxu0 0.0
  %2114 = vmatprep.subr.mxu0 0.0
  %2115 = vmatpush2.xpose.msra.mxu0 0.0
  %2116 = vmatprep.subr.mxu0 0.0
  %2117 = vmatpush2.xpose.msra.mxu0 0.0
  %2118 = vmatprep.subr.mxu0 0.0
  %2119 = vmatpush2.xpose.msra.mxu0 0.0
  %2120 = vmatprep.subr.mxu0 0.0
  %2121 = vmatpush2.xpose.msra.mxu0 0.0
  %2122 = vmatprep.subr.mxu0 0.0
  %2123 = vmatpush2.xpose.msra.mxu0 0.0
  %2124 = vmatprep.subr.mxu0 0.0
  %2125 = vmatpush2.xpose.msra.mxu0 0.0
  %2126 = vmatprep.subr.mxu0 0.0
  %2127 = vmatpush2.xpose.msra.mxu0 0.0
  %2128 = vmatprep.subr.mxu0 0.0
  %2129 = vmatpush2.xpose.msra.mxu0 0.0
  %2130 = vmatprep.subr.mxu0 0.0
  %2131 = vmatpush2.xpose.msra.mxu0 0.0
  %2132 = vmatprep.subr.mxu0 0.0
  %2133 = vmatpush2.xpose.msra.mxu0 0.0
  %2134 = vmatprep.subr.mxu0 0.0
  %2135 = vmatpush2.xpose.msra.mxu0 0.0
  %2136 = vmatprep.subr.mxu0 0.0
  %2137 = vmatpush2.xpose.msra.mxu0 0.0
  %2138 = vmatprep.subr.mxu0 0.0
  %2139 = vmatpush2.xpose.msra.mxu0 0.0
  %2140 = vmatprep.subr.mxu0 0.0
  %2141 = vmatpush2.xpose.msra.mxu0 0.0
  %2142 = vmatprep.mubr.f32.mxu0 0.0
  %2143 = vmatmul.mubr.f32.gmra.mxu0 %v2074
  %v2144 = vpop.f32.mrf.mxu0
  %v2145 = vadd.f32 0.0, %v2144
  %v2146 = vpop.f32.mrf.mxu0
  %2147 = vdwg.mxu0
  %2148 = vrot.lane.b32.xlu0 %v2055, 96
  %v2149 = vpop.permute.xlu0 %2148
  %v2150 = vsel %vm293, %v2055, 0
  %v2152 = vsel %vm293, %v2149, 0
  %2154 = vmatprep.subr.mxu0 0.0
  %2155 = vmatpush1.xpose.msra.mxu0 0.0
  %2156 = vmatprep.subr.mxu0 0.0
  %2157 = vmatpush1.xpose.msra.mxu0 0.0
  %2158 = vmatprep.subr.mxu0 0.0
  %2159 = vmatpush1.xpose.msra.mxu0 0.0
  %2160 = vmatprep.subr.mxu0 0.0
  %2161 = vmatpush1.xpose.msra.mxu0 0.0
  %2162 = vmatprep.subr.mxu0 0.0
  %2163 = vmatpush1.xpose.msra.mxu0 0.0
  %2164 = vmatprep.subr.mxu0 0.0
  %2165 = vmatpush1.xpose.msra.mxu0 0.0
  %2166 = vmatprep.subr.mxu0 0.0
  %2167 = vmatpush1.xpose.msra.mxu0 0.0
  %2168 = vmatprep.subr.mxu0 0.0
  %2169 = vmatpush1.xpose.msra.mxu0 0.0
  %2170 = vmatprep.subr.mxu0 0.0
  %2171 = vmatpush1.xpose.msra.mxu0 0.0
  %2172 = vmatprep.subr.mxu0 0.0
  %2173 = vmatpush1.xpose.msra.mxu0 0.0
  %2174 = vmatprep.subr.mxu0 0.0
  %2175 = vmatpush1.xpose.msra.mxu0 0.0
  %2176 = vmatprep.subr.mxu0 0.0
  %2177 = vmatpush1.xpose.msra.mxu0 0.0
  %2178 = vmatprep.subr.mxu0 0.0
  %2179 = vmatpush1.xpose.msra.mxu0 0.0
  %2180 = vmatprep.subr.mxu0 0.0
  %2181 = vmatpush1.xpose.msra.mxu0 0.0
  %2182 = vmatprep.subr.mxu0 0.0
  %2183 = vmatpush1.xpose.msra.mxu0 0.0
  %2184 = vmatprep.subr.mxu0 0.0
  %2185 = vmatpush1.xpose.msra.mxu0 %v2152
  %2186 = vmatprep.subr.mxu0 0.0
  %2187 = vmatpush2.xpose.msra.mxu0 0.0
  %2188 = vmatprep.subr.mxu0 0.0
  %2189 = vmatpush2.xpose.msra.mxu0 0.0
  %2190 = vmatprep.subr.mxu0 0.0
  %2191 = vmatpush2.xpose.msra.mxu0 0.0
  %2192 = vmatprep.subr.mxu0 0.0
  %2193 = vmatpush2.xpose.msra.mxu0 0.0
  %2194 = vmatprep.subr.mxu0 0.0
  %2195 = vmatpush2.xpose.msra.mxu0 0.0
  %2196 = vmatprep.subr.mxu0 0.0
  %2197 = vmatpush2.xpose.msra.mxu0 0.0
  %2198 = vmatprep.subr.mxu0 0.0
  %2199 = vmatpush2.xpose.msra.mxu0 0.0
  %2200 = vmatprep.subr.mxu0 0.0
  %2201 = vmatpush2.xpose.msra.mxu0 0.0
  %2202 = vmatprep.subr.mxu0 0.0
  %2203 = vmatpush2.xpose.msra.mxu0 0.0
  %2204 = vmatprep.subr.mxu0 0.0
  %2205 = vmatpush2.xpose.msra.mxu0 0.0
  %2206 = vmatprep.subr.mxu0 0.0
  %2207 = vmatpush2.xpose.msra.mxu0 0.0
  %2208 = vmatprep.subr.mxu0 0.0
  %2209 = vmatpush2.xpose.msra.mxu0 0.0
  %2210 = vmatprep.subr.mxu0 0.0
  %2211 = vmatpush2.xpose.msra.mxu0 0.0
  %2212 = vmatprep.subr.mxu0 0.0
  %2213 = vmatpush2.xpose.msra.mxu0 0.0
  %2214 = vmatprep.subr.mxu0 0.0
  %2215 = vmatpush2.xpose.msra.mxu0 0.0
  %2216 = vmatprep.subr.mxu0 0.0
  %2217 = vmatpush2.xpose.msra.mxu0 0.0
  %2218 = vmatprep.mubr.f32.mxu0 0.0
  %2219 = vmatmul.mubr.f32.gmra.mxu0 %v2150
  %v2220 = vpop.f32.mrf.mxu0
  %v2221 = vadd.f32 0.0, %v2220
  %v2222 = vpop.f32.mrf.mxu0
  %2223 = vdwg.mxu0
  %2224 = vrot.lane.b32.xlu0 %v2061, 96
  %v2225 = vpop.permute.xlu0 %2224
  %v2226 = vsel %vm293, %v2061, 0
  %v2228 = vsel %vm293, %v2225, 0
  %2230 = vmatprep.subr.mxu0 0.0
  %2231 = vmatpush1.xpose.msra.mxu0 0.0
  %2232 = vmatprep.subr.mxu0 0.0
  %2233 = vmatpush1.xpose.msra.mxu0 0.0
  %2234 = vmatprep.subr.mxu0 0.0
  %2235 = vmatpush1.xpose.msra.mxu0 0.0
  %2236 = vmatprep.subr.mxu0 0.0
  %2237 = vmatpush1.xpose.msra.mxu0 0.0
  %2238 = vmatprep.subr.mxu0 0.0
  %2239 = vmatpush1.xpose.msra.mxu0 0.0
  %2240 = vmatprep.subr.mxu0 0.0
  %2241 = vmatpush1.xpose.msra.mxu0 0.0
  %2242 = vmatprep.subr.mxu0 0.0
  %2243 = vmatpush1.xpose.msra.mxu0 0.0
  %2244 = vmatprep.subr.mxu0 0.0
  %2245 = vmatpush1.xpose.msra.mxu0 0.0
  %2246 = vmatprep.subr.mxu0 0.0
  %2247 = vmatpush1.xpose.msra.mxu0 0.0
  %2248 = vmatprep.subr.mxu0 0.0
  %2249 = vmatpush1.xpose.msra.mxu0 0.0
  %2250 = vmatprep.subr.mxu0 0.0
  %2251 = vmatpush1.xpose.msra.mxu0 0.0
  %2252 = vmatprep.subr.mxu0 0.0
  %2253 = vmatpush1.xpose.msra.mxu0 0.0
  %2254 = vmatprep.subr.mxu0 0.0
  %2255 = vmatpush1.xpose.msra.mxu0 0.0
  %2256 = vmatprep.subr.mxu0 0.0
  %2257 = vmatpush1.xpose.msra.mxu0 0.0
  %2258 = vmatprep.subr.mxu0 0.0
  %2259 = vmatpush1.xpose.msra.mxu0 0.0
  %2260 = vmatprep.subr.mxu0 0.0
  %2261 = vmatpush1.xpose.msra.mxu0 %v2228
  %2262 = vmatprep.subr.mxu0 0.0
  %2263 = vmatpush2.xpose.msra.mxu0 0.0
  %2264 = vmatprep.subr.mxu0 0.0
  %2265 = vmatpush2.xpose.msra.mxu0 0.0
  %2266 = vmatprep.subr.mxu0 0.0
  %2267 = vmatpush2.xpose.msra.mxu0 0.0
  %2268 = vmatprep.subr.mxu0 0.0
  %2269 = vmatpush2.xpose.msra.mxu0 0.0
  %2270 = vmatprep.subr.mxu0 0.0
  %2271 = vmatpush2.xpose.msra.mxu0 0.0
  %2272 = vmatprep.subr.mxu0 0.0
  %2273 = vmatpush2.xpose.msra.mxu0 0.0
  %2274 = vmatprep.subr.mxu0 0.0
  %2275 = vmatpush2.xpose.msra.mxu0 0.0
  %2276 = vmatprep.subr.mxu0 0.0
  %2277 = vmatpush2.xpose.msra.mxu0 0.0
  %2278 = vmatprep.subr.mxu0 0.0
  %2279 = vmatpush2.xpose.msra.mxu0 0.0
  %2280 = vmatprep.subr.mxu0 0.0
  %2281 = vmatpush2.xpose.msra.mxu0 0.0
  %2282 = vmatprep.subr.mxu0 0.0
  %2283 = vmatpush2.xpose.msra.mxu0 0.0
  %2284 = vmatprep.subr.mxu0 0.0
  %2285 = vmatpush2.xpose.msra.mxu0 0.0
  %2286 = vmatprep.subr.mxu0 0.0
  %2287 = vmatpush2.xpose.msra.mxu0 0.0
  %2288 = vmatprep.subr.mxu0 0.0
  %2289 = vmatpush2.xpose.msra.mxu0 0.0
  %2290 = vmatprep.subr.mxu0 0.0
  %2291 = vmatpush2.xpose.msra.mxu0 0.0
  %2292 = vmatprep.subr.mxu0 0.0
  %2293 = vmatpush2.xpose.msra.mxu0 0.0
  %2294 = vmatprep.mubr.f32.mxu0 0.0
  %2295 = vmatmul.mubr.f32.gmra.mxu0 %v2226
  %v2296 = vpop.f32.mrf.mxu0
  %v2297 = vadd.f32 0.0, %v2296
  %v2298 = vpop.f32.mrf.mxu0
  %2299 = vdwg.mxu0
  %2300 = vrot.lane.b32.xlu0 %v2063, 96
  %v2301 = vpop.permute.xlu0 %2300
  %v2302 = vsel %vm293, %v2063, 0
  %v2304 = vsel %vm293, %v2301, 0
  %2306 = vmatprep.subr.mxu0 0.0
  %2307 = vmatpush1.xpose.msra.mxu0 0.0
  %2308 = vmatprep.subr.mxu0 0.0
  %2309 = vmatpush1.xpose.msra.mxu0 0.0
  %2310 = vmatprep.subr.mxu0 0.0
  %2311 = vmatpush1.xpose.msra.mxu0 0.0
  %2312 = vmatprep.subr.mxu0 0.0
  %2313 = vmatpush1.xpose.msra.mxu0 0.0
  %2314 = vmatprep.subr.mxu0 0.0
  %2315 = vmatpush1.xpose.msra.mxu0 0.0
  %2316 = vmatprep.subr.mxu0 0.0
  %2317 = vmatpush1.xpose.msra.mxu0 0.0
  %2318 = vmatprep.subr.mxu0 0.0
  %2319 = vmatpush1.xpose.msra.mxu0 0.0
  %2320 = vmatprep.subr.mxu0 0.0
  %2321 = vmatpush1.xpose.msra.mxu0 0.0
  %2322 = vmatprep.subr.mxu0 0.0
  %2323 = vmatpush1.xpose.msra.mxu0 0.0
  %2324 = vmatprep.subr.mxu0 0.0
  %2325 = vmatpush1.xpose.msra.mxu0 0.0
  %2326 = vmatprep.subr.mxu0 0.0
  %2327 = vmatpush1.xpose.msra.mxu0 0.0
  %2328 = vmatprep.subr.mxu0 0.0
  %2329 = vmatpush1.xpose.msra.mxu0 0.0
  %2330 = vmatprep.subr.mxu0 0.0
  %2331 = vmatpush1.xpose.msra.mxu0 0.0
  %2332 = vmatprep.subr.mxu0 0.0
  %2333 = vmatpush1.xpose.msra.mxu0 0.0
  %2334 = vmatprep.subr.mxu0 0.0
  %2335 = vmatpush1.xpose.msra.mxu0 0.0
  %2336 = vmatprep.subr.mxu0 0.0
  %2337 = vmatpush1.xpose.msra.mxu0 %v2304
  %2338 = vmatprep.subr.mxu0 0.0
  %2339 = vmatpush2.xpose.msra.mxu0 0.0
  %2340 = vmatprep.subr.mxu0 0.0
  %2341 = vmatpush2.xpose.msra.mxu0 0.0
  %2342 = vmatprep.subr.mxu0 0.0
  %2343 = vmatpush2.xpose.msra.mxu0 0.0
  %2344 = vmatprep.subr.mxu0 0.0
  %2345 = vmatpush2.xpose.msra.mxu0 0.0
  %2346 = vmatprep.subr.mxu0 0.0
  %2347 = vmatpush2.xpose.msra.mxu0 0.0
  %2348 = vmatprep.subr.mxu0 0.0
  %2349 = vmatpush2.xpose.msra.mxu0 0.0
  %2350 = vmatprep.subr.mxu0 0.0
  %2351 = vmatpush2.xpose.msra.mxu0 0.0
  %2352 = vmatprep.subr.mxu0 0.0
  %2353 = vmatpush2.xpose.msra.mxu0 0.0
  %2354 = vmatprep.subr.mxu0 0.0
  %2355 = vmatpush2.xpose.msra.mxu0 0.0
  %2356 = vmatprep.subr.mxu0 0.0
  %2357 = vmatpush2.xpose.msra.mxu0 0.0
  %2358 = vmatprep.subr.mxu0 0.0
  %2359 = vmatpush2.xpose.msra.mxu0 0.0
  %2360 = vmatprep.subr.mxu0 0.0
  %2361 = vmatpush2.xpose.msra.mxu0 0.0
  %2362 = vmatprep.subr.mxu0 0.0
  %2363 = vmatpush2.xpose.msra.mxu0 0.0
  %2364 = vmatprep.subr.mxu0 0.0
  %2365 = vmatpush2.xpose.msra.mxu0 0.0
  %2366 = vmatprep.subr.mxu0 0.0
  %2367 = vmatpush2.xpose.msra.mxu0 0.0
  %2368 = vmatprep.subr.mxu0 0.0
  %2369 = vmatpush2.xpose.msra.mxu0 0.0
  %2370 = vmatprep.mubr.f32.mxu0 0.0
  %2371 = vmatmul.mubr.f32.gmra.mxu0 %v2302
  %v2372 = vpop.f32.mrf.mxu0
  %v2373 = vadd.f32 0.0, %v2372
  %v2374 = vpop.f32.mrf.mxu0
  %2375 = vdwg.mxu0
  %2376 = vrot.lane.b32.xlu0 %v2065, 96
  %v2377 = vpop.permute.xlu0 %2376
  %v2378 = vsel %vm293, %v2065, 0
  %v2380 = vsel %vm293, %v2377, 0
  %2382 = vmatprep.subr.mxu0 0.0
  %2383 = vmatpush1.xpose.msra.mxu0 0.0
  %2384 = vmatprep.subr.mxu0 0.0
  %2385 = vmatpush1.xpose.msra.mxu0 0.0
  %2386 = vmatprep.subr.mxu0 0.0
  %2387 = vmatpush1.xpose.msra.mxu0 0.0
  %2388 = vmatprep.subr.mxu0 0.0
  %2389 = vmatpush1.xpose.msra.mxu0 0.0
  %2390 = vmatprep.subr.mxu0 0.0
  %2391 = vmatpush1.xpose.msra.mxu0 0.0
  %2392 = vmatprep.subr.mxu0 0.0
  %2393 = vmatpush1.xpose.msra.mxu0 0.0
  %2394 = vmatprep.subr.mxu0 0.0
  %2395 = vmatpush1.xpose.msra.mxu0 0.0
  %2396 = vmatprep.subr.mxu0 0.0
  %2397 = vmatpush1.xpose.msra.mxu0 0.0
  %2398 = vmatprep.subr.mxu0 0.0
  %2399 = vmatpush1.xpose.msra.mxu0 0.0
  %2400 = vmatprep.subr.mxu0 0.0
  %2401 = vmatpush1.xpose.msra.mxu0 0.0
  %2402 = vmatprep.subr.mxu0 0.0
  %2403 = vmatpush1.xpose.msra.mxu0 0.0
  %2404 = vmatprep.subr.mxu0 0.0
  %2405 = vmatpush1.xpose.msra.mxu0 0.0
  %2406 = vmatprep.subr.mxu0 0.0
  %2407 = vmatpush1.xpose.msra.mxu0 0.0
  %2408 = vmatprep.subr.mxu0 0.0
  %2409 = vmatpush1.xpose.msra.mxu0 0.0
  %2410 = vmatprep.subr.mxu0 0.0
  %2411 = vmatpush1.xpose.msra.mxu0 0.0
  %2412 = vmatprep.subr.mxu0 0.0
  %2413 = vmatpush1.xpose.msra.mxu0 %v2380
  %2414 = vmatprep.subr.mxu0 0.0
  %2415 = vmatpush2.xpose.msra.mxu0 0.0
  %2416 = vmatprep.subr.mxu0 0.0
  %2417 = vmatpush2.xpose.msra.mxu0 0.0
  %2418 = vmatprep.subr.mxu0 0.0
  %2419 = vmatpush2.xpose.msra.mxu0 0.0
  %2420 = vmatprep.subr.mxu0 0.0
  %2421 = vmatpush2.xpose.msra.mxu0 0.0
  %2422 = vmatprep.subr.mxu0 0.0
  %2423 = vmatpush2.xpose.msra.mxu0 0.0
  %2424 = vmatprep.subr.mxu0 0.0
  %2425 = vmatpush2.xpose.msra.mxu0 0.0
  %2426 = vmatprep.subr.mxu0 0.0
  %2427 = vmatpush2.xpose.msra.mxu0 0.0
  %2428 = vmatprep.subr.mxu0 0.0
  %2429 = vmatpush2.xpose.msra.mxu0 0.0
  %2430 = vmatprep.subr.mxu0 0.0
  %2431 = vmatpush2.xpose.msra.mxu0 0.0
  %2432 = vmatprep.subr.mxu0 0.0
  %2433 = vmatpush2.xpose.msra.mxu0 0.0
  %2434 = vmatprep.subr.mxu0 0.0
  %2435 = vmatpush2.xpose.msra.mxu0 0.0
  %2436 = vmatprep.subr.mxu0 0.0
  %2437 = vmatpush2.xpose.msra.mxu0 0.0
  %2438 = vmatprep.subr.mxu0 0.0
  %2439 = vmatpush2.xpose.msra.mxu0 0.0
  %2440 = vmatprep.subr.mxu0 0.0
  %2441 = vmatpush2.xpose.msra.mxu0 0.0
  %2442 = vmatprep.subr.mxu0 0.0
  %2443 = vmatpush2.xpose.msra.mxu0 0.0
  %2444 = vmatprep.subr.mxu0 0.0
  %2445 = vmatpush2.xpose.msra.mxu0 0.0
  %2446 = vmatprep.mubr.f32.mxu0 0.0
  %2447 = vmatmul.mubr.f32.gmra.mxu0 %v2378
  %v2448 = vpop.f32.mrf.mxu0
  %v2449 = vadd.f32 0.0, %v2448
  %v2450 = vpop.f32.mrf.mxu0
  %2451 = vdwg.mxu0
  %2452 = vrot.lane.b32.xlu0 %v2067, 96
  %v2453 = vpop.permute.xlu0 %2452
  %v2454 = vsel %vm293, %v2067, 0
  %v2456 = vsel %vm293, %v2453, 0
  %2458 = vmatprep.subr.mxu0 0.0
  %2459 = vmatpush1.xpose.msra.mxu0 0.0
  %2460 = vmatprep.subr.mxu0 0.0
  %2461 = vmatpush1.xpose.msra.mxu0 0.0
  %2462 = vmatprep.subr.mxu0 0.0
  %2463 = vmatpush1.xpose.msra.mxu0 0.0
  %2464 = vmatprep.subr.mxu0 0.0
  %2465 = vmatpush1.xpose.msra.mxu0 0.0
  %2466 = vmatprep.subr.mxu0 0.0
  %2467 = vmatpush1.xpose.msra.mxu0 0.0
  %2468 = vmatprep.subr.mxu0 0.0
  %2469 = vmatpush1.xpose.msra.mxu0 0.0
  %2470 = vmatprep.subr.mxu0 0.0
  %2471 = vmatpush1.xpose.msra.mxu0 0.0
  %2472 = vmatprep.subr.mxu0 0.0
  %2473 = vmatpush1.xpose.msra.mxu0 0.0
  %2474 = vmatprep.subr.mxu0 0.0
  %2475 = vmatpush1.xpose.msra.mxu0 0.0
  %2476 = vmatprep.subr.mxu0 0.0
  %2477 = vmatpush1.xpose.msra.mxu0 0.0
  %2478 = vmatprep.subr.mxu0 0.0
  %2479 = vmatpush1.xpose.msra.mxu0 0.0
  %2480 = vmatprep.subr.mxu0 0.0
  %2481 = vmatpush1.xpose.msra.mxu0 0.0
  %2482 = vmatprep.subr.mxu0 0.0
  %2483 = vmatpush1.xpose.msra.mxu0 0.0
  %2484 = vmatprep.subr.mxu0 0.0
  %2485 = vmatpush1.xpose.msra.mxu0 0.0
  %2486 = vmatprep.subr.mxu0 0.0
  %2487 = vmatpush1.xpose.msra.mxu0 0.0
  %2488 = vmatprep.subr.mxu0 0.0
  %2489 = vmatpush1.xpose.msra.mxu0 %v2456
  %2490 = vmatprep.subr.mxu0 0.0
  %2491 = vmatpush2.xpose.msra.mxu0 0.0
  %2492 = vmatprep.subr.mxu0 0.0
  %2493 = vmatpush2.xpose.msra.mxu0 0.0
  %2494 = vmatprep.subr.mxu0 0.0
  %2495 = vmatpush2.xpose.msra.mxu0 0.0
  %2496 = vmatprep.subr.mxu0 0.0
  %2497 = vmatpush2.xpose.msra.mxu0 0.0
  %2498 = vmatprep.subr.mxu0 0.0
  %2499 = vmatpush2.xpose.msra.mxu0 0.0
  %2500 = vmatprep.subr.mxu0 0.0
  %2501 = vmatpush2.xpose.msra.mxu0 0.0
  %2502 = vmatprep.subr.mxu0 0.0
  %2503 = vmatpush2.xpose.msra.mxu0 0.0
  %2504 = vmatprep.subr.mxu0 0.0
  %2505 = vmatpush2.xpose.msra.mxu0 0.0
  %2506 = vmatprep.subr.mxu0 0.0
  %2507 = vmatpush2.xpose.msra.mxu0 0.0
  %2508 = vmatprep.subr.mxu0 0.0
  %2509 = vmatpush2.xpose.msra.mxu0 0.0
  %2510 = vmatprep.subr.mxu0 0.0
  %2511 = vmatpush2.xpose.msra.mxu0 0.0
  %2512 = vmatprep.subr.mxu0 0.0
  %2513 = vmatpush2.xpose.msra.mxu0 0.0
  %2514 = vmatprep.subr.mxu0 0.0
  %2515 = vmatpush2.xpose.msra.mxu0 0.0
  %2516 = vmatprep.subr.mxu0 0.0
  %2517 = vmatpush2.xpose.msra.mxu0 0.0
  %2518 = vmatprep.subr.mxu0 0.0
  %2519 = vmatpush2.xpose.msra.mxu0 0.0
  %2520 = vmatprep.subr.mxu0 0.0
  %2521 = vmatpush2.xpose.msra.mxu0 0.0
  %2522 = vmatprep.mubr.f32.mxu0 0.0
  %2523 = vmatmul.mubr.f32.gmra.mxu0 %v2454
  %v2524 = vpop.f32.mrf.mxu0
  %v2525 = vadd.f32 0.0, %v2524
  %v2526 = vpop.f32.mrf.mxu0
  %2527 = vdwg.mxu0
  %2528 = vrot.lane.b32.xlu0 %v2069, 96
  %v2529 = vpop.permute.xlu0 %2528
  %v2530 = vsel %vm293, %v2069, 0
  %v2532 = vsel %vm293, %v2529, 0
  %2534 = vmatprep.subr.mxu0 0.0
  %2535 = vmatpush1.xpose.msra.mxu0 0.0
  %2536 = vmatprep.subr.mxu0 0.0
  %2537 = vmatpush1.xpose.msra.mxu0 0.0
  %2538 = vmatprep.subr.mxu0 0.0
  %2539 = vmatpush1.xpose.msra.mxu0 0.0
  %2540 = vmatprep.subr.mxu0 0.0
  %2541 = vmatpush1.xpose.msra.mxu0 0.0
  %2542 = vmatprep.subr.mxu0 0.0
  %2543 = vmatpush1.xpose.msra.mxu0 0.0
  %2544 = vmatprep.subr.mxu0 0.0
  %2545 = vmatpush1.xpose.msra.mxu0 0.0
  %2546 = vmatprep.subr.mxu0 0.0
  %2547 = vmatpush1.xpose.msra.mxu0 0.0
  %2548 = vmatprep.subr.mxu0 0.0
  %2549 = vmatpush1.xpose.msra.mxu0 0.0
  %2550 = vmatprep.subr.mxu0 0.0
  %2551 = vmatpush1.xpose.msra.mxu0 0.0
  %2552 = vmatprep.subr.mxu0 0.0
  %2553 = vmatpush1.xpose.msra.mxu0 0.0
  %2554 = vmatprep.subr.mxu0 0.0
  %2555 = vmatpush1.xpose.msra.mxu0 0.0
  %2556 = vmatprep.subr.mxu0 0.0
  %2557 = vmatpush1.xpose.msra.mxu0 0.0
  %2558 = vmatprep.subr.mxu0 0.0
  %2559 = vmatpush1.xpose.msra.mxu0 0.0
  %2560 = vmatprep.subr.mxu0 0.0
  %2561 = vmatpush1.xpose.msra.mxu0 0.0
  %2562 = vmatprep.subr.mxu0 0.0
  %2563 = vmatpush1.xpose.msra.mxu0 0.0
  %2564 = vmatprep.subr.mxu0 0.0
  %2565 = vmatpush1.xpose.msra.mxu0 %v2532
  %2566 = vmatprep.subr.mxu0 0.0
  %2567 = vmatpush2.xpose.msra.mxu0 0.0
  %2568 = vmatprep.subr.mxu0 0.0
  %2569 = vmatpush2.xpose.msra.mxu0 0.0
  %2570 = vmatprep.subr.mxu0 0.0
  %2571 = vmatpush2.xpose.msra.mxu0 0.0
  %2572 = vmatprep.subr.mxu0 0.0
  %2573 = vmatpush2.xpose.msra.mxu0 0.0
  %2574 = vmatprep.subr.mxu0 0.0
  %2575 = vmatpush2.xpose.msra.mxu0 0.0
  %2576 = vmatprep.subr.mxu0 0.0
  %2577 = vmatpush2.xpose.msra.mxu0 0.0
  %2578 = vmatprep.subr.mxu0 0.0
  %2579 = vmatpush2.xpose.msra.mxu0 0.0
  %2580 = vmatprep.subr.mxu0 0.0
  %2581 = vmatpush2.xpose.msra.mxu0 0.0
  %2582 = vmatprep.subr.mxu0 0.0
  %2583 = vmatpush2.xpose.msra.mxu0 0.0
  %2584 = vmatprep.subr.mxu0 0.0
  %2585 = vmatpush2.xpose.msra.mxu0 0.0
  %2586 = vmatprep.subr.mxu0 0.0
  %2587 = vmatpush2.xpose.msra.mxu0 0.0
  %2588 = vmatprep.subr.mxu0 0.0
  %2589 = vmatpush2.xpose.msra.mxu0 0.0
  %2590 = vmatprep.subr.mxu0 0.0
  %2591 = vmatpush2.xpose.msra.mxu0 0.0
  %2592 = vmatprep.subr.mxu0 0.0
  %2593 = vmatpush2.xpose.msra.mxu0 0.0
  %2594 = vmatprep.subr.mxu0 0.0
  %2595 = vmatpush2.xpose.msra.mxu0 0.0
  %2596 = vmatprep.subr.mxu0 0.0
  %2597 = vmatpush2.xpose.msra.mxu0 0.0
  %2598 = vmatprep.mubr.f32.mxu0 0.0
  %2599 = vmatmul.mubr.f32.gmra.mxu0 %v2530
  %v2600 = vpop.f32.mrf.mxu0
  %v2601 = vadd.f32 0.0, %v2600
  %v2602 = vpop.f32.mrf.mxu0
  %2603 = vdwg.mxu0
  %2604 = vrot.lane.b32.xlu0 %v2071, 96
  %v2605 = vpop.permute.xlu0 %2604
  %v2606 = vsel %vm293, %v2071, 0
  %v2608 = vsel %vm293, %v2605, 0
  %2610 = vmatprep.subr.mxu0 0.0
  %2611 = vmatpush1.xpose.msra.mxu0 0.0
  %2612 = vmatprep.subr.mxu0 0.0
  %2613 = vmatpush1.xpose.msra.mxu0 0.0
  %2614 = vmatprep.subr.mxu0 0.0
  %2615 = vmatpush1.xpose.msra.mxu0 0.0
  %2616 = vmatprep.subr.mxu0 0.0
  %2617 = vmatpush1.xpose.msra.mxu0 0.0
  %2618 = vmatprep.subr.mxu0 0.0
  %2619 = vmatpush1.xpose.msra.mxu0 0.0
  %2620 = vmatprep.subr.mxu0 0.0
  %2621 = vmatpush1.xpose.msra.mxu0 0.0
  %2622 = vmatprep.subr.mxu0 0.0
  %2623 = vmatpush1.xpose.msra.mxu0 0.0
  %2624 = vmatprep.subr.mxu0 0.0
  %2625 = vmatpush1.xpose.msra.mxu0 0.0
  %2626 = vmatprep.subr.mxu0 0.0
  %2627 = vmatpush1.xpose.msra.mxu0 0.0
  %2628 = vmatprep.subr.mxu0 0.0
  %2629 = vmatpush1.xpose.msra.mxu0 0.0
  %2630 = vmatprep.subr.mxu0 0.0
  %2631 = vmatpush1.xpose.msra.mxu0 0.0
  %2632 = vmatprep.subr.mxu0 0.0
  %2633 = vmatpush1.xpose.msra.mxu0 0.0
  %2634 = vmatprep.subr.mxu0 0.0
  %2635 = vmatpush1.xpose.msra.mxu0 0.0
  %2636 = vmatprep.subr.mxu0 0.0
  %2637 = vmatpush1.xpose.msra.mxu0 0.0
  %2638 = vmatprep.subr.mxu0 0.0
  %2639 = vmatpush1.xpose.msra.mxu0 0.0
  %2640 = vmatprep.subr.mxu0 0.0
  %2641 = vmatpush1.xpose.msra.mxu0 %v2608
  %2642 = vmatprep.subr.mxu0 0.0
  %2643 = vmatpush2.xpose.msra.mxu0 0.0
  %2644 = vmatprep.subr.mxu0 0.0
  %2645 = vmatpush2.xpose.msra.mxu0 0.0
  %2646 = vmatprep.subr.mxu0 0.0
  %2647 = vmatpush2.xpose.msra.mxu0 0.0
  %2648 = vmatprep.subr.mxu0 0.0
  %2649 = vmatpush2.xpose.msra.mxu0 0.0
  %2650 = vmatprep.subr.mxu0 0.0
  %2651 = vmatpush2.xpose.msra.mxu0 0.0
  %2652 = vmatprep.subr.mxu0 0.0
  %2653 = vmatpush2.xpose.msra.mxu0 0.0
  %2654 = vmatprep.subr.mxu0 0.0
  %2655 = vmatpush2.xpose.msra.mxu0 0.0
  %2656 = vmatprep.subr.mxu0 0.0
  %2657 = vmatpush2.xpose.msra.mxu0 0.0
  %2658 = vmatprep.subr.mxu0 0.0
  %2659 = vmatpush2.xpose.msra.mxu0 0.0
  %2660 = vmatprep.subr.mxu0 0.0
  %2661 = vmatpush2.xpose.msra.mxu0 0.0
  %2662 = vmatprep.subr.mxu0 0.0
  %2663 = vmatpush2.xpose.msra.mxu0 0.0
  %2664 = vmatprep.subr.mxu0 0.0
  %2665 = vmatpush2.xpose.msra.mxu0 0.0
  %2666 = vmatprep.subr.mxu0 0.0
  %2667 = vmatpush2.xpose.msra.mxu0 0.0
  %2668 = vmatprep.subr.mxu0 0.0
  %2669 = vmatpush2.xpose.msra.mxu0 0.0
  %2670 = vmatprep.subr.mxu0 0.0
  %2671 = vmatpush2.xpose.msra.mxu0 0.0
  %2672 = vmatprep.subr.mxu0 0.0
  %2673 = vmatpush2.xpose.msra.mxu0 0.0
  %2674 = vmatprep.mubr.f32.mxu0 0.0
  %2675 = vmatmul.mubr.f32.gmra.mxu0 %v2606
  %v2676 = vpop.f32.mrf.mxu0
  %v2677 = vadd.f32 0.0, %v2676
  %v2678 = vpop.f32.mrf.mxu0
  %2679 = vdwg.mxu0
  %v2680 = vmul.f32 %v2145, 0.17677669
  %v2681 = vmul.f32 %v2221, 0.17677669
  %v2682 = vmul.f32 %v2297, 0.17677669
  %v2683 = vmul.f32 %v2373, 0.17677669
  %v2684 = vmul.f32 %v2449, 0.17677669
  %v2685 = vmul.f32 %v2525, 0.17677669
  %v2686 = vmul.f32 %v2601, 0.17677669
  %v2687 = vmul.f32 %v2677, 0.17677669
  %v2688 = vadd.f32 %v2680, %v162
  %v2689 = vadd.f32 %v2681, %v162
  %v2690 = vadd.f32 %v2682, %v162
  %v2691 = vadd.f32 %v2683, %v162
  %v2692 = vadd.f32 %v2684, %v162
  %v2693 = vadd.f32 %v2685, %v162
  %v2694 = vadd.f32 %v2686, %v162
  %v2695 = vadd.f32 %v2687, %v162
  %v2696 = vsel %vm293, %v2688, -inf
  %2697 = vmax.xlane.f32.xlu0 %v2696
  %v2698 = vpop.xlane.xlu0 %2697
  %v2699 = vsel %vm293, %v2689, -inf
  %2700 = vmax.xlane.f32.xlu0 %v2699
  %v2701 = vpop.xlane.xlu0 %2700
  %v2702 = vsel %vm293, %v2690, -inf
  %2703 = vmax.xlane.f32.xlu0 %v2702
  %v2704 = vpop.xlane.xlu0 %2703
  %v2705 = vsel %vm293, %v2691, -inf
  %2706 = vmax.xlane.f32.xlu0 %v2705
  %v2707 = vpop.xlane.xlu0 %2706
  %v2708 = vsel %vm293, %v2692, -inf
  %2709 = vmax.xlane.f32.xlu0 %v2708
  %v2710 = vpop.xlane.xlu0 %2709
  %v2711 = vsel %vm293, %v2693, -inf
  %2712 = vmax.xlane.f32.xlu0 %v2711
  %v2713 = vpop.xlane.xlu0 %2712
  %v2714 = vsel %vm293, %v2694, -inf
  %2715 = vmax.xlane.f32.xlu0 %v2714
  %v2716 = vpop.xlane.xlu0 %2715
  %v2717 = vsel %vm293, %v2695, -inf
  %2718 = vmax.xlane.f32.xlu0 %v2717
  %v2719 = vpop.xlane.xlu0 %2718
  %v2720 = vsub.f32 %v2688, %v2698
  %v2721 = vsub.f32 %v2689, %v2701
  %v2722 = vsub.f32 %v2690, %v2704
  %v2723 = vsub.f32 %v2691, %v2707
  %v2724 = vsub.f32 %v2692, %v2710
  %v2725 = vsub.f32 %v2693, %v2713
  %v2726 = vsub.f32 %v2694, %v2716
  %v2727 = vsub.f32 %v2695, %v2719
  %v2728 = vmul.f32 %v2720, 1.442695
  %v2729 = vpow.pop %v2728
  %v2730 = vmul.f32 %v2721, 1.442695
  %v2731 = vpow.pop %v2730
  %v2732 = vmul.f32 %v2722, 1.442695
  %v2733 = vpow.pop %v2732
  %v2734 = vmul.f32 %v2723, 1.442695
  %v2735 = vpow.pop %v2734
  %v2736 = vmul.f32 %v2724, 1.442695
  %v2737 = vpow.pop %v2736
  %v2738 = vmul.f32 %v2725, 1.442695
  %v2739 = vpow.pop %v2738
  %v2740 = vmul.f32 %v2726, 1.442695
  %v2741 = vpow.pop %v2740
  %v2742 = vmul.f32 %v2727, 1.442695
  %v2743 = vpow.pop %v2742
  %v2744 = vsel %vm293, %v2729, 0.0
  %2745 = vadd.xlane.f32.xlu0 %v2744
  %v2746 = vpop.xlane.xlu0 %2745
  %v2747 = vsel %vm293, %v2731, 0.0
  %2748 = vadd.xlane.f32.xlu0 %v2747
  %v2749 = vpop.xlane.xlu0 %2748
  %v2750 = vsel %vm293, %v2733, 0.0
  %2751 = vadd.xlane.f32.xlu0 %v2750
  %v2752 = vpop.xlane.xlu0 %2751
  %v2753 = vsel %vm293, %v2735, 0.0
  %2754 = vadd.xlane.f32.xlu0 %v2753
  %v2755 = vpop.xlane.xlu0 %2754
  %v2756 = vsel %vm293, %v2737, 0.0
  %2757 = vadd.xlane.f32.xlu0 %v2756
  %v2758 = vpop.xlane.xlu0 %2757
  %v2759 = vsel %vm293, %v2739, 0.0
  %2760 = vadd.xlane.f32.xlu0 %v2759
  %v2761 = vpop.xlane.xlu0 %2760
  %v2762 = vsel %vm293, %v2741, 0.0
  %2763 = vadd.xlane.f32.xlu0 %v2762
  %v2764 = vpop.xlane.xlu0 %2763
  %v2765 = vsel %vm293, %v2743, 0.0
  %2766 = vadd.xlane.f32.xlu0 %v2765
  %v2767 = vpop.xlane.xlu0 %2766
  %v2768 = vrcp.pop %v2746
  %v2769 = vmul.f32 %v2729, %v2768
  %v2770 = vrcp.pop %v2749
  %v2771 = vmul.f32 %v2731, %v2770
  %v2772 = vrcp.pop %v2752
  %v2773 = vmul.f32 %v2733, %v2772
  %v2774 = vrcp.pop %v2755
  %v2775 = vmul.f32 %v2735, %v2774
  %v2776 = vrcp.pop %v2758
  %v2777 = vmul.f32 %v2737, %v2776
  %v2778 = vrcp.pop %v2761
  %v2779 = vmul.f32 %v2739, %v2778
  %v2780 = vrcp.pop %v2764
  %v2781 = vmul.f32 %v2741, %v2780
  %v2782 = vrcp.pop %v2767
  %v2783 = vmul.f32 %v2743, %v2782
  %2784 = vrot.lane.b32.xlu0 %v2052, 64
  %v2785 = vpop.permute.xlu0 %2784
  %v2788 = vsel %vm293, %v2769, 0
  %2790 = vmatprep.subr.mxu0 0.0
  %2791 = vmatpush1.msra.mxu0 0.0
  %2792 = vmatprep.subr.mxu0 0.0
  %2793 = vmatpush1.msra.mxu0 0.0
  %2794 = vmatprep.subr.mxu0 0.0
  %2795 = vmatpush1.msra.mxu0 0.0
  %2796 = vmatprep.subr.mxu0 0.0
  %2797 = vmatpush1.msra.mxu0 0.0
  %2798 = vmatprep.subr.mxu0 0.0
  %2799 = vmatpush1.msra.mxu0 0.0
  %2800 = vmatprep.subr.mxu0 0.0
  %2801 = vmatpush1.msra.mxu0 0.0
  %2802 = vmatprep.subr.mxu0 0.0
  %2803 = vmatpush1.msra.mxu0 0.0
  %2804 = vmatprep.subr.mxu0 0.0
  %2805 = vmatpush1.msra.mxu0 0.0
  %2806 = vmatprep.subr.mxu0 0.0
  %2807 = vmatpush1.msra.mxu0 0.0
  %2808 = vmatprep.subr.mxu0 0.0
  %2809 = vmatpush1.msra.mxu0 0.0
  %2810 = vmatprep.subr.mxu0 0.0
  %2811 = vmatpush1.msra.mxu0 0.0
  %2812 = vmatprep.subr.mxu0 0.0
  %2813 = vmatpush1.msra.mxu0 0.0
  %2814 = vmatprep.subr.mxu0 0.0
  %2815 = vmatpush1.msra.mxu0 0.0
  %2816 = vmatprep.subr.mxu0 0.0
  %2817 = vmatpush1.msra.mxu0 0.0
  %2818 = vmatprep.subr.mxu0 0.0
  %2819 = vmatpush1.msra.mxu0 0.0
  %2820 = vmatprep.subr.mxu0 0.0
  %2821 = vmatpush1.msra.mxu0 %v2785
  %2822 = vmatprep.subr.mxu0 0.0
  %2823 = vmatpush2.msra.mxu0 0.0
  %2824 = vmatprep.subr.mxu0 0.0
  %2825 = vmatpush2.msra.mxu0 0.0
  %2826 = vmatprep.subr.mxu0 0.0
  %2827 = vmatpush2.msra.mxu0 0.0
  %2828 = vmatprep.subr.mxu0 0.0
  %2829 = vmatpush2.msra.mxu0 0.0
  %2830 = vmatprep.subr.mxu0 0.0
  %2831 = vmatpush2.msra.mxu0 0.0
  %2832 = vmatprep.subr.mxu0 0.0
  %2833 = vmatpush2.msra.mxu0 0.0
  %2834 = vmatprep.subr.mxu0 0.0
  %2835 = vmatpush2.msra.mxu0 0.0
  %2836 = vmatprep.subr.mxu0 0.0
  %2837 = vmatpush2.msra.mxu0 0.0
  %2838 = vmatprep.subr.mxu0 0.0
  %2839 = vmatpush2.msra.mxu0 0.0
  %2840 = vmatprep.subr.mxu0 0.0
  %2841 = vmatpush2.msra.mxu0 0.0
  %2842 = vmatprep.subr.mxu0 0.0
  %2843 = vmatpush2.msra.mxu0 0.0
  %2844 = vmatprep.subr.mxu0 0.0
  %2845 = vmatpush2.msra.mxu0 0.0
  %2846 = vmatprep.subr.mxu0 0.0
  %2847 = vmatpush2.msra.mxu0 0.0
  %2848 = vmatprep.subr.mxu0 0.0
  %2849 = vmatpush2.msra.mxu0 0.0
  %2850 = vmatprep.subr.mxu0 0.0
  %2851 = vmatpush2.msra.mxu0 0.0
  %2852 = vmatprep.subr.mxu0 0.0
  %2853 = vmatpush2.msra.mxu0 0.0
  %2854 = vmatprep.mubr.f32.mxu0 0.0
  %2855 = vmatmul.mubr.f32.gmra.mxu0 %v2788
  %v2856 = vpop.f32.mrf.mxu0
  %v2857 = vadd.f32 0.0, %v2856
  %v2858 = vpop.f32.mrf.mxu0
  %2859 = vdwg.mxu0
  %2860 = vrot.lane.b32.xlu0 %v2055, 64
  %v2861 = vpop.permute.xlu0 %2860
  %v2864 = vsel %vm293, %v2771, 0
  %2866 = vmatprep.subr.mxu0 0.0
  %2867 = vmatpush1.msra.mxu0 0.0
  %2868 = vmatprep.subr.mxu0 0.0
  %2869 = vmatpush1.msra.mxu0 0.0
  %2870 = vmatprep.subr.mxu0 0.0
  %2871 = vmatpush1.msra.mxu0 0.0
  %2872 = vmatprep.subr.mxu0 0.0
  %2873 = vmatpush1.msra.mxu0 0.0
  %2874 = vmatprep.subr.mxu0 0.0
  %2875 = vmatpush1.msra.mxu0 0.0
  %2876 = vmatprep.subr.mxu0 0.0
  %2877 = vmatpush1.msra.mxu0 0.0
  %2878 = vmatprep.subr.mxu0 0.0
  %2879 = vmatpush1.msra.mxu0 0.0
  %2880 = vmatprep.subr.mxu0 0.0
  %2881 = vmatpush1.msra.mxu0 0.0
  %2882 = vmatprep.subr.mxu0 0.0
  %2883 = vmatpush1.msra.mxu0 0.0
  %2884 = vmatprep.subr.mxu0 0.0
  %2885 = vmatpush1.msra.mxu0 0.0
  %2886 = vmatprep.subr.mxu0 0.0
  %2887 = vmatpush1.msra.mxu0 0.0
  %2888 = vmatprep.subr.mxu0 0.0
  %2889 = vmatpush1.msra.mxu0 0.0
  %2890 = vmatprep.subr.mxu0 0.0
  %2891 = vmatpush1.msra.mxu0 0.0
  %2892 = vmatprep.subr.mxu0 0.0
  %2893 = vmatpush1.msra.mxu0 0.0
  %2894 = vmatprep.subr.mxu0 0.0
  %2895 = vmatpush1.msra.mxu0 0.0
  %2896 = vmatprep.subr.mxu0 0.0
  %2897 = vmatpush1.msra.mxu0 %v2861
  %2898 = vmatprep.subr.mxu0 0.0
  %2899 = vmatpush2.msra.mxu0 0.0
  %2900 = vmatprep.subr.mxu0 0.0
  %2901 = vmatpush2.msra.mxu0 0.0
  %2902 = vmatprep.subr.mxu0 0.0
  %2903 = vmatpush2.msra.mxu0 0.0
  %2904 = vmatprep.subr.mxu0 0.0
  %2905 = vmatpush2.msra.mxu0 0.0
  %2906 = vmatprep.subr.mxu0 0.0
  %2907 = vmatpush2.msra.mxu0 0.0
  %2908 = vmatprep.subr.mxu0 0.0
  %2909 = vmatpush2.msra.mxu0 0.0
  %2910 = vmatprep.subr.mxu0 0.0
  %2911 = vmatpush2.msra.mxu0 0.0
  %2912 = vmatprep.subr.mxu0 0.0
  %2913 = vmatpush2.msra.mxu0 0.0
  %2914 = vmatprep.subr.mxu0 0.0
  %2915 = vmatpush2.msra.mxu0 0.0
  %2916 = vmatprep.subr.mxu0 0.0
  %2917 = vmatpush2.msra.mxu0 0.0
  %2918 = vmatprep.subr.mxu0 0.0
  %2919 = vmatpush2.msra.mxu0 0.0
  %2920 = vmatprep.subr.mxu0 0.0
  %2921 = vmatpush2.msra.mxu0 0.0
  %2922 = vmatprep.subr.mxu0 0.0
  %2923 = vmatpush2.msra.mxu0 0.0
  %2924 = vmatprep.subr.mxu0 0.0
  %2925 = vmatpush2.msra.mxu0 0.0
  %2926 = vmatprep.subr.mxu0 0.0
  %2927 = vmatpush2.msra.mxu0 0.0
  %2928 = vmatprep.subr.mxu0 0.0
  %2929 = vmatpush2.msra.mxu0 0.0
  %2930 = vmatprep.mubr.f32.mxu0 0.0
  %2931 = vmatmul.mubr.f32.gmra.mxu0 %v2864
  %v2932 = vpop.f32.mrf.mxu0
  %v2933 = vadd.f32 0.0, %v2932
  %v2934 = vpop.f32.mrf.mxu0
  %2935 = vdwg.mxu0
  %2936 = vrot.lane.b32.xlu0 %v2061, 64
  %v2937 = vpop.permute.xlu0 %2936
  %v2940 = vsel %vm293, %v2773, 0
  %2942 = vmatprep.subr.mxu0 0.0
  %2943 = vmatpush1.msra.mxu0 0.0
  %2944 = vmatprep.subr.mxu0 0.0
  %2945 = vmatpush1.msra.mxu0 0.0
  %2946 = vmatprep.subr.mxu0 0.0
  %2947 = vmatpush1.msra.mxu0 0.0
  %2948 = vmatprep.subr.mxu0 0.0
  %2949 = vmatpush1.msra.mxu0 0.0
  %2950 = vmatprep.subr.mxu0 0.0
  %2951 = vmatpush1.msra.mxu0 0.0
  %2952 = vmatprep.subr.mxu0 0.0
  %2953 = vmatpush1.msra.mxu0 0.0
  %2954 = vmatprep.subr.mxu0 0.0
  %2955 = vmatpush1.msra.mxu0 0.0
  %2956 = vmatprep.subr.mxu0 0.0
  %2957 = vmatpush1.msra.mxu0 0.0
  %2958 = vmatprep.subr.mxu0 0.0
  %2959 = vmatpush1.msra.mxu0 0.0
  %2960 = vmatprep.subr.mxu0 0.0
  %2961 = vmatpush1.msra.mxu0 0.0
  %2962 = vmatprep.subr.mxu0 0.0
  %2963 = vmatpush1.msra.mxu0 0.0
  %2964 = vmatprep.subr.mxu0 0.0
  %2965 = vmatpush1.msra.mxu0 0.0
  %2966 = vmatprep.subr.mxu0 0.0
  %2967 = vmatpush1.msra.mxu0 0.0
  %2968 = vmatprep.subr.mxu0 0.0
  %2969 = vmatpush1.msra.mxu0 0.0
  %2970 = vmatprep.subr.mxu0 0.0
  %2971 = vmatpush1.msra.mxu0 0.0
  %2972 = vmatprep.subr.mxu0 0.0
  %2973 = vmatpush1.msra.mxu0 %v2937
  %2974 = vmatprep.subr.mxu0 0.0
  %2975 = vmatpush2.msra.mxu0 0.0
  %2976 = vmatprep.subr.mxu0 0.0
  %2977 = vmatpush2.msra.mxu0 0.0
  %2978 = vmatprep.subr.mxu0 0.0
  %2979 = vmatpush2.msra.mxu0 0.0
  %2980 = vmatprep.subr.mxu0 0.0
  %2981 = vmatpush2.msra.mxu0 0.0
  %2982 = vmatprep.subr.mxu0 0.0
  %2983 = vmatpush2.msra.mxu0 0.0
  %2984 = vmatprep.subr.mxu0 0.0
  %2985 = vmatpush2.msra.mxu0 0.0
  %2986 = vmatprep.subr.mxu0 0.0
  %2987 = vmatpush2.msra.mxu0 0.0
  %2988 = vmatprep.subr.mxu0 0.0
  %2989 = vmatpush2.msra.mxu0 0.0
  %2990 = vmatprep.subr.mxu0 0.0
  %2991 = vmatpush2.msra.mxu0 0.0
  %2992 = vmatprep.subr.mxu0 0.0
  %2993 = vmatpush2.msra.mxu0 0.0
  %2994 = vmatprep.subr.mxu0 0.0
  %2995 = vmatpush2.msra.mxu0 0.0
  %2996 = vmatprep.subr.mxu0 0.0
  %2997 = vmatpush2.msra.mxu0 0.0
  %2998 = vmatprep.subr.mxu0 0.0
  %2999 = vmatpush2.msra.mxu0 0.0
  %3000 = vmatprep.subr.mxu0 0.0
  %3001 = vmatpush2.msra.mxu0 0.0
  %3002 = vmatprep.subr.mxu0 0.0
  %3003 = vmatpush2.msra.mxu0 0.0
  %3004 = vmatprep.subr.mxu0 0.0
  %3005 = vmatpush2.msra.mxu0 0.0
  %3006 = vmatprep.mubr.f32.mxu0 0.0
  %3007 = vmatmul.mubr.f32.gmra.mxu0 %v2940
  %v3008 = vpop.f32.mrf.mxu0
  %v3009 = vadd.f32 0.0, %v3008
  %v3010 = vpop.f32.mrf.mxu0
  %3011 = vdwg.mxu0
  %3012 = vrot.lane.b32.xlu0 %v2063, 64
  %v3013 = vpop.permute.xlu0 %3012
  %v3016 = vsel %vm293, %v2775, 0
  %3018 = vmatprep.subr.mxu0 0.0
  %3019 = vmatpush1.msra.mxu0 0.0
  %3020 = vmatprep.subr.mxu0 0.0
  %3021 = vmatpush1.msra.mxu0 0.0
  %3022 = vmatprep.subr.mxu0 0.0
  %3023 = vmatpush1.msra.mxu0 0.0
  %3024 = vmatprep.subr.mxu0 0.0
  %3025 = vmatpush1.msra.mxu0 0.0
  %3026 = vmatprep.subr.mxu0 0.0
  %3027 = vmatpush1.msra.mxu0 0.0
  %3028 = vmatprep.subr.mxu0 0.0
  %3029 = vmatpush1.msra.mxu0 0.0
  %3030 = vmatprep.subr.mxu0 0.0
  %3031 = vmatpush1.msra.mxu0 0.0
  %3032 = vmatprep.subr.mxu0 0.0
  %3033 = vmatpush1.msra.mxu0 0.0
  %3034 = vmatprep.subr.mxu0 0.0
  %3035 = vmatpush1.msra.mxu0 0.0
  %3036 = vmatprep.subr.mxu0 0.0
  %3037 = vmatpush1.msra.mxu0 0.0
  %3038 = vmatprep.subr.mxu0 0.0
  %3039 = vmatpush1.msra.mxu0 0.0
  %3040 = vmatprep.subr.mxu0 0.0
  %3041 = vmatpush1.msra.mxu0 0.0
  %3042 = vmatprep.subr.mxu0 0.0
  %3043 = vmatpush1.msra.mxu0 0.0
  %3044 = vmatprep.subr.mxu0 0.0
  %3045 = vmatpush1.msra.mxu0 0.0
  %3046 = vmatprep.subr.mxu0 0.0
  %3047 = vmatpush1.msra.mxu0 0.0
  %3048 = vmatprep.subr.mxu0 0.0
  %3049 = vmatpush1.msra.mxu0 %v3013
  %3050 = vmatprep.subr.mxu0 0.0
  %3051 = vmatpush2.msra.mxu0 0.0
  %3052 = vmatprep.subr.mxu0 0.0
  %3053 = vmatpush2.msra.mxu0 0.0
  %3054 = vmatprep.subr.mxu0 0.0
  %3055 = vmatpush2.msra.mxu0 0.0
  %3056 = vmatprep.subr.mxu0 0.0
  %3057 = vmatpush2.msra.mxu0 0.0
  %3058 = vmatprep.subr.mxu0 0.0
  %3059 = vmatpush2.msra.mxu0 0.0
  %3060 = vmatprep.subr.mxu0 0.0
  %3061 = vmatpush2.msra.mxu0 0.0
  %3062 = vmatprep.subr.mxu0 0.0
  %3063 = vmatpush2.msra.mxu0 0.0
  %3064 = vmatprep.subr.mxu0 0.0
  %3065 = vmatpush2.msra.mxu0 0.0
  %3066 = vmatprep.subr.mxu0 0.0
  %3067 = vmatpush2.msra.mxu0 0.0
  %3068 = vmatprep.subr.mxu0 0.0
  %3069 = vmatpush2.msra.mxu0 0.0
  %3070 = vmatprep.subr.mxu0 0.0
  %3071 = vmatpush2.msra.mxu0 0.0
  %3072 = vmatprep.subr.mxu0 0.0
  %3073 = vmatpush2.msra.mxu0 0.0
  %3074 = vmatprep.subr.mxu0 0.0
  %3075 = vmatpush2.msra.mxu0 0.0
  %3076 = vmatprep.subr.mxu0 0.0
  %3077 = vmatpush2.msra.mxu0 0.0
  %3078 = vmatprep.subr.mxu0 0.0
  %3079 = vmatpush2.msra.mxu0 0.0
  %3080 = vmatprep.subr.mxu0 0.0
  %3081 = vmatpush2.msra.mxu0 0.0
  %3082 = vmatprep.mubr.f32.mxu0 0.0
  %3083 = vmatmul.mubr.f32.gmra.mxu0 %v3016
  %v3084 = vpop.f32.mrf.mxu0
  %v3085 = vadd.f32 0.0, %v3084
  %v3086 = vpop.f32.mrf.mxu0
  %3087 = vdwg.mxu0
  %3088 = vrot.lane.b32.xlu0 %v2065, 64
  %v3089 = vpop.permute.xlu0 %3088
  %v3092 = vsel %vm293, %v2777, 0
  %3094 = vmatprep.subr.mxu0 0.0
  %3095 = vmatpush1.msra.mxu0 0.0
  %3096 = vmatprep.subr.mxu0 0.0
  %3097 = vmatpush1.msra.mxu0 0.0
  %3098 = vmatprep.subr.mxu0 0.0
  %3099 = vmatpush1.msra.mxu0 0.0
  %3100 = vmatprep.subr.mxu0 0.0
  %3101 = vmatpush1.msra.mxu0 0.0
  %3102 = vmatprep.subr.mxu0 0.0
  %3103 = vmatpush1.msra.mxu0 0.0
  %3104 = vmatprep.subr.mxu0 0.0
  %3105 = vmatpush1.msra.mxu0 0.0
  %3106 = vmatprep.subr.mxu0 0.0
  %3107 = vmatpush1.msra.mxu0 0.0
  %3108 = vmatprep.subr.mxu0 0.0
  %3109 = vmatpush1.msra.mxu0 0.0
  %3110 = vmatprep.subr.mxu0 0.0
  %3111 = vmatpush1.msra.mxu0 0.0
  %3112 = vmatprep.subr.mxu0 0.0
  %3113 = vmatpush1.msra.mxu0 0.0
  %3114 = vmatprep.subr.mxu0 0.0
  %3115 = vmatpush1.msra.mxu0 0.0
  %3116 = vmatprep.subr.mxu0 0.0
  %3117 = vmatpush1.msra.mxu0 0.0
  %3118 = vmatprep.subr.mxu0 0.0
  %3119 = vmatpush1.msra.mxu0 0.0
  %3120 = vmatprep.subr.mxu0 0.0
  %3121 = vmatpush1.msra.mxu0 0.0
  %3122 = vmatprep.subr.mxu0 0.0
  %3123 = vmatpush1.msra.mxu0 0.0
  %3124 = vmatprep.subr.mxu0 0.0
  %3125 = vmatpush1.msra.mxu0 %v3089
  %3126 = vmatprep.subr.mxu0 0.0
  %3127 = vmatpush2.msra.mxu0 0.0
  %3128 = vmatprep.subr.mxu0 0.0
  %3129 = vmatpush2.msra.mxu0 0.0
  %3130 = vmatprep.subr.mxu0 0.0
  %3131 = vmatpush2.msra.mxu0 0.0
  %3132 = vmatprep.subr.mxu0 0.0
  %3133 = vmatpush2.msra.mxu0 0.0
  %3134 = vmatprep.subr.mxu0 0.0
  %3135 = vmatpush2.msra.mxu0 0.0
  %3136 = vmatprep.subr.mxu0 0.0
  %3137 = vmatpush2.msra.mxu0 0.0
  %3138 = vmatprep.subr.mxu0 0.0
  %3139 = vmatpush2.msra.mxu0 0.0
  %3140 = vmatprep.subr.mxu0 0.0
  %3141 = vmatpush2.msra.mxu0 0.0
  %3142 = vmatprep.subr.mxu0 0.0
  %3143 = vmatpush2.msra.mxu0 0.0
  %3144 = vmatprep.subr.mxu0 0.0
  %3145 = vmatpush2.msra.mxu0 0.0
  %3146 = vmatprep.subr.mxu0 0.0
  %3147 = vmatpush2.msra.mxu0 0.0
  %3148 = vmatprep.subr.mxu0 0.0
  %3149 = vmatpush2.msra.mxu0 0.0
  %3150 = vmatprep.subr.mxu0 0.0
  %3151 = vmatpush2.msra.mxu0 0.0
  %3152 = vmatprep.subr.mxu0 0.0
  %3153 = vmatpush2.msra.mxu0 0.0
  %3154 = vmatprep.subr.mxu0 0.0
  %3155 = vmatpush2.msra.mxu0 0.0
  %3156 = vmatprep.subr.mxu0 0.0
  %3157 = vmatpush2.msra.mxu0 0.0
  %3158 = vmatprep.mubr.f32.mxu0 0.0
  %3159 = vmatmul.mubr.f32.gmra.mxu0 %v3092
  %v3160 = vpop.f32.mrf.mxu0
  %v3161 = vadd.f32 0.0, %v3160
  %v3162 = vpop.f32.mrf.mxu0
  %3163 = vdwg.mxu0
  %3164 = vrot.lane.b32.xlu0 %v2067, 64
  %v3165 = vpop.permute.xlu0 %3164
  %v3168 = vsel %vm293, %v2779, 0
  %3170 = vmatprep.subr.mxu0 0.0
  %3171 = vmatpush1.msra.mxu0 0.0
  %3172 = vmatprep.subr.mxu0 0.0
  %3173 = vmatpush1.msra.mxu0 0.0
  %3174 = vmatprep.subr.mxu0 0.0
  %3175 = vmatpush1.msra.mxu0 0.0
  %3176 = vmatprep.subr.mxu0 0.0
  %3177 = vmatpush1.msra.mxu0 0.0
  %3178 = vmatprep.subr.mxu0 0.0
  %3179 = vmatpush1.msra.mxu0 0.0
  %3180 = vmatprep.subr.mxu0 0.0
  %3181 = vmatpush1.msra.mxu0 0.0
  %3182 = vmatprep.subr.mxu0 0.0
  %3183 = vmatpush1.msra.mxu0 0.0
  %3184 = vmatprep.subr.mxu0 0.0
  %3185 = vmatpush1.msra.mxu0 0.0
  %3186 = vmatprep.subr.mxu0 0.0
  %3187 = vmatpush1.msra.mxu0 0.0
  %3188 = vmatprep.subr.mxu0 0.0
  %3189 = vmatpush1.msra.mxu0 0.0
  %3190 = vmatprep.subr.mxu0 0.0
  %3191 = vmatpush1.msra.mxu0 0.0
  %3192 = vmatprep.subr.mxu0 0.0
  %3193 = vmatpush1.msra.mxu0 0.0
  %3194 = vmatprep.subr.mxu0 0.0
  %3195 = vmatpush1.msra.mxu0 0.0
  %3196 = vmatprep.subr.mxu0 0.0
  %3197 = vmatpush1.msra.mxu0 0.0
  %3198 = vmatprep.subr.mxu0 0.0
  %3199 = vmatpush1.msra.mxu0 0.0
  %3200 = vmatprep.subr.mxu0 0.0
  %3201 = vmatpush1.msra.mxu0 %v3165
  %3202 = vmatprep.subr.mxu0 0.0
  %3203 = vmatpush2.msra.mxu0 0.0
  %3204 = vmatprep.subr.mxu0 0.0
  %3205 = vmatpush2.msra.mxu0 0.0
  %3206 = vmatprep.subr.mxu0 0.0
  %3207 = vmatpush2.msra.mxu0 0.0
  %3208 = vmatprep.subr.mxu0 0.0
  %3209 = vmatpush2.msra.mxu0 0.0
  %3210 = vmatprep.subr.mxu0 0.0
  %3211 = vmatpush2.msra.mxu0 0.0
  %3212 = vmatprep.subr.mxu0 0.0
  %3213 = vmatpush2.msra.mxu0 0.0
  %3214 = vmatprep.subr.mxu0 0.0
  %3215 = vmatpush2.msra.mxu0 0.0
  %3216 = vmatprep.subr.mxu0 0.0
  %3217 = vmatpush2.msra.mxu0 0.0
  %3218 = vmatprep.subr.mxu0 0.0
  %3219 = vmatpush2.msra.mxu0 0.0
  %3220 = vmatprep.subr.mxu0 0.0
  %3221 = vmatpush2.msra.mxu0 0.0
  %3222 = vmatprep.subr.mxu0 0.0
  %3223 = vmatpush2.msra.mxu0 0.0
  %3224 = vmatprep.subr.mxu0 0.0
  %3225 = vmatpush2.msra.mxu0 0.0
  %3226 = vmatprep.subr.mxu0 0.0
  %3227 = vmatpush2.msra.mxu0 0.0
  %3228 = vmatprep.subr.mxu0 0.0
  %3229 = vmatpush2.msra.mxu0 0.0
  %3230 = vmatprep.subr.mxu0 0.0
  %3231 = vmatpush2.msra.mxu0 0.0
  %3232 = vmatprep.subr.mxu0 0.0
  %3233 = vmatpush2.msra.mxu0 0.0
  %3234 = vmatprep.mubr.f32.mxu0 0.0
  %3235 = vmatmul.mubr.f32.gmra.mxu0 %v3168
  %v3236 = vpop.f32.mrf.mxu0
  %v3237 = vadd.f32 0.0, %v3236
  %v3238 = vpop.f32.mrf.mxu0
  %3239 = vdwg.mxu0
  %3240 = vrot.lane.b32.xlu0 %v2069, 64
  %v3241 = vpop.permute.xlu0 %3240
  %v3244 = vsel %vm293, %v2781, 0
  %3246 = vmatprep.subr.mxu0 0.0
  %3247 = vmatpush1.msra.mxu0 0.0
  %3248 = vmatprep.subr.mxu0 0.0
  %3249 = vmatpush1.msra.mxu0 0.0
  %3250 = vmatprep.subr.mxu0 0.0
  %3251 = vmatpush1.msra.mxu0 0.0
  %3252 = vmatprep.subr.mxu0 0.0
  %3253 = vmatpush1.msra.mxu0 0.0
  %3254 = vmatprep.subr.mxu0 0.0
  %3255 = vmatpush1.msra.mxu0 0.0
  %3256 = vmatprep.subr.mxu0 0.0
  %3257 = vmatpush1.msra.mxu0 0.0
  %3258 = vmatprep.subr.mxu0 0.0
  %3259 = vmatpush1.msra.mxu0 0.0
  %3260 = vmatprep.subr.mxu0 0.0
  %3261 = vmatpush1.msra.mxu0 0.0
  %3262 = vmatprep.subr.mxu0 0.0
  %3263 = vmatpush1.msra.mxu0 0.0
  %3264 = vmatprep.subr.mxu0 0.0
  %3265 = vmatpush1.msra.mxu0 0.0
  %3266 = vmatprep.subr.mxu0 0.0
  %3267 = vmatpush1.msra.mxu0 0.0
  %3268 = vmatprep.subr.mxu0 0.0
  %3269 = vmatpush1.msra.mxu0 0.0
  %3270 = vmatprep.subr.mxu0 0.0
  %3271 = vmatpush1.msra.mxu0 0.0
  %3272 = vmatprep.subr.mxu0 0.0
  %3273 = vmatpush1.msra.mxu0 0.0
  %3274 = vmatprep.subr.mxu0 0.0
  %3275 = vmatpush1.msra.mxu0 0.0
  %3276 = vmatprep.subr.mxu0 0.0
  %3277 = vmatpush1.msra.mxu0 %v3241
  %3278 = vmatprep.subr.mxu0 0.0
  %3279 = vmatpush2.msra.mxu0 0.0
  %3280 = vmatprep.subr.mxu0 0.0
  %3281 = vmatpush2.msra.mxu0 0.0
  %3282 = vmatprep.subr.mxu0 0.0
  %3283 = vmatpush2.msra.mxu0 0.0
  %3284 = vmatprep.subr.mxu0 0.0
  %3285 = vmatpush2.msra.mxu0 0.0
  %3286 = vmatprep.subr.mxu0 0.0
  %3287 = vmatpush2.msra.mxu0 0.0
  %3288 = vmatprep.subr.mxu0 0.0
  %3289 = vmatpush2.msra.mxu0 0.0
  %3290 = vmatprep.subr.mxu0 0.0
  %3291 = vmatpush2.msra.mxu0 0.0
  %3292 = vmatprep.subr.mxu0 0.0
  %3293 = vmatpush2.msra.mxu0 0.0
  %3294 = vmatprep.subr.mxu0 0.0
  %3295 = vmatpush2.msra.mxu0 0.0
  %3296 = vmatprep.subr.mxu0 0.0
  %3297 = vmatpush2.msra.mxu0 0.0
  %3298 = vmatprep.subr.mxu0 0.0
  %3299 = vmatpush2.msra.mxu0 0.0
  %3300 = vmatprep.subr.mxu0 0.0
  %3301 = vmatpush2.msra.mxu0 0.0
  %3302 = vmatprep.subr.mxu0 0.0
  %3303 = vmatpush2.msra.mxu0 0.0
  %3304 = vmatprep.subr.mxu0 0.0
  %3305 = vmatpush2.msra.mxu0 0.0
  %3306 = vmatprep.subr.mxu0 0.0
  %3307 = vmatpush2.msra.mxu0 0.0
  %3308 = vmatprep.subr.mxu0 0.0
  %3309 = vmatpush2.msra.mxu0 0.0
  %3310 = vmatprep.mubr.f32.mxu0 0.0
  %3311 = vmatmul.mubr.f32.gmra.mxu0 %v3244
  %v3312 = vpop.f32.mrf.mxu0
  %v3313 = vadd.f32 0.0, %v3312
  %v3314 = vpop.f32.mrf.mxu0
  %3315 = vdwg.mxu0
  %3316 = vrot.lane.b32.xlu0 %v2071, 64
  %v3317 = vpop.permute.xlu0 %3316
  %v3320 = vsel %vm293, %v2783, 0
  %3322 = vmatprep.subr.mxu0 0.0
  %3323 = vmatpush1.msra.mxu0 0.0
  %3324 = vmatprep.subr.mxu0 0.0
  %3325 = vmatpush1.msra.mxu0 0.0
  %3326 = vmatprep.subr.mxu0 0.0
  %3327 = vmatpush1.msra.mxu0 0.0
  %3328 = vmatprep.subr.mxu0 0.0
  %3329 = vmatpush1.msra.mxu0 0.0
  %3330 = vmatprep.subr.mxu0 0.0
  %3331 = vmatpush1.msra.mxu0 0.0
  %3332 = vmatprep.subr.mxu0 0.0
  %3333 = vmatpush1.msra.mxu0 0.0
  %3334 = vmatprep.subr.mxu0 0.0
  %3335 = vmatpush1.msra.mxu0 0.0
  %3336 = vmatprep.subr.mxu0 0.0
  %3337 = vmatpush1.msra.mxu0 0.0
  %3338 = vmatprep.subr.mxu0 0.0
  %3339 = vmatpush1.msra.mxu0 0.0
  %3340 = vmatprep.subr.mxu0 0.0
  %3341 = vmatpush1.msra.mxu0 0.0
  %3342 = vmatprep.subr.mxu0 0.0
  %3343 = vmatpush1.msra.mxu0 0.0
  %3344 = vmatprep.subr.mxu0 0.0
  %3345 = vmatpush1.msra.mxu0 0.0
  %3346 = vmatprep.subr.mxu0 0.0
  %3347 = vmatpush1.msra.mxu0 0.0
  %3348 = vmatprep.subr.mxu0 0.0
  %3349 = vmatpush1.msra.mxu0 0.0
  %3350 = vmatprep.subr.mxu0 0.0
  %3351 = vmatpush1.msra.mxu0 0.0
  %3352 = vmatprep.subr.mxu0 0.0
  %3353 = vmatpush1.msra.mxu0 %v3317
  %3354 = vmatprep.subr.mxu0 0.0
  %3355 = vmatpush2.msra.mxu0 0.0
  %3356 = vmatprep.subr.mxu0 0.0
  %3357 = vmatpush2.msra.mxu0 0.0
  %3358 = vmatprep.subr.mxu0 0.0
  %3359 = vmatpush2.msra.mxu0 0.0
  %3360 = vmatprep.subr.mxu0 0.0
  %3361 = vmatpush2.msra.mxu0 0.0
  %3362 = vmatprep.subr.mxu0 0.0
  %3363 = vmatpush2.msra.mxu0 0.0
  %3364 = vmatprep.subr.mxu0 0.0
  %3365 = vmatpush2.msra.mxu0 0.0
  %3366 = vmatprep.subr.mxu0 0.0
  %3367 = vmatpush2.msra.mxu0 0.0
  %3368 = vmatprep.subr.mxu0 0.0
  %3369 = vmatpush2.msra.mxu0 0.0
  %3370 = vmatprep.subr.mxu0 0.0
  %3371 = vmatpush2.msra.mxu0 0.0
  %3372 = vmatprep.subr.mxu0 0.0
  %3373 = vmatpush2.msra.mxu0 0.0
  %3374 = vmatprep.subr.mxu0 0.0
  %3375 = vmatpush2.msra.mxu0 0.0
  %3376 = vmatprep.subr.mxu0 0.0
  %3377 = vmatpush2.msra.mxu0 0.0
  %3378 = vmatprep.subr.mxu0 0.0
  %3379 = vmatpush2.msra.mxu0 0.0
  %3380 = vmatprep.subr.mxu0 0.0
  %3381 = vmatpush2.msra.mxu0 0.0
  %3382 = vmatprep.subr.mxu0 0.0
  %3383 = vmatpush2.msra.mxu0 0.0
  %3384 = vmatprep.subr.mxu0 0.0
  %3385 = vmatpush2.msra.mxu0 0.0
  %3386 = vmatprep.mubr.f32.mxu0 0.0
  %3387 = vmatmul.mubr.f32.gmra.mxu0 %v3320
  %v3388 = vpop.f32.mrf.mxu0
  %v3389 = vadd.f32 0.0, %v3388
  %v3390 = vpop.f32.mrf.mxu0
  %3391 = vdwg.mxu0
  %3394 = vrot.lane.b32.xlu0 %v3009, 8
  %v3395 = vpop.permute.xlu0 %3394
  %3396 = vrot.lane.b32.xlu0 %v3085, 8
  %v3397 = vpop.permute.xlu0 %3396
  %3402 = vrot.lane.b32.xlu0 %v3161, 16
  %v3403 = vpop.permute.xlu0 %3402
  %3404 = vrot.lane.b32.xlu0 %v3237, 16
  %v3405 = vpop.permute.xlu0 %3404
  %3410 = vrot.lane.b32.xlu0 %v3313, 24
  %v3411 = vpop.permute.xlu0 %3410
  %3412 = vrot.lane.b32.xlu0 %v3389, 24
  %v3413 = vpop.permute.xlu0 %3412
  %v3416 = vsel %vm293, %v2857, %v3395
  %v3417 = vsel %vm293, %v2933, %v3397
  %v3418 = vsel %vm77, %v3416, %v3403
  %v3419 = vsel %vm77, %v3417, %v3405
  %v3420 = vsel %vm1640, %v3418, %v3411
  %v3421 = vsel %vm1640, %v3419, %v3413
  %v3422 = vpack.c.bf16 %v3421, %v3420
  %s3423 = scalar_lea.vmem %s7, 16
  %v3424 = vld [vmem:[%s3423] sm:$0xf]
  %v3425 = vld [vmem:[%s3423 + $0x4] sm:$0xf]
  %v3426 = vld [vmem:[%s3423 + $0x8] sm:$0xf]
  %v3427 = vld [vmem:[%s3423 + $0xc] sm:$0xf]
  %s3428 = scalar_lea.vmem %s8, 1
  %v3429 = vld [vmem:[%s3428] sm:$0x1]
  %v3431 = vlaneseq
  %v3432 = vshrl.u32 %v3431, 7
  %v3433 = vsub.s32 0, %v3432
  %v3434 = vrot.slane %v3429, %v3433
  %v3440 = vunpack.c.l.b16 %v3424
  %v3441 = vunpack.c.l.b16 %v3425
  %v3442 = vunpack.c.l.b16 %v3426
  %v3443 = vunpack.c.l.b16 %v3427
  %v3444 = vpack.c.b16 %v3441, %v3440
  %v3445 = vpack.c.b16 %v3443, %v3442
  %v3449 = vsel %vm165, %v3422, 0
  %3451 = vmatprep.subr.bf16.mxu0 0
  %3452 = vmatpush1.bf16.msra.mxu0 0
  %3453 = vmatprep.subr.bf16.mxu0 0
  %3454 = vmatpush1.bf16.msra.mxu0 0
  %3455 = vmatprep.subr.bf16.mxu0 0
  %3456 = vmatpush1.bf16.msra.mxu0 0
  %3457 = vmatprep.subr.bf16.mxu0 0
  %3458 = vmatpush1.bf16.msra.mxu0 0
  %3459 = vmatprep.subr.bf16.mxu0 0
  %3460 = vmatpush1.bf16.msra.mxu0 0
  %3461 = vmatprep.subr.bf16.mxu0 0
  %3462 = vmatpush1.bf16.msra.mxu0 0
  %3463 = vmatprep.subr.bf16.mxu0 0
  %3464 = vmatpush1.bf16.msra.mxu0 %v3445
  %3465 = vmatprep.subr.bf16.mxu0 0
  %3466 = vmatpush1.bf16.msra.mxu0 %v3444
  %3467 = vmatprep.subr.bf16.mxu0 0
  %3468 = vmatpush2.bf16.msra.mxu0 0
  %3469 = vmatprep.subr.bf16.mxu0 0
  %3470 = vmatpush2.bf16.msra.mxu0 0
  %3471 = vmatprep.subr.bf16.mxu0 0
  %3472 = vmatpush2.bf16.msra.mxu0 0
  %3473 = vmatprep.subr.bf16.mxu0 0
  %3474 = vmatpush2.bf16.msra.mxu0 0
  %3475 = vmatprep.subr.bf16.mxu0 0
  %3476 = vmatpush2.bf16.msra.mxu0 0
  %3477 = vmatprep.subr.bf16.mxu0 0
  %3478 = vmatpush2.bf16.msra.mxu0 0
  %3479 = vmatprep.subr.bf16.mxu0 0
  %3480 = vmatpush2.bf16.msra.mxu0 0
  %3481 = vmatprep.subr.bf16.mxu0 0
  %3482 = vmatpush2.bf16.msra.mxu0 0
  %3483 = vmatprep.mubr.bf16.mxu0 0
  %3484 = vmatmul.mubr.bf16.gmra.mxu0 %v3449
  %v3485 = vpop.f32.mrf.mxu0
  %v3486 = vadd.f32 %v3434, %v3485
  %v3487 = vpop.f32.mrf.mxu0
  %v3488 = vpop.f32.mrf.mxu0
  %v3489 = vadd.f32 %v3434, %v3488
  %v3490 = vpop.f32.mrf.mxu0
  %3491 = vdwg.mxu0
  %v3492 = vadd.f32 %v1940, %v3486
  %v3493 = vadd.f32 %v1941, %v3489
  %s3494 = scalar_lea.vmem %s9, 1
  %v3495 = vld [vmem:[%s3494] sm:$0x1]
  %s3496 = scalar_lea.vmem %s10, 1
  %v3497 = vld [vmem:[%s3496] sm:$0x1]
  %v3498 = vsel %vm165, %v3492, 0.0
  %3499 = vadd.xlane.f32.xlu0 %v3498
  %v3500 = vpop.xlane.xlu0 %3499
  %v3501 = vsel %vm165, %v3493, 0.0
  %3502 = vadd.xlane.f32.xlu0 %v3501
  %v3503 = vpop.xlane.xlu0 %3502
  %v3504 = vmul.f32 %v3500, %v172
  %v3505 = vmul.f32 %v3503, %v172
  %v3506 = vsub.f32 %v3492, %v3504
  %v3507 = vsub.f32 %v3493, %v3505
  %v3508 = vmul.f32 %v3506, %v3506
  %v3509 = vmul.f32 %v3507, %v3507
  %v3510 = vsel %vm165, %v3508, 0.0
  %3511 = vadd.xlane.f32.xlu0 %v3510
  %v3512 = vpop.xlane.xlu0 %3511
  %v3513 = vsel %vm165, %v3509, 0.0
  %3514 = vadd.xlane.f32.xlu0 %v3513
  %v3515 = vpop.xlane.xlu0 %3514
  %v3516 = vmul.f32 %v3512, 0.032258064
  %v3517 = vmul.f32 %v3515, 0.032258064
  %v3518 = vadd.f32 %v3516, 1e-12
  %v3519 = vadd.f32 %v3517, 1e-12
  %v3520 = vrcp.pop %v3518
  %v3521 = vmul.f32 %v3506, %v3520
  %v3522 = vrcp.pop %v3519
  %v3523 = vmul.f32 %v3507, %v3522
  %v3525 = vlaneseq
  %v3526 = vshrl.u32 %v3525, 7
  %v3527 = vsub.s32 0, %v3526
  %v3528 = vrot.slane %v3495, %v3527
  %v3530 = vmul.f32 %v3528, %v3521
  %v3531 = vmul.f32 %v3528, %v3523
  %v3533 = vlaneseq
  %v3534 = vshrl.u32 %v3533, 7
  %v3535 = vsub.s32 0, %v3534
  %v3536 = vrot.slane %v3497, %v3535
  %v3538 = vadd.f32 %v3530, %v3536
  %v3539 = vadd.f32 %v3531, %v3536
  %v3540 = vpack.c.bf16 %v3539, %v3538
  %s3541 = scalar_lea.vmem %s11, 16
  %v3542 = vld [vmem:[%s3541] sm:$0xf]
  %v3543 = vld [vmem:[%s3541 + $0x4] sm:$0xf]
  %v3544 = vld [vmem:[%s3541 + $0x8] sm:$0xf]
  %v3545 = vld [vmem:[%s3541 + $0xc] sm:$0xf]
  %s3546 = scalar_lea.vmem %s12, 1
  %v3547 = vld [vmem:[%s3546] sm:$0x1]
  %v3549 = vlaneseq
  %v3550 = vshrl.u32 %v3549, 7
  %v3551 = vsub.s32 0, %v3550
  %v3552 = vrot.slane %v3547, %v3551
  %v3558 = vunpack.c.l.b16 %v3542
  %v3559 = vunpack.c.l.b16 %v3543
  %v3560 = vunpack.c.l.b16 %v3544
  %v3561 = vunpack.c.l.b16 %v3545
  %v3562 = vpack.c.b16 %v3559, %v3558
  %v3563 = vpack.c.b16 %v3561, %v3560
  %v3567 = vsel %vm165, %v3540, 0
  %3569 = vmatprep.subr.bf16.mxu0 0
  %3570 = vmatpush1.bf16.msra.mxu0 0
  %3571 = vmatprep.subr.bf16.mxu0 0
  %3572 = vmatpush1.bf16.msra.mxu0 0
  %3573 = vmatprep.subr.bf16.mxu0 0
  %3574 = vmatpush1.bf16.msra.mxu0 0
  %3575 = vmatprep.subr.bf16.mxu0 0
  %3576 = vmatpush1.bf16.msra.mxu0 0
  %3577 = vmatprep.subr.bf16.mxu0 0
  %3578 = vmatpush1.bf16.msra.mxu0 0
  %3579 = vmatprep.subr.bf16.mxu0 0
  %3580 = vmatpush1.bf16.msra.mxu0 0
  %3581 = vmatprep.subr.bf16.mxu0 0
  %3582 = vmatpush1.bf16.msra.mxu0 %v3563
  %3583 = vmatprep.subr.bf16.mxu0 0
  %3584 = vmatpush1.bf16.msra.mxu0 %v3562
  %3585 = vmatprep.subr.bf16.mxu0 0
  %3586 = vmatpush2.bf16.msra.mxu0 0
  %3587 = vmatprep.subr.bf16.mxu0 0
  %3588 = vmatpush2.bf16.msra.mxu0 0
  %3589 = vmatprep.subr.bf16.mxu0 0
  %3590 = vmatpush2.bf16.msra.mxu0 0
  %3591 = vmatprep.subr.bf16.mxu0 0
  %3592 = vmatpush2.bf16.msra.mxu0 0
  %3593 = vmatprep.subr.bf16.mxu0 0
  %3594 = vmatpush2.bf16.msra.mxu0 0
  %3595 = vmatprep.subr.bf16.mxu0 0
  %3596 = vmatpush2.bf16.msra.mxu0 0
  %3597 = vmatprep.subr.bf16.mxu0 0
  %3598 = vmatpush2.bf16.msra.mxu0 0
  %3599 = vmatprep.subr.bf16.mxu0 0
  %3600 = vmatpush2.bf16.msra.mxu0 0
  %3601 = vmatprep.mubr.bf16.mxu0 0
  %3602 = vmatmul.mubr.bf16.gmra.mxu0 %v3567
  %v3603 = vpop.f32.mrf.mxu0
  %v3604 = vadd.f32 %v3552, %v3603
  %v3605 = vpop.f32.mrf.mxu0
  %v3606 = vpop.f32.mrf.mxu0
  %v3607 = vadd.f32 %v3552, %v3606
  %v3608 = vpop.f32.mrf.mxu0
  %3609 = vdwg.mxu0
  %v3610 = vmax.f32 %v3604, 0.0
  %v3611 = vmax.f32 %v3607, 0.0
  %v3612 = vpack.c.bf16 %v3611, %v3610
  %s3613 = scalar_lea.vmem %s13, 64
  %v3614 = vld [vmem:[%s3613] sm:$0xf]
  %v3615 = vld [vmem:[%s3613 + $0x4] sm:$0xf]
  %v3616 = vld [vmem:[%s3613 + $0x8] sm:$0xf]
  %v3617 = vld [vmem:[%s3613 + $0xc] sm:$0xf]
  %v3618 = vld [vmem:[%s3613 + $0x10] sm:$0xf]
  %v3619 = vld [vmem:[%s3613 + $0x14] sm:$0xf]
  %v3620 = vld [vmem:[%s3613 + $0x18] sm:$0xf]
  %v3621 = vld [vmem:[%s3613 + $0x1c] sm:$0xf]
  %v3622 = vld [vmem:[%s3613 + $0x20] sm:$0xf]
  %v3623 = vld [vmem:[%s3613 + $0x24] sm:$0xf]
  %v3624 = vld [vmem:[%s3613 + $0x28] sm:$0xf]
  %v3625 = vld [vmem:[%s3613 + $0x2c] sm:$0xf]
  %v3626 = vld [vmem:[%s3613 + $0x30] sm:$0xf]
  %v3627 = vld [vmem:[%s3613 + $0x34] sm:$0xf]
  %v3628 = vld [vmem:[%s3613 + $0x38] sm:$0xf]
  %v3629 = vld [vmem:[%s3613 + $0x3c] sm:$0xf]
  %s3630 = scalar_lea.vmem %s14, 1
  %v3631 = vld [vmem:[%s3630] sm:$0x1]
  %v3633 = vlaneseq
  %v3634 = vshrl.u32 %v3633, 7
  %v3635 = vsub.s32 0, %v3634
  %v3636 = vrot.slane %v3631, %v3635
  %v3654 = vunpack.c.l.b16 %v3614
  %v3655 = vunpack.c.l.b16 %v3615
  %v3656 = vunpack.c.l.b16 %v3616
  %v3657 = vunpack.c.l.b16 %v3617
  %v3658 = vunpack.c.l.b16 %v3618
  %v3659 = vunpack.c.l.b16 %v3619
  %v3660 = vunpack.c.l.b16 %v3620
  %v3661 = vunpack.c.l.b16 %v3621
  %v3662 = vunpack.c.l.b16 %v3622
  %v3663 = vunpack.c.l.b16 %v3623
  %v3664 = vunpack.c.l.b16 %v3624
  %v3665 = vunpack.c.l.b16 %v3625
  %v3666 = vunpack.c.l.b16 %v3626
  %v3667 = vunpack.c.l.b16 %v3627
  %v3668 = vunpack.c.l.b16 %v3628
  %v3669 = vunpack.c.l.b16 %v3629
  %v3670 = vpack.c.b16 %v3655, %v3654
  %v3671 = vpack.c.b16 %v3657, %v3656
  %v3672 = vpack.c.b16 %v3659, %v3658
  %v3673 = vpack.c.b16 %v3661, %v3660
  %v3674 = vpack.c.b16 %v3663, %v3662
  %v3675 = vpack.c.b16 %v3665, %v3664
  %v3676 = vpack.c.b16 %v3667, %v3666
  %v3677 = vpack.c.b16 %v3669, %v3668
  %3686 = vmatprep.subr.bf16.mxu0 0
  %3687 = vmatpush1.bf16.msra.mxu0 %v3677
  %3688 = vmatprep.subr.bf16.mxu0 0
  %3689 = vmatpush1.bf16.msra.mxu0 %v3676
  %3690 = vmatprep.subr.bf16.mxu0 0
  %3691 = vmatpush1.bf16.msra.mxu0 %v3675
  %3692 = vmatprep.subr.bf16.mxu0 0
  %3693 = vmatpush1.bf16.msra.mxu0 %v3674
  %3694 = vmatprep.subr.bf16.mxu0 0
  %3695 = vmatpush1.bf16.msra.mxu0 %v3673
  %3696 = vmatprep.subr.bf16.mxu0 0
  %3697 = vmatpush1.bf16.msra.mxu0 %v3672
  %3698 = vmatprep.subr.bf16.mxu0 0
  %3699 = vmatpush1.bf16.msra.mxu0 %v3671
  %3700 = vmatprep.subr.bf16.mxu0 0
  %3701 = vmatpush1.bf16.msra.mxu0 %v3670
  %3702 = vmatprep.subr.bf16.mxu0 0
  %3703 = vmatpush2.bf16.msra.mxu0 0
  %3704 = vmatprep.subr.bf16.mxu0 0
  %3705 = vmatpush2.bf16.msra.mxu0 0
  %3706 = vmatprep.subr.bf16.mxu0 0
  %3707 = vmatpush2.bf16.msra.mxu0 0
  %3708 = vmatprep.subr.bf16.mxu0 0
  %3709 = vmatpush2.bf16.msra.mxu0 0
  %3710 = vmatprep.subr.bf16.mxu0 0
  %3711 = vmatpush2.bf16.msra.mxu0 0
  %3712 = vmatprep.subr.bf16.mxu0 0
  %3713 = vmatpush2.bf16.msra.mxu0 0
  %3714 = vmatprep.subr.bf16.mxu0 0
  %3715 = vmatpush2.bf16.msra.mxu0 0
  %3716 = vmatprep.subr.bf16.mxu0 0
  %3717 = vmatpush2.bf16.msra.mxu0 0
  %3718 = vmatprep.mubr.bf16.mxu0 0
  %3719 = vmatmul.mubr.bf16.gmra.mxu0 %v3612
  %v3720 = vpop.f32.mrf.mxu0
  %v3721 = vadd.f32 %v3636, %v3720
  %v3722 = vpop.f32.mrf.mxu0
  %v3723 = vpop.f32.mrf.mxu0
  %v3724 = vadd.f32 %v3636, %v3723
  %v3725 = vpop.f32.mrf.mxu0
  %3726 = vdwg.mxu0
  %v3727 = vadd.f32 %v1940, %v3721
  %v3728 = vadd.f32 %v1941, %v3724
  %s3729 = scalar_lea.vmem %s3, 2
  %v3730 = vld [vmem:[%s3729] sm:$0x1]
  %s3731 = scalar_lea.vmem %s4, 2
  %v3732 = vld [vmem:[%s3731] sm:$0x1]
  %v3733 = vsel %vm165, %v3727, 0.0
  %3734 = vadd.xlane.f32.xlu0 %v3733
  %v3735 = vpop.xlane.xlu0 %3734
  %v3736 = vsel %vm165, %v3728, 0.0
  %3737 = vadd.xlane.f32.xlu0 %v3736
  %v3738 = vpop.xlane.xlu0 %3737
  %v3739 = vmul.f32 %v3735, %v172
  %v3740 = vmul.f32 %v3738, %v172
  %v3741 = vsub.f32 %v3727, %v3739
  %v3742 = vsub.f32 %v3728, %v3740
  %v3743 = vmul.f32 %v3741, %v3741
  %v3744 = vmul.f32 %v3742, %v3742
  %v3745 = vsel %vm165, %v3743, 0.0
  %3746 = vadd.xlane.f32.xlu0 %v3745
  %v3747 = vpop.xlane.xlu0 %3746
  %v3748 = vsel %vm165, %v3744, 0.0
  %3749 = vadd.xlane.f32.xlu0 %v3748
  %v3750 = vpop.xlane.xlu0 %3749
  %v3751 = vmul.f32 %v3747, 0.032258064
  %v3752 = vmul.f32 %v3750, 0.032258064
  %v3753 = vadd.f32 %v3751, 1e-12
  %v3754 = vadd.f32 %v3752, 1e-12
  %v3755 = vrcp.pop %v3753
  %v3756 = vmul.f32 %v3741, %v3755
  %v3757 = vrcp.pop %v3754
  %v3758 = vmul.f32 %v3742, %v3757
  %v3760 = vlaneseq
  %v3761 = vshrl.u32 %v3760, 7
  %v3762 = vsub.s32 0, %v3761
  %v3763 = vrot.slane %v3730, %v3762
  %v3765 = vmul.f32 %v3763, %v3756
  %v3766 = vmul.f32 %v3763, %v3758
  %v3768 = vlaneseq
  %v3769 = vshrl.u32 %v3768, 7
  %v3770 = vsub.s32 0, %v3769
  %v3771 = vrot.slane %v3732, %v3770
  %v3773 = vadd.f32 %v3765, %v3771
  %v3774 = vadd.f32 %v3766, %v3771
  %v3775 = vpack.c.bf16 %v3774, %v3773
  %s3776 = scalar_lea.vmem %s5, 32
  %v3777 = vld [vmem:[%s3776] sm:$0xf]
  %v3778 = vld [vmem:[%s3776 + $0x4] sm:$0xf]
  %v3779 = vld [vmem:[%s3776 + $0x8] sm:$0xf]
  %v3780 = vld [vmem:[%s3776 + $0xc] sm:$0xf]
  %s3781 = scalar_lea.vmem %s6, 2
  %v3782 = vld [vmem:[%s3781] sm:$0x1]
  %v3784 = vlaneseq
  %v3785 = vshrl.u32 %v3784, 7
  %v3786 = vsub.s32 0, %v3785
  %v3787 = vrot.slane %v3782, %v3786
  %v3793 = vunpack.c.l.b16 %v3777
  %v3794 = vunpack.c.l.b16 %v3778
  %v3795 = vunpack.c.l.b16 %v3779
  %v3796 = vunpack.c.l.b16 %v3780
  %v3797 = vpack.c.b16 %v3794, %v3793
  %v3798 = vpack.c.b16 %v3796, %v3795
  %v3802 = vsel %vm165, %v3775, 0
  %3804 = vmatprep.subr.bf16.mxu0 0
  %3805 = vmatpush1.bf16.msra.mxu0 0
  %3806 = vmatprep.subr.bf16.mxu0 0
  %3807 = vmatpush1.bf16.msra.mxu0 0
  %3808 = vmatprep.subr.bf16.mxu0 0
  %3809 = vmatpush1.bf16.msra.mxu0 0
  %3810 = vmatprep.subr.bf16.mxu0 0
  %3811 = vmatpush1.bf16.msra.mxu0 0
  %3812 = vmatprep.subr.bf16.mxu0 0
  %3813 = vmatpush1.bf16.msra.mxu0 0
  %3814 = vmatprep.subr.bf16.mxu0 0
  %3815 = vmatpush1.bf16.msra.mxu0 0
  %3816 = vmatprep.subr.bf16.mxu0 0
  %3817 = vmatpush1.bf16.msra.mxu0 %v3798
  %3818 = vmatprep.subr.bf16.mxu0 0
  %3819 = vmatpush1.bf16.msra.mxu0 %v3797
  %3820 = vmatprep.subr.bf16.mxu0 0
  %3821 = vmatpush2.bf16.msra.mxu0 0
  %3822 = vmatprep.subr.bf16.mxu0 0
  %3823 = vmatpush2.bf16.msra.mxu0 0
  %3824 = vmatprep.subr.bf16.mxu0 0
  %3825 = vmatpush2.bf16.msra.mxu0 0
  %3826 = vmatprep.subr.bf16.mxu0 0
  %3827 = vmatpush2.bf16.msra.mxu0 0
  %3828 = vmatprep.subr.bf16.mxu0 0
  %3829 = vmatpush2.bf16.msra.mxu0 0
  %3830 = vmatprep.subr.bf16.mxu0 0
  %3831 = vmatpush2.bf16.msra.mxu0 0
  %3832 = vmatprep.subr.bf16.mxu0 0
  %3833 = vmatpush2.bf16.msra.mxu0 0
  %3834 = vmatprep.subr.bf16.mxu0 0
  %3835 = vmatpush2.bf16.msra.mxu0 0
  %3836 = vmatprep.mubr.bf16.mxu0 0
  %3837 = vmatmul.mubr.bf16.gmra.mxu0 %v3802
  %v3838 = vpop.f32.mrf.mxu0
  %v3839 = vadd.f32 %v3787, %v3838
  %v3840 = vpop.f32.mrf.mxu0
  %v3841 = vpop.f32.mrf.mxu0
  %v3842 = vadd.f32 %v3787, %v3841
  %v3843 = vpop.f32.mrf.mxu0
  %3844 = vdwg.mxu0
  %3847 = vrot.lane.b32.xlu0 %v3839, 120
  %v3848 = vpop.permute.xlu0 %3847
  %3849 = vrot.lane.b32.xlu0 %v3842, 120
  %v3850 = vpop.permute.xlu0 %3849
  %3851 = vrot.lane.b32.xlu0 %v3839, 112
  %v3852 = vpop.permute.xlu0 %3851
  %3853 = vrot.lane.b32.xlu0 %v3842, 112
  %v3854 = vpop.permute.xlu0 %3853
  %3855 = vrot.lane.b32.xlu0 %v3839, 104
  %v3856 = vpop.permute.xlu0 %3855
  %3857 = vrot.lane.b32.xlu0 %v3842, 104
  %v3858 = vpop.permute.xlu0 %3857
  %3859 = vrot.lane.b32.xlu0 %v3839, 96
  %v3860 = vpop.permute.xlu0 %3859
  %v3861 = vsel %vm293, %v3839, 0
  %v3863 = vsel %vm293, %v3860, 0
  %3865 = vmatprep.subr.mxu0 0.0
  %3866 = vmatpush1.xpose.msra.mxu0 0.0
  %3867 = vmatprep.subr.mxu0 0.0
  %3868 = vmatpush1.xpose.msra.mxu0 0.0
  %3869 = vmatprep.subr.mxu0 0.0
  %3870 = vmatpush1.xpose.msra.mxu0 0.0
  %3871 = vmatprep.subr.mxu0 0.0
  %3872 = vmatpush1.xpose.msra.mxu0 0.0
  %3873 = vmatprep.subr.mxu0 0.0
  %3874 = vmatpush1.xpose.msra.mxu0 0.0
  %3875 = vmatprep.subr.mxu0 0.0
  %3876 = vmatpush1.xpose.msra.mxu0 0.0
  %3877 = vmatprep.subr.mxu0 0.0
  %3878 = vmatpush1.xpose.msra.mxu0 0.0
  %3879 = vmatprep.subr.mxu0 0.0
  %3880 = vmatpush1.xpose.msra.mxu0 0.0
  %3881 = vmatprep.subr.mxu0 0.0
  %3882 = vmatpush1.xpose.msra.mxu0 0.0
  %3883 = vmatprep.subr.mxu0 0.0
  %3884 = vmatpush1.xpose.msra.mxu0 0.0
  %3885 = vmatprep.subr.mxu0 0.0
  %3886 = vmatpush1.xpose.msra.mxu0 0.0
  %3887 = vmatprep.subr.mxu0 0.0
  %3888 = vmatpush1.xpose.msra.mxu0 0.0
  %3889 = vmatprep.subr.mxu0 0.0
  %3890 = vmatpush1.xpose.msra.mxu0 0.0
  %3891 = vmatprep.subr.mxu0 0.0
  %3892 = vmatpush1.xpose.msra.mxu0 0.0
  %3893 = vmatprep.subr.mxu0 0.0
  %3894 = vmatpush1.xpose.msra.mxu0 0.0
  %3895 = vmatprep.subr.mxu0 0.0
  %3896 = vmatpush1.xpose.msra.mxu0 %v3863
  %3897 = vmatprep.subr.mxu0 0.0
  %3898 = vmatpush2.xpose.msra.mxu0 0.0
  %3899 = vmatprep.subr.mxu0 0.0
  %3900 = vmatpush2.xpose.msra.mxu0 0.0
  %3901 = vmatprep.subr.mxu0 0.0
  %3902 = vmatpush2.xpose.msra.mxu0 0.0
  %3903 = vmatprep.subr.mxu0 0.0
  %3904 = vmatpush2.xpose.msra.mxu0 0.0
  %3905 = vmatprep.subr.mxu0 0.0
  %3906 = vmatpush2.xpose.msra.mxu0 0.0
  %3907 = vmatprep.subr.mxu0 0.0
  %3908 = vmatpush2.xpose.msra.mxu0 0.0
  %3909 = vmatprep.subr.mxu0 0.0
  %3910 = vmatpush2.xpose.msra.mxu0 0.0
  %3911 = vmatprep.subr.mxu0 0.0
  %3912 = vmatpush2.xpose.msra.mxu0 0.0
  %3913 = vmatprep.subr.mxu0 0.0
  %3914 = vmatpush2.xpose.msra.mxu0 0.0
  %3915 = vmatprep.subr.mxu0 0.0
  %3916 = vmatpush2.xpose.msra.mxu0 0.0
  %3917 = vmatprep.subr.mxu0 0.0
  %3918 = vmatpush2.xpose.msra.mxu0 0.0
  %3919 = vmatprep.subr.mxu0 0.0
  %3920 = vmatpush2.xpose.msra.mxu0 0.0
  %3921 = vmatprep.subr.mxu0 0.0
  %3922 = vmatpush2.xpose.msra.mxu0 0.0
  %3923 = vmatprep.subr.mxu0 0.0
  %3924 = vmatpush2.xpose.msra.mxu0 0.0
  %3925 = vmatprep.subr.mxu0 0.0
  %3926 = vmatpush2.xpose.msra.mxu0 0.0
  %3927 = vmatprep.subr.mxu0 0.0
  %3928 = vmatpush2.xpose.msra.mxu0 0.0
  %3929 = vmatprep.mubr.f32.mxu0 0.0
  %3930 = vmatmul.mubr.f32.gmra.mxu0 %v3861
  %v3931 = vpop.f32.mrf.mxu0
  %v3932 = vadd.f32 0.0, %v3931
  %v3933 = vpop.f32.mrf.mxu0
  %3934 = vdwg.mxu0
  %3935 = vrot.lane.b32.xlu0 %v3842, 96
  %v3936 = vpop.permute.xlu0 %3935
  %v3937 = vsel %vm293, %v3842, 0
  %v3939 = vsel %vm293, %v3936, 0
  %3941 = vmatprep.subr.mxu0 0.0
  %3942 = vmatpush1.xpose.msra.mxu0 0.0
  %3943 = vmatprep.subr.mxu0 0.0
  %3944 = vmatpush1.xpose.msra.mxu0 0.0
  %3945 = vmatprep.subr.mxu0 0.0
  %3946 = vmatpush1.xpose.msra.mxu0 0.0
  %3947 = vmatprep.subr.mxu0 0.0
  %3948 = vmatpush1.xpose.msra.mxu0 0.0
  %3949 = vmatprep.subr.mxu0 0.0
  %3950 = vmatpush1.xpose.msra.mxu0 0.0
  %3951 = vmatprep.subr.mxu0 0.0
  %3952 = vmatpush1.xpose.msra.mxu0 0.0
  %3953 = vmatprep.subr.mxu0 0.0
  %3954 = vmatpush1.xpose.msra.mxu0 0.0
  %3955 = vmatprep.subr.mxu0 0.0
  %3956 = vmatpush1.xpose.msra.mxu0 0.0
  %3957 = vmatprep.subr.mxu0 0.0
  %3958 = vmatpush1.xpose.msra.mxu0 0.0
  %3959 = vmatprep.subr.mxu0 0.0
  %3960 = vmatpush1.xpose.msra.mxu0 0.0
  %3961 = vmatprep.subr.mxu0 0.0
  %3962 = vmatpush1.xpose.msra.mxu0 0.0
  %3963 = vmatprep.subr.mxu0 0.0
  %3964 = vmatpush1.xpose.msra.mxu0 0.0
  %3965 = vmatprep.subr.mxu0 0.0
  %3966 = vmatpush1.xpose.msra.mxu0 0.0
  %3967 = vmatprep.subr.mxu0 0.0
  %3968 = vmatpush1.xpose.msra.mxu0 0.0
  %3969 = vmatprep.subr.mxu0 0.0
  %3970 = vmatpush1.xpose.msra.mxu0 0.0
  %3971 = vmatprep.subr.mxu0 0.0
  %3972 = vmatpush1.xpose.msra.mxu0 %v3939
  %3973 = vmatprep.subr.mxu0 0.0
  %3974 = vmatpush2.xpose.msra.mxu0 0.0
  %3975 = vmatprep.subr.mxu0 0.0
  %3976 = vmatpush2.xpose.msra.mxu0 0.0
  %3977 = vmatprep.subr.mxu0 0.0
  %3978 = vmatpush2.xpose.msra.mxu0 0.0
  %3979 = vmatprep.subr.mxu0 0.0
  %3980 = vmatpush2.xpose.msra.mxu0 0.0
  %3981 = vmatprep.subr.mxu0 0.0
  %3982 = vmatpush2.xpose.msra.mxu0 0.0
  %3983 = vmatprep.subr.mxu0 0.0
  %3984 = vmatpush2.xpose.msra.mxu0 0.0
  %3985 = vmatprep.subr.mxu0 0.0
  %3986 = vmatpush2.xpose.msra.mxu0 0.0
  %3987 = vmatprep.subr.mxu0 0.0
  %3988 = vmatpush2.xpose.msra.mxu0 0.0
  %3989 = vmatprep.subr.mxu0 0.0
  %3990 = vmatpush2.xpose.msra.mxu0 0.0
  %3991 = vmatprep.subr.mxu0 0.0
  %3992 = vmatpush2.xpose.msra.mxu0 0.0
  %3993 = vmatprep.subr.mxu0 0.0
  %3994 = vmatpush2.xpose.msra.mxu0 0.0
  %3995 = vmatprep.subr.mxu0 0.0
  %3996 = vmatpush2.xpose.msra.mxu0 0.0
  %3997 = vmatprep.subr.mxu0 0.0
  %3998 = vmatpush2.xpose.msra.mxu0 0.0
  %3999 = vmatprep.subr.mxu0 0.0
  %4000 = vmatpush2.xpose.msra.mxu0 0.0
  %4001 = vmatprep.subr.mxu0 0.0
  %4002 = vmatpush2.xpose.msra.mxu0 0.0
  %4003 = vmatprep.subr.mxu0 0.0
  %4004 = vmatpush2.xpose.msra.mxu0 0.0
  %4005 = vmatprep.mubr.f32.mxu0 0.0
  %4006 = vmatmul.mubr.f32.gmra.mxu0 %v3937
  %v4007 = vpop.f32.mrf.mxu0
  %v4008 = vadd.f32 0.0, %v4007
  %v4009 = vpop.f32.mrf.mxu0
  %4010 = vdwg.mxu0
  %4011 = vrot.lane.b32.xlu0 %v3848, 96
  %v4012 = vpop.permute.xlu0 %4011
  %v4013 = vsel %vm293, %v3848, 0
  %v4015 = vsel %vm293, %v4012, 0
  %4017 = vmatprep.subr.mxu0 0.0
  %4018 = vmatpush1.xpose.msra.mxu0 0.0
  %4019 = vmatprep.subr.mxu0 0.0
  %4020 = vmatpush1.xpose.msra.mxu0 0.0
  %4021 = vmatprep.subr.mxu0 0.0
  %4022 = vmatpush1.xpose.msra.mxu0 0.0
  %4023 = vmatprep.subr.mxu0 0.0
  %4024 = vmatpush1.xpose.msra.mxu0 0.0
  %4025 = vmatprep.subr.mxu0 0.0
  %4026 = vmatpush1.xpose.msra.mxu0 0.0
  %4027 = vmatprep.subr.mxu0 0.0
  %4028 = vmatpush1.xpose.msra.mxu0 0.0
  %4029 = vmatprep.subr.mxu0 0.0
  %4030 = vmatpush1.xpose.msra.mxu0 0.0
  %4031 = vmatprep.subr.mxu0 0.0
  %4032 = vmatpush1.xpose.msra.mxu0 0.0
  %4033 = vmatprep.subr.mxu0 0.0
  %4034 = vmatpush1.xpose.msra.mxu0 0.0
  %4035 = vmatprep.subr.mxu0 0.0
  %4036 = vmatpush1.xpose.msra.mxu0 0.0
  %4037 = vmatprep.subr.mxu0 0.0
  %4038 = vmatpush1.xpose.msra.mxu0 0.0
  %4039 = vmatprep.subr.mxu0 0.0
  %4040 = vmatpush1.xpose.msra.mxu0 0.0
  %4041 = vmatprep.subr.mxu0 0.0
  %4042 = vmatpush1.xpose.msra.mxu0 0.0
  %4043 = vmatprep.subr.mxu0 0.0
  %4044 = vmatpush1.xpose.msra.mxu0 0.0
  %4045 = vmatprep.subr.mxu0 0.0
  %4046 = vmatpush1.xpose.msra.mxu0 0.0
  %4047 = vmatprep.subr.mxu0 0.0
  %4048 = vmatpush1.xpose.msra.mxu0 %v4015
  %4049 = vmatprep.subr.mxu0 0.0
  %4050 = vmatpush2.xpose.msra.mxu0 0.0
  %4051 = vmatprep.subr.mxu0 0.0
  %4052 = vmatpush2.xpose.msra.mxu0 0.0
  %4053 = vmatprep.subr.mxu0 0.0
  %4054 = vmatpush2.xpose.msra.mxu0 0.0
  %4055 = vmatprep.subr.mxu0 0.0
  %4056 = vmatpush2.xpose.msra.mxu0 0.0
  %4057 = vmatprep.subr.mxu0 0.0
  %4058 = vmatpush2.xpose.msra.mxu0 0.0
  %4059 = vmatprep.subr.mxu0 0.0
  %4060 = vmatpush2.xpose.msra.mxu0 0.0
  %4061 = vmatprep.subr.mxu0 0.0
  %4062 = vmatpush2.xpose.msra.mxu0 0.0
  %4063 = vmatprep.subr.mxu0 0.0
  %4064 = vmatpush2.xpose.msra.mxu0 0.0
  %4065 = vmatprep.subr.mxu0 0.0
  %4066 = vmatpush2.xpose.msra.mxu0 0.0
  %4067 = vmatprep.subr.mxu0 0.0
  %4068 = vmatpush2.xpose.msra.mxu0 0.0
  %4069 = vmatprep.subr.mxu0 0.0
  %4070 = vmatpush2.xpose.msra.mxu0 0.0
  %4071 = vmatprep.subr.mxu0 0.0
  %4072 = vmatpush2.xpose.msra.mxu0 0.0
  %4073 = vmatprep.subr.mxu0 0.0
  %4074 = vmatpush2.xpose.msra.mxu0 0.0
  %4075 = vmatprep.subr.mxu0 0.0
  %4076 = vmatpush2.xpose.msra.mxu0 0.0
  %4077 = vmatprep.subr.mxu0 0.0
  %4078 = vmatpush2.xpose.msra.mxu0 0.0
  %4079 = vmatprep.subr.mxu0 0.0
  %4080 = vmatpush2.xpose.msra.mxu0 0.0
  %4081 = vmatprep.mubr.f32.mxu0 0.0
  %4082 = vmatmul.mubr.f32.gmra.mxu0 %v4013
  %v4083 = vpop.f32.mrf.mxu0
  %v4084 = vadd.f32 0.0, %v4083
  %v4085 = vpop.f32.mrf.mxu0
  %4086 = vdwg.mxu0
  %4087 = vrot.lane.b32.xlu0 %v3850, 96
  %v4088 = vpop.permute.xlu0 %4087
  %v4089 = vsel %vm293, %v3850, 0
  %v4091 = vsel %vm293, %v4088, 0
  %4093 = vmatprep.subr.mxu0 0.0
  %4094 = vmatpush1.xpose.msra.mxu0 0.0
  %4095 = vmatprep.subr.mxu0 0.0
  %4096 = vmatpush1.xpose.msra.mxu0 0.0
  %4097 = vmatprep.subr.mxu0 0.0
  %4098 = vmatpush1.xpose.msra.mxu0 0.0
  %4099 = vmatprep.subr.mxu0 0.0
  %4100 = vmatpush1.xpose.msra.mxu0 0.0
  %4101 = vmatprep.subr.mxu0 0.0
  %4102 = vmatpush1.xpose.msra.mxu0 0.0
  %4103 = vmatprep.subr.mxu0 0.0
  %4104 = vmatpush1.xpose.msra.mxu0 0.0
  %4105 = vmatprep.subr.mxu0 0.0
  %4106 = vmatpush1.xpose.msra.mxu0 0.0
  %4107 = vmatprep.subr.mxu0 0.0
  %4108 = vmatpush1.xpose.msra.mxu0 0.0
  %4109 = vmatprep.subr.mxu0 0.0
  %4110 = vmatpush1.xpose.msra.mxu0 0.0
  %4111 = vmatprep.subr.mxu0 0.0
  %4112 = vmatpush1.xpose.msra.mxu0 0.0
  %4113 = vmatprep.subr.mxu0 0.0
  %4114 = vmatpush1.xpose.msra.mxu0 0.0
  %4115 = vmatprep.subr.mxu0 0.0
  %4116 = vmatpush1.xpose.msra.mxu0 0.0
  %4117 = vmatprep.subr.mxu0 0.0
  %4118 = vmatpush1.xpose.msra.mxu0 0.0
  %4119 = vmatprep.subr.mxu0 0.0
  %4120 = vmatpush1.xpose.msra.mxu0 0.0
  %4121 = vmatprep.subr.mxu0 0.0
  %4122 = vmatpush1.xpose.msra.mxu0 0.0
  %4123 = vmatprep.subr.mxu0 0.0
  %4124 = vmatpush1.xpose.msra.mxu0 %v4091
  %4125 = vmatprep.subr.mxu0 0.0
  %4126 = vmatpush2.xpose.msra.mxu0 0.0
  %4127 = vmatprep.subr.mxu0 0.0
  %4128 = vmatpush2.xpose.msra.mxu0 0.0
  %4129 = vmatprep.subr.mxu0 0.0
  %4130 = vmatpush2.xpose.msra.mxu0 0.0
  %4131 = vmatprep.subr.mxu0 0.0
  %4132 = vmatpush2.xpose.msra.mxu0 0.0
  %4133 = vmatprep.subr.mxu0 0.0
  %4134 = vmatpush2.xpose.msra.mxu0 0.0
  %4135 = vmatprep.subr.mxu0 0.0
  %4136 = vmatpush2.xpose.msra.mxu0 0.0
  %4137 = vmatprep.subr.mxu0 0.0
  %4138 = vmatpush2.xpose.msra.mxu0 0.0
  %4139 = vmatprep.subr.mxu0 0.0
  %4140 = vmatpush2.xpose.msra.mxu0 0.0
  %4141 = vmatprep.subr.mxu0 0.0
  %4142 = vmatpush2.xpose.msra.mxu0 0.0
  %4143 = vmatprep.subr.mxu0 0.0
  %4144 = vmatpush2.xpose.msra.mxu0 0.0
  %4145 = vmatprep.subr.mxu0 0.0
  %4146 = vmatpush2.xpose.msra.mxu0 0.0
  %4147 = vmatprep.subr.mxu0 0.0
  %4148 = vmatpush2.xpose.msra.mxu0 0.0
  %4149 = vmatprep.subr.mxu0 0.0
  %4150 = vmatpush2.xpose.msra.mxu0 0.0
  %4151 = vmatprep.subr.mxu0 0.0
  %4152 = vmatpush2.xpose.msra.mxu0 0.0
  %4153 = vmatprep.subr.mxu0 0.0
  %4154 = vmatpush2.xpose.msra.mxu0 0.0
  %4155 = vmatprep.subr.mxu0 0.0
  %4156 = vmatpush2.xpose.msra.mxu0 0.0
  %4157 = vmatprep.mubr.f32.mxu0 0.0
  %4158 = vmatmul.mubr.f32.gmra.mxu0 %v4089
  %v4159 = vpop.f32.mrf.mxu0
  %v4160 = vadd.f32 0.0, %v4159
  %v4161 = vpop.f32.mrf.mxu0
  %4162 = vdwg.mxu0
  %4163 = vrot.lane.b32.xlu0 %v3852, 96
  %v4164 = vpop.permute.xlu0 %4163
  %v4165 = vsel %vm293, %v3852, 0
  %v4167 = vsel %vm293, %v4164, 0
  %4169 = vmatprep.subr.mxu0 0.0
  %4170 = vmatpush1.xpose.msra.mxu0 0.0
  %4171 = vmatprep.subr.mxu0 0.0
  %4172 = vmatpush1.xpose.msra.mxu0 0.0
  %4173 = vmatprep.subr.mxu0 0.0
  %4174 = vmatpush1.xpose.msra.mxu0 0.0
  %4175 = vmatprep.subr.mxu0 0.0
  %4176 = vmatpush1.xpose.msra.mxu0 0.0
  %4177 = vmatprep.subr.mxu0 0.0
  %4178 = vmatpush1.xpose.msra.mxu0 0.0
  %4179 = vmatprep.subr.mxu0 0.0
  %4180 = vmatpush1.xpose.msra.mxu0 0.0
  %4181 = vmatprep.subr.mxu0 0.0
  %4182 = vmatpush1.xpose.msra.mxu0 0.0
  %4183 = vmatprep.subr.mxu0 0.0
  %4184 = vmatpush1.xpose.msra.mxu0 0.0
  %4185 = vmatprep.subr.mxu0 0.0
  %4186 = vmatpush1.xpose.msra.mxu0 0.0
  %4187 = vmatprep.subr.mxu0 0.0
  %4188 = vmatpush1.xpose.msra.mxu0 0.0
  %4189 = vmatprep.subr.mxu0 0.0
  %4190 = vmatpush1.xpose.msra.mxu0 0.0
  %4191 = vmatprep.subr.mxu0 0.0
  %4192 = vmatpush1.xpose.msra.mxu0 0.0
  %4193 = vmatprep.subr.mxu0 0.0
  %4194 = vmatpush1.xpose.msra.mxu0 0.0
  %4195 = vmatprep.subr.mxu0 0.0
  %4196 = vmatpush1.xpose.msra.mxu0 0.0
  %4197 = vmatprep.subr.mxu0 0.0
  %4198 = vmatpush1.xpose.msra.mxu0 0.0
  %4199 = vmatprep.subr.mxu0 0.0
  %4200 = vmatpush1.xpose.msra.mxu0 %v4167
  %4201 = vmatprep.subr.mxu0 0.0
  %4202 = vmatpush2.xpose.msra.mxu0 0.0
  %4203 = vmatprep.subr.mxu0 0.0
  %4204 = vmatpush2.xpose.msra.mxu0 0.0
  %4205 = vmatprep.subr.mxu0 0.0
  %4206 = vmatpush2.xpose.msra.mxu0 0.0
  %4207 = vmatprep.subr.mxu0 0.0
  %4208 = vmatpush2.xpose.msra.mxu0 0.0
  %4209 = vmatprep.subr.mxu0 0.0
  %4210 = vmatpush2.xpose.msra.mxu0 0.0
  %4211 = vmatprep.subr.mxu0 0.0
  %4212 = vmatpush2.xpose.msra.mxu0 0.0
  %4213 = vmatprep.subr.mxu0 0.0
  %4214 = vmatpush2.xpose.msra.mxu0 0.0
  %4215 = vmatprep.subr.mxu0 0.0
  %4216 = vmatpush2.xpose.msra.mxu0 0.0
  %4217 = vmatprep.subr.mxu0 0.0
  %4218 = vmatpush2.xpose.msra.mxu0 0.0
  %4219 = vmatprep.subr.mxu0 0.0
  %4220 = vmatpush2.xpose.msra.mxu0 0.0
  %4221 = vmatprep.subr.mxu0 0.0
  %4222 = vmatpush2.xpose.msra.mxu0 0.0
  %4223 = vmatprep.subr.mxu0 0.0
  %4224 = vmatpush2.xpose.msra.mxu0 0.0
  %4225 = vmatprep.subr.mxu0 0.0
  %4226 = vmatpush2.xpose.msra.mxu0 0.0
  %4227 = vmatprep.subr.mxu0 0.0
  %4228 = vmatpush2.xpose.msra.mxu0 0.0
  %4229 = vmatprep.subr.mxu0 0.0
  %4230 = vmatpush2.xpose.msra.mxu0 0.0
  %4231 = vmatprep.subr.mxu0 0.0
  %4232 = vmatpush2.xpose.msra.mxu0 0.0
  %4233 = vmatprep.mubr.f32.mxu0 0.0
  %4234 = vmatmul.mubr.f32.gmra.mxu0 %v4165
  %v4235 = vpop.f32.mrf.mxu0
  %v4236 = vadd.f32 0.0, %v4235
  %v4237 = vpop.f32.mrf.mxu0
  %4238 = vdwg.mxu0
  %4239 = vrot.lane.b32.xlu0 %v3854, 96
  %v4240 = vpop.permute.xlu0 %4239
  %v4241 = vsel %vm293, %v3854, 0
  %v4243 = vsel %vm293, %v4240, 0
  %4245 = vmatprep.subr.mxu0 0.0
  %4246 = vmatpush1.xpose.msra.mxu0 0.0
  %4247 = vmatprep.subr.mxu0 0.0
  %4248 = vmatpush1.xpose.msra.mxu0 0.0
  %4249 = vmatprep.subr.mxu0 0.0
  %4250 = vmatpush1.xpose.msra.mxu0 0.0
  %4251 = vmatprep.subr.mxu0 0.0
  %4252 = vmatpush1.xpose.msra.mxu0 0.0
  %4253 = vmatprep.subr.mxu0 0.0
  %4254 = vmatpush1.xpose.msra.mxu0 0.0
  %4255 = vmatprep.subr.mxu0 0.0
  %4256 = vmatpush1.xpose.msra.mxu0 0.0
  %4257 = vmatprep.subr.mxu0 0.0
  %4258 = vmatpush1.xpose.msra.mxu0 0.0
  %4259 = vmatprep.subr.mxu0 0.0
  %4260 = vmatpush1.xpose.msra.mxu0 0.0
  %4261 = vmatprep.subr.mxu0 0.0
  %4262 = vmatpush1.xpose.msra.mxu0 0.0
  %4263 = vmatprep.subr.mxu0 0.0
  %4264 = vmatpush1.xpose.msra.mxu0 0.0
  %4265 = vmatprep.subr.mxu0 0.0
  %4266 = vmatpush1.xpose.msra.mxu0 0.0
  %4267 = vmatprep.subr.mxu0 0.0
  %4268 = vmatpush1.xpose.msra.mxu0 0.0
  %4269 = vmatprep.subr.mxu0 0.0
  %4270 = vmatpush1.xpose.msra.mxu0 0.0
  %4271 = vmatprep.subr.mxu0 0.0
  %4272 = vmatpush1.xpose.msra.mxu0 0.0
  %4273 = vmatprep.subr.mxu0 0.0
  %4274 = vmatpush1.xpose.msra.mxu0 0.0
  %4275 = vmatprep.subr.mxu0 0.0
  %4276 = vmatpush1.xpose.msra.mxu0 %v4243
  %4277 = vmatprep.subr.mxu0 0.0
  %4278 = vmatpush2.xpose.msra.mxu0 0.0
  %4279 = vmatprep.subr.mxu0 0.0
  %4280 = vmatpush2.xpose.msra.mxu0 0.0
  %4281 = vmatprep.subr.mxu0 0.0
  %4282 = vmatpush2.xpose.msra.mxu0 0.0
  %4283 = vmatprep.subr.mxu0 0.0
  %4284 = vmatpush2.xpose.msra.mxu0 0.0
  %4285 = vmatprep.subr.mxu0 0.0
  %4286 = vmatpush2.xpose.msra.mxu0 0.0
  %4287 = vmatprep.subr.mxu0 0.0
  %4288 = vmatpush2.xpose.msra.mxu0 0.0
  %4289 = vmatprep.subr.mxu0 0.0
  %4290 = vmatpush2.xpose.msra.mxu0 0.0
  %4291 = vmatprep.subr.mxu0 0.0
  %4292 = vmatpush2.xpose.msra.mxu0 0.0
  %4293 = vmatprep.subr.mxu0 0.0
  %4294 = vmatpush2.xpose.msra.mxu0 0.0
  %4295 = vmatprep.subr.mxu0 0.0
  %4296 = vmatpush2.xpose.msra.mxu0 0.0
  %4297 = vmatprep.subr.mxu0 0.0
  %4298 = vmatpush2.xpose.msra.mxu0 0.0
  %4299 = vmatprep.subr.mxu0 0.0
  %4300 = vmatpush2.xpose.msra.mxu0 0.0
  %4301 = vmatprep.subr.mxu0 0.0
  %4302 = vmatpush2.xpose.msra.mxu0 0.0
  %4303 = vmatprep.subr.mxu0 0.0
  %4304 = vmatpush2.xpose.msra.mxu0 0.0
  %4305 = vmatprep.subr.mxu0 0.0
  %4306 = vmatpush2.xpose.msra.mxu0 0.0
  %4307 = vmatprep.subr.mxu0 0.0
  %4308 = vmatpush2.xpose.msra.mxu0 0.0
  %4309 = vmatprep.mubr.f32.mxu0 0.0
  %4310 = vmatmul.mubr.f32.gmra.mxu0 %v4241
  %v4311 = vpop.f32.mrf.mxu0
  %v4312 = vadd.f32 0.0, %v4311
  %v4313 = vpop.f32.mrf.mxu0
  %4314 = vdwg.mxu0
  %4315 = vrot.lane.b32.xlu0 %v3856, 96
  %v4316 = vpop.permute.xlu0 %4315
  %v4317 = vsel %vm293, %v3856, 0
  %v4319 = vsel %vm293, %v4316, 0
  %4321 = vmatprep.subr.mxu0 0.0
  %4322 = vmatpush1.xpose.msra.mxu0 0.0
  %4323 = vmatprep.subr.mxu0 0.0
  %4324 = vmatpush1.xpose.msra.mxu0 0.0
  %4325 = vmatprep.subr.mxu0 0.0
  %4326 = vmatpush1.xpose.msra.mxu0 0.0
  %4327 = vmatprep.subr.mxu0 0.0
  %4328 = vmatpush1.xpose.msra.mxu0 0.0
  %4329 = vmatprep.subr.mxu0 0.0
  %4330 = vmatpush1.xpose.msra.mxu0 0.0
  %4331 = vmatprep.subr.mxu0 0.0
  %4332 = vmatpush1.xpose.msra.mxu0 0.0
  %4333 = vmatprep.subr.mxu0 0.0
  %4334 = vmatpush1.xpose.msra.mxu0 0.0
  %4335 = vmatprep.subr.mxu0 0.0
  %4336 = vmatpush1.xpose.msra.mxu0 0.0
  %4337 = vmatprep.subr.mxu0 0.0
  %4338 = vmatpush1.xpose.msra.mxu0 0.0
  %4339 = vmatprep.subr.mxu0 0.0
  %4340 = vmatpush1.xpose.msra.mxu0 0.0
  %4341 = vmatprep.subr.mxu0 0.0
  %4342 = vmatpush1.xpose.msra.mxu0 0.0
  %4343 = vmatprep.subr.mxu0 0.0
  %4344 = vmatpush1.xpose.msra.mxu0 0.0
  %4345 = vmatprep.subr.mxu0 0.0
  %4346 = vmatpush1.xpose.msra.mxu0 0.0
  %4347 = vmatprep.subr.mxu0 0.0
  %4348 = vmatpush1.xpose.msra.mxu0 0.0
  %4349 = vmatprep.subr.mxu0 0.0
  %4350 = vmatpush1.xpose.msra.mxu0 0.0
  %4351 = vmatprep.subr.mxu0 0.0
  %4352 = vmatpush1.xpose.msra.mxu0 %v4319
  %4353 = vmatprep.subr.mxu0 0.0
  %4354 = vmatpush2.xpose.msra.mxu0 0.0
  %4355 = vmatprep.subr.mxu0 0.0
  %4356 = vmatpush2.xpose.msra.mxu0 0.0
  %4357 = vmatprep.subr.mxu0 0.0
  %4358 = vmatpush2.xpose.msra.mxu0 0.0
  %4359 = vmatprep.subr.mxu0 0.0
  %4360 = vmatpush2.xpose.msra.mxu0 0.0
  %4361 = vmatprep.subr.mxu0 0.0
  %4362 = vmatpush2.xpose.msra.mxu0 0.0
  %4363 = vmatprep.subr.mxu0 0.0
  %4364 = vmatpush2.xpose.msra.mxu0 0.0
  %4365 = vmatprep.subr.mxu0 0.0
  %4366 = vmatpush2.xpose.msra.mxu0 0.0
  %4367 = vmatprep.subr.mxu0 0.0
  %4368 = vmatpush2.xpose.msra.mxu0 0.0
  %4369 = vmatprep.subr.mxu0 0.0
  %4370 = vmatpush2.xpose.msra.mxu0 0.0
  %4371 = vmatprep.subr.mxu0 0.0
  %4372 = vmatpush2.xpose.msra.mxu0 0.0
  %4373 = vmatprep.subr.mxu0 0.0
  %4374 = vmatpush2.xpose.msra.mxu0 0.0
  %4375 = vmatprep.subr.mxu0 0.0
  %4376 = vmatpush2.xpose.msra.mxu0 0.0
  %4377 = vmatprep.subr.mxu0 0.0
  %4378 = vmatpush2.xpose.msra.mxu0 0.0
  %4379 = vmatprep.subr.mxu0 0.0
  %4380 = vmatpush2.xpose.msra.mxu0 0.0
  %4381 = vmatprep.subr.mxu0 0.0
  %4382 = vmatpush2.xpose.msra.mxu0 0.0
  %4383 = vmatprep.subr.mxu0 0.0
  %4384 = vmatpush2.xpose.msra.mxu0 0.0
  %4385 = vmatprep.mubr.f32.mxu0 0.0
  %4386 = vmatmul.mubr.f32.gmra.mxu0 %v4317
  %v4387 = vpop.f32.mrf.mxu0
  %v4388 = vadd.f32 0.0, %v4387
  %v4389 = vpop.f32.mrf.mxu0
  %4390 = vdwg.mxu0
  %4391 = vrot.lane.b32.xlu0 %v3858, 96
  %v4392 = vpop.permute.xlu0 %4391
  %v4393 = vsel %vm293, %v3858, 0
  %v4395 = vsel %vm293, %v4392, 0
  %4397 = vmatprep.subr.mxu0 0.0
  %4398 = vmatpush1.xpose.msra.mxu0 0.0
  %4399 = vmatprep.subr.mxu0 0.0
  %4400 = vmatpush1.xpose.msra.mxu0 0.0
  %4401 = vmatprep.subr.mxu0 0.0
  %4402 = vmatpush1.xpose.msra.mxu0 0.0
  %4403 = vmatprep.subr.mxu0 0.0
  %4404 = vmatpush1.xpose.msra.mxu0 0.0
  %4405 = vmatprep.subr.mxu0 0.0
  %4406 = vmatpush1.xpose.msra.mxu0 0.0
  %4407 = vmatprep.subr.mxu0 0.0
  %4408 = vmatpush1.xpose.msra.mxu0 0.0
  %4409 = vmatprep.subr.mxu0 0.0
  %4410 = vmatpush1.xpose.msra.mxu0 0.0
  %4411 = vmatprep.subr.mxu0 0.0
  %4412 = vmatpush1.xpose.msra.mxu0 0.0
  %4413 = vmatprep.subr.mxu0 0.0
  %4414 = vmatpush1.xpose.msra.mxu0 0.0
  %4415 = vmatprep.subr.mxu0 0.0
  %4416 = vmatpush1.xpose.msra.mxu0 0.0
  %4417 = vmatprep.subr.mxu0 0.0
  %4418 = vmatpush1.xpose.msra.mxu0 0.0
  %4419 = vmatprep.subr.mxu0 0.0
  %4420 = vmatpush1.xpose.msra.mxu0 0.0
  %4421 = vmatprep.subr.mxu0 0.0
  %4422 = vmatpush1.xpose.msra.mxu0 0.0
  %4423 = vmatprep.subr.mxu0 0.0
  %4424 = vmatpush1.xpose.msra.mxu0 0.0
  %4425 = vmatprep.subr.mxu0 0.0
  %4426 = vmatpush1.xpose.msra.mxu0 0.0
  %4427 = vmatprep.subr.mxu0 0.0
  %4428 = vmatpush1.xpose.msra.mxu0 %v4395
  %4429 = vmatprep.subr.mxu0 0.0
  %4430 = vmatpush2.xpose.msra.mxu0 0.0
  %4431 = vmatprep.subr.mxu0 0.0
  %4432 = vmatpush2.xpose.msra.mxu0 0.0
  %4433 = vmatprep.subr.mxu0 0.0
  %4434 = vmatpush2.xpose.msra.mxu0 0.0
  %4435 = vmatprep.subr.mxu0 0.0
  %4436 = vmatpush2.xpose.msra.mxu0 0.0
  %4437 = vmatprep.subr.mxu0 0.0
  %4438 = vmatpush2.xpose.msra.mxu0 0.0
  %4439 = vmatprep.subr.mxu0 0.0
  %4440 = vmatpush2.xpose.msra.mxu0 0.0
  %4441 = vmatprep.subr.mxu0 0.0
  %4442 = vmatpush2.xpose.msra.mxu0 0.0
  %4443 = vmatprep.subr.mxu0 0.0
  %4444 = vmatpush2.xpose.msra.mxu0 0.0
  %4445 = vmatprep.subr.mxu0 0.0
  %4446 = vmatpush2.xpose.msra.mxu0 0.0
  %4447 = vmatprep.subr.mxu0 0.0
  %4448 = vmatpush2.xpose.msra.mxu0 0.0
  %4449 = vmatprep.subr.mxu0 0.0
  %4450 = vmatpush2.xpose.msra.mxu0 0.0
  %4451 = vmatprep.subr.mxu0 0.0
  %4452 = vmatpush2.xpose.msra.mxu0 0.0
  %4453 = vmatprep.subr.mxu0 0.0
  %4454 = vmatpush2.xpose.msra.mxu0 0.0
  %4455 = vmatprep.subr.mxu0 0.0
  %4456 = vmatpush2.xpose.msra.mxu0 0.0
  %4457 = vmatprep.subr.mxu0 0.0
  %4458 = vmatpush2.xpose.msra.mxu0 0.0
  %4459 = vmatprep.subr.mxu0 0.0
  %4460 = vmatpush2.xpose.msra.mxu0 0.0
  %4461 = vmatprep.mubr.f32.mxu0 0.0
  %4462 = vmatmul.mubr.f32.gmra.mxu0 %v4393
  %v4463 = vpop.f32.mrf.mxu0
  %v4464 = vadd.f32 0.0, %v4463
  %v4465 = vpop.f32.mrf.mxu0
  %4466 = vdwg.mxu0
  %v4467 = vmul.f32 %v3932, 0.17677669
  %v4468 = vmul.f32 %v4008, 0.17677669
  %v4469 = vmul.f32 %v4084, 0.17677669
  %v4470 = vmul.f32 %v4160, 0.17677669
  %v4471 = vmul.f32 %v4236, 0.17677669
  %v4472 = vmul.f32 %v4312, 0.17677669
  %v4473 = vmul.f32 %v4388, 0.17677669
  %v4474 = vmul.f32 %v4464, 0.17677669
  %v4475 = vadd.f32 %v4467, %v162
  %v4476 = vadd.f32 %v4468, %v162
  %v4477 = vadd.f32 %v4469, %v162
  %v4478 = vadd.f32 %v4470, %v162
  %v4479 = vadd.f32 %v4471, %v162
  %v4480 = vadd.f32 %v4472, %v162
  %v4481 = vadd.f32 %v4473, %v162
  %v4482 = vadd.f32 %v4474, %v162
  %v4483 = vsel %vm293, %v4475, -inf
  %4484 = vmax.xlane.f32.xlu0 %v4483
  %v4485 = vpop.xlane.xlu0 %4484
  %v4486 = vsel %vm293, %v4476, -inf
  %4487 = vmax.xlane.f32.xlu0 %v4486
  %v4488 = vpop.xlane.xlu0 %4487
  %v4489 = vsel %vm293, %v4477, -inf
  %4490 = vmax.xlane.f32.xlu0 %v4489
  %v4491 = vpop.xlane.xlu0 %4490
  %v4492 = vsel %vm293, %v4478, -inf
  %4493 = vmax.xlane.f32.xlu0 %v4492
  %v4494 = vpop.xlane.xlu0 %4493
  %v4495 = vsel %vm293, %v4479, -inf
  %4496 = vmax.xlane.f32.xlu0 %v4495
  %v4497 = vpop.xlane.xlu0 %4496
  %v4498 = vsel %vm293, %v4480, -inf
  %4499 = vmax.xlane.f32.xlu0 %v4498
  %v4500 = vpop.xlane.xlu0 %4499
  %v4501 = vsel %vm293, %v4481, -inf
  %4502 = vmax.xlane.f32.xlu0 %v4501
  %v4503 = vpop.xlane.xlu0 %4502
  %v4504 = vsel %vm293, %v4482, -inf
  %4505 = vmax.xlane.f32.xlu0 %v4504
  %v4506 = vpop.xlane.xlu0 %4505
  %v4507 = vsub.f32 %v4475, %v4485
  %v4508 = vsub.f32 %v4476, %v4488
  %v4509 = vsub.f32 %v4477, %v4491
  %v4510 = vsub.f32 %v4478, %v4494
  %v4511 = vsub.f32 %v4479, %v4497
  %v4512 = vsub.f32 %v4480, %v4500
  %v4513 = vsub.f32 %v4481, %v4503
  %v4514 = vsub.f32 %v4482, %v4506
  %v4515 = vmul.f32 %v4507, 1.442695
  %v4516 = vpow.pop %v4515
  %v4517 = vmul.f32 %v4508, 1.442695
  %v4518 = vpow.pop %v4517
  %v4519 = vmul.f32 %v4509, 1.442695
  %v4520 = vpow.pop %v4519
  %v4521 = vmul.f32 %v4510, 1.442695
  %v4522 = vpow.pop %v4521
  %v4523 = vmul.f32 %v4511, 1.442695
  %v4524 = vpow.pop %v4523
  %v4525 = vmul.f32 %v4512, 1.442695
  %v4526 = vpow.pop %v4525
  %v4527 = vmul.f32 %v4513, 1.442695
  %v4528 = vpow.pop %v4527
  %v4529 = vmul.f32 %v4514, 1.442695
  %v4530 = vpow.pop %v4529
  %v4531 = vsel %vm293, %v4516, 0.0
  %4532 = vadd.xlane.f32.xlu0 %v4531
  %v4533 = vpop.xlane.xlu0 %4532
  %v4534 = vsel %vm293, %v4518, 0.0
  %4535 = vadd.xlane.f32.xlu0 %v4534
  %v4536 = vpop.xlane.xlu0 %4535
  %v4537 = vsel %vm293, %v4520, 0.0
  %4538 = vadd.xlane.f32.xlu0 %v4537
  %v4539 = vpop.xlane.xlu0 %4538
  %v4540 = vsel %vm293, %v4522, 0.0
  %4541 = vadd.xlane.f32.xlu0 %v4540
  %v4542 = vpop.xlane.xlu0 %4541
  %v4543 = vsel %vm293, %v4524, 0.0
  %4544 = vadd.xlane.f32.xlu0 %v4543
  %v4545 = vpop.xlane.xlu0 %4544
  %v4546 = vsel %vm293, %v4526, 0.0
  %4547 = vadd.xlane.f32.xlu0 %v4546
  %v4548 = vpop.xlane.xlu0 %4547
  %v4549 = vsel %vm293, %v4528, 0.0
  %4550 = vadd.xlane.f32.xlu0 %v4549
  %v4551 = vpop.xlane.xlu0 %4550
  %v4552 = vsel %vm293, %v4530, 0.0
  %4553 = vadd.xlane.f32.xlu0 %v4552
  %v4554 = vpop.xlane.xlu0 %4553
  %v4555 = vrcp.pop %v4533
  %v4556 = vmul.f32 %v4516, %v4555
  %v4557 = vrcp.pop %v4536
  %v4558 = vmul.f32 %v4518, %v4557
  %v4559 = vrcp.pop %v4539
  %v4560 = vmul.f32 %v4520, %v4559
  %v4561 = vrcp.pop %v4542
  %v4562 = vmul.f32 %v4522, %v4561
  %v4563 = vrcp.pop %v4545
  %v4564 = vmul.f32 %v4524, %v4563
  %v4565 = vrcp.pop %v4548
  %v4566 = vmul.f32 %v4526, %v4565
  %v4567 = vrcp.pop %v4551
  %v4568 = vmul.f32 %v4528, %v4567
  %v4569 = vrcp.pop %v4554
  %v4570 = vmul.f32 %v4530, %v4569
  %4571 = vrot.lane.b32.xlu0 %v3839, 64
  %v4572 = vpop.permute.xlu0 %4571
  %v4575 = vsel %vm293, %v4556, 0
  %4577 = vmatprep.subr.mxu0 0.0
  %4578 = vmatpush1.msra.mxu0 0.0
  %4579 = vmatprep.subr.mxu0 0.0
  %4580 = vmatpush1.msra.mxu0 0.0
  %4581 = vmatprep.subr.mxu0 0.0
  %4582 = vmatpush1.msra.mxu0 0.0
  %4583 = vmatprep.subr.mxu0 0.0
  %4584 = vmatpush1.msra.mxu0 0.0
  %4585 = vmatprep.subr.mxu0 0.0
  %4586 = vmatpush1.msra.mxu0 0.0
  %4587 = vmatprep.subr.mxu0 0.0
  %4588 = vmatpush1.msra.mxu0 0.0
  %4589 = vmatprep.subr.mxu0 0.0
  %4590 = vmatpush1.msra.mxu0 0.0
  %4591 = vmatprep.subr.mxu0 0.0
  %4592 = vmatpush1.msra.mxu0 0.0
  %4593 = vmatprep.subr.mxu0 0.0
  %4594 = vmatpush1.msra.mxu0 0.0
  %4595 = vmatprep.subr.mxu0 0.0
  %4596 = vmatpush1.msra.mxu0 0.0
  %4597 = vmatprep.subr.mxu0 0.0
  %4598 = vmatpush1.msra.mxu0 0.0
  %4599 = vmatprep.subr.mxu0 0.0
  %4600 = vmatpush1.msra.mxu0 0.0
  %4601 = vmatprep.subr.mxu0 0.0
  %4602 = vmatpush1.msra.mxu0 0.0
  %4603 = vmatprep.subr.mxu0 0.0
  %4604 = vmatpush1.msra.mxu0 0.0
  %4605 = vmatprep.subr.mxu0 0.0
  %4606 = vmatpush1.msra.mxu0 0.0
  %4607 = vmatprep.subr.mxu0 0.0
  %4608 = vmatpush1.msra.mxu0 %v4572
  %4609 = vmatprep.subr.mxu0 0.0
  %4610 = vmatpush2.msra.mxu0 0.0
  %4611 = vmatprep.subr.mxu0 0.0
  %4612 = vmatpush2.msra.mxu0 0.0
  %4613 = vmatprep.subr.mxu0 0.0
  %4614 = vmatpush2.msra.mxu0 0.0
  %4615 = vmatprep.subr.mxu0 0.0
  %4616 = vmatpush2.msra.mxu0 0.0
  %4617 = vmatprep.subr.mxu0 0.0
  %4618 = vmatpush2.msra.mxu0 0.0
  %4619 = vmatprep.subr.mxu0 0.0
  %4620 = vmatpush2.msra.mxu0 0.0
  %4621 = vmatprep.subr.mxu0 0.0
  %4622 = vmatpush2.msra.mxu0 0.0
  %4623 = vmatprep.subr.mxu0 0.0
  %4624 = vmatpush2.msra.mxu0 0.0
  %4625 = vmatprep.subr.mxu0 0.0
  %4626 = vmatpush2.msra.mxu0 0.0
  %4627 = vmatprep.subr.mxu0 0.0
  %4628 = vmatpush2.msra.mxu0 0.0
  %4629 = vmatprep.subr.mxu0 0.0
  %4630 = vmatpush2.msra.mxu0 0.0
  %4631 = vmatprep.subr.mxu0 0.0
  %4632 = vmatpush2.msra.mxu0 0.0
  %4633 = vmatprep.subr.mxu0 0.0
  %4634 = vmatpush2.msra.mxu0 0.0
  %4635 = vmatprep.subr.mxu0 0.0
  %4636 = vmatpush2.msra.mxu0 0.0
  %4637 = vmatprep.subr.mxu0 0.0
  %4638 = vmatpush2.msra.mxu0 0.0
  %4639 = vmatprep.subr.mxu0 0.0
  %4640 = vmatpush2.msra.mxu0 0.0
  %4641 = vmatprep.mubr.f32.mxu0 0.0
  %4642 = vmatmul.mubr.f32.gmra.mxu0 %v4575
  %v4643 = vpop.f32.mrf.mxu0
  %v4644 = vadd.f32 0.0, %v4643
  %v4645 = vpop.f32.mrf.mxu0
  %4646 = vdwg.mxu0
  %4647 = vrot.lane.b32.xlu0 %v3842, 64
  %v4648 = vpop.permute.xlu0 %4647
  %v4651 = vsel %vm293, %v4558, 0
  %4653 = vmatprep.subr.mxu0 0.0
  %4654 = vmatpush1.msra.mxu0 0.0
  %4655 = vmatprep.subr.mxu0 0.0
  %4656 = vmatpush1.msra.mxu0 0.0
  %4657 = vmatprep.subr.mxu0 0.0
  %4658 = vmatpush1.msra.mxu0 0.0
  %4659 = vmatprep.subr.mxu0 0.0
  %4660 = vmatpush1.msra.mxu0 0.0
  %4661 = vmatprep.subr.mxu0 0.0
  %4662 = vmatpush1.msra.mxu0 0.0
  %4663 = vmatprep.subr.mxu0 0.0
  %4664 = vmatpush1.msra.mxu0 0.0
  %4665 = vmatprep.subr.mxu0 0.0
  %4666 = vmatpush1.msra.mxu0 0.0
  %4667 = vmatprep.subr.mxu0 0.0
  %4668 = vmatpush1.msra.mxu0 0.0
  %4669 = vmatprep.subr.mxu0 0.0
  %4670 = vmatpush1.msra.mxu0 0.0
  %4671 = vmatprep.subr.mxu0 0.0
  %4672 = vmatpush1.msra.mxu0 0.0
  %4673 = vmatprep.subr.mxu0 0.0
  %4674 = vmatpush1.msra.mxu0 0.0
  %4675 = vmatprep.subr.mxu0 0.0
  %4676 = vmatpush1.msra.mxu0 0.0
  %4677 = vmatprep.subr.mxu0 0.0
  %4678 = vmatpush1.msra.mxu0 0.0
  %4679 = vmatprep.subr.mxu0 0.0
  %4680 = vmatpush1.msra.mxu0 0.0
  %4681 = vmatprep.subr.mxu0 0.0
  %4682 = vmatpush1.msra.mxu0 0.0
  %4683 = vmatprep.subr.mxu0 0.0
  %4684 = vmatpush1.msra.mxu0 %v4648
  %4685 = vmatprep.subr.mxu0 0.0
  %4686 = vmatpush2.msra.mxu0 0.0
  %4687 = vmatprep.subr.mxu0 0.0
  %4688 = vmatpush2.msra.mxu0 0.0
  %4689 = vmatprep.subr.mxu0 0.0
  %4690 = vmatpush2.msra.mxu0 0.0
  %4691 = vmatprep.subr.mxu0 0.0
  %4692 = vmatpush2.msra.mxu0 0.0
  %4693 = vmatprep.subr.mxu0 0.0
  %4694 = vmatpush2.msra.mxu0 0.0
  %4695 = vmatprep.subr.mxu0 0.0
  %4696 = vmatpush2.msra.mxu0 0.0
  %4697 = vmatprep.subr.mxu0 0.0
  %4698 = vmatpush2.msra.mxu0 0.0
  %4699 = vmatprep.subr.mxu0 0.0
  %4700 = vmatpush2.msra.mxu0 0.0
  %4701 = vmatprep.subr.mxu0 0.0
  %4702 = vmatpush2.msra.mxu0 0.0
  %4703 = vmatprep.subr.mxu0 0.0
  %4704 = vmatpush2.msra.mxu0 0.0
  %4705 = vmatprep.subr.mxu0 0.0
  %4706 = vmatpush2.msra.mxu0 0.0
  %4707 = vmatprep.subr.mxu0 0.0
  %4708 = vmatpush2.msra.mxu0 0.0
  %4709 = vmatprep.subr.mxu0 0.0
  %4710 = vmatpush2.msra.mxu0 0.0
  %4711 = vmatprep.subr.mxu0 0.0
  %4712 = vmatpush2.msra.mxu0 0.0
  %4713 = vmatprep.subr.mxu0 0.0
  %4714 = vmatpush2.msra.mxu0 0.0
  %4715 = vmatprep.subr.mxu0 0.0
  %4716 = vmatpush2.msra.mxu0 0.0
  %4717 = vmatprep.mubr.f32.mxu0 0.0
  %4718 = vmatmul.mubr.f32.gmra.mxu0 %v4651
  %v4719 = vpop.f32.mrf.mxu0
  %v4720 = vadd.f32 0.0, %v4719
  %v4721 = vpop.f32.mrf.mxu0
  %4722 = vdwg.mxu0
  %4723 = vrot.lane.b32.xlu0 %v3848, 64
  %v4724 = vpop.permute.xlu0 %4723
  %v4727 = vsel %vm293, %v4560, 0
  %4729 = vmatprep.subr.mxu0 0.0
  %4730 = vmatpush1.msra.mxu0 0.0
  %4731 = vmatprep.subr.mxu0 0.0
  %4732 = vmatpush1.msra.mxu0 0.0
  %4733 = vmatprep.subr.mxu0 0.0
  %4734 = vmatpush1.msra.mxu0 0.0
  %4735 = vmatprep.subr.mxu0 0.0
  %4736 = vmatpush1.msra.mxu0 0.0
  %4737 = vmatprep.subr.mxu0 0.0
  %4738 = vmatpush1.msra.mxu0 0.0
  %4739 = vmatprep.subr.mxu0 0.0
  %4740 = vmatpush1.msra.mxu0 0.0
  %4741 = vmatprep.subr.mxu0 0.0
  %4742 = vmatpush1.msra.mxu0 0.0
  %4743 = vmatprep.subr.mxu0 0.0
  %4744 = vmatpush1.msra.mxu0 0.0
  %4745 = vmatprep.subr.mxu0 0.0
  %4746 = vmatpush1.msra.mxu0 0.0
  %4747 = vmatprep.subr.mxu0 0.0
  %4748 = vmatpush1.msra.mxu0 0.0
  %4749 = vmatprep.subr.mxu0 0.0
  %4750 = vmatpush1.msra.mxu0 0.0
  %4751 = vmatprep.subr.mxu0 0.0
  %4752 = vmatpush1.msra.mxu0 0.0
  %4753 = vmatprep.subr.mxu0 0.0
  %4754 = vmatpush1.msra.mxu0 0.0
  %4755 = vmatprep.subr.mxu0 0.0
  %4756 = vmatpush1.msra.mxu0 0.0
  %4757 = vmatprep.subr.mxu0 0.0
  %4758 = vmatpush1.msra.mxu0 0.0
  %4759 = vmatprep.subr.mxu0 0.0
  %4760 = vmatpush1.msra.mxu0 %v4724
  %4761 = vmatprep.subr.mxu0 0.0
  %4762 = vmatpush2.msra.mxu0 0.0
  %4763 = vmatprep.subr.mxu0 0.0
  %4764 = vmatpush2.msra.mxu0 0.0
  %4765 = vmatprep.subr.mxu0 0.0
  %4766 = vmatpush2.msra.mxu0 0.0
  %4767 = vmatprep.subr.mxu0 0.0
  %4768 = vmatpush2.msra.mxu0 0.0
  %4769 = vmatprep.subr.mxu0 0.0
  %4770 = vmatpush2.msra.mxu0 0.0
  %4771 = vmatprep.subr.mxu0 0.0
  %4772 = vmatpush2.msra.mxu0 0.0
  %4773 = vmatprep.subr.mxu0 0.0
  %4774 = vmatpush2.msra.mxu0 0.0
  %4775 = vmatprep.subr.mxu0 0.0
  %4776 = vmatpush2.msra.mxu0 0.0
  %4777 = vmatprep.subr.mxu0 0.0
  %4778 = vmatpush2.msra.mxu0 0.0
  %4779 = vmatprep.subr.mxu0 0.0
  %4780 = vmatpush2.msra.mxu0 0.0
  %4781 = vmatprep.subr.mxu0 0.0
  %4782 = vmatpush2.msra.mxu0 0.0
  %4783 = vmatprep.subr.mxu0 0.0
  %4784 = vmatpush2.msra.mxu0 0.0
  %4785 = vmatprep.subr.mxu0 0.0
  %4786 = vmatpush2.msra.mxu0 0.0
  %4787 = vmatprep.subr.mxu0 0.0
  %4788 = vmatpush2.msra.mxu0 0.0
  %4789 = vmatprep.subr.mxu0 0.0
  %4790 = vmatpush2.msra.mxu0 0.0
  %4791 = vmatprep.subr.mxu0 0.0
  %4792 = vmatpush2.msra.mxu0 0.0
  %4793 = vmatprep.mubr.f32.mxu0 0.0
  %4794 = vmatmul.mubr.f32.gmra.mxu0 %v4727
  %v4795 = vpop.f32.mrf.mxu0
  %v4796 = vadd.f32 0.0, %v4795
  %v4797 = vpop.f32.mrf.mxu0
  %4798 = vdwg.mxu0
  %4799 = vrot.lane.b32.xlu0 %v3850, 64
  %v4800 = vpop.permute.xlu0 %4799
  %v4803 = vsel %vm293, %v4562, 0
  %4805 = vmatprep.subr.mxu0 0.0
  %4806 = vmatpush1.msra.mxu0 0.0
  %4807 = vmatprep.subr.mxu0 0.0
  %4808 = vmatpush1.msra.mxu0 0.0
  %4809 = vmatprep.subr.mxu0 0.0
  %4810 = vmatpush1.msra.mxu0 0.0
  %4811 = vmatprep.subr.mxu0 0.0
  %4812 = vmatpush1.msra.mxu0 0.0
  %4813 = vmatprep.subr.mxu0 0.0
  %4814 = vmatpush1.msra.mxu0 0.0
  %4815 = vmatprep.subr.mxu0 0.0
  %4816 = vmatpush1.msra.mxu0 0.0
  %4817 = vmatprep.subr.mxu0 0.0
  %4818 = vmatpush1.msra.mxu0 0.0
  %4819 = vmatprep.subr.mxu0 0.0
  %4820 = vmatpush1.msra.mxu0 0.0
  %4821 = vmatprep.subr.mxu0 0.0
  %4822 = vmatpush1.msra.mxu0 0.0
  %4823 = vmatprep.subr.mxu0 0.0
  %4824 = vmatpush1.msra.mxu0 0.0
  %4825 = vmatprep.subr.mxu0 0.0
  %4826 = vmatpush1.msra.mxu0 0.0
  %4827 = vmatprep.subr.mxu0 0.0
  %4828 = vmatpush1.msra.mxu0 0.0
  %4829 = vmatprep.subr.mxu0 0.0
  %4830 = vmatpush1.msra.mxu0 0.0
  %4831 = vmatprep.subr.mxu0 0.0
  %4832 = vmatpush1.msra.mxu0 0.0
  %4833 = vmatprep.subr.mxu0 0.0
  %4834 = vmatpush1.msra.mxu0 0.0
  %4835 = vmatprep.subr.mxu0 0.0
  %4836 = vmatpush1.msra.mxu0 %v4800
  %4837 = vmatprep.subr.mxu0 0.0
  %4838 = vmatpush2.msra.mxu0 0.0
  %4839 = vmatprep.subr.mxu0 0.0
  %4840 = vmatpush2.msra.mxu0 0.0
  %4841 = vmatprep.subr.mxu0 0.0
  %4842 = vmatpush2.msra.mxu0 0.0
  %4843 = vmatprep.subr.mxu0 0.0
  %4844 = vmatpush2.msra.mxu0 0.0
  %4845 = vmatprep.subr.mxu0 0.0
  %4846 = vmatpush2.msra.mxu0 0.0
  %4847 = vmatprep.subr.mxu0 0.0
  %4848 = vmatpush2.msra.mxu0 0.0
  %4849 = vmatprep.subr.mxu0 0.0
  %4850 = vmatpush2.msra.mxu0 0.0
  %4851 = vmatprep.subr.mxu0 0.0
  %4852 = vmatpush2.msra.mxu0 0.0
  %4853 = vmatprep.subr.mxu0 0.0
  %4854 = vmatpush2.msra.mxu0 0.0
  %4855 = vmatprep.subr.mxu0 0.0
  %4856 = vmatpush2.msra.mxu0 0.0
  %4857 = vmatprep.subr.mxu0 0.0
  %4858 = vmatpush2.msra.mxu0 0.0
  %4859 = vmatprep.subr.mxu0 0.0
  %4860 = vmatpush2.msra.mxu0 0.0
  %4861 = vmatprep.subr.mxu0 0.0
  %4862 = vmatpush2.msra.mxu0 0.0
  %4863 = vmatprep.subr.mxu0 0.0
  %4864 = vmatpush2.msra.mxu0 0.0
  %4865 = vmatprep.subr.mxu0 0.0
  %4866 = vmatpush2.msra.mxu0 0.0
  %4867 = vmatprep.subr.mxu0 0.0
  %4868 = vmatpush2.msra.mxu0 0.0
  %4869 = vmatprep.mubr.f32.mxu0 0.0
  %4870 = vmatmul.mubr.f32.gmra.mxu0 %v4803
  %v4871 = vpop.f32.mrf.mxu0
  %v4872 = vadd.f32 0.0, %v4871
  %v4873 = vpop.f32.mrf.mxu0
  %4874 = vdwg.mxu0
  %4875 = vrot.lane.b32.xlu0 %v3852, 64
  %v4876 = vpop.permute.xlu0 %4875
  %v4879 = vsel %vm293, %v4564, 0
  %4881 = vmatprep.subr.mxu0 0.0
  %4882 = vmatpush1.msra.mxu0 0.0
  %4883 = vmatprep.subr.mxu0 0.0
  %4884 = vmatpush1.msra.mxu0 0.0
  %4885 = vmatprep.subr.mxu0 0.0
  %4886 = vmatpush1.msra.mxu0 0.0
  %4887 = vmatprep.subr.mxu0 0.0
  %4888 = vmatpush1.msra.mxu0 0.0
  %4889 = vmatprep.subr.mxu0 0.0
  %4890 = vmatpush1.msra.mxu0 0.0
  %4891 = vmatprep.subr.mxu0 0.0
  %4892 = vmatpush1.msra.mxu0 0.0
  %4893 = vmatprep.subr.mxu0 0.0
  %4894 = vmatpush1.msra.mxu0 0.0
  %4895 = vmatprep.subr.mxu0 0.0
  %4896 = vmatpush1.msra.mxu0 0.0
  %4897 = vmatprep.subr.mxu0 0.0
  %4898 = vmatpush1.msra.mxu0 0.0
  %4899 = vmatprep.subr.mxu0 0.0
  %4900 = vmatpush1.msra.mxu0 0.0
  %4901 = vmatprep.subr.mxu0 0.0
  %4902 = vmatpush1.msra.mxu0 0.0
  %4903 = vmatprep.subr.mxu0 0.0
  %4904 = vmatpush1.msra.mxu0 0.0
  %4905 = vmatprep.subr.mxu0 0.0
  %4906 = vmatpush1.msra.mxu0 0.0
  %4907 = vmatprep.subr.mxu0 0.0
  %4908 = vmatpush1.msra.mxu0 0.0
  %4909 = vmatprep.subr.mxu0 0.0
  %4910 = vmatpush1.msra.mxu0 0.0
  %4911 = vmatprep.subr.mxu0 0.0
  %4912 = vmatpush1.msra.mxu0 %v4876
  %4913 = vmatprep.subr.mxu0 0.0
  %4914 = vmatpush2.msra.mxu0 0.0
  %4915 = vmatprep.subr.mxu0 0.0
  %4916 = vmatpush2.msra.mxu0 0.0
  %4917 = vmatprep.subr.mxu0 0.0
  %4918 = vmatpush2.msra.mxu0 0.0
  %4919 = vmatprep.subr.mxu0 0.0
  %4920 = vmatpush2.msra.mxu0 0.0
  %4921 = vmatprep.subr.mxu0 0.0
  %4922 = vmatpush2.msra.mxu0 0.0
  %4923 = vmatprep.subr.mxu0 0.0
  %4924 = vmatpush2.msra.mxu0 0.0
  %4925 = vmatprep.subr.mxu0 0.0
  %4926 = vmatpush2.msra.mxu0 0.0
  %4927 = vmatprep.subr.mxu0 0.0
  %4928 = vmatpush2.msra.mxu0 0.0
  %4929 = vmatprep.subr.mxu0 0.0
  %4930 = vmatpush2.msra.mxu0 0.0
  %4931 = vmatprep.subr.mxu0 0.0
  %4932 = vmatpush2.msra.mxu0 0.0
  %4933 = vmatprep.subr.mxu0 0.0
  %4934 = vmatpush2.msra.mxu0 0.0
  %4935 = vmatprep.subr.mxu0 0.0
  %4936 = vmatpush2.msra.mxu0 0.0
  %4937 = vmatprep.subr.mxu0 0.0
  %4938 = vmatpush2.msra.mxu0 0.0
  %4939 = vmatprep.subr.mxu0 0.0
  %4940 = vmatpush2.msra.mxu0 0.0
  %4941 = vmatprep.subr.mxu0 0.0
  %4942 = vmatpush2.msra.mxu0 0.0
  %4943 = vmatprep.subr.mxu0 0.0
  %4944 = vmatpush2.msra.mxu0 0.0
  %4945 = vmatprep.mubr.f32.mxu0 0.0
  %4946 = vmatmul.mubr.f32.gmra.mxu0 %v4879
  %v4947 = vpop.f32.mrf.mxu0
  %v4948 = vadd.f32 0.0, %v4947
  %v4949 = vpop.f32.mrf.mxu0
  %4950 = vdwg.mxu0
  %4951 = vrot.lane.b32.xlu0 %v3854, 64
  %v4952 = vpop.permute.xlu0 %4951
  %v4955 = vsel %vm293, %v4566, 0
  %4957 = vmatprep.subr.mxu0 0.0
  %4958 = vmatpush1.msra.mxu0 0.0
  %4959 = vmatprep.subr.mxu0 0.0
  %4960 = vmatpush1.msra.mxu0 0.0
  %4961 = vmatprep.subr.mxu0 0.0
  %4962 = vmatpush1.msra.mxu0 0.0
  %4963 = vmatprep.subr.mxu0 0.0
  %4964 = vmatpush1.msra.mxu0 0.0
  %4965 = vmatprep.subr.mxu0 0.0
  %4966 = vmatpush1.msra.mxu0 0.0
  %4967 = vmatprep.subr.mxu0 0.0
  %4968 = vmatpush1.msra.mxu0 0.0
  %4969 = vmatprep.subr.mxu0 0.0
  %4970 = vmatpush1.msra.mxu0 0.0
  %4971 = vmatprep.subr.mxu0 0.0
  %4972 = vmatpush1.msra.mxu0 0.0
  %4973 = vmatprep.subr.mxu0 0.0
  %4974 = vmatpush1.msra.mxu0 0.0
  %4975 = vmatprep.subr.mxu0 0.0
  %4976 = vmatpush1.msra.mxu0 0.0
  %4977 = vmatprep.subr.mxu0 0.0
  %4978 = vmatpush1.msra.mxu0 0.0
  %4979 = vmatprep.subr.mxu0 0.0
  %4980 = vmatpush1.msra.mxu0 0.0
  %4981 = vmatprep.subr.mxu0 0.0
  %4982 = vmatpush1.msra.mxu0 0.0
  %4983 = vmatprep.subr.mxu0 0.0
  %4984 = vmatpush1.msra.mxu0 0.0
  %4985 = vmatprep.subr.mxu0 0.0
  %4986 = vmatpush1.msra.mxu0 0.0
  %4987 = vmatprep.subr.mxu0 0.0
  %4988 = vmatpush1.msra.mxu0 %v4952
  %4989 = vmatprep.subr.mxu0 0.0
  %4990 = vmatpush2.msra.mxu0 0.0
  %4991 = vmatprep.subr.mxu0 0.0
  %4992 = vmatpush2.msra.mxu0 0.0
  %4993 = vmatprep.subr.mxu0 0.0
  %4994 = vmatpush2.msra.mxu0 0.0
  %4995 = vmatprep.subr.mxu0 0.0
  %4996 = vmatpush2.msra.mxu0 0.0
  %4997 = vmatprep.subr.mxu0 0.0
  %4998 = vmatpush2.msra.mxu0 0.0
  %4999 = vmatprep.subr.mxu0 0.0
  %5000 = vmatpush2.msra.mxu0 0.0
  %5001 = vmatprep.subr.mxu0 0.0
  %5002 = vmatpush2.msra.mxu0 0.0
  %5003 = vmatprep.subr.mxu0 0.0
  %5004 = vmatpush2.msra.mxu0 0.0
  %5005 = vmatprep.subr.mxu0 0.0
  %5006 = vmatpush2.msra.mxu0 0.0
  %5007 = vmatprep.subr.mxu0 0.0
  %5008 = vmatpush2.msra.mxu0 0.0
  %5009 = vmatprep.subr.mxu0 0.0
  %5010 = vmatpush2.msra.mxu0 0.0
  %5011 = vmatprep.subr.mxu0 0.0
  %5012 = vmatpush2.msra.mxu0 0.0
  %5013 = vmatprep.subr.mxu0 0.0
  %5014 = vmatpush2.msra.mxu0 0.0
  %5015 = vmatprep.subr.mxu0 0.0
  %5016 = vmatpush2.msra.mxu0 0.0
  %5017 = vmatprep.subr.mxu0 0.0
  %5018 = vmatpush2.msra.mxu0 0.0
  %5019 = vmatprep.subr.mxu0 0.0
  %5020 = vmatpush2.msra.mxu0 0.0
  %5021 = vmatprep.mubr.f32.mxu0 0.0
  %5022 = vmatmul.mubr.f32.gmra.mxu0 %v4955
  %v5023 = vpop.f32.mrf.mxu0
  %v5024 = vadd.f32 0.0, %v5023
  %v5025 = vpop.f32.mrf.mxu0
  %5026 = vdwg.mxu0
  %5027 = vrot.lane.b32.xlu0 %v3856, 64
  %v5028 = vpop.permute.xlu0 %5027
  %v5031 = vsel %vm293, %v4568, 0
  %5033 = vmatprep.subr.mxu0 0.0
  %5034 = vmatpush1.msra.mxu0 0.0
  %5035 = vmatprep.subr.mxu0 0.0
  %5036 = vmatpush1.msra.mxu0 0.0
  %5037 = vmatprep.subr.mxu0 0.0
  %5038 = vmatpush1.msra.mxu0 0.0
  %5039 = vmatprep.subr.mxu0 0.0
  %5040 = vmatpush1.msra.mxu0 0.0
  %5041 = vmatprep.subr.mxu0 0.0
  %5042 = vmatpush1.msra.mxu0 0.0
  %5043 = vmatprep.subr.mxu0 0.0
  %5044 = vmatpush1.msra.mxu0 0.0
  %5045 = vmatprep.subr.mxu0 0.0
  %5046 = vmatpush1.msra.mxu0 0.0
  %5047 = vmatprep.subr.mxu0 0.0
  %5048 = vmatpush1.msra.mxu0 0.0
  %5049 = vmatprep.subr.mxu0 0.0
  %5050 = vmatpush1.msra.mxu0 0.0
  %5051 = vmatprep.subr.mxu0 0.0
  %5052 = vmatpush1.msra.mxu0 0.0
  %5053 = vmatprep.subr.mxu0 0.0
  %5054 = vmatpush1.msra.mxu0 0.0
  %5055 = vmatprep.subr.mxu0 0.0
  %5056 = vmatpush1.msra.mxu0 0.0
  %5057 = vmatprep.subr.mxu0 0.0
  %5058 = vmatpush1.msra.mxu0 0.0
  %5059 = vmatprep.subr.mxu0 0.0
  %5060 = vmatpush1.msra.mxu0 0.0
  %5061 = vmatprep.subr.mxu0 0.0
  %5062 = vmatpush1.msra.mxu0 0.0
  %5063 = vmatprep.subr.mxu0 0.0
  %5064 = vmatpush1.msra.mxu0 %v5028
  %5065 = vmatprep.subr.mxu0 0.0
  %5066 = vmatpush2.msra.mxu0 0.0
  %5067 = vmatprep.subr.mxu0 0.0
  %5068 = vmatpush2.msra.mxu0 0.0
  %5069 = vmatprep.subr.mxu0 0.0
  %5070 = vmatpush2.msra.mxu0 0.0
  %5071 = vmatprep.subr.mxu0 0.0
  %5072 = vmatpush2.msra.mxu0 0.0
  %5073 = vmatprep.subr.mxu0 0.0
  %5074 = vmatpush2.msra.mxu0 0.0
  %5075 = vmatprep.subr.mxu0 0.0
  %5076 = vmatpush2.msra.mxu0 0.0
  %5077 = vmatprep.subr.mxu0 0.0
  %5078 = vmatpush2.msra.mxu0 0.0
  %5079 = vmatprep.subr.mxu0 0.0
  %5080 = vmatpush2.msra.mxu0 0.0
  %5081 = vmatprep.subr.mxu0 0.0
  %5082 = vmatpush2.msra.mxu0 0.0
  %5083 = vmatprep.subr.mxu0 0.0
  %5084 = vmatpush2.msra.mxu0 0.0
  %5085 = vmatprep.subr.mxu0 0.0
  %5086 = vmatpush2.msra.mxu0 0.0
  %5087 = vmatprep.subr.mxu0 0.0
  %5088 = vmatpush2.msra.mxu0 0.0
  %5089 = vmatprep.subr.mxu0 0.0
  %5090 = vmatpush2.msra.mxu0 0.0
  %5091 = vmatprep.subr.mxu0 0.0
  %5092 = vmatpush2.msra.mxu0 0.0
  %5093 = vmatprep.subr.mxu0 0.0
  %5094 = vmatpush2.msra.mxu0 0.0
  %5095 = vmatprep.subr.mxu0 0.0
  %5096 = vmatpush2.msra.mxu0 0.0
  %5097 = vmatprep.mubr.f32.mxu0 0.0
  %5098 = vmatmul.mubr.f32.gmra.mxu0 %v5031
  %v5099 = vpop.f32.mrf.mxu0
  %v5100 = vadd.f32 0.0, %v5099
  %v5101 = vpop.f32.mrf.mxu0
  %5102 = vdwg.mxu0
  %5103 = vrot.lane.b32.xlu0 %v3858, 64
  %v5104 = vpop.permute.xlu0 %5103
  %v5107 = vsel %vm293, %v4570, 0
  %5109 = vmatprep.subr.mxu0 0.0
  %5110 = vmatpush1.msra.mxu0 0.0
  %5111 = vmatprep.subr.mxu0 0.0
  %5112 = vmatpush1.msra.mxu0 0.0
  %5113 = vmatprep.subr.mxu0 0.0
  %5114 = vmatpush1.msra.mxu0 0.0
  %5115 = vmatprep.subr.mxu0 0.0
  %5116 = vmatpush1.msra.mxu0 0.0
  %5117 = vmatprep.subr.mxu0 0.0
  %5118 = vmatpush1.msra.mxu0 0.0
  %5119 = vmatprep.subr.mxu0 0.0
  %5120 = vmatpush1.msra.mxu0 0.0
  %5121 = vmatprep.subr.mxu0 0.0
  %5122 = vmatpush1.msra.mxu0 0.0
  %5123 = vmatprep.subr.mxu0 0.0
  %5124 = vmatpush1.msra.mxu0 0.0
  %5125 = vmatprep.subr.mxu0 0.0
  %5126 = vmatpush1.msra.mxu0 0.0
  %5127 = vmatprep.subr.mxu0 0.0
  %5128 = vmatpush1.msra.mxu0 0.0
  %5129 = vmatprep.subr.mxu0 0.0
  %5130 = vmatpush1.msra.mxu0 0.0
  %5131 = vmatprep.subr.mxu0 0.0
  %5132 = vmatpush1.msra.mxu0 0.0
  %5133 = vmatprep.subr.mxu0 0.0
  %5134 = vmatpush1.msra.mxu0 0.0
  %5135 = vmatprep.subr.mxu0 0.0
  %5136 = vmatpush1.msra.mxu0 0.0
  %5137 = vmatprep.subr.mxu0 0.0
  %5138 = vmatpush1.msra.mxu0 0.0
  %5139 = vmatprep.subr.mxu0 0.0
  %5140 = vmatpush1.msra.mxu0 %v5104
  %5141 = vmatprep.subr.mxu0 0.0
  %5142 = vmatpush2.msra.mxu0 0.0
  %5143 = vmatprep.subr.mxu0 0.0
  %5144 = vmatpush2.msra.mxu0 0.0
  %5145 = vmatprep.subr.mxu0 0.0
  %5146 = vmatpush2.msra.mxu0 0.0
  %5147 = vmatprep.subr.mxu0 0.0
  %5148 = vmatpush2.msra.mxu0 0.0
  %5149 = vmatprep.subr.mxu0 0.0
  %5150 = vmatpush2.msra.mxu0 0.0
  %5151 = vmatprep.subr.mxu0 0.0
  %5152 = vmatpush2.msra.mxu0 0.0
  %5153 = vmatprep.subr.mxu0 0.0
  %5154 = vmatpush2.msra.mxu0 0.0
  %5155 = vmatprep.subr.mxu0 0.0
  %5156 = vmatpush2.msra.mxu0 0.0
  %5157 = vmatprep.subr.mxu0 0.0
  %5158 = vmatpush2.msra.mxu0 0.0
  %5159 = vmatprep.subr.mxu0 0.0
  %5160 = vmatpush2.msra.mxu0 0.0
  %5161 = vmatprep.subr.mxu0 0.0
  %5162 = vmatpush2.msra.mxu0 0.0
  %5163 = vmatprep.subr.mxu0 0.0
  %5164 = vmatpush2.msra.mxu0 0.0
  %5165 = vmatprep.subr.mxu0 0.0
  %5166 = vmatpush2.msra.mxu0 0.0
  %5167 = vmatprep.subr.mxu0 0.0
  %5168 = vmatpush2.msra.mxu0 0.0
  %5169 = vmatprep.subr.mxu0 0.0
  %5170 = vmatpush2.msra.mxu0 0.0
  %5171 = vmatprep.subr.mxu0 0.0
  %5172 = vmatpush2.msra.mxu0 0.0
  %5173 = vmatprep.mubr.f32.mxu0 0.0
  %5174 = vmatmul.mubr.f32.gmra.mxu0 %v5107
  %v5175 = vpop.f32.mrf.mxu0
  %v5176 = vadd.f32 0.0, %v5175
  %v5177 = vpop.f32.mrf.mxu0
  %5178 = vdwg.mxu0
  %5181 = vrot.lane.b32.xlu0 %v4796, 8
  %v5182 = vpop.permute.xlu0 %5181
  %5183 = vrot.lane.b32.xlu0 %v4872, 8
  %v5184 = vpop.permute.xlu0 %5183
  %5189 = vrot.lane.b32.xlu0 %v4948, 16
  %v5190 = vpop.permute.xlu0 %5189
  %5191 = vrot.lane.b32.xlu0 %v5024, 16
  %v5192 = vpop.permute.xlu0 %5191
  %5197 = vrot.lane.b32.xlu0 %v5100, 24
  %v5198 = vpop.permute.xlu0 %5197
  %5199 = vrot.lane.b32.xlu0 %v5176, 24
  %v5200 = vpop.permute.xlu0 %5199
  %v5203 = vsel %vm293, %v4644, %v5182
  %v5204 = vsel %vm293, %v4720, %v5184
  %v5205 = vsel %vm77, %v5203, %v5190
  %v5206 = vsel %vm77, %v5204, %v5192
  %v5207 = vsel %vm1640, %v5205, %v5198
  %v5208 = vsel %vm1640, %v5206, %v5200
  %v5209 = vpack.c.bf16 %v5208, %v5207
  %s5210 = scalar_lea.vmem %s7, 32
  %v5211 = vld [vmem:[%s5210] sm:$0xf]
  %v5212 = vld [vmem:[%s5210 + $0x4] sm:$0xf]
  %v5213 = vld [vmem:[%s5210 + $0x8] sm:$0xf]
  %v5214 = vld [vmem:[%s5210 + $0xc] sm:$0xf]
  %s5215 = scalar_lea.vmem %s8, 2
  %v5216 = vld [vmem:[%s5215] sm:$0x1]
  %v5218 = vlaneseq
  %v5219 = vshrl.u32 %v5218, 7
  %v5220 = vsub.s32 0, %v5219
  %v5221 = vrot.slane %v5216, %v5220
  %v5227 = vunpack.c.l.b16 %v5211
  %v5228 = vunpack.c.l.b16 %v5212
  %v5229 = vunpack.c.l.b16 %v5213
  %v5230 = vunpack.c.l.b16 %v5214
  %v5231 = vpack.c.b16 %v5228, %v5227
  %v5232 = vpack.c.b16 %v5230, %v5229
  %v5236 = vsel %vm165, %v5209, 0
  %5238 = vmatprep.subr.bf16.mxu0 0
  %5239 = vmatpush1.bf16.msra.mxu0 0
  %5240 = vmatprep.subr.bf16.mxu0 0
  %5241 = vmatpush1.bf16.msra.mxu0 0
  %5242 = vmatprep.subr.bf16.mxu0 0
  %5243 = vmatpush1.bf16.msra.mxu0 0
  %5244 = vmatprep.subr.bf16.mxu0 0
  %5245 = vmatpush1.bf16.msra.mxu0 0
  %5246 = vmatprep.subr.bf16.mxu0 0
  %5247 = vmatpush1.bf16.msra.mxu0 0
  %5248 = vmatprep.subr.bf16.mxu0 0
  %5249 = vmatpush1.bf16.msra.mxu0 0
  %5250 = vmatprep.subr.bf16.mxu0 0
  %5251 = vmatpush1.bf16.msra.mxu0 %v5232
  %5252 = vmatprep.subr.bf16.mxu0 0
  %5253 = vmatpush1.bf16.msra.mxu0 %v5231
  %5254 = vmatprep.subr.bf16.mxu0 0
  %5255 = vmatpush2.bf16.msra.mxu0 0
  %5256 = vmatprep.subr.bf16.mxu0 0
  %5257 = vmatpush2.bf16.msra.mxu0 0
  %5258 = vmatprep.subr.bf16.mxu0 0
  %5259 = vmatpush2.bf16.msra.mxu0 0
  %5260 = vmatprep.subr.bf16.mxu0 0
  %5261 = vmatpush2.bf16.msra.mxu0 0
  %5262 = vmatprep.subr.bf16.mxu0 0
  %5263 = vmatpush2.bf16.msra.mxu0 0
  %5264 = vmatprep.subr.bf16.mxu0 0
  %5265 = vmatpush2.bf16.msra.mxu0 0
  %5266 = vmatprep.subr.bf16.mxu0 0
  %5267 = vmatpush2.bf16.msra.mxu0 0
  %5268 = vmatprep.subr.bf16.mxu0 0
  %5269 = vmatpush2.bf16.msra.mxu0 0
  %5270 = vmatprep.mubr.bf16.mxu0 0
  %5271 = vmatmul.mubr.bf16.gmra.mxu0 %v5236
  %v5272 = vpop.f32.mrf.mxu0
  %v5273 = vadd.f32 %v5221, %v5272
  %v5274 = vpop.f32.mrf.mxu0
  %v5275 = vpop.f32.mrf.mxu0
  %v5276 = vadd.f32 %v5221, %v5275
  %v5277 = vpop.f32.mrf.mxu0
  %5278 = vdwg.mxu0
  %v5279 = vadd.f32 %v3727, %v5273
  %v5280 = vadd.f32 %v3728, %v5276
  %s5281 = scalar_lea.vmem %s9, 2
  %v5282 = vld [vmem:[%s5281] sm:$0x1]
  %s5283 = scalar_lea.vmem %s10, 2
  %v5284 = vld [vmem:[%s5283] sm:$0x1]
  %v5285 = vsel %vm165, %v5279, 0.0
  %5286 = vadd.xlane.f32.xlu0 %v5285
  %v5287 = vpop.xlane.xlu0 %5286
  %v5288 = vsel %vm165, %v5280, 0.0
  %5289 = vadd.xlane.f32.xlu0 %v5288
  %v5290 = vpop.xlane.xlu0 %5289
  %v5291 = vmul.f32 %v5287, %v172
  %v5292 = vmul.f32 %v5290, %v172
  %v5293 = vsub.f32 %v5279, %v5291
  %v5294 = vsub.f32 %v5280, %v5292
  %v5295 = vmul.f32 %v5293, %v5293
  %v5296 = vmul.f32 %v5294, %v5294
  %v5297 = vsel %vm165, %v5295, 0.0
  %5298 = vadd.xlane.f32.xlu0 %v5297
  %v5299 = vpop.xlane.xlu0 %5298
  %v5300 = vsel %vm165, %v5296, 0.0
  %5301 = vadd.xlane.f32.xlu0 %v5300
  %v5302 = vpop.xlane.xlu0 %5301
  %v5303 = vmul.f32 %v5299, 0.032258064
  %v5304 = vmul.f32 %v5302, 0.032258064
  %v5305 = vadd.f32 %v5303, 1e-12
  %v5306 = vadd.f32 %v5304, 1e-12
  %v5307 = vrcp.pop %v5305
  %v5308 = vmul.f32 %v5293, %v5307
  %v5309 = vrcp.pop %v5306
  %v5310 = vmul.f32 %v5294, %v5309
  %v5312 = vlaneseq
  %v5313 = vshrl.u32 %v5312, 7
  %v5314 = vsub.s32 0, %v5313
  %v5315 = vrot.slane %v5282, %v5314
  %v5317 = vmul.f32 %v5315, %v5308
  %v5318 = vmul.f32 %v5315, %v5310
  %v5320 = vlaneseq
  %v5321 = vshrl.u32 %v5320, 7
  %v5322 = vsub.s32 0, %v5321
  %v5323 = vrot.slane %v5284, %v5322
  %v5325 = vadd.f32 %v5317, %v5323
  %v5326 = vadd.f32 %v5318, %v5323
  %v5327 = vpack.c.bf16 %v5326, %v5325
  %s5328 = scalar_lea.vmem %s11, 32
  %v5329 = vld [vmem:[%s5328] sm:$0xf]
  %v5330 = vld [vmem:[%s5328 + $0x4] sm:$0xf]
  %v5331 = vld [vmem:[%s5328 + $0x8] sm:$0xf]
  %v5332 = vld [vmem:[%s5328 + $0xc] sm:$0xf]
  %s5333 = scalar_lea.vmem %s12, 2
  %v5334 = vld [vmem:[%s5333] sm:$0x1]
  %v5336 = vlaneseq
  %v5337 = vshrl.u32 %v5336, 7
  %v5338 = vsub.s32 0, %v5337
  %v5339 = vrot.slane %v5334, %v5338
  %v5345 = vunpack.c.l.b16 %v5329
  %v5346 = vunpack.c.l.b16 %v5330
  %v5347 = vunpack.c.l.b16 %v5331
  %v5348 = vunpack.c.l.b16 %v5332
  %v5349 = vpack.c.b16 %v5346, %v5345
  %v5350 = vpack.c.b16 %v5348, %v5347
  %v5354 = vsel %vm165, %v5327, 0
  %5356 = vmatprep.subr.bf16.mxu0 0
  %5357 = vmatpush1.bf16.msra.mxu0 0
  %5358 = vmatprep.subr.bf16.mxu0 0
  %5359 = vmatpush1.bf16.msra.mxu0 0
  %5360 = vmatprep.subr.bf16.mxu0 0
  %5361 = vmatpush1.bf16.msra.mxu0 0
  %5362 = vmatprep.subr.bf16.mxu0 0
  %5363 = vmatpush1.bf16.msra.mxu0 0
  %5364 = vmatprep.subr.bf16.mxu0 0
  %5365 = vmatpush1.bf16.msra.mxu0 0
  %5366 = vmatprep.subr.bf16.mxu0 0
  %5367 = vmatpush1.bf16.msra.mxu0 0
  %5368 = vmatprep.subr.bf16.mxu0 0
  %5369 = vmatpush1.bf16.msra.mxu0 %v5350
  %5370 = vmatprep.subr.bf16.mxu0 0
  %5371 = vmatpush1.bf16.msra.mxu0 %v5349
  %5372 = vmatprep.subr.bf16.mxu0 0
  %5373 = vmatpush2.bf16.msra.mxu0 0
  %5374 = vmatprep.subr.bf16.mxu0 0
  %5375 = vmatpush2.bf16.msra.mxu0 0
  %5376 = vmatprep.subr.bf16.mxu0 0
  %5377 = vmatpush2.bf16.msra.mxu0 0
  %5378 = vmatprep.subr.bf16.mxu0 0
  %5379 = vmatpush2.bf16.msra.mxu0 0
  %5380 = vmatprep.subr.bf16.mxu0 0
  %5381 = vmatpush2.bf16.msra.mxu0 0
  %5382 = vmatprep.subr.bf16.mxu0 0
  %5383 = vmatpush2.bf16.msra.mxu0 0
  %5384 = vmatprep.subr.bf16.mxu0 0
  %5385 = vmatpush2.bf16.msra.mxu0 0
  %5386 = vmatprep.subr.bf16.mxu0 0
  %5387 = vmatpush2.bf16.msra.mxu0 0
  %5388 = vmatprep.mubr.bf16.mxu0 0
  %5389 = vmatmul.mubr.bf16.gmra.mxu0 %v5354
  %v5390 = vpop.f32.mrf.mxu0
  %v5391 = vadd.f32 %v5339, %v5390
  %v5392 = vpop.f32.mrf.mxu0
  %v5393 = vpop.f32.mrf.mxu0
  %v5394 = vadd.f32 %v5339, %v5393
  %v5395 = vpop.f32.mrf.mxu0
  %5396 = vdwg.mxu0
  %v5397 = vmax.f32 %v5391, 0.0
  %v5398 = vmax.f32 %v5394, 0.0
  %v5399 = vpack.c.bf16 %v5398, %v5397
  %s5400 = scalar_lea.vmem %s13, 128
  %v5401 = vld [vmem:[%s5400] sm:$0xf]
  %v5402 = vld [vmem:[%s5400 + $0x4] sm:$0xf]
  %v5403 = vld [vmem:[%s5400 + $0x8] sm:$0xf]
  %v5404 = vld [vmem:[%s5400 + $0xc] sm:$0xf]
  %v5405 = vld [vmem:[%s5400 + $0x10] sm:$0xf]
  %v5406 = vld [vmem:[%s5400 + $0x14] sm:$0xf]
  %v5407 = vld [vmem:[%s5400 + $0x18] sm:$0xf]
  %v5408 = vld [vmem:[%s5400 + $0x1c] sm:$0xf]
  %v5409 = vld [vmem:[%s5400 + $0x20] sm:$0xf]
  %v5410 = vld [vmem:[%s5400 + $0x24] sm:$0xf]
  %v5411 = vld [vmem:[%s5400 + $0x28] sm:$0xf]
  %v5412 = vld [vmem:[%s5400 + $0x2c] sm:$0xf]
  %v5413 = vld [vmem:[%s5400 + $0x30] sm:$0xf]
  %v5414 = vld [vmem:[%s5400 + $0x34] sm:$0xf]
  %v5415 = vld [vmem:[%s5400 + $0x38] sm:$0xf]
  %v5416 = vld [vmem:[%s5400 + $0x3c] sm:$0xf]
  %s5417 = scalar_lea.vmem %s14, 2
  %v5418 = vld [vmem:[%s5417] sm:$0x1]
  %v5420 = vlaneseq
  %v5421 = vshrl.u32 %v5420, 7
  %v5422 = vsub.s32 0, %v5421
  %v5423 = vrot.slane %v5418, %v5422
  %v5441 = vunpack.c.l.b16 %v5401
  %v5442 = vunpack.c.l.b16 %v5402
  %v5443 = vunpack.c.l.b16 %v5403
  %v5444 = vunpack.c.l.b16 %v5404
  %v5445 = vunpack.c.l.b16 %v5405
  %v5446 = vunpack.c.l.b16 %v5406
  %v5447 = vunpack.c.l.b16 %v5407
  %v5448 = vunpack.c.l.b16 %v5408
  %v5449 = vunpack.c.l.b16 %v5409
  %v5450 = vunpack.c.l.b16 %v5410
  %v5451 = vunpack.c.l.b16 %v5411
  %v5452 = vunpack.c.l.b16 %v5412
  %v5453 = vunpack.c.l.b16 %v5413
  %v5454 = vunpack.c.l.b16 %v5414
  %v5455 = vunpack.c.l.b16 %v5415
  %v5456 = vunpack.c.l.b16 %v5416
  %v5457 = vpack.c.b16 %v5442, %v5441
  %v5458 = vpack.c.b16 %v5444, %v5443
  %v5459 = vpack.c.b16 %v5446, %v5445
  %v5460 = vpack.c.b16 %v5448, %v5447
  %v5461 = vpack.c.b16 %v5450, %v5449
  %v5462 = vpack.c.b16 %v5452, %v5451
  %v5463 = vpack.c.b16 %v5454, %v5453
  %v5464 = vpack.c.b16 %v5456, %v5455
  %5473 = vmatprep.subr.bf16.mxu0 0
  %5474 = vmatpush1.bf16.msra.mxu0 %v5464
  %5475 = vmatprep.subr.bf16.mxu0 0
  %5476 = vmatpush1.bf16.msra.mxu0 %v5463
  %5477 = vmatprep.subr.bf16.mxu0 0
  %5478 = vmatpush1.bf16.msra.mxu0 %v5462
  %5479 = vmatprep.subr.bf16.mxu0 0
  %5480 = vmatpush1.bf16.msra.mxu0 %v5461
  %5481 = vmatprep.subr.bf16.mxu0 0
  %5482 = vmatpush1.bf16.msra.mxu0 %v5460
  %5483 = vmatprep.subr.bf16.mxu0 0
  %5484 = vmatpush1.bf16.msra.mxu0 %v5459
  %5485 = vmatprep.subr.bf16.mxu0 0
  %5486 = vmatpush1.bf16.msra.mxu0 %v5458
  %5487 = vmatprep.subr.bf16.mxu0 0
  %5488 = vmatpush1.bf16.msra.mxu0 %v5457
  %5489 = vmatprep.subr.bf16.mxu0 0
  %5490 = vmatpush2.bf16.msra.mxu0 0
  %5491 = vmatprep.subr.bf16.mxu0 0
  %5492 = vmatpush2.bf16.msra.mxu0 0
  %5493 = vmatprep.subr.bf16.mxu0 0
  %5494 = vmatpush2.bf16.msra.mxu0 0
  %5495 = vmatprep.subr.bf16.mxu0 0
  %5496 = vmatpush2.bf16.msra.mxu0 0
  %5497 = vmatprep.subr.bf16.mxu0 0
  %5498 = vmatpush2.bf16.msra.mxu0 0
  %5499 = vmatprep.subr.bf16.mxu0 0
  %5500 = vmatpush2.bf16.msra.mxu0 0
  %5501 = vmatprep.subr.bf16.mxu0 0
  %5502 = vmatpush2.bf16.msra.mxu0 0
  %5503 = vmatprep.subr.bf16.mxu0 0
  %5504 = vmatpush2.bf16.msra.mxu0 0
  %5505 = vmatprep.mubr.bf16.mxu0 0
  %5506 = vmatmul.mubr.bf16.gmra.mxu0 %v5399
  %v5507 = vpop.f32.mrf.mxu0
  %v5508 = vadd.f32 %v5423, %v5507
  %v5509 = vpop.f32.mrf.mxu0
  %v5510 = vpop.f32.mrf.mxu0
  %v5511 = vadd.f32 %v5423, %v5510
  %v5512 = vpop.f32.mrf.mxu0
  %5513 = vdwg.mxu0
  %v5514 = vadd.f32 %v3727, %v5508
  %v5515 = vadd.f32 %v3728, %v5511
  %s5516 = scalar_lea.vmem %s3, 3
  %v5517 = vld [vmem:[%s5516] sm:$0x1]
  %s5518 = scalar_lea.vmem %s4, 3
  %v5519 = vld [vmem:[%s5518] sm:$0x1]
  %v5520 = vsel %vm165, %v5514, 0.0
  %5521 = vadd.xlane.f32.xlu0 %v5520
  %v5522 = vpop.xlane.xlu0 %5521
  %v5523 = vsel %vm165, %v5515, 0.0
  %5524 = vadd.xlane.f32.xlu0 %v5523
  %v5525 = vpop.xlane.xlu0 %5524
  %v5526 = vmul.f32 %v5522, %v172
  %v5527 = vmul.f32 %v5525, %v172
  %v5528 = vsub.f32 %v5514, %v5526
  %v5529 = vsub.f32 %v5515, %v5527
  %v5530 = vmul.f32 %v5528, %v5528
  %v5531 = vmul.f32 %v5529, %v5529
  %v5532 = vsel %vm165, %v5530, 0.0
  %5533 = vadd.xlane.f32.xlu0 %v5532
  %v5534 = vpop.xlane.xlu0 %5533
  %v5535 = vsel %vm165, %v5531, 0.0
  %5536 = vadd.xlane.f32.xlu0 %v5535
  %v5537 = vpop.xlane.xlu0 %5536
  %v5538 = vmul.f32 %v5534, 0.032258064
  %v5539 = vmul.f32 %v5537, 0.032258064
  %v5540 = vadd.f32 %v5538, 1e-12
  %v5541 = vadd.f32 %v5539, 1e-12
  %v5542 = vrcp.pop %v5540
  %v5543 = vmul.f32 %v5528, %v5542
  %v5544 = vrcp.pop %v5541
  %v5545 = vmul.f32 %v5529, %v5544
  %v5547 = vlaneseq
  %v5548 = vshrl.u32 %v5547, 7
  %v5549 = vsub.s32 0, %v5548
  %v5550 = vrot.slane %v5517, %v5549
  %v5552 = vmul.f32 %v5550, %v5543
  %v5553 = vmul.f32 %v5550, %v5545
  %v5555 = vlaneseq
  %v5556 = vshrl.u32 %v5555, 7
  %v5557 = vsub.s32 0, %v5556
  %v5558 = vrot.slane %v5519, %v5557
  %v5560 = vadd.f32 %v5552, %v5558
  %v5561 = vadd.f32 %v5553, %v5558
  %v5562 = vpack.c.bf16 %v5561, %v5560
  %s5563 = scalar_lea.vmem %s5, 48
  %v5564 = vld [vmem:[%s5563] sm:$0xf]
  %v5565 = vld [vmem:[%s5563 + $0x4] sm:$0xf]
  %v5566 = vld [vmem:[%s5563 + $0x8] sm:$0xf]
  %v5567 = vld [vmem:[%s5563 + $0xc] sm:$0xf]
  %s5568 = scalar_lea.vmem %s6, 3
  %v5569 = vld [vmem:[%s5568] sm:$0x1]
  %v5571 = vlaneseq
  %v5572 = vshrl.u32 %v5571, 7
  %v5573 = vsub.s32 0, %v5572
  %v5574 = vrot.slane %v5569, %v5573
  %v5580 = vunpack.c.l.b16 %v5564
  %v5581 = vunpack.c.l.b16 %v5565
  %v5582 = vunpack.c.l.b16 %v5566
  %v5583 = vunpack.c.l.b16 %v5567
  %v5584 = vpack.c.b16 %v5581, %v5580
  %v5585 = vpack.c.b16 %v5583, %v5582
  %v5589 = vsel %vm165, %v5562, 0
  %5591 = vmatprep.subr.bf16.mxu0 0
  %5592 = vmatpush1.bf16.msra.mxu0 0
  %5593 = vmatprep.subr.bf16.mxu0 0
  %5594 = vmatpush1.bf16.msra.mxu0 0
  %5595 = vmatprep.subr.bf16.mxu0 0
  %5596 = vmatpush1.bf16.msra.mxu0 0
  %5597 = vmatprep.subr.bf16.mxu0 0
  %5598 = vmatpush1.bf16.msra.mxu0 0
  %5599 = vmatprep.subr.bf16.mxu0 0
  %5600 = vmatpush1.bf16.msra.mxu0 0
  %5601 = vmatprep.subr.bf16.mxu0 0
  %5602 = vmatpush1.bf16.msra.mxu0 0
  %5603 = vmatprep.subr.bf16.mxu0 0
  %5604 = vmatpush1.bf16.msra.mxu0 %v5585
  %5605 = vmatprep.subr.bf16.mxu0 0
  %5606 = vmatpush1.bf16.msra.mxu0 %v5584
  %5607 = vmatprep.subr.bf16.mxu0 0
  %5608 = vmatpush2.bf16.msra.mxu0 0
  %5609 = vmatprep.subr.bf16.mxu0 0
  %5610 = vmatpush2.bf16.msra.mxu0 0
  %5611 = vmatprep.subr.bf16.mxu0 0
  %5612 = vmatpush2.bf16.msra.mxu0 0
  %5613 = vmatprep.subr.bf16.mxu0 0
  %5614 = vmatpush2.bf16.msra.mxu0 0
  %5615 = vmatprep.subr.bf16.mxu0 0
  %5616 = vmatpush2.bf16.msra.mxu0 0
  %5617 = vmatprep.subr.bf16.mxu0 0
  %5618 = vmatpush2.bf16.msra.mxu0 0
  %5619 = vmatprep.subr.bf16.mxu0 0
  %5620 = vmatpush2.bf16.msra.mxu0 0
  %5621 = vmatprep.subr.bf16.mxu0 0
  %5622 = vmatpush2.bf16.msra.mxu0 0
  %5623 = vmatprep.mubr.bf16.mxu0 0
  %5624 = vmatmul.mubr.bf16.gmra.mxu0 %v5589
  %v5625 = vpop.f32.mrf.mxu0
  %v5626 = vadd.f32 %v5574, %v5625
  %v5627 = vpop.f32.mrf.mxu0
  %v5628 = vpop.f32.mrf.mxu0
  %v5629 = vadd.f32 %v5574, %v5628
  %v5630 = vpop.f32.mrf.mxu0
  %5631 = vdwg.mxu0
  %5634 = vrot.lane.b32.xlu0 %v5626, 120
  %v5635 = vpop.permute.xlu0 %5634
  %5636 = vrot.lane.b32.xlu0 %v5629, 120
  %v5637 = vpop.permute.xlu0 %5636
  %5638 = vrot.lane.b32.xlu0 %v5626, 112
  %v5639 = vpop.permute.xlu0 %5638
  %5640 = vrot.lane.b32.xlu0 %v5629, 112
  %v5641 = vpop.permute.xlu0 %5640
  %5642 = vrot.lane.b32.xlu0 %v5626, 104
  %v5643 = vpop.permute.xlu0 %5642
  %5644 = vrot.lane.b32.xlu0 %v5629, 104
  %v5645 = vpop.permute.xlu0 %5644
  %5646 = vrot.lane.b32.xlu0 %v5626, 96
  %v5647 = vpop.permute.xlu0 %5646
  %v5648 = vsel %vm293, %v5626, 0
  %v5650 = vsel %vm293, %v5647, 0
  %5652 = vmatprep.subr.mxu0 0.0
  %5653 = vmatpush1.xpose.msra.mxu0 0.0
  %5654 = vmatprep.subr.mxu0 0.0
  %5655 = vmatpush1.xpose.msra.mxu0 0.0
  %5656 = vmatprep.subr.mxu0 0.0
  %5657 = vmatpush1.xpose.msra.mxu0 0.0
  %5658 = vmatprep.subr.mxu0 0.0
  %5659 = vmatpush1.xpose.msra.mxu0 0.0
  %5660 = vmatprep.subr.mxu0 0.0
  %5661 = vmatpush1.xpose.msra.mxu0 0.0
  %5662 = vmatprep.subr.mxu0 0.0
  %5663 = vmatpush1.xpose.msra.mxu0 0.0
  %5664 = vmatprep.subr.mxu0 0.0
  %5665 = vmatpush1.xpose.msra.mxu0 0.0
  %5666 = vmatprep.subr.mxu0 0.0
  %5667 = vmatpush1.xpose.msra.mxu0 0.0
  %5668 = vmatprep.subr.mxu0 0.0
  %5669 = vmatpush1.xpose.msra.mxu0 0.0
  %5670 = vmatprep.subr.mxu0 0.0
  %5671 = vmatpush1.xpose.msra.mxu0 0.0
  %5672 = vmatprep.subr.mxu0 0.0
  %5673 = vmatpush1.xpose.msra.mxu0 0.0
  %5674 = vmatprep.subr.mxu0 0.0
  %5675 = vmatpush1.xpose.msra.mxu0 0.0
  %5676 = vmatprep.subr.mxu0 0.0
  %5677 = vmatpush1.xpose.msra.mxu0 0.0
  %5678 = vmatprep.subr.mxu0 0.0
  %5679 = vmatpush1.xpose.msra.mxu0 0.0
  %5680 = vmatprep.subr.mxu0 0.0
  %5681 = vmatpush1.xpose.msra.mxu0 0.0
  %5682 = vmatprep.subr.mxu0 0.0
  %5683 = vmatpush1.xpose.msra.mxu0 %v5650
  %5684 = vmatprep.subr.mxu0 0.0
  %5685 = vmatpush2.xpose.msra.mxu0 0.0
  %5686 = vmatprep.subr.mxu0 0.0
  %5687 = vmatpush2.xpose.msra.mxu0 0.0
  %5688 = vmatprep.subr.mxu0 0.0
  %5689 = vmatpush2.xpose.msra.mxu0 0.0
  %5690 = vmatprep.subr.mxu0 0.0
  %5691 = vmatpush2.xpose.msra.mxu0 0.0
  %5692 = vmatprep.subr.mxu0 0.0
  %5693 = vmatpush2.xpose.msra.mxu0 0.0
  %5694 = vmatprep.subr.mxu0 0.0
  %5695 = vmatpush2.xpose.msra.mxu0 0.0
  %5696 = vmatprep.subr.mxu0 0.0
  %5697 = vmatpush2.xpose.msra.mxu0 0.0
  %5698 = vmatprep.subr.mxu0 0.0
  %5699 = vmatpush2.xpose.msra.mxu0 0.0
  %5700 = vmatprep.subr.mxu0 0.0
  %5701 = vmatpush2.xpose.msra.mxu0 0.0
  %5702 = vmatprep.subr.mxu0 0.0
  %5703 = vmatpush2.xpose.msra.mxu0 0.0
  %5704 = vmatprep.subr.mxu0 0.0
  %5705 = vmatpush2.xpose.msra.mxu0 0.0
  %5706 = vmatprep.subr.mxu0 0.0
  %5707 = vmatpush2.xpose.msra.mxu0 0.0
  %5708 = vmatprep.subr.mxu0 0.0
  %5709 = vmatpush2.xpose.msra.mxu0 0.0
  %5710 = vmatprep.subr.mxu0 0.0
  %5711 = vmatpush2.xpose.msra.mxu0 0.0
  %5712 = vmatprep.subr.mxu0 0.0
  %5713 = vmatpush2.xpose.msra.mxu0 0.0
  %5714 = vmatprep.subr.mxu0 0.0
  %5715 = vmatpush2.xpose.msra.mxu0 0.0
  %5716 = vmatprep.mubr.f32.mxu0 0.0
  %5717 = vmatmul.mubr.f32.gmra.mxu0 %v5648
  %v5718 = vpop.f32.mrf.mxu0
  %v5719 = vadd.f32 0.0, %v5718
  %v5720 = vpop.f32.mrf.mxu0
  %5721 = vdwg.mxu0
  %5722 = vrot.lane.b32.xlu0 %v5629, 96
  %v5723 = vpop.permute.xlu0 %5722
  %v5724 = vsel %vm293, %v5629, 0
  %v5726 = vsel %vm293, %v5723, 0
  %5728 = vmatprep.subr.mxu0 0.0
  %5729 = vmatpush1.xpose.msra.mxu0 0.0
  %5730 = vmatprep.subr.mxu0 0.0
  %5731 = vmatpush1.xpose.msra.mxu0 0.0
  %5732 = vmatprep.subr.mxu0 0.0
  %5733 = vmatpush1.xpose.msra.mxu0 0.0
  %5734 = vmatprep.subr.mxu0 0.0
  %5735 = vmatpush1.xpose.msra.mxu0 0.0
  %5736 = vmatprep.subr.mxu0 0.0
  %5737 = vmatpush1.xpose.msra.mxu0 0.0
  %5738 = vmatprep.subr.mxu0 0.0
  %5739 = vmatpush1.xpose.msra.mxu0 0.0
  %5740 = vmatprep.subr.mxu0 0.0
  %5741 = vmatpush1.xpose.msra.mxu0 0.0
  %5742 = vmatprep.subr.mxu0 0.0
  %5743 = vmatpush1.xpose.msra.mxu0 0.0
  %5744 = vmatprep.subr.mxu0 0.0
  %5745 = vmatpush1.xpose.msra.mxu0 0.0
  %5746 = vmatprep.subr.mxu0 0.0
  %5747 = vmatpush1.xpose.msra.mxu0 0.0
  %5748 = vmatprep.subr.mxu0 0.0
  %5749 = vmatpush1.xpose.msra.mxu0 0.0
  %5750 = vmatprep.subr.mxu0 0.0
  %5751 = vmatpush1.xpose.msra.mxu0 0.0
  %5752 = vmatprep.subr.mxu0 0.0
  %5753 = vmatpush1.xpose.msra.mxu0 0.0
  %5754 = vmatprep.subr.mxu0 0.0
  %5755 = vmatpush1.xpose.msra.mxu0 0.0
  %5756 = vmatprep.subr.mxu0 0.0
  %5757 = vmatpush1.xpose.msra.mxu0 0.0
  %5758 = vmatprep.subr.mxu0 0.0
  %5759 = vmatpush1.xpose.msra.mxu0 %v5726
  %5760 = vmatprep.subr.mxu0 0.0
  %5761 = vmatpush2.xpose.msra.mxu0 0.0
  %5762 = vmatprep.subr.mxu0 0.0
  %5763 = vmatpush2.xpose.msra.mxu0 0.0
  %5764 = vmatprep.subr.mxu0 0.0
  %5765 = vmatpush2.xpose.msra.mxu0 0.0
  %5766 = vmatprep.subr.mxu0 0.0
  %5767 = vmatpush2.xpose.msra.mxu0 0.0
  %5768 = vmatprep.subr.mxu0 0.0
  %5769 = vmatpush2.xpose.msra.mxu0 0.0
  %5770 = vmatprep.subr.mxu0 0.0
  %5771 = vmatpush2.xpose.msra.mxu0 0.0
  %5772 = vmatprep.subr.mxu0 0.0
  %5773 = vmatpush2.xpose.msra.mxu0 0.0
  %5774 = vmatprep.subr.mxu0 0.0
  %5775 = vmatpush2.xpose.msra.mxu0 0.0
  %5776 = vmatprep.subr.mxu0 0.0
  %5777 = vmatpush2.xpose.msra.mxu0 0.0
  %5778 = vmatprep.subr.mxu0 0.0
  %5779 = vmatpush2.xpose.msra.mxu0 0.0
  %5780 = vmatprep.subr.mxu0 0.0
  %5781 = vmatpush2.xpose.msra.mxu0 0.0
  %5782 = vmatprep.subr.mxu0 0.0
  %5783 = vmatpush2.xpose.msra.mxu0 0.0
  %5784 = vmatprep.subr.mxu0 0.0
  %5785 = vmatpush2.xpose.msra.mxu0 0.0
  %5786 = vmatprep.subr.mxu0 0.0
  %5787 = vmatpush2.xpose.msra.mxu0 0.0
  %5788 = vmatprep.subr.mxu0 0.0
  %5789 = vmatpush2.xpose.msra.mxu0 0.0
  %5790 = vmatprep.subr.mxu0 0.0
  %5791 = vmatpush2.xpose.msra.mxu0 0.0
  %5792 = vmatprep.mubr.f32.mxu0 0.0
  %5793 = vmatmul.mubr.f32.gmra.mxu0 %v5724
  %v5794 = vpop.f32.mrf.mxu0
  %v5795 = vadd.f32 0.0, %v5794
  %v5796 = vpop.f32.mrf.mxu0
  %5797 = vdwg.mxu0
  %5798 = vrot.lane.b32.xlu0 %v5635, 96
  %v5799 = vpop.permute.xlu0 %5798
  %v5800 = vsel %vm293, %v5635, 0
  %v5802 = vsel %vm293, %v5799, 0
  %5804 = vmatprep.subr.mxu0 0.0
  %5805 = vmatpush1.xpose.msra.mxu0 0.0
  %5806 = vmatprep.subr.mxu0 0.0
  %5807 = vmatpush1.xpose.msra.mxu0 0.0
  %5808 = vmatprep.subr.mxu0 0.0
  %5809 = vmatpush1.xpose.msra.mxu0 0.0
  %5810 = vmatprep.subr.mxu0 0.0
  %5811 = vmatpush1.xpose.msra.mxu0 0.0
  %5812 = vmatprep.subr.mxu0 0.0
  %5813 = vmatpush1.xpose.msra.mxu0 0.0
  %5814 = vmatprep.subr.mxu0 0.0
  %5815 = vmatpush1.xpose.msra.mxu0 0.0
  %5816 = vmatprep.subr.mxu0 0.0
  %5817 = vmatpush1.xpose.msra.mxu0 0.0
  %5818 = vmatprep.subr.mxu0 0.0
  %5819 = vmatpush1.xpose.msra.mxu0 0.0
  %5820 = vmatprep.subr.mxu0 0.0
  %5821 = vmatpush1.xpose.msra.mxu0 0.0
  %5822 = vmatprep.subr.mxu0 0.0
  %5823 = vmatpush1.xpose.msra.mxu0 0.0
  %5824 = vmatprep.subr.mxu0 0.0
  %5825 = vmatpush1.xpose.msra.mxu0 0.0
  %5826 = vmatprep.subr.mxu0 0.0
  %5827 = vmatpush1.xpose.msra.mxu0 0.0
  %5828 = vmatprep.subr.mxu0 0.0
  %5829 = vmatpush1.xpose.msra.mxu0 0.0
  %5830 = vmatprep.subr.mxu0 0.0
  %5831 = vmatpush1.xpose.msra.mxu0 0.0
  %5832 = vmatprep.subr.mxu0 0.0
  %5833 = vmatpush1.xpose.msra.mxu0 0.0
  %5834 = vmatprep.subr.mxu0 0.0
  %5835 = vmatpush1.xpose.msra.mxu0 %v5802
  %5836 = vmatprep.subr.mxu0 0.0
  %5837 = vmatpush2.xpose.msra.mxu0 0.0
  %5838 = vmatprep.subr.mxu0 0.0
  %5839 = vmatpush2.xpose.msra.mxu0 0.0
  %5840 = vmatprep.subr.mxu0 0.0
  %5841 = vmatpush2.xpose.msra.mxu0 0.0
  %5842 = vmatprep.subr.mxu0 0.0
  %5843 = vmatpush2.xpose.msra.mxu0 0.0
  %5844 = vmatprep.subr.mxu0 0.0
  %5845 = vmatpush2.xpose.msra.mxu0 0.0
  %5846 = vmatprep.subr.mxu0 0.0
  %5847 = vmatpush2.xpose.msra.mxu0 0.0
  %5848 = vmatprep.subr.mxu0 0.0
  %5849 = vmatpush2.xpose.msra.mxu0 0.0
  %5850 = vmatprep.subr.mxu0 0.0
  %5851 = vmatpush2.xpose.msra.mxu0 0.0
  %5852 = vmatprep.subr.mxu0 0.0
  %5853 = vmatpush2.xpose.msra.mxu0 0.0
  %5854 = vmatprep.subr.mxu0 0.0
  %5855 = vmatpush2.xpose.msra.mxu0 0.0
  %5856 = vmatprep.subr.mxu0 0.0
  %5857 = vmatpush2.xpose.msra.mxu0 0.0
  %5858 = vmatprep.subr.mxu0 0.0
  %5859 = vmatpush2.xpose.msra.mxu0 0.0
  %5860 = vmatprep.subr.mxu0 0.0
  %5861 = vmatpush2.xpose.msra.mxu0 0.0
  %5862 = vmatprep.subr.mxu0 0.0
  %5863 = vmatpush2.xpose.msra.mxu0 0.0
  %5864 = vmatprep.subr.mxu0 0.0
  %5865 = vmatpush2.xpose.msra.mxu0 0.0
  %5866 = vmatprep.subr.mxu0 0.0
  %5867 = vmatpush2.xpose.msra.mxu0 0.0
  %5868 = vmatprep.mubr.f32.mxu0 0.0
  %5869 = vmatmul.mubr.f32.gmra.mxu0 %v5800
  %v5870 = vpop.f32.mrf.mxu0
  %v5871 = vadd.f32 0.0, %v5870
  %v5872 = vpop.f32.mrf.mxu0
  %5873 = vdwg.mxu0
  %5874 = vrot.lane.b32.xlu0 %v5637, 96
  %v5875 = vpop.permute.xlu0 %5874
  %v5876 = vsel %vm293, %v5637, 0
  %v5878 = vsel %vm293, %v5875, 0
  %5880 = vmatprep.subr.mxu0 0.0
  %5881 = vmatpush1.xpose.msra.mxu0 0.0
  %5882 = vmatprep.subr.mxu0 0.0
  %5883 = vmatpush1.xpose.msra.mxu0 0.0
  %5884 = vmatprep.subr.mxu0 0.0
  %5885 = vmatpush1.xpose.msra.mxu0 0.0
  %5886 = vmatprep.subr.mxu0 0.0
  %5887 = vmatpush1.xpose.msra.mxu0 0.0
  %5888 = vmatprep.subr.mxu0 0.0
  %5889 = vmatpush1.xpose.msra.mxu0 0.0
  %5890 = vmatprep.subr.mxu0 0.0
  %5891 = vmatpush1.xpose.msra.mxu0 0.0
  %5892 = vmatprep.subr.mxu0 0.0
  %5893 = vmatpush1.xpose.msra.mxu0 0.0
  %5894 = vmatprep.subr.mxu0 0.0
  %5895 = vmatpush1.xpose.msra.mxu0 0.0
  %5896 = vmatprep.subr.mxu0 0.0
  %5897 = vmatpush1.xpose.msra.mxu0 0.0
  %5898 = vmatprep.subr.mxu0 0.0
  %5899 = vmatpush1.xpose.msra.mxu0 0.0
  %5900 = vmatprep.subr.mxu0 0.0
  %5901 = vmatpush1.xpose.msra.mxu0 0.0
  %5902 = vmatprep.subr.mxu0 0.0
  %5903 = vmatpush1.xpose.msra.mxu0 0.0
  %5904 = vmatprep.subr.mxu0 0.0
  %5905 = vmatpush1.xpose.msra.mxu0 0.0
  %5906 = vmatprep.subr.mxu0 0.0
  %5907 = vmatpush1.xpose.msra.mxu0 0.0
  %5908 = vmatprep.subr.mxu0 0.0
  %5909 = vmatpush1.xpose.msra.mxu0 0.0
  %5910 = vmatprep.subr.mxu0 0.0
  %5911 = vmatpush1.xpose.msra.mxu0 %v5878
  %5912 = vmatprep.subr.mxu0 0.0
  %5913 = vmatpush2.xpose.msra.mxu0 0.0
  %5914 = vmatprep.subr.mxu0 0.0
  %5915 = vmatpush2.xpose.msra.mxu0 0.0
  %5916 = vmatprep.subr.mxu0 0.0
  %5917 = vmatpush2.xpose.msra.mxu0 0.0
  %5918 = vmatprep.subr.mxu0 0.0
  %5919 = vmatpush2.xpose.msra.mxu0 0.0
  %5920 = vmatprep.subr.mxu0 0.0
  %5921 = vmatpush2.xpose.msra.mxu0 0.0
  %5922 = vmatprep.subr.mxu0 0.0
  %5923 = vmatpush2.xpose.msra.mxu0 0.0
  %5924 = vmatprep.subr.mxu0 0.0
  %5925 = vmatpush2.xpose.msra.mxu0 0.0
  %5926 = vmatprep.subr.mxu0 0.0
  %5927 = vmatpush2.xpose.msra.mxu0 0.0
  %5928 = vmatprep.subr.mxu0 0.0
  %5929 = vmatpush2.xpose.msra.mxu0 0.0
  %5930 = vmatprep.subr.mxu0 0.0
  %5931 = vmatpush2.xpose.msra.mxu0 0.0
  %5932 = vmatprep.subr.mxu0 0.0
  %5933 = vmatpush2.xpose.msra.mxu0 0.0
  %5934 = vmatprep.subr.mxu0 0.0
  %5935 = vmatpush2.xpose.msra.mxu0 0.0
  %5936 = vmatprep.subr.mxu0 0.0
  %5937 = vmatpush2.xpose.msra.mxu0 0.0
  %5938 = vmatprep.subr.mxu0 0.0
  %5939 = vmatpush2.xpose.msra.mxu0 0.0
  %5940 = vmatprep.subr.mxu0 0.0
  %5941 = vmatpush2.xpose.msra.mxu0 0.0
  %5942 = vmatprep.subr.mxu0 0.0
  %5943 = vmatpush2.xpose.msra.mxu0 0.0
  %5944 = vmatprep.mubr.f32.mxu0 0.0
  %5945 = vmatmul.mubr.f32.gmra.mxu0 %v5876
  %v5946 = vpop.f32.mrf.mxu0
  %v5947 = vadd.f32 0.0, %v5946
  %v5948 = vpop.f32.mrf.mxu0
  %5949 = vdwg.mxu0
  %5950 = vrot.lane.b32.xlu0 %v5639, 96
  %v5951 = vpop.permute.xlu0 %5950
  %v5952 = vsel %vm293, %v5639, 0
  %v5954 = vsel %vm293, %v5951, 0
  %5956 = vmatprep.subr.mxu0 0.0
  %5957 = vmatpush1.xpose.msra.mxu0 0.0
  %5958 = vmatprep.subr.mxu0 0.0
  %5959 = vmatpush1.xpose.msra.mxu0 0.0
  %5960 = vmatprep.subr.mxu0 0.0
  %5961 = vmatpush1.xpose.msra.mxu0 0.0
  %5962 = vmatprep.subr.mxu0 0.0
  %5963 = vmatpush1.xpose.msra.mxu0 0.0
  %5964 = vmatprep.subr.mxu0 0.0
  %5965 = vmatpush1.xpose.msra.mxu0 0.0
  %5966 = vmatprep.subr.mxu0 0.0
  %5967 = vmatpush1.xpose.msra.mxu0 0.0
  %5968 = vmatprep.subr.mxu0 0.0
  %5969 = vmatpush1.xpose.msra.mxu0 0.0
  %5970 = vmatprep.subr.mxu0 0.0
  %5971 = vmatpush1.xpose.msra.mxu0 0.0
  %5972 = vmatprep.subr.mxu0 0.0
  %5973 = vmatpush1.xpose.msra.mxu0 0.0
  %5974 = vmatprep.subr.mxu0 0.0
  %5975 = vmatpush1.xpose.msra.mxu0 0.0
  %5976 = vmatprep.subr.mxu0 0.0
  %5977 = vmatpush1.xpose.msra.mxu0 0.0
  %5978 = vmatprep.subr.mxu0 0.0
  %5979 = vmatpush1.xpose.msra.mxu0 0.0
  %5980 = vmatprep.subr.mxu0 0.0
  %5981 = vmatpush1.xpose.msra.mxu0 0.0
  %5982 = vmatprep.subr.mxu0 0.0
  %5983 = vmatpush1.xpose.msra.mxu0 0.0
  %5984 = vmatprep.subr.mxu0 0.0
  %5985 = vmatpush1.xpose.msra.mxu0 0.0
  %5986 = vmatprep.subr.mxu0 0.0
  %5987 = vmatpush1.xpose.msra.mxu0 %v5954
  %5988 = vmatprep.subr.mxu0 0.0
  %5989 = vmatpush2.xpose.msra.mxu0 0.0
  %5990 = vmatprep.subr.mxu0 0.0
  %5991 = vmatpush2.xpose.msra.mxu0 0.0
  %5992 = vmatprep.subr.mxu0 0.0
  %5993 = vmatpush2.xpose.msra.mxu0 0.0
  %5994 = vmatprep.subr.mxu0 0.0
  %5995 = vmatpush2.xpose.msra.mxu0 0.0
  %5996 = vmatprep.subr.mxu0 0.0
  %5997 = vmatpush2.xpose.msra.mxu0 0.0
  %5998 = vmatprep.subr.mxu0 0.0
  %5999 = vmatpush2.xpose.msra.mxu0 0.0
  %6000 = vmatprep.subr.mxu0 0.0
  %6001 = vmatpush2.xpose.msra.mxu0 0.0
  %6002 = vmatprep.subr.mxu0 0.0
  %6003 = vmatpush2.xpose.msra.mxu0 0.0
  %6004 = vmatprep.subr.mxu0 0.0
  %6005 = vmatpush2.xpose.msra.mxu0 0.0
  %6006 = vmatprep.subr.mxu0 0.0
  %6007 = vmatpush2.xpose.msra.mxu0 0.0
  %6008 = vmatprep.subr.mxu0 0.0
  %6009 = vmatpush2.xpose.msra.mxu0 0.0
  %6010 = vmatprep.subr.mxu0 0.0
  %6011 = vmatpush2.xpose.msra.mxu0 0.0
  %6012 = vmatprep.subr.mxu0 0.0
  %6013 = vmatpush2.xpose.msra.mxu0 0.0
  %6014 = vmatprep.subr.mxu0 0.0
  %6015 = vmatpush2.xpose.msra.mxu0 0.0
  %6016 = vmatprep.subr.mxu0 0.0
  %6017 = vmatpush2.xpose.msra.mxu0 0.0
  %6018 = vmatprep.subr.mxu0 0.0
  %6019 = vmatpush2.xpose.msra.mxu0 0.0
  %6020 = vmatprep.mubr.f32.mxu0 0.0
  %6021 = vmatmul.mubr.f32.gmra.mxu0 %v5952
  %v6022 = vpop.f32.mrf.mxu0
  %v6023 = vadd.f32 0.0, %v6022
  %v6024 = vpop.f32.mrf.mxu0
  %6025 = vdwg.mxu0
  %6026 = vrot.lane.b32.xlu0 %v5641, 96
  %v6027 = vpop.permute.xlu0 %6026
  %v6028 = vsel %vm293, %v5641, 0
  %v6030 = vsel %vm293, %v6027, 0
  %6032 = vmatprep.subr.mxu0 0.0
  %6033 = vmatpush1.xpose.msra.mxu0 0.0
  %6034 = vmatprep.subr.mxu0 0.0
  %6035 = vmatpush1.xpose.msra.mxu0 0.0
  %6036 = vmatprep.subr.mxu0 0.0
  %6037 = vmatpush1.xpose.msra.mxu0 0.0
  %6038 = vmatprep.subr.mxu0 0.0
  %6039 = vmatpush1.xpose.msra.mxu0 0.0
  %6040 = vmatprep.subr.mxu0 0.0
  %6041 = vmatpush1.xpose.msra.mxu0 0.0
  %6042 = vmatprep.subr.mxu0 0.0
  %6043 = vmatpush1.xpose.msra.mxu0 0.0
  %6044 = vmatprep.subr.mxu0 0.0
  %6045 = vmatpush1.xpose.msra.mxu0 0.0
  %6046 = vmatprep.subr.mxu0 0.0
  %6047 = vmatpush1.xpose.msra.mxu0 0.0
  %6048 = vmatprep.subr.mxu0 0.0
  %6049 = vmatpush1.xpose.msra.mxu0 0.0
  %6050 = vmatprep.subr.mxu0 0.0
  %6051 = vmatpush1.xpose.msra.mxu0 0.0
  %6052 = vmatprep.subr.mxu0 0.0
  %6053 = vmatpush1.xpose.msra.mxu0 0.0
  %6054 = vmatprep.subr.mxu0 0.0
  %6055 = vmatpush1.xpose.msra.mxu0 0.0
  %6056 = vmatprep.subr.mxu0 0.0
  %6057 = vmatpush1.xpose.msra.mxu0 0.0
  %6058 = vmatprep.subr.mxu0 0.0
  %6059 = vmatpush1.xpose.msra.mxu0 0.0
  %6060 = vmatprep.subr.mxu0 0.0
  %6061 = vmatpush1.xpose.msra.mxu0 0.0
  %6062 = vmatprep.subr.mxu0 0.0
  %6063 = vmatpush1.xpose.msra.mxu0 %v6030
  %6064 = vmatprep.subr.mxu0 0.0
  %6065 = vmatpush2.xpose.msra.mxu0 0.0
  %6066 = vmatprep.subr.mxu0 0.0
  %6067 = vmatpush2.xpose.msra.mxu0 0.0
  %6068 = vmatprep.subr.mxu0 0.0
  %6069 = vmatpush2.xpose.msra.mxu0 0.0
  %6070 = vmatprep.subr.mxu0 0.0
  %6071 = vmatpush2.xpose.msra.mxu0 0.0
  %6072 = vmatprep.subr.mxu0 0.0
  %6073 = vmatpush2.xpose.msra.mxu0 0.0
  %6074 = vmatprep.subr.mxu0 0.0
  %6075 = vmatpush2.xpose.msra.mxu0 0.0
  %6076 = vmatprep.subr.mxu0 0.0
  %6077 = vmatpush2.xpose.msra.mxu0 0.0
  %6078 = vmatprep.subr.mxu0 0.0
  %6079 = vmatpush2.xpose.msra.mxu0 0.0
  %6080 = vmatprep.subr.mxu0 0.0
  %6081 = vmatpush2.xpose.msra.mxu0 0.0
  %6082 = vmatprep.subr.mxu0 0.0
  %6083 = vmatpush2.xpose.msra.mxu0 0.0
  %6084 = vmatprep.subr.mxu0 0.0
  %6085 = vmatpush2.xpose.msra.mxu0 0.0
  %6086 = vmatprep.subr.mxu0 0.0
  %6087 = vmatpush2.xpose.msra.mxu0 0.0
  %6088 = vmatprep.subr.mxu0 0.0
  %6089 = vmatpush2.xpose.msra.mxu0 0.0
  %6090 = vmatprep.subr.mxu0 0.0
  %6091 = vmatpush2.xpose.msra.mxu0 0.0
  %6092 = vmatprep.subr.mxu0 0.0
  %6093 = vmatpush2.xpose.msra.mxu0 0.0
  %6094 = vmatprep.subr.mxu0 0.0
  %6095 = vmatpush2.xpose.msra.mxu0 0.0
  %6096 = vmatprep.mubr.f32.mxu0 0.0
  %6097 = vmatmul.mubr.f32.gmra.mxu0 %v6028
  %v6098 = vpop.f32.mrf.mxu0
  %v6099 = vadd.f32 0.0, %v6098
  %v6100 = vpop.f32.mrf.mxu0
  %6101 = vdwg.mxu0
  %6102 = vrot.lane.b32.xlu0 %v5643, 96
  %v6103 = vpop.permute.xlu0 %6102
  %v6104 = vsel %vm293, %v5643, 0
  %v6106 = vsel %vm293, %v6103, 0
  %6108 = vmatprep.subr.mxu0 0.0
  %6109 = vmatpush1.xpose.msra.mxu0 0.0
  %6110 = vmatprep.subr.mxu0 0.0
  %6111 = vmatpush1.xpose.msra.mxu0 0.0
  %6112 = vmatprep.subr.mxu0 0.0
  %6113 = vmatpush1.xpose.msra.mxu0 0.0
  %6114 = vmatprep.subr.mxu0 0.0
  %6115 = vmatpush1.xpose.msra.mxu0 0.0
  %6116 = vmatprep.subr.mxu0 0.0
  %6117 = vmatpush1.xpose.msra.mxu0 0.0
  %6118 = vmatprep.subr.mxu0 0.0
  %6119 = vmatpush1.xpose.msra.mxu0 0.0
  %6120 = vmatprep.subr.mxu0 0.0
  %6121 = vmatpush1.xpose.msra.mxu0 0.0
  %6122 = vmatprep.subr.mxu0 0.0
  %6123 = vmatpush1.xpose.msra.mxu0 0.0
  %6124 = vmatprep.subr.mxu0 0.0
  %6125 = vmatpush1.xpose.msra.mxu0 0.0
  %6126 = vmatprep.subr.mxu0 0.0
  %6127 = vmatpush1.xpose.msra.mxu0 0.0
  %6128 = vmatprep.subr.mxu0 0.0
  %6129 = vmatpush1.xpose.msra.mxu0 0.0
  %6130 = vmatprep.subr.mxu0 0.0
  %6131 = vmatpush1.xpose.msra.mxu0 0.0
  %6132 = vmatprep.subr.mxu0 0.0
  %6133 = vmatpush1.xpose.msra.mxu0 0.0
  %6134 = vmatprep.subr.mxu0 0.0
  %6135 = vmatpush1.xpose.msra.mxu0 0.0
  %6136 = vmatprep.subr.mxu0 0.0
  %6137 = vmatpush1.xpose.msra.mxu0 0.0
  %6138 = vmatprep.subr.mxu0 0.0
  %6139 = vmatpush1.xpose.msra.mxu0 %v6106
  %6140 = vmatprep.subr.mxu0 0.0
  %6141 = vmatpush2.xpose.msra.mxu0 0.0
  %6142 = vmatprep.subr.mxu0 0.0
  %6143 = vmatpush2.xpose.msra.mxu0 0.0
  %6144 = vmatprep.subr.mxu0 0.0
  %6145 = vmatpush2.xpose.msra.mxu0 0.0
  %6146 = vmatprep.subr.mxu0 0.0
  %6147 = vmatpush2.xpose.msra.mxu0 0.0
  %6148 = vmatprep.subr.mxu0 0.0
  %6149 = vmatpush2.xpose.msra.mxu0 0.0
  %6150 = vmatprep.subr.mxu0 0.0
  %6151 = vmatpush2.xpose.msra.mxu0 0.0
  %6152 = vmatprep.subr.mxu0 0.0
  %6153 = vmatpush2.xpose.msra.mxu0 0.0
  %6154 = vmatprep.subr.mxu0 0.0
  %6155 = vmatpush2.xpose.msra.mxu0 0.0
  %6156 = vmatprep.subr.mxu0 0.0
  %6157 = vmatpush2.xpose.msra.mxu0 0.0
  %6158 = vmatprep.subr.mxu0 0.0
  %6159 = vmatpush2.xpose.msra.mxu0 0.0
  %6160 = vmatprep.subr.mxu0 0.0
  %6161 = vmatpush2.xpose.msra.mxu0 0.0
  %6162 = vmatprep.subr.mxu0 0.0
  %6163 = vmatpush2.xpose.msra.mxu0 0.0
  %6164 = vmatprep.subr.mxu0 0.0
  %6165 = vmatpush2.xpose.msra.mxu0 0.0
  %6166 = vmatprep.subr.mxu0 0.0
  %6167 = vmatpush2.xpose.msra.mxu0 0.0
  %6168 = vmatprep.subr.mxu0 0.0
  %6169 = vmatpush2.xpose.msra.mxu0 0.0
  %6170 = vmatprep.subr.mxu0 0.0
  %6171 = vmatpush2.xpose.msra.mxu0 0.0
  %6172 = vmatprep.mubr.f32.mxu0 0.0
  %6173 = vmatmul.mubr.f32.gmra.mxu0 %v6104
  %v6174 = vpop.f32.mrf.mxu0
  %v6175 = vadd.f32 0.0, %v6174
  %v6176 = vpop.f32.mrf.mxu0
  %6177 = vdwg.mxu0
  %6178 = vrot.lane.b32.xlu0 %v5645, 96
  %v6179 = vpop.permute.xlu0 %6178
  %v6180 = vsel %vm293, %v5645, 0
  %v6182 = vsel %vm293, %v6179, 0
  %6184 = vmatprep.subr.mxu0 0.0
  %6185 = vmatpush1.xpose.msra.mxu0 0.0
  %6186 = vmatprep.subr.mxu0 0.0
  %6187 = vmatpush1.xpose.msra.mxu0 0.0
  %6188 = vmatprep.subr.mxu0 0.0
  %6189 = vmatpush1.xpose.msra.mxu0 0.0
  %6190 = vmatprep.subr.mxu0 0.0
  %6191 = vmatpush1.xpose.msra.mxu0 0.0
  %6192 = vmatprep.subr.mxu0 0.0
  %6193 = vmatpush1.xpose.msra.mxu0 0.0
  %6194 = vmatprep.subr.mxu0 0.0
  %6195 = vmatpush1.xpose.msra.mxu0 0.0
  %6196 = vmatprep.subr.mxu0 0.0
  %6197 = vmatpush1.xpose.msra.mxu0 0.0
  %6198 = vmatprep.subr.mxu0 0.0
  %6199 = vmatpush1.xpose.msra.mxu0 0.0
  %6200 = vmatprep.subr.mxu0 0.0
  %6201 = vmatpush1.xpose.msra.mxu0 0.0
  %6202 = vmatprep.subr.mxu0 0.0
  %6203 = vmatpush1.xpose.msra.mxu0 0.0
  %6204 = vmatprep.subr.mxu0 0.0
  %6205 = vmatpush1.xpose.msra.mxu0 0.0
  %6206 = vmatprep.subr.mxu0 0.0
  %6207 = vmatpush1.xpose.msra.mxu0 0.0
  %6208 = vmatprep.subr.mxu0 0.0
  %6209 = vmatpush1.xpose.msra.mxu0 0.0
  %6210 = vmatprep.subr.mxu0 0.0
  %6211 = vmatpush1.xpose.msra.mxu0 0.0
  %6212 = vmatprep.subr.mxu0 0.0
  %6213 = vmatpush1.xpose.msra.mxu0 0.0
  %6214 = vmatprep.subr.mxu0 0.0
  %6215 = vmatpush1.xpose.msra.mxu0 %v6182
  %6216 = vmatprep.subr.mxu0 0.0
  %6217 = vmatpush2.xpose.msra.mxu0 0.0
  %6218 = vmatprep.subr.mxu0 0.0
  %6219 = vmatpush2.xpose.msra.mxu0 0.0
  %6220 = vmatprep.subr.mxu0 0.0
  %6221 = vmatpush2.xpose.msra.mxu0 0.0
  %6222 = vmatprep.subr.mxu0 0.0
  %6223 = vmatpush2.xpose.msra.mxu0 0.0
  %6224 = vmatprep.subr.mxu0 0.0
  %6225 = vmatpush2.xpose.msra.mxu0 0.0
  %6226 = vmatprep.subr.mxu0 0.0
  %6227 = vmatpush2.xpose.msra.mxu0 0.0
  %6228 = vmatprep.subr.mxu0 0.0
  %6229 = vmatpush2.xpose.msra.mxu0 0.0
  %6230 = vmatprep.subr.mxu0 0.0
  %6231 = vmatpush2.xpose.msra.mxu0 0.0
  %6232 = vmatprep.subr.mxu0 0.0
  %6233 = vmatpush2.xpose.msra.mxu0 0.0
  %6234 = vmatprep.subr.mxu0 0.0
  %6235 = vmatpush2.xpose.msra.mxu0 0.0
  %6236 = vmatprep.subr.mxu0 0.0
  %6237 = vmatpush2.xpose.msra.mxu0 0.0
  %6238 = vmatprep.subr.mxu0 0.0
  %6239 = vmatpush2.xpose.msra.mxu0 0.0
  %6240 = vmatprep.subr.mxu0 0.0
  %6241 = vmatpush2.xpose.msra.mxu0 0.0
  %6242 = vmatprep.subr.mxu0 0.0
  %6243 = vmatpush2.xpose.msra.mxu0 0.0
  %6244 = vmatprep.subr.mxu0 0.0
  %6245 = vmatpush2.xpose.msra.mxu0 0.0
  %6246 = vmatprep.subr.mxu0 0.0
  %6247 = vmatpush2.xpose.msra.mxu0 0.0
  %6248 = vmatprep.mubr.f32.mxu0 0.0
  %6249 = vmatmul.mubr.f32.gmra.mxu0 %v6180
  %v6250 = vpop.f32.mrf.mxu0
  %v6251 = vadd.f32 0.0, %v6250
  %v6252 = vpop.f32.mrf.mxu0
  %6253 = vdwg.mxu0
  %v6254 = vmul.f32 %v5719, 0.17677669
  %v6255 = vmul.f32 %v5795, 0.17677669
  %v6256 = vmul.f32 %v5871, 0.17677669
  %v6257 = vmul.f32 %v5947, 0.17677669
  %v6258 = vmul.f32 %v6023, 0.17677669
  %v6259 = vmul.f32 %v6099, 0.17677669
  %v6260 = vmul.f32 %v6175, 0.17677669
  %v6261 = vmul.f32 %v6251, 0.17677669
  %v6262 = vadd.f32 %v6254, %v162
  %v6263 = vadd.f32 %v6255, %v162
  %v6264 = vadd.f32 %v6256, %v162
  %v6265 = vadd.f32 %v6257, %v162
  %v6266 = vadd.f32 %v6258, %v162
  %v6267 = vadd.f32 %v6259, %v162
  %v6268 = vadd.f32 %v6260, %v162
  %v6269 = vadd.f32 %v6261, %v162
  %v6270 = vsel %vm293, %v6262, -inf
  %6271 = vmax.xlane.f32.xlu0 %v6270
  %v6272 = vpop.xlane.xlu0 %6271
  %v6273 = vsel %vm293, %v6263, -inf
  %6274 = vmax.xlane.f32.xlu0 %v6273
  %v6275 = vpop.xlane.xlu0 %6274
  %v6276 = vsel %vm293, %v6264, -inf
  %6277 = vmax.xlane.f32.xlu0 %v6276
  %v6278 = vpop.xlane.xlu0 %6277
  %v6279 = vsel %vm293, %v6265, -inf
  %6280 = vmax.xlane.f32.xlu0 %v6279
  %v6281 = vpop.xlane.xlu0 %6280
  %v6282 = vsel %vm293, %v6266, -inf
  %6283 = vmax.xlane.f32.xlu0 %v6282
  %v6284 = vpop.xlane.xlu0 %6283
  %v6285 = vsel %vm293, %v6267, -inf
  %6286 = vmax.xlane.f32.xlu0 %v6285
  %v6287 = vpop.xlane.xlu0 %6286
  %v6288 = vsel %vm293, %v6268, -inf
  %6289 = vmax.xlane.f32.xlu0 %v6288
  %v6290 = vpop.xlane.xlu0 %6289
  %v6291 = vsel %vm293, %v6269, -inf
  %6292 = vmax.xlane.f32.xlu0 %v6291
  %v6293 = vpop.xlane.xlu0 %6292
  %v6294 = vsub.f32 %v6262, %v6272
  %v6295 = vsub.f32 %v6263, %v6275
  %v6296 = vsub.f32 %v6264, %v6278
  %v6297 = vsub.f32 %v6265, %v6281
  %v6298 = vsub.f32 %v6266, %v6284
  %v6299 = vsub.f32 %v6267, %v6287
  %v6300 = vsub.f32 %v6268, %v6290
  %v6301 = vsub.f32 %v6269, %v6293
  %v6302 = vmul.f32 %v6294, 1.442695
  %v6303 = vpow.pop %v6302
  %v6304 = vmul.f32 %v6295, 1.442695
  %v6305 = vpow.pop %v6304
  %v6306 = vmul.f32 %v6296, 1.442695
  %v6307 = vpow.pop %v6306
  %v6308 = vmul.f32 %v6297, 1.442695
  %v6309 = vpow.pop %v6308
  %v6310 = vmul.f32 %v6298, 1.442695
  %v6311 = vpow.pop %v6310
  %v6312 = vmul.f32 %v6299, 1.442695
  %v6313 = vpow.pop %v6312
  %v6314 = vmul.f32 %v6300, 1.442695
  %v6315 = vpow.pop %v6314
  %v6316 = vmul.f32 %v6301, 1.442695
  %v6317 = vpow.pop %v6316
  %v6318 = vsel %vm293, %v6303, 0.0
  %6319 = vadd.xlane.f32.xlu0 %v6318
  %v6320 = vpop.xlane.xlu0 %6319
  %v6321 = vsel %vm293, %v6305, 0.0
  %6322 = vadd.xlane.f32.xlu0 %v6321
  %v6323 = vpop.xlane.xlu0 %6322
  %v6324 = vsel %vm293, %v6307, 0.0
  %6325 = vadd.xlane.f32.xlu0 %v6324
  %v6326 = vpop.xlane.xlu0 %6325
  %v6327 = vsel %vm293, %v6309, 0.0
  %6328 = vadd.xlane.f32.xlu0 %v6327
  %v6329 = vpop.xlane.xlu0 %6328
  %v6330 = vsel %vm293, %v6311, 0.0
  %6331 = vadd.xlane.f32.xlu0 %v6330
  %v6332 = vpop.xlane.xlu0 %6331
  %v6333 = vsel %vm293, %v6313, 0.0
  %6334 = vadd.xlane.f32.xlu0 %v6333
  %v6335 = vpop.xlane.xlu0 %6334
  %v6336 = vsel %vm293, %v6315, 0.0
  %6337 = vadd.xlane.f32.xlu0 %v6336
  %v6338 = vpop.xlane.xlu0 %6337
  %v6339 = vsel %vm293, %v6317, 0.0
  %6340 = vadd.xlane.f32.xlu0 %v6339
  %v6341 = vpop.xlane.xlu0 %6340
  %v6342 = vrcp.pop %v6320
  %v6343 = vmul.f32 %v6303, %v6342
  %v6344 = vrcp.pop %v6323
  %v6345 = vmul.f32 %v6305, %v6344
  %v6346 = vrcp.pop %v6326
  %v6347 = vmul.f32 %v6307, %v6346
  %v6348 = vrcp.pop %v6329
  %v6349 = vmul.f32 %v6309, %v6348
  %v6350 = vrcp.pop %v6332
  %v6351 = vmul.f32 %v6311, %v6350
  %v6352 = vrcp.pop %v6335
  %v6353 = vmul.f32 %v6313, %v6352
  %v6354 = vrcp.pop %v6338
  %v6355 = vmul.f32 %v6315, %v6354
  %v6356 = vrcp.pop %v6341
  %v6357 = vmul.f32 %v6317, %v6356
  %6358 = vrot.lane.b32.xlu0 %v5626, 64
  %v6359 = vpop.permute.xlu0 %6358
  %v6362 = vsel %vm293, %v6343, 0
  %6364 = vmatprep.subr.mxu0 0.0
  %6365 = vmatpush1.msra.mxu0 0.0
  %6366 = vmatprep.subr.mxu0 0.0
  %6367 = vmatpush1.msra.mxu0 0.0
  %6368 = vmatprep.subr.mxu0 0.0
  %6369 = vmatpush1.msra.mxu0 0.0
  %6370 = vmatprep.subr.mxu0 0.0
  %6371 = vmatpush1.msra.mxu0 0.0
  %6372 = vmatprep.subr.mxu0 0.0
  %6373 = vmatpush1.msra.mxu0 0.0
  %6374 = vmatprep.subr.mxu0 0.0
  %6375 = vmatpush1.msra.mxu0 0.0
  %6376 = vmatprep.subr.mxu0 0.0
  %6377 = vmatpush1.msra.mxu0 0.0
  %6378 = vmatprep.subr.mxu0 0.0
  %6379 = vmatpush1.msra.mxu0 0.0
  %6380 = vmatprep.subr.mxu0 0.0
  %6381 = vmatpush1.msra.mxu0 0.0
  %6382 = vmatprep.subr.mxu0 0.0
  %6383 = vmatpush1.msra.mxu0 0.0
  %6384 = vmatprep.subr.mxu0 0.0
  %6385 = vmatpush1.msra.mxu0 0.0
  %6386 = vmatprep.subr.mxu0 0.0
  %6387 = vmatpush1.msra.mxu0 0.0
  %6388 = vmatprep.subr.mxu0 0.0
  %6389 = vmatpush1.msra.mxu0 0.0
  %6390 = vmatprep.subr.mxu0 0.0
  %6391 = vmatpush1.msra.mxu0 0.0
  %6392 = vmatprep.subr.mxu0 0.0
  %6393 = vmatpush1.msra.mxu0 0.0
  %6394 = vmatprep.subr.mxu0 0.0
  %6395 = vmatpush1.msra.mxu0 %v6359
  %6396 = vmatprep.subr.mxu0 0.0
  %6397 = vmatpush2.msra.mxu0 0.0
  %6398 = vmatprep.subr.mxu0 0.0
  %6399 = vmatpush2.msra.mxu0 0.0
  %6400 = vmatprep.subr.mxu0 0.0
  %6401 = vmatpush2.msra.mxu0 0.0
  %6402 = vmatprep.subr.mxu0 0.0
  %6403 = vmatpush2.msra.mxu0 0.0
  %6404 = vmatprep.subr.mxu0 0.0
  %6405 = vmatpush2.msra.mxu0 0.0
  %6406 = vmatprep.subr.mxu0 0.0
  %6407 = vmatpush2.msra.mxu0 0.0
  %6408 = vmatprep.subr.mxu0 0.0
  %6409 = vmatpush2.msra.mxu0 0.0
  %6410 = vmatprep.subr.mxu0 0.0
  %6411 = vmatpush2.msra.mxu0 0.0
  %6412 = vmatprep.subr.mxu0 0.0
  %6413 = vmatpush2.msra.mxu0 0.0
  %6414 = vmatprep.subr.mxu0 0.0
  %6415 = vmatpush2.msra.mxu0 0.0
  %6416 = vmatprep.subr.mxu0 0.0
  %6417 = vmatpush2.msra.mxu0 0.0
  %6418 = vmatprep.subr.mxu0 0.0
  %6419 = vmatpush2.msra.mxu0 0.0
  %6420 = vmatprep.subr.mxu0 0.0
  %6421 = vmatpush2.msra.mxu0 0.0
  %6422 = vmatprep.subr.mxu0 0.0
  %6423 = vmatpush2.msra.mxu0 0.0
  %6424 = vmatprep.subr.mxu0 0.0
  %6425 = vmatpush2.msra.mxu0 0.0
  %6426 = vmatprep.subr.mxu0 0.0
  %6427 = vmatpush2.msra.mxu0 0.0
  %6428 = vmatprep.mubr.f32.mxu0 0.0
  %6429 = vmatmul.mubr.f32.gmra.mxu0 %v6362
  %v6430 = vpop.f32.mrf.mxu0
  %v6431 = vadd.f32 0.0, %v6430
  %v6432 = vpop.f32.mrf.mxu0
  %6433 = vdwg.mxu0
  %6434 = vrot.lane.b32.xlu0 %v5629, 64
  %v6435 = vpop.permute.xlu0 %6434
  %v6438 = vsel %vm293, %v6345, 0
  %6440 = vmatprep.subr.mxu0 0.0
  %6441 = vmatpush1.msra.mxu0 0.0
  %6442 = vmatprep.subr.mxu0 0.0
  %6443 = vmatpush1.msra.mxu0 0.0
  %6444 = vmatprep.subr.mxu0 0.0
  %6445 = vmatpush1.msra.mxu0 0.0
  %6446 = vmatprep.subr.mxu0 0.0
  %6447 = vmatpush1.msra.mxu0 0.0
  %6448 = vmatprep.subr.mxu0 0.0
  %6449 = vmatpush1.msra.mxu0 0.0
  %6450 = vmatprep.subr.mxu0 0.0
  %6451 = vmatpush1.msra.mxu0 0.0
  %6452 = vmatprep.subr.mxu0 0.0
  %6453 = vmatpush1.msra.mxu0 0.0
  %6454 = vmatprep.subr.mxu0 0.0
  %6455 = vmatpush1.msra.mxu0 0.0
  %6456 = vmatprep.subr.mxu0 0.0
  %6457 = vmatpush1.msra.mxu0 0.0
  %6458 = vmatprep.subr.mxu0 0.0
  %6459 = vmatpush1.msra.mxu0 0.0
  %6460 = vmatprep.subr.mxu0 0.0
  %6461 = vmatpush1.msra.mxu0 0.0
  %6462 = vmatprep.subr.mxu0 0.0
  %6463 = vmatpush1.msra.mxu0 0.0
  %6464 = vmatprep.subr.mxu0 0.0
  %6465 = vmatpush1.msra.mxu0 0.0
  %6466 = vmatprep.subr.mxu0 0.0
  %6467 = vmatpush1.msra.mxu0 0.0
  %6468 = vmatprep.subr.mxu0 0.0
  %6469 = vmatpush1.msra.mxu0 0.0
  %6470 = vmatprep.subr.mxu0 0.0
  %6471 = vmatpush1.msra.mxu0 %v6435
  %6472 = vmatprep.subr.mxu0 0.0
  %6473 = vmatpush2.msra.mxu0 0.0
  %6474 = vmatprep.subr.mxu0 0.0
  %6475 = vmatpush2.msra.mxu0 0.0
  %6476 = vmatprep.subr.mxu0 0.0
  %6477 = vmatpush2.msra.mxu0 0.0
  %6478 = vmatprep.subr.mxu0 0.0
  %6479 = vmatpush2.msra.mxu0 0.0
  %6480 = vmatprep.subr.mxu0 0.0
  %6481 = vmatpush2.msra.mxu0 0.0
  %6482 = vmatprep.subr.mxu0 0.0
  %6483 = vmatpush2.msra.mxu0 0.0
  %6484 = vmatprep.subr.mxu0 0.0
  %6485 = vmatpush2.msra.mxu0 0.0
  %6486 = vmatprep.subr.mxu0 0.0
  %6487 = vmatpush2.msra.mxu0 0.0
  %6488 = vmatprep.subr.mxu0 0.0
  %6489 = vmatpush2.msra.mxu0 0.0
  %6490 = vmatprep.subr.mxu0 0.0
  %6491 = vmatpush2.msra.mxu0 0.0
  %6492 = vmatprep.subr.mxu0 0.0
  %6493 = vmatpush2.msra.mxu0 0.0
  %6494 = vmatprep.subr.mxu0 0.0
  %6495 = vmatpush2.msra.mxu0 0.0
  %6496 = vmatprep.subr.mxu0 0.0
  %6497 = vmatpush2.msra.mxu0 0.0
  %6498 = vmatprep.subr.mxu0 0.0
  %6499 = vmatpush2.msra.mxu0 0.0
  %6500 = vmatprep.subr.mxu0 0.0
  %6501 = vmatpush2.msra.mxu0 0.0
  %6502 = vmatprep.subr.mxu0 0.0
  %6503 = vmatpush2.msra.mxu0 0.0
  %6504 = vmatprep.mubr.f32.mxu0 0.0
  %6505 = vmatmul.mubr.f32.gmra.mxu0 %v6438
  %v6506 = vpop.f32.mrf.mxu0
  %v6507 = vadd.f32 0.0, %v6506
  %v6508 = vpop.f32.mrf.mxu0
  %6509 = vdwg.mxu0
  %6510 = vrot.lane.b32.xlu0 %v5635, 64
  %v6511 = vpop.permute.xlu0 %6510
  %v6514 = vsel %vm293, %v6347, 0
  %6516 = vmatprep.subr.mxu0 0.0
  %6517 = vmatpush1.msra.mxu0 0.0
  %6518 = vmatprep.subr.mxu0 0.0
  %6519 = vmatpush1.msra.mxu0 0.0
  %6520 = vmatprep.subr.mxu0 0.0
  %6521 = vmatpush1.msra.mxu0 0.0
  %6522 = vmatprep.subr.mxu0 0.0
  %6523 = vmatpush1.msra.mxu0 0.0
  %6524 = vmatprep.subr.mxu0 0.0
  %6525 = vmatpush1.msra.mxu0 0.0
  %6526 = vmatprep.subr.mxu0 0.0
  %6527 = vmatpush1.msra.mxu0 0.0
  %6528 = vmatprep.subr.mxu0 0.0
  %6529 = vmatpush1.msra.mxu0 0.0
  %6530 = vmatprep.subr.mxu0 0.0
  %6531 = vmatpush1.msra.mxu0 0.0
  %6532 = vmatprep.subr.mxu0 0.0
  %6533 = vmatpush1.msra.mxu0 0.0
  %6534 = vmatprep.subr.mxu0 0.0
  %6535 = vmatpush1.msra.mxu0 0.0
  %6536 = vmatprep.subr.mxu0 0.0
  %6537 = vmatpush1.msra.mxu0 0.0
  %6538 = vmatprep.subr.mxu0 0.0
  %6539 = vmatpush1.msra.mxu0 0.0
  %6540 = vmatprep.subr.mxu0 0.0
  %6541 = vmatpush1.msra.mxu0 0.0
  %6542 = vmatprep.subr.mxu0 0.0
  %6543 = vmatpush1.msra.mxu0 0.0
  %6544 = vmatprep.subr.mxu0 0.0
  %6545 = vmatpush1.msra.mxu0 0.0
  %6546 = vmatprep.subr.mxu0 0.0
  %6547 = vmatpush1.msra.mxu0 %v6511
  %6548 = vmatprep.subr.mxu0 0.0
  %6549 = vmatpush2.msra.mxu0 0.0
  %6550 = vmatprep.subr.mxu0 0.0
  %6551 = vmatpush2.msra.mxu0 0.0
  %6552 = vmatprep.subr.mxu0 0.0
  %6553 = vmatpush2.msra.mxu0 0.0
  %6554 = vmatprep.subr.mxu0 0.0
  %6555 = vmatpush2.msra.mxu0 0.0
  %6556 = vmatprep.subr.mxu0 0.0
  %6557 = vmatpush2.msra.mxu0 0.0
  %6558 = vmatprep.subr.mxu0 0.0
  %6559 = vmatpush2.msra.mxu0 0.0
  %6560 = vmatprep.subr.mxu0 0.0
  %6561 = vmatpush2.msra.mxu0 0.0
  %6562 = vmatprep.subr.mxu0 0.0
  %6563 = vmatpush2.msra.mxu0 0.0
  %6564 = vmatprep.subr.mxu0 0.0
  %6565 = vmatpush2.msra.mxu0 0.0
  %6566 = vmatprep.subr.mxu0 0.0
  %6567 = vmatpush2.msra.mxu0 0.0
  %6568 = vmatprep.subr.mxu0 0.0
  %6569 = vmatpush2.msra.mxu0 0.0
  %6570 = vmatprep.subr.mxu0 0.0
  %6571 = vmatpush2.msra.mxu0 0.0
  %6572 = vmatprep.subr.mxu0 0.0
  %6573 = vmatpush2.msra.mxu0 0.0
  %6574 = vmatprep.subr.mxu0 0.0
  %6575 = vmatpush2.msra.mxu0 0.0
  %6576 = vmatprep.subr.mxu0 0.0
  %6577 = vmatpush2.msra.mxu0 0.0
  %6578 = vmatprep.subr.mxu0 0.0
  %6579 = vmatpush2.msra.mxu0 0.0
  %6580 = vmatprep.mubr.f32.mxu0 0.0
  %6581 = vmatmul.mubr.f32.gmra.mxu0 %v6514
  %v6582 = vpop.f32.mrf.mxu0
  %v6583 = vadd.f32 0.0, %v6582
  %v6584 = vpop.f32.mrf.mxu0
  %6585 = vdwg.mxu0
  %6586 = vrot.lane.b32.xlu0 %v5637, 64
  %v6587 = vpop.permute.xlu0 %6586
  %v6590 = vsel %vm293, %v6349, 0
  %6592 = vmatprep.subr.mxu0 0.0
  %6593 = vmatpush1.msra.mxu0 0.0
  %6594 = vmatprep.subr.mxu0 0.0
  %6595 = vmatpush1.msra.mxu0 0.0
  %6596 = vmatprep.subr.mxu0 0.0
  %6597 = vmatpush1.msra.mxu0 0.0
  %6598 = vmatprep.subr.mxu0 0.0
  %6599 = vmatpush1.msra.mxu0 0.0
  %6600 = vmatprep.subr.mxu0 0.0
  %6601 = vmatpush1.msra.mxu0 0.0
  %6602 = vmatprep.subr.mxu0 0.0
  %6603 = vmatpush1.msra.mxu0 0.0
  %6604 = vmatprep.subr.mxu0 0.0
  %6605 = vmatpush1.msra.mxu0 0.0
  %6606 = vmatprep.subr.mxu0 0.0
  %6607 = vmatpush1.msra.mxu0 0.0
  %6608 = vmatprep.subr.mxu0 0.0
  %6609 = vmatpush1.msra.mxu0 0.0
  %6610 = vmatprep.subr.mxu0 0.0
  %6611 = vmatpush1.msra.mxu0 0.0
  %6612 = vmatprep.subr.mxu0 0.0
  %6613 = vmatpush1.msra.mxu0 0.0
  %6614 = vmatprep.subr.mxu0 0.0
  %6615 = vmatpush1.msra.mxu0 0.0
  %6616 = vmatprep.subr.mxu0 0.0
  %6617 = vmatpush1.msra.mxu0 0.0
  %6618 = vmatprep.subr.mxu0 0.0
  %6619 = vmatpush1.msra.mxu0 0.0
  %6620 = vmatprep.subr.mxu0 0.0
  %6621 = vmatpush1.msra.mxu0 0.0
  %6622 = vmatprep.subr.mxu0 0.0
  %6623 = vmatpush1.msra.mxu0 %v6587
  %6624 = vmatprep.subr.mxu0 0.0
  %6625 = vmatpush2.msra.mxu0 0.0
  %6626 = vmatprep.subr.mxu0 0.0
  %6627 = vmatpush2.msra.mxu0 0.0
  %6628 = vmatprep.subr.mxu0 0.0
  %6629 = vmatpush2.msra.mxu0 0.0
  %6630 = vmatprep.subr.mxu0 0.0
  %6631 = vmatpush2.msra.mxu0 0.0
  %6632 = vmatprep.subr.mxu0 0.0
  %6633 = vmatpush2.msra.mxu0 0.0
  %6634 = vmatprep.subr.mxu0 0.0
  %6635 = vmatpush2.msra.mxu0 0.0
  %6636 = vmatprep.subr.mxu0 0.0
  %6637 = vmatpush2.msra.mxu0 0.0
  %6638 = vmatprep.subr.mxu0 0.0
  %6639 = vmatpush2.msra.mxu0 0.0
  %6640 = vmatprep.subr.mxu0 0.0
  %6641 = vmatpush2.msra.mxu0 0.0
  %6642 = vmatprep.subr.mxu0 0.0
  %6643 = vmatpush2.msra.mxu0 0.0
  %6644 = vmatprep.subr.mxu0 0.0
  %6645 = vmatpush2.msra.mxu0 0.0
  %6646 = vmatprep.subr.mxu0 0.0
  %6647 = vmatpush2.msra.mxu0 0.0
  %6648 = vmatprep.subr.mxu0 0.0
  %6649 = vmatpush2.msra.mxu0 0.0
  %6650 = vmatprep.subr.mxu0 0.0
  %6651 = vmatpush2.msra.mxu0 0.0
  %6652 = vmatprep.subr.mxu0 0.0
  %6653 = vmatpush2.msra.mxu0 0.0
  %6654 = vmatprep.subr.mxu0 0.0
  %6655 = vmatpush2.msra.mxu0 0.0
  %6656 = vmatprep.mubr.f32.mxu0 0.0
  %6657 = vmatmul.mubr.f32.gmra.mxu0 %v6590
  %v6658 = vpop.f32.mrf.mxu0
  %v6659 = vadd.f32 0.0, %v6658
  %v6660 = vpop.f32.mrf.mxu0
  %6661 = vdwg.mxu0
  %6662 = vrot.lane.b32.xlu0 %v5639, 64
  %v6663 = vpop.permute.xlu0 %6662
  %v6666 = vsel %vm293, %v6351, 0
  %6668 = vmatprep.subr.mxu0 0.0
  %6669 = vmatpush1.msra.mxu0 0.0
  %6670 = vmatprep.subr.mxu0 0.0
  %6671 = vmatpush1.msra.mxu0 0.0
  %6672 = vmatprep.subr.mxu0 0.0
  %6673 = vmatpush1.msra.mxu0 0.0
  %6674 = vmatprep.subr.mxu0 0.0
  %6675 = vmatpush1.msra.mxu0 0.0
  %6676 = vmatprep.subr.mxu0 0.0
  %6677 = vmatpush1.msra.mxu0 0.0
  %6678 = vmatprep.subr.mxu0 0.0
  %6679 = vmatpush1.msra.mxu0 0.0
  %6680 = vmatprep.subr.mxu0 0.0
  %6681 = vmatpush1.msra.mxu0 0.0
  %6682 = vmatprep.subr.mxu0 0.0
  %6683 = vmatpush1.msra.mxu0 0.0
  %6684 = vmatprep.subr.mxu0 0.0
  %6685 = vmatpush1.msra.mxu0 0.0
  %6686 = vmatprep.subr.mxu0 0.0
  %6687 = vmatpush1.msra.mxu0 0.0
  %6688 = vmatprep.subr.mxu0 0.0
  %6689 = vmatpush1.msra.mxu0 0.0
  %6690 = vmatprep.subr.mxu0 0.0
  %6691 = vmatpush1.msra.mxu0 0.0
  %6692 = vmatprep.subr.mxu0 0.0
  %6693 = vmatpush1.msra.mxu0 0.0
  %6694 = vmatprep.subr.mxu0 0.0
  %6695 = vmatpush1.msra.mxu0 0.0
  %6696 = vmatprep.subr.mxu0 0.0
  %6697 = vmatpush1.msra.mxu0 0.0
  %6698 = vmatprep.subr.mxu0 0.0
  %6699 = vmatpush1.msra.mxu0 %v6663
  %6700 = vmatprep.subr.mxu0 0.0
  %6701 = vmatpush2.msra.mxu0 0.0
  %6702 = vmatprep.subr.mxu0 0.0
  %6703 = vmatpush2.msra.mxu0 0.0
  %6704 = vmatprep.subr.mxu0 0.0
  %6705 = vmatpush2.msra.mxu0 0.0
  %6706 = vmatprep.subr.mxu0 0.0
  %6707 = vmatpush2.msra.mxu0 0.0
  %6708 = vmatprep.subr.mxu0 0.0
  %6709 = vmatpush2.msra.mxu0 0.0
  %6710 = vmatprep.subr.mxu0 0.0
  %6711 = vmatpush2.msra.mxu0 0.0
  %6712 = vmatprep.subr.mxu0 0.0
  %6713 = vmatpush2.msra.mxu0 0.0
  %6714 = vmatprep.subr.mxu0 0.0
  %6715 = vmatpush2.msra.mxu0 0.0
  %6716 = vmatprep.subr.mxu0 0.0
  %6717 = vmatpush2.msra.mxu0 0.0
  %6718 = vmatprep.subr.mxu0 0.0
  %6719 = vmatpush2.msra.mxu0 0.0
  %6720 = vmatprep.subr.mxu0 0.0
  %6721 = vmatpush2.msra.mxu0 0.0
  %6722 = vmatprep.subr.mxu0 0.0
  %6723 = vmatpush2.msra.mxu0 0.0
  %6724 = vmatprep.subr.mxu0 0.0
  %6725 = vmatpush2.msra.mxu0 0.0
  %6726 = vmatprep.subr.mxu0 0.0
  %6727 = vmatpush2.msra.mxu0 0.0
  %6728 = vmatprep.subr.mxu0 0.0
  %6729 = vmatpush2.msra.mxu0 0.0
  %6730 = vmatprep.subr.mxu0 0.0
  %6731 = vmatpush2.msra.mxu0 0.0
  %6732 = vmatprep.mubr.f32.mxu0 0.0
  %6733 = vmatmul.mubr.f32.gmra.mxu0 %v6666
  %v6734 = vpop.f32.mrf.mxu0
  %v6735 = vadd.f32 0.0, %v6734
  %v6736 = vpop.f32.mrf.mxu0
  %6737 = vdwg.mxu0
  %6738 = vrot.lane.b32.xlu0 %v5641, 64
  %v6739 = vpop.permute.xlu0 %6738
  %v6742 = vsel %vm293, %v6353, 0
  %6744 = vmatprep.subr.mxu0 0.0
  %6745 = vmatpush1.msra.mxu0 0.0
  %6746 = vmatprep.subr.mxu0 0.0
  %6747 = vmatpush1.msra.mxu0 0.0
  %6748 = vmatprep.subr.mxu0 0.0
  %6749 = vmatpush1.msra.mxu0 0.0
  %6750 = vmatprep.subr.mxu0 0.0
  %6751 = vmatpush1.msra.mxu0 0.0
  %6752 = vmatprep.subr.mxu0 0.0
  %6753 = vmatpush1.msra.mxu0 0.0
  %6754 = vmatprep.subr.mxu0 0.0
  %6755 = vmatpush1.msra.mxu0 0.0
  %6756 = vmatprep.subr.mxu0 0.0
  %6757 = vmatpush1.msra.mxu0 0.0
  %6758 = vmatprep.subr.mxu0 0.0
  %6759 = vmatpush1.msra.mxu0 0.0
  %6760 = vmatprep.subr.mxu0 0.0
  %6761 = vmatpush1.msra.mxu0 0.0
  %6762 = vmatprep.subr.mxu0 0.0
  %6763 = vmatpush1.msra.mxu0 0.0
  %6764 = vmatprep.subr.mxu0 0.0
  %6765 = vmatpush1.msra.mxu0 0.0
  %6766 = vmatprep.subr.mxu0 0.0
  %6767 = vmatpush1.msra.mxu0 0.0
  %6768 = vmatprep.subr.mxu0 0.0
  %6769 = vmatpush1.msra.mxu0 0.0
  %6770 = vmatprep.subr.mxu0 0.0
  %6771 = vmatpush1.msra.mxu0 0.0
  %6772 = vmatprep.subr.mxu0 0.0
  %6773 = vmatpush1.msra.mxu0 0.0
  %6774 = vmatprep.subr.mxu0 0.0
  %6775 = vmatpush1.msra.mxu0 %v6739
  %6776 = vmatprep.subr.mxu0 0.0
  %6777 = vmatpush2.msra.mxu0 0.0
  %6778 = vmatprep.subr.mxu0 0.0
  %6779 = vmatpush2.msra.mxu0 0.0
  %6780 = vmatprep.subr.mxu0 0.0
  %6781 = vmatpush2.msra.mxu0 0.0
  %6782 = vmatprep.subr.mxu0 0.0
  %6783 = vmatpush2.msra.mxu0 0.0
  %6784 = vmatprep.subr.mxu0 0.0
  %6785 = vmatpush2.msra.mxu0 0.0
  %6786 = vmatprep.subr.mxu0 0.0
  %6787 = vmatpush2.msra.mxu0 0.0
  %6788 = vmatprep.subr.mxu0 0.0
  %6789 = vmatpush2.msra.mxu0 0.0
  %6790 = vmatprep.subr.mxu0 0.0
  %6791 = vmatpush2.msra.mxu0 0.0
  %6792 = vmatprep.subr.mxu0 0.0
  %6793 = vmatpush2.msra.mxu0 0.0
  %6794 = vmatprep.subr.mxu0 0.0
  %6795 = vmatpush2.msra.mxu0 0.0
  %6796 = vmatprep.subr.mxu0 0.0
  %6797 = vmatpush2.msra.mxu0 0.0
  %6798 = vmatprep.subr.mxu0 0.0
  %6799 = vmatpush2.msra.mxu0 0.0
  %6800 = vmatprep.subr.mxu0 0.0
  %6801 = vmatpush2.msra.mxu0 0.0
  %6802 = vmatprep.subr.mxu0 0.0
  %6803 = vmatpush2.msra.mxu0 0.0
  %6804 = vmatprep.subr.mxu0 0.0
  %6805 = vmatpush2.msra.mxu0 0.0
  %6806 = vmatprep.subr.mxu0 0.0
  %6807 = vmatpush2.msra.mxu0 0.0
  %6808 = vmatprep.mubr.f32.mxu0 0.0
  %6809 = vmatmul.mubr.f32.gmra.mxu0 %v6742
  %v6810 = vpop.f32.mrf.mxu0
  %v6811 = vadd.f32 0.0, %v6810
  %v6812 = vpop.f32.mrf.mxu0
  %6813 = vdwg.mxu0
  %6814 = vrot.lane.b32.xlu0 %v5643, 64
  %v6815 = vpop.permute.xlu0 %6814
  %v6818 = vsel %vm293, %v6355, 0
  %6820 = vmatprep.subr.mxu0 0.0
  %6821 = vmatpush1.msra.mxu0 0.0
  %6822 = vmatprep.subr.mxu0 0.0
  %6823 = vmatpush1.msra.mxu0 0.0
  %6824 = vmatprep.subr.mxu0 0.0
  %6825 = vmatpush1.msra.mxu0 0.0
  %6826 = vmatprep.subr.mxu0 0.0
  %6827 = vmatpush1.msra.mxu0 0.0
  %6828 = vmatprep.subr.mxu0 0.0
  %6829 = vmatpush1.msra.mxu0 0.0
  %6830 = vmatprep.subr.mxu0 0.0
  %6831 = vmatpush1.msra.mxu0 0.0
  %6832 = vmatprep.subr.mxu0 0.0
  %6833 = vmatpush1.msra.mxu0 0.0
  %6834 = vmatprep.subr.mxu0 0.0
  %6835 = vmatpush1.msra.mxu0 0.0
  %6836 = vmatprep.subr.mxu0 0.0
  %6837 = vmatpush1.msra.mxu0 0.0
  %6838 = vmatprep.subr.mxu0 0.0
  %6839 = vmatpush1.msra.mxu0 0.0
  %6840 = vmatprep.subr.mxu0 0.0
  %6841 = vmatpush1.msra.mxu0 0.0
  %6842 = vmatprep.subr.mxu0 0.0
  %6843 = vmatpush1.msra.mxu0 0.0
  %6844 = vmatprep.subr.mxu0 0.0
  %6845 = vmatpush1.msra.mxu0 0.0
  %6846 = vmatprep.subr.mxu0 0.0
  %6847 = vmatpush1.msra.mxu0 0.0
  %6848 = vmatprep.subr.mxu0 0.0
  %6849 = vmatpush1.msra.mxu0 0.0
  %6850 = vmatprep.subr.mxu0 0.0
  %6851 = vmatpush1.msra.mxu0 %v6815
  %6852 = vmatprep.subr.mxu0 0.0
  %6853 = vmatpush2.msra.mxu0 0.0
  %6854 = vmatprep.subr.mxu0 0.0
  %6855 = vmatpush2.msra.mxu0 0.0
  %6856 = vmatprep.subr.mxu0 0.0
  %6857 = vmatpush2.msra.mxu0 0.0
  %6858 = vmatprep.subr.mxu0 0.0
  %6859 = vmatpush2.msra.mxu0 0.0
  %6860 = vmatprep.subr.mxu0 0.0
  %6861 = vmatpush2.msra.mxu0 0.0
  %6862 = vmatprep.subr.mxu0 0.0
  %6863 = vmatpush2.msra.mxu0 0.0
  %6864 = vmatprep.subr.mxu0 0.0
  %6865 = vmatpush2.msra.mxu0 0.0
  %6866 = vmatprep.subr.mxu0 0.0
  %6867 = vmatpush2.msra.mxu0 0.0
  %6868 = vmatprep.subr.mxu0 0.0
  %6869 = vmatpush2.msra.mxu0 0.0
  %6870 = vmatprep.subr.mxu0 0.0
  %6871 = vmatpush2.msra.mxu0 0.0
  %6872 = vmatprep.subr.mxu0 0.0
  %6873 = vmatpush2.msra.mxu0 0.0
  %6874 = vmatprep.subr.mxu0 0.0
  %6875 = vmatpush2.msra.mxu0 0.0
  %6876 = vmatprep.subr.mxu0 0.0
  %6877 = vmatpush2.msra.mxu0 0.0
  %6878 = vmatprep.subr.mxu0 0.0
  %6879 = vmatpush2.msra.mxu0 0.0
  %6880 = vmatprep.subr.mxu0 0.0
  %6881 = vmatpush2.msra.mxu0 0.0
  %6882 = vmatprep.subr.mxu0 0.0
  %6883 = vmatpush2.msra.mxu0 0.0
  %6884 = vmatprep.mubr.f32.mxu0 0.0
  %6885 = vmatmul.mubr.f32.gmra.mxu0 %v6818
  %v6886 = vpop.f32.mrf.mxu0
  %v6887 = vadd.f32 0.0, %v6886
  %v6888 = vpop.f32.mrf.mxu0
  %6889 = vdwg.mxu0
  %6890 = vrot.lane.b32.xlu0 %v5645, 64
  %v6891 = vpop.permute.xlu0 %6890
  %v6894 = vsel %vm293, %v6357, 0
  %6896 = vmatprep.subr.mxu0 0.0
  %6897 = vmatpush1.msra.mxu0 0.0
  %6898 = vmatprep.subr.mxu0 0.0
  %6899 = vmatpush1.msra.mxu0 0.0
  %6900 = vmatprep.subr.mxu0 0.0
  %6901 = vmatpush1.msra.mxu0 0.0
  %6902 = vmatprep.subr.mxu0 0.0
  %6903 = vmatpush1.msra.mxu0 0.0
  %6904 = vmatprep.subr.mxu0 0.0
  %6905 = vmatpush1.msra.mxu0 0.0
  %6906 = vmatprep.subr.mxu0 0.0
  %6907 = vmatpush1.msra.mxu0 0.0
  %6908 = vmatprep.subr.mxu0 0.0
  %6909 = vmatpush1.msra.mxu0 0.0
  %6910 = vmatprep.subr.mxu0 0.0
  %6911 = vmatpush1.msra.mxu0 0.0
  %6912 = vmatprep.subr.mxu0 0.0
  %6913 = vmatpush1.msra.mxu0 0.0
  %6914 = vmatprep.subr.mxu0 0.0
  %6915 = vmatpush1.msra.mxu0 0.0
  %6916 = vmatprep.subr.mxu0 0.0
  %6917 = vmatpush1.msra.mxu0 0.0
  %6918 = vmatprep.subr.mxu0 0.0
  %6919 = vmatpush1.msra.mxu0 0.0
  %6920 = vmatprep.subr.mxu0 0.0
  %6921 = vmatpush1.msra.mxu0 0.0
  %6922 = vmatprep.subr.mxu0 0.0
  %6923 = vmatpush1.msra.mxu0 0.0
  %6924 = vmatprep.subr.mxu0 0.0
  %6925 = vmatpush1.msra.mxu0 0.0
  %6926 = vmatprep.subr.mxu0 0.0
  %6927 = vmatpush1.msra.mxu0 %v6891
  %6928 = vmatprep.subr.mxu0 0.0
  %6929 = vmatpush2.msra.mxu0 0.0
  %6930 = vmatprep.subr.mxu0 0.0
  %6931 = vmatpush2.msra.mxu0 0.0
  %6932 = vmatprep.subr.mxu0 0.0
  %6933 = vmatpush2.msra.mxu0 0.0
  %6934 = vmatprep.subr.mxu0 0.0
  %6935 = vmatpush2.msra.mxu0 0.0
  %6936 = vmatprep.subr.mxu0 0.0
  %6937 = vmatpush2.msra.mxu0 0.0
  %6938 = vmatprep.subr.mxu0 0.0
  %6939 = vmatpush2.msra.mxu0 0.0
  %6940 = vmatprep.subr.mxu0 0.0
  %6941 = vmatpush2.msra.mxu0 0.0
  %6942 = vmatprep.subr.mxu0 0.0
  %6943 = vmatpush2.msra.mxu0 0.0
  %6944 = vmatprep.subr.mxu0 0.0
  %6945 = vmatpush2.msra.mxu0 0.0
  %6946 = vmatprep.subr.mxu0 0.0
  %6947 = vmatpush2.msra.mxu0 0.0
  %6948 = vmatprep.subr.mxu0 0.0
  %6949 = vmatpush2.msra.mxu0 0.0
  %6950 = vmatprep.subr.mxu0 0.0
  %6951 = vmatpush2.msra.mxu0 0.0
  %6952 = vmatprep.subr.mxu0 0.0
  %6953 = vmatpush2.msra.mxu0 0.0
  %6954 = vmatprep.subr.mxu0 0.0
  %6955 = vmatpush2.msra.mxu0 0.0
  %6956 = vmatprep.subr.mxu0 0.0
  %6957 = vmatpush2.msra.mxu0 0.0
  %6958 = vmatprep.subr.mxu0 0.0
  %6959 = vmatpush2.msra.mxu0 0.0
  %6960 = vmatprep.mubr.f32.mxu0 0.0
  %6961 = vmatmul.mubr.f32.gmra.mxu0 %v6894
  %v6962 = vpop.f32.mrf.mxu0
  %v6963 = vadd.f32 0.0, %v6962
  %v6964 = vpop.f32.mrf.mxu0
  %6965 = vdwg.mxu0
  %6968 = vrot.lane.b32.xlu0 %v6583, 8
  %v6969 = vpop.permute.xlu0 %6968
  %6970 = vrot.lane.b32.xlu0 %v6659, 8
  %v6971 = vpop.permute.xlu0 %6970
  %6976 = vrot.lane.b32.xlu0 %v6735, 16
  %v6977 = vpop.permute.xlu0 %6976
  %6978 = vrot.lane.b32.xlu0 %v6811, 16
  %v6979 = vpop.permute.xlu0 %6978
  %6984 = vrot.lane.b32.xlu0 %v6887, 24
  %v6985 = vpop.permute.xlu0 %6984
  %6986 = vrot.lane.b32.xlu0 %v6963, 24
  %v6987 = vpop.permute.xlu0 %6986
  %v6990 = vsel %vm293, %v6431, %v6969
  %v6991 = vsel %vm293, %v6507, %v6971
  %v6992 = vsel %vm77, %v6990, %v6977
  %v6993 = vsel %vm77, %v6991, %v6979
  %v6994 = vsel %vm1640, %v6992, %v6985
  %v6995 = vsel %vm1640, %v6993, %v6987
  %v6996 = vpack.c.bf16 %v6995, %v6994
  %s6997 = scalar_lea.vmem %s7, 48
  %v6998 = vld [vmem:[%s6997] sm:$0xf]
  %v6999 = vld [vmem:[%s6997 + $0x4] sm:$0xf]
  %v7000 = vld [vmem:[%s6997 + $0x8] sm:$0xf]
  %v7001 = vld [vmem:[%s6997 + $0xc] sm:$0xf]
  %s7002 = scalar_lea.vmem %s8, 3
  %v7003 = vld [vmem:[%s7002] sm:$0x1]
  %v7005 = vlaneseq
  %v7006 = vshrl.u32 %v7005, 7
  %v7007 = vsub.s32 0, %v7006
  %v7008 = vrot.slane %v7003, %v7007
  %v7014 = vunpack.c.l.b16 %v6998
  %v7015 = vunpack.c.l.b16 %v6999
  %v7016 = vunpack.c.l.b16 %v7000
  %v7017 = vunpack.c.l.b16 %v7001
  %v7018 = vpack.c.b16 %v7015, %v7014
  %v7019 = vpack.c.b16 %v7017, %v7016
  %v7023 = vsel %vm165, %v6996, 0
  %7025 = vmatprep.subr.bf16.mxu0 0
  %7026 = vmatpush1.bf16.msra.mxu0 0
  %7027 = vmatprep.subr.bf16.mxu0 0
  %7028 = vmatpush1.bf16.msra.mxu0 0
  %7029 = vmatprep.subr.bf16.mxu0 0
  %7030 = vmatpush1.bf16.msra.mxu0 0
  %7031 = vmatprep.subr.bf16.mxu0 0
  %7032 = vmatpush1.bf16.msra.mxu0 0
  %7033 = vmatprep.subr.bf16.mxu0 0
  %7034 = vmatpush1.bf16.msra.mxu0 0
  %7035 = vmatprep.subr.bf16.mxu0 0
  %7036 = vmatpush1.bf16.msra.mxu0 0
  %7037 = vmatprep.subr.bf16.mxu0 0
  %7038 = vmatpush1.bf16.msra.mxu0 %v7019
  %7039 = vmatprep.subr.bf16.mxu0 0
  %7040 = vmatpush1.bf16.msra.mxu0 %v7018
  %7041 = vmatprep.subr.bf16.mxu0 0
  %7042 = vmatpush2.bf16.msra.mxu0 0
  %7043 = vmatprep.subr.bf16.mxu0 0
  %7044 = vmatpush2.bf16.msra.mxu0 0
  %7045 = vmatprep.subr.bf16.mxu0 0
  %7046 = vmatpush2.bf16.msra.mxu0 0
  %7047 = vmatprep.subr.bf16.mxu0 0
  %7048 = vmatpush2.bf16.msra.mxu0 0
  %7049 = vmatprep.subr.bf16.mxu0 0
  %7050 = vmatpush2.bf16.msra.mxu0 0
  %7051 = vmatprep.subr.bf16.mxu0 0
  %7052 = vmatpush2.bf16.msra.mxu0 0
  %7053 = vmatprep.subr.bf16.mxu0 0
  %7054 = vmatpush2.bf16.msra.mxu0 0
  %7055 = vmatprep.subr.bf16.mxu0 0
  %7056 = vmatpush2.bf16.msra.mxu0 0
  %7057 = vmatprep.mubr.bf16.mxu0 0
  %7058 = vmatmul.mubr.bf16.gmra.mxu0 %v7023
  %v7059 = vpop.f32.mrf.mxu0
  %v7060 = vadd.f32 %v7008, %v7059
  %v7061 = vpop.f32.mrf.mxu0
  %v7062 = vpop.f32.mrf.mxu0
  %v7063 = vadd.f32 %v7008, %v7062
  %v7064 = vpop.f32.mrf.mxu0
  %7065 = vdwg.mxu0
  %v7066 = vadd.f32 %v5514, %v7060
  %v7067 = vadd.f32 %v5515, %v7063
  %s7068 = scalar_lea.vmem %s9, 3
  %v7069 = vld [vmem:[%s7068] sm:$0x1]
  %s7070 = scalar_lea.vmem %s10, 3
  %v7071 = vld [vmem:[%s7070] sm:$0x1]
  %v7072 = vsel %vm165, %v7066, 0.0
  %7073 = vadd.xlane.f32.xlu0 %v7072
  %v7074 = vpop.xlane.xlu0 %7073
  %v7075 = vsel %vm165, %v7067, 0.0
  %7076 = vadd.xlane.f32.xlu0 %v7075
  %v7077 = vpop.xlane.xlu0 %7076
  %v7078 = vmul.f32 %v7074, %v172
  %v7079 = vmul.f32 %v7077, %v172
  %v7080 = vsub.f32 %v7066, %v7078
  %v7081 = vsub.f32 %v7067, %v7079
  %v7082 = vmul.f32 %v7080, %v7080
  %v7083 = vmul.f32 %v7081, %v7081
  %v7084 = vsel %vm165, %v7082, 0.0
  %7085 = vadd.xlane.f32.xlu0 %v7084
  %v7086 = vpop.xlane.xlu0 %7085
  %v7087 = vsel %vm165, %v7083, 0.0
  %7088 = vadd.xlane.f32.xlu0 %v7087
  %v7089 = vpop.xlane.xlu0 %7088
  %v7090 = vmul.f32 %v7086, 0.032258064
  %v7091 = vmul.f32 %v7089, 0.032258064
  %v7092 = vadd.f32 %v7090, 1e-12
  %v7093 = vadd.f32 %v7091, 1e-12
  %v7094 = vrcp.pop %v7092
  %v7095 = vmul.f32 %v7080, %v7094
  %v7096 = vrcp.pop %v7093
  %v7097 = vmul.f32 %v7081, %v7096
  %v7099 = vlaneseq
  %v7100 = vshrl.u32 %v7099, 7
  %v7101 = vsub.s32 0, %v7100
  %v7102 = vrot.slane %v7069, %v7101
  %v7104 = vmul.f32 %v7102, %v7095
  %v7105 = vmul.f32 %v7102, %v7097
  %v7107 = vlaneseq
  %v7108 = vshrl.u32 %v7107, 7
  %v7109 = vsub.s32 0, %v7108
  %v7110 = vrot.slane %v7071, %v7109
  %v7112 = vadd.f32 %v7104, %v7110
  %v7113 = vadd.f32 %v7105, %v7110
  %v7114 = vpack.c.bf16 %v7113, %v7112
  %s7115 = scalar_lea.vmem %s11, 48
  %v7116 = vld [vmem:[%s7115] sm:$0xf]
  %v7117 = vld [vmem:[%s7115 + $0x4] sm:$0xf]
  %v7118 = vld [vmem:[%s7115 + $0x8] sm:$0xf]
  %v7119 = vld [vmem:[%s7115 + $0xc] sm:$0xf]
  %s7120 = scalar_lea.vmem %s12, 3
  %v7121 = vld [vmem:[%s7120] sm:$0x1]
  %v7123 = vlaneseq
  %v7124 = vshrl.u32 %v7123, 7
  %v7125 = vsub.s32 0, %v7124
  %v7126 = vrot.slane %v7121, %v7125
  %v7132 = vunpack.c.l.b16 %v7116
  %v7133 = vunpack.c.l.b16 %v7117
  %v7134 = vunpack.c.l.b16 %v7118
  %v7135 = vunpack.c.l.b16 %v7119
  %v7136 = vpack.c.b16 %v7133, %v7132
  %v7137 = vpack.c.b16 %v7135, %v7134
  %v7141 = vsel %vm165, %v7114, 0
  %7143 = vmatprep.subr.bf16.mxu0 0
  %7144 = vmatpush1.bf16.msra.mxu0 0
  %7145 = vmatprep.subr.bf16.mxu0 0
  %7146 = vmatpush1.bf16.msra.mxu0 0
  %7147 = vmatprep.subr.bf16.mxu0 0
  %7148 = vmatpush1.bf16.msra.mxu0 0
  %7149 = vmatprep.subr.bf16.mxu0 0
  %7150 = vmatpush1.bf16.msra.mxu0 0
  %7151 = vmatprep.subr.bf16.mxu0 0
  %7152 = vmatpush1.bf16.msra.mxu0 0
  %7153 = vmatprep.subr.bf16.mxu0 0
  %7154 = vmatpush1.bf16.msra.mxu0 0
  %7155 = vmatprep.subr.bf16.mxu0 0
  %7156 = vmatpush1.bf16.msra.mxu0 %v7137
  %7157 = vmatprep.subr.bf16.mxu0 0
  %7158 = vmatpush1.bf16.msra.mxu0 %v7136
  %7159 = vmatprep.subr.bf16.mxu0 0
  %7160 = vmatpush2.bf16.msra.mxu0 0
  %7161 = vmatprep.subr.bf16.mxu0 0
  %7162 = vmatpush2.bf16.msra.mxu0 0
  %7163 = vmatprep.subr.bf16.mxu0 0
  %7164 = vmatpush2.bf16.msra.mxu0 0
  %7165 = vmatprep.subr.bf16.mxu0 0
  %7166 = vmatpush2.bf16.msra.mxu0 0
  %7167 = vmatprep.subr.bf16.mxu0 0
  %7168 = vmatpush2.bf16.msra.mxu0 0
  %7169 = vmatprep.subr.bf16.mxu0 0
  %7170 = vmatpush2.bf16.msra.mxu0 0
  %7171 = vmatprep.subr.bf16.mxu0 0
  %7172 = vmatpush2.bf16.msra.mxu0 0
  %7173 = vmatprep.subr.bf16.mxu0 0
  %7174 = vmatpush2.bf16.msra.mxu0 0
  %7175 = vmatprep.mubr.bf16.mxu0 0
  %7176 = vmatmul.mubr.bf16.gmra.mxu0 %v7141
  %v7177 = vpop.f32.mrf.mxu0
  %v7178 = vadd.f32 %v7126, %v7177
  %v7179 = vpop.f32.mrf.mxu0
  %v7180 = vpop.f32.mrf.mxu0
  %v7181 = vadd.f32 %v7126, %v7180
  %v7182 = vpop.f32.mrf.mxu0
  %7183 = vdwg.mxu0
  %v7184 = vmax.f32 %v7178, 0.0
  %v7185 = vmax.f32 %v7181, 0.0
  %v7186 = vpack.c.bf16 %v7185, %v7184
  %s7187 = scalar_lea.vmem %s13, 192
  %v7188 = vld [vmem:[%s7187] sm:$0xf]
  %v7189 = vld [vmem:[%s7187 + $0x4] sm:$0xf]
  %v7190 = vld [vmem:[%s7187 + $0x8] sm:$0xf]
  %v7191 = vld [vmem:[%s7187 + $0xc] sm:$0xf]
  %v7192 = vld [vmem:[%s7187 + $0x10] sm:$0xf]
  %v7193 = vld [vmem:[%s7187 + $0x14] sm:$0xf]
  %v7194 = vld [vmem:[%s7187 + $0x18] sm:$0xf]
  %v7195 = vld [vmem:[%s7187 + $0x1c] sm:$0xf]
  %v7196 = vld [vmem:[%s7187 + $0x20] sm:$0xf]
  %v7197 = vld [vmem:[%s7187 + $0x24] sm:$0xf]
  %v7198 = vld [vmem:[%s7187 + $0x28] sm:$0xf]
  %v7199 = vld [vmem:[%s7187 + $0x2c] sm:$0xf]
  %v7200 = vld [vmem:[%s7187 + $0x30] sm:$0xf]
  %v7201 = vld [vmem:[%s7187 + $0x34] sm:$0xf]
  %v7202 = vld [vmem:[%s7187 + $0x38] sm:$0xf]
  %v7203 = vld [vmem:[%s7187 + $0x3c] sm:$0xf]
  %s7204 = scalar_lea.vmem %s14, 3
  %v7205 = vld [vmem:[%s7204] sm:$0x1]
  %v7207 = vlaneseq
  %v7208 = vshrl.u32 %v7207, 7
  %v7209 = vsub.s32 0, %v7208
  %v7210 = vrot.slane %v7205, %v7209
  %v7228 = vunpack.c.l.b16 %v7188
  %v7229 = vunpack.c.l.b16 %v7189
  %v7230 = vunpack.c.l.b16 %v7190
  %v7231 = vunpack.c.l.b16 %v7191
  %v7232 = vunpack.c.l.b16 %v7192
  %v7233 = vunpack.c.l.b16 %v7193
  %v7234 = vunpack.c.l.b16 %v7194
  %v7235 = vunpack.c.l.b16 %v7195
  %v7236 = vunpack.c.l.b16 %v7196
  %v7237 = vunpack.c.l.b16 %v7197
  %v7238 = vunpack.c.l.b16 %v7198
  %v7239 = vunpack.c.l.b16 %v7199
  %v7240 = vunpack.c.l.b16 %v7200
  %v7241 = vunpack.c.l.b16 %v7201
  %v7242 = vunpack.c.l.b16 %v7202
  %v7243 = vunpack.c.l.b16 %v7203
  %v7244 = vpack.c.b16 %v7229, %v7228
  %v7245 = vpack.c.b16 %v7231, %v7230
  %v7246 = vpack.c.b16 %v7233, %v7232
  %v7247 = vpack.c.b16 %v7235, %v7234
  %v7248 = vpack.c.b16 %v7237, %v7236
  %v7249 = vpack.c.b16 %v7239, %v7238
  %v7250 = vpack.c.b16 %v7241, %v7240
  %v7251 = vpack.c.b16 %v7243, %v7242
  %7260 = vmatprep.subr.bf16.mxu0 0
  %7261 = vmatpush1.bf16.msra.mxu0 %v7251
  %7262 = vmatprep.subr.bf16.mxu0 0
  %7263 = vmatpush1.bf16.msra.mxu0 %v7250
  %7264 = vmatprep.subr.bf16.mxu0 0
  %7265 = vmatpush1.bf16.msra.mxu0 %v7249
  %7266 = vmatprep.subr.bf16.mxu0 0
  %7267 = vmatpush1.bf16.msra.mxu0 %v7248
  %7268 = vmatprep.subr.bf16.mxu0 0
  %7269 = vmatpush1.bf16.msra.mxu0 %v7247
  %7270 = vmatprep.subr.bf16.mxu0 0
  %7271 = vmatpush1.bf16.msra.mxu0 %v7246
  %7272 = vmatprep.subr.bf16.mxu0 0
  %7273 = vmatpush1.bf16.msra.mxu0 %v7245
  %7274 = vmatprep.subr.bf16.mxu0 0
  %7275 = vmatpush1.bf16.msra.mxu0 %v7244
  %7276 = vmatprep.subr.bf16.mxu0 0
  %7277 = vmatpush2.bf16.msra.mxu0 0
  %7278 = vmatprep.subr.bf16.mxu0 0
  %7279 = vmatpush2.bf16.msra.mxu0 0
  %7280 = vmatprep.subr.bf16.mxu0 0
  %7281 = vmatpush2.bf16.msra.mxu0 0
  %7282 = vmatprep.subr.bf16.mxu0 0
  %7283 = vmatpush2.bf16.msra.mxu0 0
  %7284 = vmatprep.subr.bf16.mxu0 0
  %7285 = vmatpush2.bf16.msra.mxu0 0
  %7286 = vmatprep.subr.bf16.mxu0 0
  %7287 = vmatpush2.bf16.msra.mxu0 0
  %7288 = vmatprep.subr.bf16.mxu0 0
  %7289 = vmatpush2.bf16.msra.mxu0 0
  %7290 = vmatprep.subr.bf16.mxu0 0
  %7291 = vmatpush2.bf16.msra.mxu0 0
  %7292 = vmatprep.mubr.bf16.mxu0 0
  %7293 = vmatmul.mubr.bf16.gmra.mxu0 %v7186
  %v7294 = vpop.f32.mrf.mxu0
  %v7295 = vadd.f32 %v7210, %v7294
  %v7296 = vpop.f32.mrf.mxu0
  %v7297 = vpop.f32.mrf.mxu0
  %v7298 = vadd.f32 %v7210, %v7297
  %v7299 = vpop.f32.mrf.mxu0
  %7300 = vdwg.mxu0
  %v7301 = vadd.f32 %v5514, %v7295
  %v7302 = vadd.f32 %v5515, %v7298
  %s7303 = scalar_lea.vmem %s3, 4
  %v7304 = vld [vmem:[%s7303] sm:$0x1]
  %s7305 = scalar_lea.vmem %s4, 4
  %v7306 = vld [vmem:[%s7305] sm:$0x1]
  %v7307 = vsel %vm165, %v7301, 0.0
  %7308 = vadd.xlane.f32.xlu0 %v7307
  %v7309 = vpop.xlane.xlu0 %7308
  %v7310 = vsel %vm165, %v7302, 0.0
  %7311 = vadd.xlane.f32.xlu0 %v7310
  %v7312 = vpop.xlane.xlu0 %7311
  %v7313 = vmul.f32 %v7309, %v172
  %v7314 = vmul.f32 %v7312, %v172
  %v7315 = vsub.f32 %v7301, %v7313
  %v7316 = vsub.f32 %v7302, %v7314
  %v7317 = vmul.f32 %v7315, %v7315
  %v7318 = vmul.f32 %v7316, %v7316
  %v7319 = vsel %vm165, %v7317, 0.0
  %7320 = vadd.xlane.f32.xlu0 %v7319
  %v7321 = vpop.xlane.xlu0 %7320
  %v7322 = vsel %vm165, %v7318, 0.0
  %7323 = vadd.xlane.f32.xlu0 %v7322
  %v7324 = vpop.xlane.xlu0 %7323
  %v7325 = vmul.f32 %v7321, 0.032258064
  %v7326 = vmul.f32 %v7324, 0.032258064
  %v7327 = vadd.f32 %v7325, 1e-12
  %v7328 = vadd.f32 %v7326, 1e-12
  %v7329 = vrcp.pop %v7327
  %v7330 = vmul.f32 %v7315, %v7329
  %v7331 = vrcp.pop %v7328
  %v7332 = vmul.f32 %v7316, %v7331
  %v7334 = vlaneseq
  %v7335 = vshrl.u32 %v7334, 7
  %v7336 = vsub.s32 0, %v7335
  %v7337 = vrot.slane %v7304, %v7336
  %v7339 = vmul.f32 %v7337, %v7330
  %v7340 = vmul.f32 %v7337, %v7332
  %v7342 = vlaneseq
  %v7343 = vshrl.u32 %v7342, 7
  %v7344 = vsub.s32 0, %v7343
  %v7345 = vrot.slane %v7306, %v7344
  %v7347 = vadd.f32 %v7339, %v7345
  %v7348 = vadd.f32 %v7340, %v7345
  %v7349 = vpack.c.bf16 %v7348, %v7347
  %s7350 = scalar_lea.vmem %s5, 64
  %v7351 = vld [vmem:[%s7350] sm:$0xf]
  %v7352 = vld [vmem:[%s7350 + $0x4] sm:$0xf]
  %v7353 = vld [vmem:[%s7350 + $0x8] sm:$0xf]
  %v7354 = vld [vmem:[%s7350 + $0xc] sm:$0xf]
  %s7355 = scalar_lea.vmem %s6, 4
  %v7356 = vld [vmem:[%s7355] sm:$0x1]
  %v7358 = vlaneseq
  %v7359 = vshrl.u32 %v7358, 7
  %v7360 = vsub.s32 0, %v7359
  %v7361 = vrot.slane %v7356, %v7360
  %v7367 = vunpack.c.l.b16 %v7351
  %v7368 = vunpack.c.l.b16 %v7352
  %v7369 = vunpack.c.l.b16 %v7353
  %v7370 = vunpack.c.l.b16 %v7354
  %v7371 = vpack.c.b16 %v7368, %v7367
  %v7372 = vpack.c.b16 %v7370, %v7369
  %v7376 = vsel %vm165, %v7349, 0
  %7378 = vmatprep.subr.bf16.mxu0 0
  %7379 = vmatpush1.bf16.msra.mxu0 0
  %7380 = vmatprep.subr.bf16.mxu0 0
  %7381 = vmatpush1.bf16.msra.mxu0 0
  %7382 = vmatprep.subr.bf16.mxu0 0
  %7383 = vmatpush1.bf16.msra.mxu0 0
  %7384 = vmatprep.subr.bf16.mxu0 0
  %7385 = vmatpush1.bf16.msra.mxu0 0
  %7386 = vmatprep.subr.bf16.mxu0 0
  %7387 = vmatpush1.bf16.msra.mxu0 0
  %7388 = vmatprep.subr.bf16.mxu0 0
  %7389 = vmatpush1.bf16.msra.mxu0 0
  %7390 = vmatprep.subr.bf16.mxu0 0
  %7391 = vmatpush1.bf16.msra.mxu0 %v7372
  %7392 = vmatprep.subr.bf16.mxu0 0
  %7393 = vmatpush1.bf16.msra.mxu0 %v7371
  %7394 = vmatprep.subr.bf16.mxu0 0
  %7395 = vmatpush2.bf16.msra.mxu0 0
  %7396 = vmatprep.subr.bf16.mxu0 0
  %7397 = vmatpush2.bf16.msra.mxu0 0
  %7398 = vmatprep.subr.bf16.mxu0 0
  %7399 = vmatpush2.bf16.msra.mxu0 0
  %7400 = vmatprep.subr.bf16.mxu0 0
  %7401 = vmatpush2.bf16.msra.mxu0 0
  %7402 = vmatprep.subr.bf16.mxu0 0
  %7403 = vmatpush2.bf16.msra.mxu0 0
  %7404 = vmatprep.subr.bf16.mxu0 0
  %7405 = vmatpush2.bf16.msra.mxu0 0
  %7406 = vmatprep.subr.bf16.mxu0 0
  %7407 = vmatpush2.bf16.msra.mxu0 0
  %7408 = vmatprep.subr.bf16.mxu0 0
  %7409 = vmatpush2.bf16.msra.mxu0 0
  %7410 = vmatprep.mubr.bf16.mxu0 0
  %7411 = vmatmul.mubr.bf16.gmra.mxu0 %v7376
  %v7412 = vpop.f32.mrf.mxu0
  %v7413 = vadd.f32 %v7361, %v7412
  %v7414 = vpop.f32.mrf.mxu0
  %v7415 = vpop.f32.mrf.mxu0
  %v7416 = vadd.f32 %v7361, %v7415
  %v7417 = vpop.f32.mrf.mxu0
  %7418 = vdwg.mxu0
  %7421 = vrot.lane.b32.xlu0 %v7413, 120
  %v7422 = vpop.permute.xlu0 %7421
  %7423 = vrot.lane.b32.xlu0 %v7416, 120
  %v7424 = vpop.permute.xlu0 %7423
  %7425 = vrot.lane.b32.xlu0 %v7413, 112
  %v7426 = vpop.permute.xlu0 %7425
  %7427 = vrot.lane.b32.xlu0 %v7416, 112
  %v7428 = vpop.permute.xlu0 %7427
  %7429 = vrot.lane.b32.xlu0 %v7413, 104
  %v7430 = vpop.permute.xlu0 %7429
  %7431 = vrot.lane.b32.xlu0 %v7416, 104
  %v7432 = vpop.permute.xlu0 %7431
  %7433 = vrot.lane.b32.xlu0 %v7413, 96
  %v7434 = vpop.permute.xlu0 %7433
  %v7435 = vsel %vm293, %v7413, 0
  %v7437 = vsel %vm293, %v7434, 0
  %7439 = vmatprep.subr.mxu0 0.0
  %7440 = vmatpush1.xpose.msra.mxu0 0.0
  %7441 = vmatprep.subr.mxu0 0.0
  %7442 = vmatpush1.xpose.msra.mxu0 0.0
  %7443 = vmatprep.subr.mxu0 0.0
  %7444 = vmatpush1.xpose.msra.mxu0 0.0
  %7445 = vmatprep.subr.mxu0 0.0
  %7446 = vmatpush1.xpose.msra.mxu0 0.0
  %7447 = vmatprep.subr.mxu0 0.0
  %7448 = vmatpush1.xpose.msra.mxu0 0.0
  %7449 = vmatprep.subr.mxu0 0.0
  %7450 = vmatpush1.xpose.msra.mxu0 0.0
  %7451 = vmatprep.subr.mxu0 0.0
  %7452 = vmatpush1.xpose.msra.mxu0 0.0
  %7453 = vmatprep.subr.mxu0 0.0
  %7454 = vmatpush1.xpose.msra.mxu0 0.0
  %7455 = vmatprep.subr.mxu0 0.0
  %7456 = vmatpush1.xpose.msra.mxu0 0.0
  %7457 = vmatprep.subr.mxu0 0.0
  %7458 = vmatpush1.xpose.msra.mxu0 0.0
  %7459 = vmatprep.subr.mxu0 0.0
  %7460 = vmatpush1.xpose.msra.mxu0 0.0
  %7461 = vmatprep.subr.mxu0 0.0
  %7462 = vmatpush1.xpose.msra.mxu0 0.0
  %7463 = vmatprep.subr.mxu0 0.0
  %7464 = vmatpush1.xpose.msra.mxu0 0.0
  %7465 = vmatprep.subr.mxu0 0.0
  %7466 = vmatpush1.xpose.msra.mxu0 0.0
  %7467 = vmatprep.subr.mxu0 0.0
  %7468 = vmatpush1.xpose.msra.mxu0 0.0
  %7469 = vmatprep.subr.mxu0 0.0
  %7470 = vmatpush1.xpose.msra.mxu0 %v7437
  %7471 = vmatprep.subr.mxu0 0.0
  %7472 = vmatpush2.xpose.msra.mxu0 0.0
  %7473 = vmatprep.subr.mxu0 0.0
  %7474 = vmatpush2.xpose.msra.mxu0 0.0
  %7475 = vmatprep.subr.mxu0 0.0
  %7476 = vmatpush2.xpose.msra.mxu0 0.0
  %7477 = vmatprep.subr.mxu0 0.0
  %7478 = vmatpush2.xpose.msra.mxu0 0.0
  %7479 = vmatprep.subr.mxu0 0.0
  %7480 = vmatpush2.xpose.msra.mxu0 0.0
  %7481 = vmatprep.subr.mxu0 0.0
  %7482 = vmatpush2.xpose.msra.mxu0 0.0
  %7483 = vmatprep.subr.mxu0 0.0
  %7484 = vmatpush2.xpose.msra.mxu0 0.0
  %7485 = vmatprep.subr.mxu0 0.0
  %7486 = vmatpush2.xpose.msra.mxu0 0.0
  %7487 = vmatprep.subr.mxu0 0.0
  %7488 = vmatpush2.xpose.msra.mxu0 0.0
  %7489 = vmatprep.subr.mxu0 0.0
  %7490 = vmatpush2.xpose.msra.mxu0 0.0
  %7491 = vmatprep.subr.mxu0 0.0
  %7492 = vmatpush2.xpose.msra.mxu0 0.0
  %7493 = vmatprep.subr.mxu0 0.0
  %7494 = vmatpush2.xpose.msra.mxu0 0.0
  %7495 = vmatprep.subr.mxu0 0.0
  %7496 = vmatpush2.xpose.msra.mxu0 0.0
  %7497 = vmatprep.subr.mxu0 0.0
  %7498 = vmatpush2.xpose.msra.mxu0 0.0
  %7499 = vmatprep.subr.mxu0 0.0
  %7500 = vmatpush2.xpose.msra.mxu0 0.0
  %7501 = vmatprep.subr.mxu0 0.0
  %7502 = vmatpush2.xpose.msra.mxu0 0.0
  %7503 = vmatprep.mubr.f32.mxu0 0.0
  %7504 = vmatmul.mubr.f32.gmra.mxu0 %v7435
  %v7505 = vpop.f32.mrf.mxu0
  %v7506 = vadd.f32 0.0, %v7505
  %v7507 = vpop.f32.mrf.mxu0
  %7508 = vdwg.mxu0
  %7509 = vrot.lane.b32.xlu0 %v7416, 96
  %v7510 = vpop.permute.xlu0 %7509
  %v7511 = vsel %vm293, %v7416, 0
  %v7513 = vsel %vm293, %v7510, 0
  %7515 = vmatprep.subr.mxu0 0.0
  %7516 = vmatpush1.xpose.msra.mxu0 0.0
  %7517 = vmatprep.subr.mxu0 0.0
  %7518 = vmatpush1.xpose.msra.mxu0 0.0
  %7519 = vmatprep.subr.mxu0 0.0
  %7520 = vmatpush1.xpose.msra.mxu0 0.0
  %7521 = vmatprep.subr.mxu0 0.0
  %7522 = vmatpush1.xpose.msra.mxu0 0.0
  %7523 = vmatprep.subr.mxu0 0.0
  %7524 = vmatpush1.xpose.msra.mxu0 0.0
  %7525 = vmatprep.subr.mxu0 0.0
  %7526 = vmatpush1.xpose.msra.mxu0 0.0
  %7527 = vmatprep.subr.mxu0 0.0
  %7528 = vmatpush1.xpose.msra.mxu0 0.0
  %7529 = vmatprep.subr.mxu0 0.0
  %7530 = vmatpush1.xpose.msra.mxu0 0.0
  %7531 = vmatprep.subr.mxu0 0.0
  %7532 = vmatpush1.xpose.msra.mxu0 0.0
  %7533 = vmatprep.subr.mxu0 0.0
  %7534 = vmatpush1.xpose.msra.mxu0 0.0
  %7535 = vmatprep.subr.mxu0 0.0
  %7536 = vmatpush1.xpose.msra.mxu0 0.0
  %7537 = vmatprep.subr.mxu0 0.0
  %7538 = vmatpush1.xpose.msra.mxu0 0.0
  %7539 = vmatprep.subr.mxu0 0.0
  %7540 = vmatpush1.xpose.msra.mxu0 0.0
  %7541 = vmatprep.subr.mxu0 0.0
  %7542 = vmatpush1.xpose.msra.mxu0 0.0
  %7543 = vmatprep.subr.mxu0 0.0
  %7544 = vmatpush1.xpose.msra.mxu0 0.0
  %7545 = vmatprep.subr.mxu0 0.0
  %7546 = vmatpush1.xpose.msra.mxu0 %v7513
  %7547 = vmatprep.subr.mxu0 0.0
  %7548 = vmatpush2.xpose.msra.mxu0 0.0
  %7549 = vmatprep.subr.mxu0 0.0
  %7550 = vmatpush2.xpose.msra.mxu0 0.0
  %7551 = vmatprep.subr.mxu0 0.0
  %7552 = vmatpush2.xpose.msra.mxu0 0.0
  %7553 = vmatprep.subr.mxu0 0.0
  %7554 = vmatpush2.xpose.msra.mxu0 0.0
  %7555 = vmatprep.subr.mxu0 0.0
  %7556 = vmatpush2.xpose.msra.mxu0 0.0
  %7557 = vmatprep.subr.mxu0 0.0
  %7558 = vmatpush2.xpose.msra.mxu0 0.0
  %7559 = vmatprep.subr.mxu0 0.0
  %7560 = vmatpush2.xpose.msra.mxu0 0.0
  %7561 = vmatprep.subr.mxu0 0.0
  %7562 = vmatpush2.xpose.msra.mxu0 0.0
  %7563 = vmatprep.subr.mxu0 0.0
  %7564 = vmatpush2.xpose.msra.mxu0 0.0
  %7565 = vmatprep.subr.mxu0 0.0
  %7566 = vmatpush2.xpose.msra.mxu0 0.0
  %7567 = vmatprep.subr.mxu0 0.0
  %7568 = vmatpush2.xpose.msra.mxu0 0.0
  %7569 = vmatprep.subr.mxu0 0.0
  %7570 = vmatpush2.xpose.msra.mxu0 0.0
  %7571 = vmatprep.subr.mxu0 0.0
  %7572 = vmatpush2.xpose.msra.mxu0 0.0
  %7573 = vmatprep.subr.mxu0 0.0
  %7574 = vmatpush2.xpose.msra.mxu0 0.0
  %7575 = vmatprep.subr.mxu0 0.0
  %7576 = vmatpush2.xpose.msra.mxu0 0.0
  %7577 = vmatprep.subr.mxu0 0.0
  %7578 = vmatpush2.xpose.msra.mxu0 0.0
  %7579 = vmatprep.mubr.f32.mxu0 0.0
  %7580 = vmatmul.mubr.f32.gmra.mxu0 %v7511
  %v7581 = vpop.f32.mrf.mxu0
  %v7582 = vadd.f32 0.0, %v7581
  %v7583 = vpop.f32.mrf.mxu0
  %7584 = vdwg.mxu0
  %7585 = vrot.lane.b32.xlu0 %v7422, 96
  %v7586 = vpop.permute.xlu0 %7585
  %v7587 = vsel %vm293, %v7422, 0
  %v7589 = vsel %vm293, %v7586, 0
  %7591 = vmatprep.subr.mxu0 0.0
  %7592 = vmatpush1.xpose.msra.mxu0 0.0
  %7593 = vmatprep.subr.mxu0 0.0
  %7594 = vmatpush1.xpose.msra.mxu0 0.0
  %7595 = vmatprep.subr.mxu0 0.0
  %7596 = vmatpush1.xpose.msra.mxu0 0.0
  %7597 = vmatprep.subr.mxu0 0.0
  %7598 = vmatpush1.xpose.msra.mxu0 0.0
  %7599 = vmatprep.subr.mxu0 0.0
  %7600 = vmatpush1.xpose.msra.mxu0 0.0
  %7601 = vmatprep.subr.mxu0 0.0
  %7602 = vmatpush1.xpose.msra.mxu0 0.0
  %7603 = vmatprep.subr.mxu0 0.0
  %7604 = vmatpush1.xpose.msra.mxu0 0.0
  %7605 = vmatprep.subr.mxu0 0.0
  %7606 = vmatpush1.xpose.msra.mxu0 0.0
  %7607 = vmatprep.subr.mxu0 0.0
  %7608 = vmatpush1.xpose.msra.mxu0 0.0
  %7609 = vmatprep.subr.mxu0 0.0
  %7610 = vmatpush1.xpose.msra.mxu0 0.0
  %7611 = vmatprep.subr.mxu0 0.0
  %7612 = vmatpush1.xpose.msra.mxu0 0.0
  %7613 = vmatprep.subr.mxu0 0.0
  %7614 = vmatpush1.xpose.msra.mxu0 0.0
  %7615 = vmatprep.subr.mxu0 0.0
  %7616 = vmatpush1.xpose.msra.mxu0 0.0
  %7617 = vmatprep.subr.mxu0 0.0
  %7618 = vmatpush1.xpose.msra.mxu0 0.0
  %7619 = vmatprep.subr.mxu0 0.0
  %7620 = vmatpush1.xpose.msra.mxu0 0.0
  %7621 = vmatprep.subr.mxu0 0.0
  %7622 = vmatpush1.xpose.msra.mxu0 %v7589
  %7623 = vmatprep.subr.mxu0 0.0
  %7624 = vmatpush2.xpose.msra.mxu0 0.0
  %7625 = vmatprep.subr.mxu0 0.0
  %7626 = vmatpush2.xpose.msra.mxu0 0.0
  %7627 = vmatprep.subr.mxu0 0.0
  %7628 = vmatpush2.xpose.msra.mxu0 0.0
  %7629 = vmatprep.subr.mxu0 0.0
  %7630 = vmatpush2.xpose.msra.mxu0 0.0
  %7631 = vmatprep.subr.mxu0 0.0
  %7632 = vmatpush2.xpose.msra.mxu0 0.0
  %7633 = vmatprep.subr.mxu0 0.0
  %7634 = vmatpush2.xpose.msra.mxu0 0.0
  %7635 = vmatprep.subr.mxu0 0.0
  %7636 = vmatpush2.xpose.msra.mxu0 0.0
  %7637 = vmatprep.subr.mxu0 0.0
  %7638 = vmatpush2.xpose.msra.mxu0 0.0
  %7639 = vmatprep.subr.mxu0 0.0
  %7640 = vmatpush2.xpose.msra.mxu0 0.0
  %7641 = vmatprep.subr.mxu0 0.0
  %7642 = vmatpush2.xpose.msra.mxu0 0.0
  %7643 = vmatprep.subr.mxu0 0.0
  %7644 = vmatpush2.xpose.msra.mxu0 0.0
  %7645 = vmatprep.subr.mxu0 0.0
  %7646 = vmatpush2.xpose.msra.mxu0 0.0
  %7647 = vmatprep.subr.mxu0 0.0
  %7648 = vmatpush2.xpose.msra.mxu0 0.0
  %7649 = vmatprep.subr.mxu0 0.0
  %7650 = vmatpush2.xpose.msra.mxu0 0.0
  %7651 = vmatprep.subr.mxu0 0.0
  %7652 = vmatpush2.xpose.msra.mxu0 0.0
  %7653 = vmatprep.subr.mxu0 0.0
  %7654 = vmatpush2.xpose.msra.mxu0 0.0
  %7655 = vmatprep.mubr.f32.mxu0 0.0
  %7656 = vmatmul.mubr.f32.gmra.mxu0 %v7587
  %v7657 = vpop.f32.mrf.mxu0
  %v7658 = vadd.f32 0.0, %v7657
  %v7659 = vpop.f32.mrf.mxu0
  %7660 = vdwg.mxu0
  %7661 = vrot.lane.b32.xlu0 %v7424, 96
  %v7662 = vpop.permute.xlu0 %7661
  %v7663 = vsel %vm293, %v7424, 0
  %v7665 = vsel %vm293, %v7662, 0
  %7667 = vmatprep.subr.mxu0 0.0
  %7668 = vmatpush1.xpose.msra.mxu0 0.0
  %7669 = vmatprep.subr.mxu0 0.0
  %7670 = vmatpush1.xpose.msra.mxu0 0.0
  %7671 = vmatprep.subr.mxu0 0.0
  %7672 = vmatpush1.xpose.msra.mxu0 0.0
  %7673 = vmatprep.subr.mxu0 0.0
  %7674 = vmatpush1.xpose.msra.mxu0 0.0
  %7675 = vmatprep.subr.mxu0 0.0
  %7676 = vmatpush1.xpose.msra.mxu0 0.0
  %7677 = vmatprep.subr.mxu0 0.0
  %7678 = vmatpush1.xpose.msra.mxu0 0.0
  %7679 = vmatprep.subr.mxu0 0.0
  %7680 = vmatpush1.xpose.msra.mxu0 0.0
  %7681 = vmatprep.subr.mxu0 0.0
  %7682 = vmatpush1.xpose.msra.mxu0 0.0
  %7683 = vmatprep.subr.mxu0 0.0
  %7684 = vmatpush1.xpose.msra.mxu0 0.0
  %7685 = vmatprep.subr.mxu0 0.0
  %7686 = vmatpush1.xpose.msra.mxu0 0.0
  %7687 = vmatprep.subr.mxu0 0.0
  %7688 = vmatpush1.xpose.msra.mxu0 0.0
  %7689 = vmatprep.subr.mxu0 0.0
  %7690 = vmatpush1.xpose.msra.mxu0 0.0
  %7691 = vmatprep.subr.mxu0 0.0
  %7692 = vmatpush1.xpose.msra.mxu0 0.0
  %7693 = vmatprep.subr.mxu0 0.0
  %7694 = vmatpush1.xpose.msra.mxu0 0.0
  %7695 = vmatprep.subr.mxu0 0.0
  %7696 = vmatpush1.xpose.msra.mxu0 0.0
  %7697 = vmatprep.subr.mxu0 0.0
  %7698 = vmatpush1.xpose.msra.mxu0 %v7665
  %7699 = vmatprep.subr.mxu0 0.0
  %7700 = vmatpush2.xpose.msra.mxu0 0.0
  %7701 = vmatprep.subr.mxu0 0.0
  %7702 = vmatpush2.xpose.msra.mxu0 0.0
  %7703 = vmatprep.subr.mxu0 0.0
  %7704 = vmatpush2.xpose.msra.mxu0 0.0
  %7705 = vmatprep.subr.mxu0 0.0
  %7706 = vmatpush2.xpose.msra.mxu0 0.0
  %7707 = vmatprep.subr.mxu0 0.0
  %7708 = vmatpush2.xpose.msra.mxu0 0.0
  %7709 = vmatprep.subr.mxu0 0.0
  %7710 = vmatpush2.xpose.msra.mxu0 0.0
  %7711 = vmatprep.subr.mxu0 0.0
  %7712 = vmatpush2.xpose.msra.mxu0 0.0
  %7713 = vmatprep.subr.mxu0 0.0
  %7714 = vmatpush2.xpose.msra.mxu0 0.0
  %7715 = vmatprep.subr.mxu0 0.0
  %7716 = vmatpush2.xpose.msra.mxu0 0.0
  %7717 = vmatprep.subr.mxu0 0.0
  %7718 = vmatpush2.xpose.msra.mxu0 0.0
  %7719 = vmatprep.subr.mxu0 0.0
  %7720 = vmatpush2.xpose.msra.mxu0 0.0
  %7721 = vmatprep.subr.mxu0 0.0
  %7722 = vmatpush2.xpose.msra.mxu0 0.0
  %7723 = vmatprep.subr.mxu0 0.0
  %7724 = vmatpush2.xpose.msra.mxu0 0.0
  %7725 = vmatprep.subr.mxu0 0.0
  %7726 = vmatpush2.xpose.msra.mxu0 0.0
  %7727 = vmatprep.subr.mxu0 0.0
  %7728 = vmatpush2.xpose.msra.mxu0 0.0
  %7729 = vmatprep.subr.mxu0 0.0
  %7730 = vmatpush2.xpose.msra.mxu0 0.0
  %7731 = vmatprep.mubr.f32.mxu0 0.0
  %7732 = vmatmul.mubr.f32.gmra.mxu0 %v7663
  %v7733 = vpop.f32.mrf.mxu0
  %v7734 = vadd.f32 0.0, %v7733
  %v7735 = vpop.f32.mrf.mxu0
  %7736 = vdwg.mxu0
  %7737 = vrot.lane.b32.xlu0 %v7426, 96
  %v7738 = vpop.permute.xlu0 %7737
  %v7739 = vsel %vm293, %v7426, 0
  %v7741 = vsel %vm293, %v7738, 0
  %7743 = vmatprep.subr.mxu0 0.0
  %7744 = vmatpush1.xpose.msra.mxu0 0.0
  %7745 = vmatprep.subr.mxu0 0.0
  %7746 = vmatpush1.xpose.msra.mxu0 0.0
  %7747 = vmatprep.subr.mxu0 0.0
  %7748 = vmatpush1.xpose.msra.mxu0 0.0
  %7749 = vmatprep.subr.mxu0 0.0
  %7750 = vmatpush1.xpose.msra.mxu0 0.0
  %7751 = vmatprep.subr.mxu0 0.0
  %7752 = vmatpush1.xpose.msra.mxu0 0.0
  %7753 = vmatprep.subr.mxu0 0.0
  %7754 = vmatpush1.xpose.msra.mxu0 0.0
  %7755 = vmatprep.subr.mxu0 0.0
  %7756 = vmatpush1.xpose.msra.mxu0 0.0
  %7757 = vmatprep.subr.mxu0 0.0
  %7758 = vmatpush1.xpose.msra.mxu0 0.0
  %7759 = vmatprep.subr.mxu0 0.0
  %7760 = vmatpush1.xpose.msra.mxu0 0.0
  %7761 = vmatprep.subr.mxu0 0.0
  %7762 = vmatpush1.xpose.msra.mxu0 0.0
  %7763 = vmatprep.subr.mxu0 0.0
  %7764 = vmatpush1.xpose.msra.mxu0 0.0
  %7765 = vmatprep.subr.mxu0 0.0
  %7766 = vmatpush1.xpose.msra.mxu0 0.0
  %7767 = vmatprep.subr.mxu0 0.0
  %7768 = vmatpush1.xpose.msra.mxu0 0.0
  %7769 = vmatprep.subr.mxu0 0.0
  %7770 = vmatpush1.xpose.msra.mxu0 0.0
  %7771 = vmatprep.subr.mxu0 0.0
  %7772 = vmatpush1.xpose.msra.mxu0 0.0
  %7773 = vmatprep.subr.mxu0 0.0
  %7774 = vmatpush1.xpose.msra.mxu0 %v7741
  %7775 = vmatprep.subr.mxu0 0.0
  %7776 = vmatpush2.xpose.msra.mxu0 0.0
  %7777 = vmatprep.subr.mxu0 0.0
  %7778 = vmatpush2.xpose.msra.mxu0 0.0
  %7779 = vmatprep.subr.mxu0 0.0
  %7780 = vmatpush2.xpose.msra.mxu0 0.0
  %7781 = vmatprep.subr.mxu0 0.0
  %7782 = vmatpush2.xpose.msra.mxu0 0.0
  %7783 = vmatprep.subr.mxu0 0.0
  %7784 = vmatpush2.xpose.msra.mxu0 0.0
  %7785 = vmatprep.subr.mxu0 0.0
  %7786 = vmatpush2.xpose.msra.mxu0 0.0
  %7787 = vmatprep.subr.mxu0 0.0
  %7788 = vmatpush2.xpose.msra.mxu0 0.0
  %7789 = vmatprep.subr.mxu0 0.0
  %7790 = vmatpush2.xpose.msra.mxu0 0.0
  %7791 = vmatprep.subr.mxu0 0.0
  %7792 = vmatpush2.xpose.msra.mxu0 0.0
  %7793 = vmatprep.subr.mxu0 0.0
  %7794 = vmatpush2.xpose.msra.mxu0 0.0
  %7795 = vmatprep.subr.mxu0 0.0
  %7796 = vmatpush2.xpose.msra.mxu0 0.0
  %7797 = vmatprep.subr.mxu0 0.0
  %7798 = vmatpush2.xpose.msra.mxu0 0.0
  %7799 = vmatprep.subr.mxu0 0.0
  %7800 = vmatpush2.xpose.msra.mxu0 0.0
  %7801 = vmatprep.subr.mxu0 0.0
  %7802 = vmatpush2.xpose.msra.mxu0 0.0
  %7803 = vmatprep.subr.mxu0 0.0
  %7804 = vmatpush2.xpose.msra.mxu0 0.0
  %7805 = vmatprep.subr.mxu0 0.0
  %7806 = vmatpush2.xpose.msra.mxu0 0.0
  %7807 = vmatprep.mubr.f32.mxu0 0.0
  %7808 = vmatmul.mubr.f32.gmra.mxu0 %v7739
  %v7809 = vpop.f32.mrf.mxu0
  %v7810 = vadd.f32 0.0, %v7809
  %v7811 = vpop.f32.mrf.mxu0
  %7812 = vdwg.mxu0
  %7813 = vrot.lane.b32.xlu0 %v7428, 96
  %v7814 = vpop.permute.xlu0 %7813
  %v7815 = vsel %vm293, %v7428, 0
  %v7817 = vsel %vm293, %v7814, 0
  %7819 = vmatprep.subr.mxu0 0.0
  %7820 = vmatpush1.xpose.msra.mxu0 0.0
  %7821 = vmatprep.subr.mxu0 0.0
  %7822 = vmatpush1.xpose.msra.mxu0 0.0
  %7823 = vmatprep.subr.mxu0 0.0
  %7824 = vmatpush1.xpose.msra.mxu0 0.0
  %7825 = vmatprep.subr.mxu0 0.0
  %7826 = vmatpush1.xpose.msra.mxu0 0.0
  %7827 = vmatprep.subr.mxu0 0.0
  %7828 = vmatpush1.xpose.msra.mxu0 0.0
  %7829 = vmatprep.subr.mxu0 0.0
  %7830 = vmatpush1.xpose.msra.mxu0 0.0
  %7831 = vmatprep.subr.mxu0 0.0
  %7832 = vmatpush1.xpose.msra.mxu0 0.0
  %7833 = vmatprep.subr.mxu0 0.0
  %7834 = vmatpush1.xpose.msra.mxu0 0.0
  %7835 = vmatprep.subr.mxu0 0.0
  %7836 = vmatpush1.xpose.msra.mxu0 0.0
  %7837 = vmatprep.subr.mxu0 0.0
  %7838 = vmatpush1.xpose.msra.mxu0 0.0
  %7839 = vmatprep.subr.mxu0 0.0
  %7840 = vmatpush1.xpose.msra.mxu0 0.0
  %7841 = vmatprep.subr.mxu0 0.0
  %7842 = vmatpush1.xpose.msra.mxu0 0.0
  %7843 = vmatprep.subr.mxu0 0.0
  %7844 = vmatpush1.xpose.msra.mxu0 0.0
  %7845 = vmatprep.subr.mxu0 0.0
  %7846 = vmatpush1.xpose.msra.mxu0 0.0
  %7847 = vmatprep.subr.mxu0 0.0
  %7848 = vmatpush1.xpose.msra.mxu0 0.0
  %7849 = vmatprep.subr.mxu0 0.0
  %7850 = vmatpush1.xpose.msra.mxu0 %v7817
  %7851 = vmatprep.subr.mxu0 0.0
  %7852 = vmatpush2.xpose.msra.mxu0 0.0
  %7853 = vmatprep.subr.mxu0 0.0
  %7854 = vmatpush2.xpose.msra.mxu0 0.0
  %7855 = vmatprep.subr.mxu0 0.0
  %7856 = vmatpush2.xpose.msra.mxu0 0.0
  %7857 = vmatprep.subr.mxu0 0.0
  %7858 = vmatpush2.xpose.msra.mxu0 0.0
  %7859 = vmatprep.subr.mxu0 0.0
  %7860 = vmatpush2.xpose.msra.mxu0 0.0
  %7861 = vmatprep.subr.mxu0 0.0
  %7862 = vmatpush2.xpose.msra.mxu0 0.0
  %7863 = vmatprep.subr.mxu0 0.0
  %7864 = vmatpush2.xpose.msra.mxu0 0.0
  %7865 = vmatprep.subr.mxu0 0.0
  %7866 = vmatpush2.xpose.msra.mxu0 0.0
  %7867 = vmatprep.subr.mxu0 0.0
  %7868 = vmatpush2.xpose.msra.mxu0 0.0
  %7869 = vmatprep.subr.mxu0 0.0
  %7870 = vmatpush2.xpose.msra.mxu0 0.0
  %7871 = vmatprep.subr.mxu0 0.0
  %7872 = vmatpush2.xpose.msra.mxu0 0.0
  %7873 = vmatprep.subr.mxu0 0.0
  %7874 = vmatpush2.xpose.msra.mxu0 0.0
  %7875 = vmatprep.subr.mxu0 0.0
  %7876 = vmatpush2.xpose.msra.mxu0 0.0
  %7877 = vmatprep.subr.mxu0 0.0
  %7878 = vmatpush2.xpose.msra.mxu0 0.0
  %7879 = vmatprep.subr.mxu0 0.0
  %7880 = vmatpush2.xpose.msra.mxu0 0.0
  %7881 = vmatprep.subr.mxu0 0.0
  %7882 = vmatpush2.xpose.msra.mxu0 0.0
  %7883 = vmatprep.mubr.f32.mxu0 0.0
  %7884 = vmatmul.mubr.f32.gmra.mxu0 %v7815
  %v7885 = vpop.f32.mrf.mxu0
  %v7886 = vadd.f32 0.0, %v7885
  %v7887 = vpop.f32.mrf.mxu0
  %7888 = vdwg.mxu0
  %7889 = vrot.lane.b32.xlu0 %v7430, 96
  %v7890 = vpop.permute.xlu0 %7889
  %v7891 = vsel %vm293, %v7430, 0
  %v7893 = vsel %vm293, %v7890, 0
  %7895 = vmatprep.subr.mxu0 0.0
  %7896 = vmatpush1.xpose.msra.mxu0 0.0
  %7897 = vmatprep.subr.mxu0 0.0
  %7898 = vmatpush1.xpose.msra.mxu0 0.0
  %7899 = vmatprep.subr.mxu0 0.0
  %7900 = vmatpush1.xpose.msra.mxu0 0.0
  %7901 = vmatprep.subr.mxu0 0.0
  %7902 = vmatpush1.xpose.msra.mxu0 0.0
  %7903 = vmatprep.subr.mxu0 0.0
  %7904 = vmatpush1.xpose.msra.mxu0 0.0
  %7905 = vmatprep.subr.mxu0 0.0
  %7906 = vmatpush1.xpose.msra.mxu0 0.0
  %7907 = vmatprep.subr.mxu0 0.0
  %7908 = vmatpush1.xpose.msra.mxu0 0.0
  %7909 = vmatprep.subr.mxu0 0.0
  %7910 = vmatpush1.xpose.msra.mxu0 0.0
  %7911 = vmatprep.subr.mxu0 0.0
  %7912 = vmatpush1.xpose.msra.mxu0 0.0
  %7913 = vmatprep.subr.mxu0 0.0
  %7914 = vmatpush1.xpose.msra.mxu0 0.0
  %7915 = vmatprep.subr.mxu0 0.0
  %7916 = vmatpush1.xpose.msra.mxu0 0.0
  %7917 = vmatprep.subr.mxu0 0.0
  %7918 = vmatpush1.xpose.msra.mxu0 0.0
  %7919 = vmatprep.subr.mxu0 0.0
  %7920 = vmatpush1.xpose.msra.mxu0 0.0
  %7921 = vmatprep.subr.mxu0 0.0
  %7922 = vmatpush1.xpose.msra.mxu0 0.0
  %7923 = vmatprep.subr.mxu0 0.0
  %7924 = vmatpush1.xpose.msra.mxu0 0.0
  %7925 = vmatprep.subr.mxu0 0.0
  %7926 = vmatpush1.xpose.msra.mxu0 %v7893
  %7927 = vmatprep.subr.mxu0 0.0
  %7928 = vmatpush2.xpose.msra.mxu0 0.0
  %7929 = vmatprep.subr.mxu0 0.0
  %7930 = vmatpush2.xpose.msra.mxu0 0.0
  %7931 = vmatprep.subr.mxu0 0.0
  %7932 = vmatpush2.xpose.msra.mxu0 0.0
  %7933 = vmatprep.subr.mxu0 0.0
  %7934 = vmatpush2.xpose.msra.mxu0 0.0
  %7935 = vmatprep.subr.mxu0 0.0
  %7936 = vmatpush2.xpose.msra.mxu0 0.0
  %7937 = vmatprep.subr.mxu0 0.0
  %7938 = vmatpush2.xpose.msra.mxu0 0.0
  %7939 = vmatprep.subr.mxu0 0.0
  %7940 = vmatpush2.xpose.msra.mxu0 0.0
  %7941 = vmatprep.subr.mxu0 0.0
  %7942 = vmatpush2.xpose.msra.mxu0 0.0
  %7943 = vmatprep.subr.mxu0 0.0
  %7944 = vmatpush2.xpose.msra.mxu0 0.0
  %7945 = vmatprep.subr.mxu0 0.0
  %7946 = vmatpush2.xpose.msra.mxu0 0.0
  %7947 = vmatprep.subr.mxu0 0.0
  %7948 = vmatpush2.xpose.msra.mxu0 0.0
  %7949 = vmatprep.subr.mxu0 0.0
  %7950 = vmatpush2.xpose.msra.mxu0 0.0
  %7951 = vmatprep.subr.mxu0 0.0
  %7952 = vmatpush2.xpose.msra.mxu0 0.0
  %7953 = vmatprep.subr.mxu0 0.0
  %7954 = vmatpush2.xpose.msra.mxu0 0.0
  %7955 = vmatprep.subr.mxu0 0.0
  %7956 = vmatpush2.xpose.msra.mxu0 0.0
  %7957 = vmatprep.subr.mxu0 0.0
  %7958 = vmatpush2.xpose.msra.mxu0 0.0
  %7959 = vmatprep.mubr.f32.mxu0 0.0
  %7960 = vmatmul.mubr.f32.gmra.mxu0 %v7891
  %v7961 = vpop.f32.mrf.mxu0
  %v7962 = vadd.f32 0.0, %v7961
  %v7963 = vpop.f32.mrf.mxu0
  %7964 = vdwg.mxu0
  %7965 = vrot.lane.b32.xlu0 %v7432, 96
  %v7966 = vpop.permute.xlu0 %7965
  %v7967 = vsel %vm293, %v7432, 0
  %v7969 = vsel %vm293, %v7966, 0
  %7971 = vmatprep.subr.mxu0 0.0
  %7972 = vmatpush1.xpose.msra.mxu0 0.0
  %7973 = vmatprep.subr.mxu0 0.0
  %7974 = vmatpush1.xpose.msra.mxu0 0.0
  %7975 = vmatprep.subr.mxu0 0.0
  %7976 = vmatpush1.xpose.msra.mxu0 0.0
  %7977 = vmatprep.subr.mxu0 0.0
  %7978 = vmatpush1.xpose.msra.mxu0 0.0
  %7979 = vmatprep.subr.mxu0 0.0
  %7980 = vmatpush1.xpose.msra.mxu0 0.0
  %7981 = vmatprep.subr.mxu0 0.0
  %7982 = vmatpush1.xpose.msra.mxu0 0.0
  %7983 = vmatprep.subr.mxu0 0.0
  %7984 = vmatpush1.xpose.msra.mxu0 0.0
  %7985 = vmatprep.subr.mxu0 0.0
  %7986 = vmatpush1.xpose.msra.mxu0 0.0
  %7987 = vmatprep.subr.mxu0 0.0
  %7988 = vmatpush1.xpose.msra.mxu0 0.0
  %7989 = vmatprep.subr.mxu0 0.0
  %7990 = vmatpush1.xpose.msra.mxu0 0.0
  %7991 = vmatprep.subr.mxu0 0.0
  %7992 = vmatpush1.xpose.msra.mxu0 0.0
  %7993 = vmatprep.subr.mxu0 0.0
  %7994 = vmatpush1.xpose.msra.mxu0 0.0
  %7995 = vmatprep.subr.mxu0 0.0
  %7996 = vmatpush1.xpose.msra.mxu0 0.0
  %7997 = vmatprep.subr.mxu0 0.0
  %7998 = vmatpush1.xpose.msra.mxu0 0.0
  %7999 = vmatprep.subr.mxu0 0.0
  %8000 = vmatpush1.xpose.msra.mxu0 0.0
  %8001 = vmatprep.subr.mxu0 0.0
  %8002 = vmatpush1.xpose.msra.mxu0 %v7969
  %8003 = vmatprep.subr.mxu0 0.0
  %8004 = vmatpush2.xpose.msra.mxu0 0.0
  %8005 = vmatprep.subr.mxu0 0.0
  %8006 = vmatpush2.xpose.msra.mxu0 0.0
  %8007 = vmatprep.subr.mxu0 0.0
  %8008 = vmatpush2.xpose.msra.mxu0 0.0
  %8009 = vmatprep.subr.mxu0 0.0
  %8010 = vmatpush2.xpose.msra.mxu0 0.0
  %8011 = vmatprep.subr.mxu0 0.0
  %8012 = vmatpush2.xpose.msra.mxu0 0.0
  %8013 = vmatprep.subr.mxu0 0.0
  %8014 = vmatpush2.xpose.msra.mxu0 0.0
  %8015 = vmatprep.subr.mxu0 0.0
  %8016 = vmatpush2.xpose.msra.mxu0 0.0
  %8017 = vmatprep.subr.mxu0 0.0
  %8018 = vmatpush2.xpose.msra.mxu0 0.0
  %8019 = vmatprep.subr.mxu0 0.0
  %8020 = vmatpush2.xpose.msra.mxu0 0.0
  %8021 = vmatprep.subr.mxu0 0.0
  %8022 = vmatpush2.xpose.msra.mxu0 0.0
  %8023 = vmatprep.subr.mxu0 0.0
  %8024 = vmatpush2.xpose.msra.mxu0 0.0
  %8025 = vmatprep.subr.mxu0 0.0
  %8026 = vmatpush2.xpose.msra.mxu0 0.0
  %8027 = vmatprep.subr.mxu0 0.0
  %8028 = vmatpush2.xpose.msra.mxu0 0.0
  %8029 = vmatprep.subr.mxu0 0.0
  %8030 = vmatpush2.xpose.msra.mxu0 0.0
  %8031 = vmatprep.subr.mxu0 0.0
  %8032 = vmatpush2.xpose.msra.mxu0 0.0
  %8033 = vmatprep.subr.mxu0 0.0
  %8034 = vmatpush2.xpose.msra.mxu0 0.0
  %8035 = vmatprep.mubr.f32.mxu0 0.0
  %8036 = vmatmul.mubr.f32.gmra.mxu0 %v7967
  %v8037 = vpop.f32.mrf.mxu0
  %v8038 = vadd.f32 0.0, %v8037
  %v8039 = vpop.f32.mrf.mxu0
  %8040 = vdwg.mxu0
  %v8041 = vmul.f32 %v7506, 0.17677669
  %v8042 = vmul.f32 %v7582, 0.17677669
  %v8043 = vmul.f32 %v7658, 0.17677669
  %v8044 = vmul.f32 %v7734, 0.17677669
  %v8045 = vmul.f32 %v7810, 0.17677669
  %v8046 = vmul.f32 %v7886, 0.17677669
  %v8047 = vmul.f32 %v7962, 0.17677669
  %v8048 = vmul.f32 %v8038, 0.17677669
  %v8049 = vadd.f32 %v8041, %v162
  %v8050 = vadd.f32 %v8042, %v162
  %v8051 = vadd.f32 %v8043, %v162
  %v8052 = vadd.f32 %v8044, %v162
  %v8053 = vadd.f32 %v8045, %v162
  %v8054 = vadd.f32 %v8046, %v162
  %v8055 = vadd.f32 %v8047, %v162
  %v8056 = vadd.f32 %v8048, %v162
  %v8057 = vsel %vm293, %v8049, -inf
  %8058 = vmax.xlane.f32.xlu0 %v8057
  %v8059 = vpop.xlane.xlu0 %8058
  %v8060 = vsel %vm293, %v8050, -inf
  %8061 = vmax.xlane.f32.xlu0 %v8060
  %v8062 = vpop.xlane.xlu0 %8061
  %v8063 = vsel %vm293, %v8051, -inf
  %8064 = vmax.xlane.f32.xlu0 %v8063
  %v8065 = vpop.xlane.xlu0 %8064
  %v8066 = vsel %vm293, %v8052, -inf
  %8067 = vmax.xlane.f32.xlu0 %v8066
  %v8068 = vpop.xlane.xlu0 %8067
  %v8069 = vsel %vm293, %v8053, -inf
  %8070 = vmax.xlane.f32.xlu0 %v8069
  %v8071 = vpop.xlane.xlu0 %8070
  %v8072 = vsel %vm293, %v8054, -inf
  %8073 = vmax.xlane.f32.xlu0 %v8072
  %v8074 = vpop.xlane.xlu0 %8073
  %v8075 = vsel %vm293, %v8055, -inf
  %8076 = vmax.xlane.f32.xlu0 %v8075
  %v8077 = vpop.xlane.xlu0 %8076
  %v8078 = vsel %vm293, %v8056, -inf
  %8079 = vmax.xlane.f32.xlu0 %v8078
  %v8080 = vpop.xlane.xlu0 %8079
  %v8081 = vsub.f32 %v8049, %v8059
  %v8082 = vsub.f32 %v8050, %v8062
  %v8083 = vsub.f32 %v8051, %v8065
  %v8084 = vsub.f32 %v8052, %v8068
  %v8085 = vsub.f32 %v8053, %v8071
  %v8086 = vsub.f32 %v8054, %v8074
  %v8087 = vsub.f32 %v8055, %v8077
  %v8088 = vsub.f32 %v8056, %v8080
  %v8089 = vmul.f32 %v8081, 1.442695
  %v8090 = vpow.pop %v8089
  %v8091 = vmul.f32 %v8082, 1.442695
  %v8092 = vpow.pop %v8091
  %v8093 = vmul.f32 %v8083, 1.442695
  %v8094 = vpow.pop %v8093
  %v8095 = vmul.f32 %v8084, 1.442695
  %v8096 = vpow.pop %v8095
  %v8097 = vmul.f32 %v8085, 1.442695
  %v8098 = vpow.pop %v8097
  %v8099 = vmul.f32 %v8086, 1.442695
  %v8100 = vpow.pop %v8099
  %v8101 = vmul.f32 %v8087, 1.442695
  %v8102 = vpow.pop %v8101
  %v8103 = vmul.f32 %v8088, 1.442695
  %v8104 = vpow.pop %v8103
  %v8105 = vsel %vm293, %v8090, 0.0
  %8106 = vadd.xlane.f32.xlu0 %v8105
  %v8107 = vpop.xlane.xlu0 %8106
  %v8108 = vsel %vm293, %v8092, 0.0
  %8109 = vadd.xlane.f32.xlu0 %v8108
  %v8110 = vpop.xlane.xlu0 %8109
  %v8111 = vsel %vm293, %v8094, 0.0
  %8112 = vadd.xlane.f32.xlu0 %v8111
  %v8113 = vpop.xlane.xlu0 %8112
  %v8114 = vsel %vm293, %v8096, 0.0
  %8115 = vadd.xlane.f32.xlu0 %v8114
  %v8116 = vpop.xlane.xlu0 %8115
  %v8117 = vsel %vm293, %v8098, 0.0
  %8118 = vadd.xlane.f32.xlu0 %v8117
  %v8119 = vpop.xlane.xlu0 %8118
  %v8120 = vsel %vm293, %v8100, 0.0
  %8121 = vadd.xlane.f32.xlu0 %v8120
  %v8122 = vpop.xlane.xlu0 %8121
  %v8123 = vsel %vm293, %v8102, 0.0
  %8124 = vadd.xlane.f32.xlu0 %v8123
  %v8125 = vpop.xlane.xlu0 %8124
  %v8126 = vsel %vm293, %v8104, 0.0
  %8127 = vadd.xlane.f32.xlu0 %v8126
  %v8128 = vpop.xlane.xlu0 %8127
  %v8129 = vrcp.pop %v8107
  %v8130 = vmul.f32 %v8090, %v8129
  %v8131 = vrcp.pop %v8110
  %v8132 = vmul.f32 %v8092, %v8131
  %v8133 = vrcp.pop %v8113
  %v8134 = vmul.f32 %v8094, %v8133
  %v8135 = vrcp.pop %v8116
  %v8136 = vmul.f32 %v8096, %v8135
  %v8137 = vrcp.pop %v8119
  %v8138 = vmul.f32 %v8098, %v8137
  %v8139 = vrcp.pop %v8122
  %v8140 = vmul.f32 %v8100, %v8139
  %v8141 = vrcp.pop %v8125
  %v8142 = vmul.f32 %v8102, %v8141
  %v8143 = vrcp.pop %v8128
  %v8144 = vmul.f32 %v8104, %v8143
  %8145 = vrot.lane.b32.xlu0 %v7413, 64
  %v8146 = vpop.permute.xlu0 %8145
  %v8149 = vsel %vm293, %v8130, 0
  %8151 = vmatprep.subr.mxu0 0.0
  %8152 = vmatpush1.msra.mxu0 0.0
  %8153 = vmatprep.subr.mxu0 0.0
  %8154 = vmatpush1.msra.mxu0 0.0
  %8155 = vmatprep.subr.mxu0 0.0
  %8156 = vmatpush1.msra.mxu0 0.0
  %8157 = vmatprep.subr.mxu0 0.0
  %8158 = vmatpush1.msra.mxu0 0.0
  %8159 = vmatprep.subr.mxu0 0.0
  %8160 = vmatpush1.msra.mxu0 0.0
  %8161 = vmatprep.subr.mxu0 0.0
  %8162 = vmatpush1.msra.mxu0 0.0
  %8163 = vmatprep.subr.mxu0 0.0
  %8164 = vmatpush1.msra.mxu0 0.0
  %8165 = vmatprep.subr.mxu0 0.0
  %8166 = vmatpush1.msra.mxu0 0.0
  %8167 = vmatprep.subr.mxu0 0.0
  %8168 = vmatpush1.msra.mxu0 0.0
  %8169 = vmatprep.subr.mxu0 0.0
  %8170 = vmatpush1.msra.mxu0 0.0
  %8171 = vmatprep.subr.mxu0 0.0
  %8172 = vmatpush1.msra.mxu0 0.0
  %8173 = vmatprep.subr.mxu0 0.0
  %8174 = vmatpush1.msra.mxu0 0.0
  %8175 = vmatprep.subr.mxu0 0.0
  %8176 = vmatpush1.msra.mxu0 0.0
  %8177 = vmatprep.subr.mxu0 0.0
  %8178 = vmatpush1.msra.mxu0 0.0
  %8179 = vmatprep.subr.mxu0 0.0
  %8180 = vmatpush1.msra.mxu0 0.0
  %8181 = vmatprep.subr.mxu0 0.0
  %8182 = vmatpush1.msra.mxu0 %v8146
  %8183 = vmatprep.subr.mxu0 0.0
  %8184 = vmatpush2.msra.mxu0 0.0
  %8185 = vmatprep.subr.mxu0 0.0
  %8186 = vmatpush2.msra.mxu0 0.0
  %8187 = vmatprep.subr.mxu0 0.0
  %8188 = vmatpush2.msra.mxu0 0.0
  %8189 = vmatprep.subr.mxu0 0.0
  %8190 = vmatpush2.msra.mxu0 0.0
  %8191 = vmatprep.subr.mxu0 0.0
  %8192 = vmatpush2.msra.mxu0 0.0
  %8193 = vmatprep.subr.mxu0 0.0
  %8194 = vmatpush2.msra.mxu0 0.0
  %8195 = vmatprep.subr.mxu0 0.0
  %8196 = vmatpush2.msra.mxu0 0.0
  %8197 = vmatprep.subr.mxu0 0.0
  %8198 = vmatpush2.msra.mxu0 0.0
  %8199 = vmatprep.subr.mxu0 0.0
  %8200 = vmatpush2.msra.mxu0 0.0
  %8201 = vmatprep.subr.mxu0 0.0
  %8202 = vmatpush2.msra.mxu0 0.0
  %8203 = vmatprep.subr.mxu0 0.0
  %8204 = vmatpush2.msra.mxu0 0.0
  %8205 = vmatprep.subr.mxu0 0.0
  %8206 = vmatpush2.msra.mxu0 0.0
  %8207 = vmatprep.subr.mxu0 0.0
  %8208 = vmatpush2.msra.mxu0 0.0
  %8209 = vmatprep.subr.mxu0 0.0
  %8210 = vmatpush2.msra.mxu0 0.0
  %8211 = vmatprep.subr.mxu0 0.0
  %8212 = vmatpush2.msra.mxu0 0.0
  %8213 = vmatprep.subr.mxu0 0.0
  %8214 = vmatpush2.msra.mxu0 0.0
  %8215 = vmatprep.mubr.f32.mxu0 0.0
  %8216 = vmatmul.mubr.f32.gmra.mxu0 %v8149
  %v8217 = vpop.f32.mrf.mxu0
  %v8218 = vadd.f32 0.0, %v8217
  %v8219 = vpop.f32.mrf.mxu0
  %8220 = vdwg.mxu0
  %8221 = vrot.lane.b32.xlu0 %v7416, 64
  %v8222 = vpop.permute.xlu0 %8221
  %v8225 = vsel %vm293, %v8132, 0
  %8227 = vmatprep.subr.mxu0 0.0
  %8228 = vmatpush1.msra.mxu0 0.0
  %8229 = vmatprep.subr.mxu0 0.0
  %8230 = vmatpush1.msra.mxu0 0.0
  %8231 = vmatprep.subr.mxu0 0.0
  %8232 = vmatpush1.msra.mxu0 0.0
  %8233 = vmatprep.subr.mxu0 0.0
  %8234 = vmatpush1.msra.mxu0 0.0
  %8235 = vmatprep.subr.mxu0 0.0
  %8236 = vmatpush1.msra.mxu0 0.0
  %8237 = vmatprep.subr.mxu0 0.0
  %8238 = vmatpush1.msra.mxu0 0.0
  %8239 = vmatprep.subr.mxu0 0.0
  %8240 = vmatpush1.msra.mxu0 0.0
  %8241 = vmatprep.subr.mxu0 0.0
  %8242 = vmatpush1.msra.mxu0 0.0
  %8243 = vmatprep.subr.mxu0 0.0
  %8244 = vmatpush1.msra.mxu0 0.0
  %8245 = vmatprep.subr.mxu0 0.0
  %8246 = vmatpush1.msra.mxu0 0.0
  %8247 = vmatprep.subr.mxu0 0.0
  %8248 = vmatpush1.msra.mxu0 0.0
  %8249 = vmatprep.subr.mxu0 0.0
  %8250 = vmatpush1.msra.mxu0 0.0
  %8251 = vmatprep.subr.mxu0 0.0
  %8252 = vmatpush1.msra.mxu0 0.0
  %8253 = vmatprep.subr.mxu0 0.0
  %8254 = vmatpush1.msra.mxu0 0.0
  %8255 = vmatprep.subr.mxu0 0.0
  %8256 = vmatpush1.msra.mxu0 0.0
  %8257 = vmatprep.subr.mxu0 0.0
  %8258 = vmatpush1.msra.mxu0 %v8222
  %8259 = vmatprep.subr.mxu0 0.0
  %8260 = vmatpush2.msra.mxu0 0.0
  %8261 = vmatprep.subr.mxu0 0.0
  %8262 = vmatpush2.msra.mxu0 0.0
  %8263 = vmatprep.subr.mxu0 0.0
  %8264 = vmatpush2.msra.mxu0 0.0
  %8265 = vmatprep.subr.mxu0 0.0
  %8266 = vmatpush2.msra.mxu0 0.0
  %8267 = vmatprep.subr.mxu0 0.0
  %8268 = vmatpush2.msra.mxu0 0.0
  %8269 = vmatprep.subr.mxu0 0.0
  %8270 = vmatpush2.msra.mxu0 0.0
  %8271 = vmatprep.subr.mxu0 0.0
  %8272 = vmatpush2.msra.mxu0 0.0
  %8273 = vmatprep.subr.mxu0 0.0
  %8274 = vmatpush2.msra.mxu0 0.0
  %8275 = vmatprep.subr.mxu0 0.0
  %8276 = vmatpush2.msra.mxu0 0.0
  %8277 = vmatprep.subr.mxu0 0.0
  %8278 = vmatpush2.msra.mxu0 0.0
  %8279 = vmatprep.subr.mxu0 0.0
  %8280 = vmatpush2.msra.mxu0 0.0
  %8281 = vmatprep.subr.mxu0 0.0
  %8282 = vmatpush2.msra.mxu0 0.0
  %8283 = vmatprep.subr.mxu0 0.0
  %8284 = vmatpush2.msra.mxu0 0.0
  %8285 = vmatprep.subr.mxu0 0.0
  %8286 = vmatpush2.msra.mxu0 0.0
  %8287 = vmatprep.subr.mxu0 0.0
  %8288 = vmatpush2.msra.mxu0 0.0
  %8289 = vmatprep.subr.mxu0 0.0
  %8290 = vmatpush2.msra.mxu0 0.0
  %8291 = vmatprep.mubr.f32.mxu0 0.0
  %8292 = vmatmul.mubr.f32.gmra.mxu0 %v8225
  %v8293 = vpop.f32.mrf.mxu0
  %v8294 = vadd.f32 0.0, %v8293
  %v8295 = vpop.f32.mrf.mxu0
  %8296 = vdwg.mxu0
  %8297 = vrot.lane.b32.xlu0 %v7422, 64
  %v8298 = vpop.permute.xlu0 %8297
  %v8301 = vsel %vm293, %v8134, 0
  %8303 = vmatprep.subr.mxu0 0.0
  %8304 = vmatpush1.msra.mxu0 0.0
  %8305 = vmatprep.subr.mxu0 0.0
  %8306 = vmatpush1.msra.mxu0 0.0
  %8307 = vmatprep.subr.mxu0 0.0
  %8308 = vmatpush1.msra.mxu0 0.0
  %8309 = vmatprep.subr.mxu0 0.0
  %8310 = vmatpush1.msra.mxu0 0.0
  %8311 = vmatprep.subr.mxu0 0.0
  %8312 = vmatpush1.msra.mxu0 0.0
  %8313 = vmatprep.subr.mxu0 0.0
  %8314 = vmatpush1.msra.mxu0 0.0
  %8315 = vmatprep.subr.mxu0 0.0
  %8316 = vmatpush1.msra.mxu0 0.0
  %8317 = vmatprep.subr.mxu0 0.0
  %8318 = vmatpush1.msra.mxu0 0.0
  %8319 = vmatprep.subr.mxu0 0.0
  %8320 = vmatpush1.msra.mxu0 0.0
  %8321 = vmatprep.subr.mxu0 0.0
  %8322 = vmatpush1.msra.mxu0 0.0
  %8323 = vmatprep.subr.mxu0 0.0
  %8324 = vmatpush1.msra.mxu0 0.0
  %8325 = vmatprep.subr.mxu0 0.0
  %8326 = vmatpush1.msra.mxu0 0.0
  %8327 = vmatprep.subr.mxu0 0.0
  %8328 = vmatpush1.msra.mxu0 0.0
  %8329 = vmatprep.subr.mxu0 0.0
  %8330 = vmatpush1.msra.mxu0 0.0
  %8331 = vmatprep.subr.mxu0 0.0
  %8332 = vmatpush1.msra.mxu0 0.0
  %8333 = vmatprep.subr.mxu0 0.0
  %8334 = vmatpush1.msra.mxu0 %v8298
  %8335 = vmatprep.subr.mxu0 0.0
  %8336 = vmatpush2.msra.mxu0 0.0
  %8337 = vmatprep.subr.mxu0 0.0
  %8338 = vmatpush2.msra.mxu0 0.0
  %8339 = vmatprep.subr.mxu0 0.0
  %8340 = vmatpush2.msra.mxu0 0.0
  %8341 = vmatprep.subr.mxu0 0.0
  %8342 = vmatpush2.msra.mxu0 0.0
  %8343 = vmatprep.subr.mxu0 0.0
  %8344 = vmatpush2.msra.mxu0 0.0
  %8345 = vmatprep.subr.mxu0 0.0
  %8346 = vmatpush2.msra.mxu0 0.0
  %8347 = vmatprep.subr.mxu0 0.0
  %8348 = vmatpush2.msra.mxu0 0.0
  %8349 = vmatprep.subr.mxu0 0.0
  %8350 = vmatpush2.msra.mxu0 0.0
  %8351 = vmatprep.subr.mxu0 0.0
  %8352 = vmatpush2.msra.mxu0 0.0
  %8353 = vmatprep.subr.mxu0 0.0
  %8354 = vmatpush2.msra.mxu0 0.0
  %8355 = vmatprep.subr.mxu0 0.0
  %8356 = vmatpush2.msra.mxu0 0.0
  %8357 = vmatprep.subr.mxu0 0.0
  %8358 = vmatpush2.msra.mxu0 0.0
  %8359 = vmatprep.subr.mxu0 0.0
  %8360 = vmatpush2.msra.mxu0 0.0
  %8361 = vmatprep.subr.mxu0 0.0
  %8362 = vmatpush2.msra.mxu0 0.0
  %8363 = vmatprep.subr.mxu0 0.0
  %8364 = vmatpush2.msra.mxu0 0.0
  %8365 = vmatprep.subr.mxu0 0.0
  %8366 = vmatpush2.msra.mxu0 0.0
  %8367 = vmatprep.mubr.f32.mxu0 0.0
  %8368 = vmatmul.mubr.f32.gmra.mxu0 %v8301
  %v8369 = vpop.f32.mrf.mxu0
  %v8370 = vadd.f32 0.0, %v8369
  %v8371 = vpop.f32.mrf.mxu0
  %8372 = vdwg.mxu0
  %8373 = vrot.lane.b32.xlu0 %v7424, 64
  %v8374 = vpop.permute.xlu0 %8373
  %v8377 = vsel %vm293, %v8136, 0
  %8379 = vmatprep.subr.mxu0 0.0
  %8380 = vmatpush1.msra.mxu0 0.0
  %8381 = vmatprep.subr.mxu0 0.0
  %8382 = vmatpush1.msra.mxu0 0.0
  %8383 = vmatprep.subr.mxu0 0.0
  %8384 = vmatpush1.msra.mxu0 0.0
  %8385 = vmatprep.subr.mxu0 0.0
  %8386 = vmatpush1.msra.mxu0 0.0
  %8387 = vmatprep.subr.mxu0 0.0
  %8388 = vmatpush1.msra.mxu0 0.0
  %8389 = vmatprep.subr.mxu0 0.0
  %8390 = vmatpush1.msra.mxu0 0.0
  %8391 = vmatprep.subr.mxu0 0.0
  %8392 = vmatpush1.msra.mxu0 0.0
  %8393 = vmatprep.subr.mxu0 0.0
  %8394 = vmatpush1.msra.mxu0 0.0
  %8395 = vmatprep.subr.mxu0 0.0
  %8396 = vmatpush1.msra.mxu0 0.0
  %8397 = vmatprep.subr.mxu0 0.0
  %8398 = vmatpush1.msra.mxu0 0.0
  %8399 = vmatprep.subr.mxu0 0.0
  %8400 = vmatpush1.msra.mxu0 0.0
  %8401 = vmatprep.subr.mxu0 0.0
  %8402 = vmatpush1.msra.mxu0 0.0
  %8403 = vmatprep.subr.mxu0 0.0
  %8404 = vmatpush1.msra.mxu0 0.0
  %8405 = vmatprep.subr.mxu0 0.0
  %8406 = vmatpush1.msra.mxu0 0.0
  %8407 = vmatprep.subr.mxu0 0.0
  %8408 = vmatpush1.msra.mxu0 0.0
  %8409 = vmatprep.subr.mxu0 0.0
  %8410 = vmatpush1.msra.mxu0 %v8374
  %8411 = vmatprep.subr.mxu0 0.0
  %8412 = vmatpush2.msra.mxu0 0.0
  %8413 = vmatprep.subr.mxu0 0.0
  %8414 = vmatpush2.msra.mxu0 0.0
  %8415 = vmatprep.subr.mxu0 0.0
  %8416 = vmatpush2.msra.mxu0 0.0
  %8417 = vmatprep.subr.mxu0 0.0
  %8418 = vmatpush2.msra.mxu0 0.0
  %8419 = vmatprep.subr.mxu0 0.0
  %8420 = vmatpush2.msra.mxu0 0.0
  %8421 = vmatprep.subr.mxu0 0.0
  %8422 = vmatpush2.msra.mxu0 0.0
  %8423 = vmatprep.subr.mxu0 0.0
  %8424 = vmatpush2.msra.mxu0 0.0
  %8425 = vmatprep.subr.mxu0 0.0
  %8426 = vmatpush2.msra.mxu0 0.0
  %8427 = vmatprep.subr.mxu0 0.0
  %8428 = vmatpush2.msra.mxu0 0.0
  %8429 = vmatprep.subr.mxu0 0.0
  %8430 = vmatpush2.msra.mxu0 0.0
  %8431 = vmatprep.subr.mxu0 0.0
  %8432 = vmatpush2.msra.mxu0 0.0
  %8433 = vmatprep.subr.mxu0 0.0
  %8434 = vmatpush2.msra.mxu0 0.0
  %8435 = vmatprep.subr.mxu0 0.0
  %8436 = vmatpush2.msra.mxu0 0.0
  %8437 = vmatprep.subr.mxu0 0.0
  %8438 = vmatpush2.msra.mxu0 0.0
  %8439 = vmatprep.subr.mxu0 0.0
  %8440 = vmatpush2.msra.mxu0 0.0
  %8441 = vmatprep.subr.mxu0 0.0
  %8442 = vmatpush2.msra.mxu0 0.0
  %8443 = vmatprep.mubr.f32.mxu0 0.0
  %8444 = vmatmul.mubr.f32.gmra.mxu0 %v8377
  %v8445 = vpop.f32.mrf.mxu0
  %v8446 = vadd.f32 0.0, %v8445
  %v8447 = vpop.f32.mrf.mxu0
  %8448 = vdwg.mxu0
  %8449 = vrot.lane.b32.xlu0 %v7426, 64
  %v8450 = vpop.permute.xlu0 %8449
  %v8453 = vsel %vm293, %v8138, 0
  %8455 = vmatprep.subr.mxu0 0.0
  %8456 = vmatpush1.msra.mxu0 0.0
  %8457 = vmatprep.subr.mxu0 0.0
  %8458 = vmatpush1.msra.mxu0 0.0
  %8459 = vmatprep.subr.mxu0 0.0
  %8460 = vmatpush1.msra.mxu0 0.0
  %8461 = vmatprep.subr.mxu0 0.0
  %8462 = vmatpush1.msra.mxu0 0.0
  %8463 = vmatprep.subr.mxu0 0.0
  %8464 = vmatpush1.msra.mxu0 0.0
  %8465 = vmatprep.subr.mxu0 0.0
  %8466 = vmatpush1.msra.mxu0 0.0
  %8467 = vmatprep.subr.mxu0 0.0
  %8468 = vmatpush1.msra.mxu0 0.0
  %8469 = vmatprep.subr.mxu0 0.0
  %8470 = vmatpush1.msra.mxu0 0.0
  %8471 = vmatprep.subr.mxu0 0.0
  %8472 = vmatpush1.msra.mxu0 0.0
  %8473 = vmatprep.subr.mxu0 0.0
  %8474 = vmatpush1.msra.mxu0 0.0
  %8475 = vmatprep.subr.mxu0 0.0
  %8476 = vmatpush1.msra.mxu0 0.0
  %8477 = vmatprep.subr.mxu0 0.0
  %8478 = vmatpush1.msra.mxu0 0.0
  %8479 = vmatprep.subr.mxu0 0.0
  %8480 = vmatpush1.msra.mxu0 0.0
  %8481 = vmatprep.subr.mxu0 0.0
  %8482 = vmatpush1.msra.mxu0 0.0
  %8483 = vmatprep.subr.mxu0 0.0
  %8484 = vmatpush1.msra.mxu0 0.0
  %8485 = vmatprep.subr.mxu0 0.0
  %8486 = vmatpush1.msra.mxu0 %v8450
  %8487 = vmatprep.subr.mxu0 0.0
  %8488 = vmatpush2.msra.mxu0 0.0
  %8489 = vmatprep.subr.mxu0 0.0
  %8490 = vmatpush2.msra.mxu0 0.0
  %8491 = vmatprep.subr.mxu0 0.0
  %8492 = vmatpush2.msra.mxu0 0.0
  %8493 = vmatprep.subr.mxu0 0.0
  %8494 = vmatpush2.msra.mxu0 0.0
  %8495 = vmatprep.subr.mxu0 0.0
  %8496 = vmatpush2.msra.mxu0 0.0
  %8497 = vmatprep.subr.mxu0 0.0
  %8498 = vmatpush2.msra.mxu0 0.0
  %8499 = vmatprep.subr.mxu0 0.0
  %8500 = vmatpush2.msra.mxu0 0.0
  %8501 = vmatprep.subr.mxu0 0.0
  %8502 = vmatpush2.msra.mxu0 0.0
  %8503 = vmatprep.subr.mxu0 0.0
  %8504 = vmatpush2.msra.mxu0 0.0
  %8505 = vmatprep.subr.mxu0 0.0
  %8506 = vmatpush2.msra.mxu0 0.0
  %8507 = vmatprep.subr.mxu0 0.0
  %8508 = vmatpush2.msra.mxu0 0.0
  %8509 = vmatprep.subr.mxu0 0.0
  %8510 = vmatpush2.msra.mxu0 0.0
  %8511 = vmatprep.subr.mxu0 0.0
  %8512 = vmatpush2.msra.mxu0 0.0
  %8513 = vmatprep.subr.mxu0 0.0
  %8514 = vmatpush2.msra.mxu0 0.0
  %8515 = vmatprep.subr.mxu0 0.0
  %8516 = vmatpush2.msra.mxu0 0.0
  %8517 = vmatprep.subr.mxu0 0.0
  %8518 = vmatpush2.msra.mxu0 0.0
  %8519 = vmatprep.mubr.f32.mxu0 0.0
  %8520 = vmatmul.mubr.f32.gmra.mxu0 %v8453
  %v8521 = vpop.f32.mrf.mxu0
  %v8522 = vadd.f32 0.0, %v8521
  %v8523 = vpop.f32.mrf.mxu0
  %8524 = vdwg.mxu0
  %8525 = vrot.lane.b32.xlu0 %v7428, 64
  %v8526 = vpop.permute.xlu0 %8525
  %v8529 = vsel %vm293, %v8140, 0
  %8531 = vmatprep.subr.mxu0 0.0
  %8532 = vmatpush1.msra.mxu0 0.0
  %8533 = vmatprep.subr.mxu0 0.0
  %8534 = vmatpush1.msra.mxu0 0.0
  %8535 = vmatprep.subr.mxu0 0.0
  %8536 = vmatpush1.msra.mxu0 0.0
  %8537 = vmatprep.subr.mxu0 0.0
  %8538 = vmatpush1.msra.mxu0 0.0
  %8539 = vmatprep.subr.mxu0 0.0
  %8540 = vmatpush1.msra.mxu0 0.0
  %8541 = vmatprep.subr.mxu0 0.0
  %8542 = vmatpush1.msra.mxu0 0.0
  %8543 = vmatprep.subr.mxu0 0.0
  %8544 = vmatpush1.msra.mxu0 0.0
  %8545 = vmatprep.subr.mxu0 0.0
  %8546 = vmatpush1.msra.mxu0 0.0
  %8547 = vmatprep.subr.mxu0 0.0
  %8548 = vmatpush1.msra.mxu0 0.0
  %8549 = vmatprep.subr.mxu0 0.0
  %8550 = vmatpush1.msra.mxu0 0.0
  %8551 = vmatprep.subr.mxu0 0.0
  %8552 = vmatpush1.msra.mxu0 0.0
  %8553 = vmatprep.subr.mxu0 0.0
  %8554 = vmatpush1.msra.mxu0 0.0
  %8555 = vmatprep.subr.mxu0 0.0
  %8556 = vmatpush1.msra.mxu0 0.0
  %8557 = vmatprep.subr.mxu0 0.0
  %8558 = vmatpush1.msra.mxu0 0.0
  %8559 = vmatprep.subr.mxu0 0.0
  %8560 = vmatpush1.msra.mxu0 0.0
  %8561 = vmatprep.subr.mxu0 0.0
  %8562 = vmatpush1.msra.mxu0 %v8526
  %8563 = vmatprep.subr.mxu0 0.0
  %8564 = vmatpush2.msra.mxu0 0.0
  %8565 = vmatprep.subr.mxu0 0.0
  %8566 = vmatpush2.msra.mxu0 0.0
  %8567 = vmatprep.subr.mxu0 0.0
  %8568 = vmatpush2.msra.mxu0 0.0
  %8569 = vmatprep.subr.mxu0 0.0
  %8570 = vmatpush2.msra.mxu0 0.0
  %8571 = vmatprep.subr.mxu0 0.0
  %8572 = vmatpush2.msra.mxu0 0.0
  %8573 = vmatprep.subr.mxu0 0.0
  %8574 = vmatpush2.msra.mxu0 0.0
  %8575 = vmatprep.subr.mxu0 0.0
  %8576 = vmatpush2.msra.mxu0 0.0
  %8577 = vmatprep.subr.mxu0 0.0
  %8578 = vmatpush2.msra.mxu0 0.0
  %8579 = vmatprep.subr.mxu0 0.0
  %8580 = vmatpush2.msra.mxu0 0.0
  %8581 = vmatprep.subr.mxu0 0.0
  %8582 = vmatpush2.msra.mxu0 0.0
  %8583 = vmatprep.subr.mxu0 0.0
  %8584 = vmatpush2.msra.mxu0 0.0
  %8585 = vmatprep.subr.mxu0 0.0
  %8586 = vmatpush2.msra.mxu0 0.0
  %8587 = vmatprep.subr.mxu0 0.0
  %8588 = vmatpush2.msra.mxu0 0.0
  %8589 = vmatprep.subr.mxu0 0.0
  %8590 = vmatpush2.msra.mxu0 0.0
  %8591 = vmatprep.subr.mxu0 0.0
  %8592 = vmatpush2.msra.mxu0 0.0
  %8593 = vmatprep.subr.mxu0 0.0
  %8594 = vmatpush2.msra.mxu0 0.0
  %8595 = vmatprep.mubr.f32.mxu0 0.0
  %8596 = vmatmul.mubr.f32.gmra.mxu0 %v8529
  %v8597 = vpop.f32.mrf.mxu0
  %v8598 = vadd.f32 0.0, %v8597
  %v8599 = vpop.f32.mrf.mxu0
  %8600 = vdwg.mxu0
  %8601 = vrot.lane.b32.xlu0 %v7430, 64
  %v8602 = vpop.permute.xlu0 %8601
  %v8605 = vsel %vm293, %v8142, 0
  %8607 = vmatprep.subr.mxu0 0.0
  %8608 = vmatpush1.msra.mxu0 0.0
  %8609 = vmatprep.subr.mxu0 0.0
  %8610 = vmatpush1.msra.mxu0 0.0
  %8611 = vmatprep.subr.mxu0 0.0
  %8612 = vmatpush1.msra.mxu0 0.0
  %8613 = vmatprep.subr.mxu0 0.0
  %8614 = vmatpush1.msra.mxu0 0.0
  %8615 = vmatprep.subr.mxu0 0.0
  %8616 = vmatpush1.msra.mxu0 0.0
  %8617 = vmatprep.subr.mxu0 0.0
  %8618 = vmatpush1.msra.mxu0 0.0
  %8619 = vmatprep.subr.mxu0 0.0
  %8620 = vmatpush1.msra.mxu0 0.0
  %8621 = vmatprep.subr.mxu0 0.0
  %8622 = vmatpush1.msra.mxu0 0.0
  %8623 = vmatprep.subr.mxu0 0.0
  %8624 = vmatpush1.msra.mxu0 0.0
  %8625 = vmatprep.subr.mxu0 0.0
  %8626 = vmatpush1.msra.mxu0 0.0
  %8627 = vmatprep.subr.mxu0 0.0
  %8628 = vmatpush1.msra.mxu0 0.0
  %8629 = vmatprep.subr.mxu0 0.0
  %8630 = vmatpush1.msra.mxu0 0.0
  %8631 = vmatprep.subr.mxu0 0.0
  %8632 = vmatpush1.msra.mxu0 0.0
  %8633 = vmatprep.subr.mxu0 0.0
  %8634 = vmatpush1.msra.mxu0 0.0
  %8635 = vmatprep.subr.mxu0 0.0
  %8636 = vmatpush1.msra.mxu0 0.0
  %8637 = vmatprep.subr.mxu0 0.0
  %8638 = vmatpush1.msra.mxu0 %v8602
  %8639 = vmatprep.subr.mxu0 0.0
  %8640 = vmatpush2.msra.mxu0 0.0
  %8641 = vmatprep.subr.mxu0 0.0
  %8642 = vmatpush2.msra.mxu0 0.0
  %8643 = vmatprep.subr.mxu0 0.0
  %8644 = vmatpush2.msra.mxu0 0.0
  %8645 = vmatprep.subr.mxu0 0.0
  %8646 = vmatpush2.msra.mxu0 0.0
  %8647 = vmatprep.subr.mxu0 0.0
  %8648 = vmatpush2.msra.mxu0 0.0
  %8649 = vmatprep.subr.mxu0 0.0
  %8650 = vmatpush2.msra.mxu0 0.0
  %8651 = vmatprep.subr.mxu0 0.0
  %8652 = vmatpush2.msra.mxu0 0.0
  %8653 = vmatprep.subr.mxu0 0.0
  %8654 = vmatpush2.msra.mxu0 0.0
  %8655 = vmatprep.subr.mxu0 0.0
  %8656 = vmatpush2.msra.mxu0 0.0
  %8657 = vmatprep.subr.mxu0 0.0
  %8658 = vmatpush2.msra.mxu0 0.0
  %8659 = vmatprep.subr.mxu0 0.0
  %8660 = vmatpush2.msra.mxu0 0.0
  %8661 = vmatprep.subr.mxu0 0.0
  %8662 = vmatpush2.msra.mxu0 0.0
  %8663 = vmatprep.subr.mxu0 0.0
  %8664 = vmatpush2.msra.mxu0 0.0
  %8665 = vmatprep.subr.mxu0 0.0
  %8666 = vmatpush2.msra.mxu0 0.0
  %8667 = vmatprep.subr.mxu0 0.0
  %8668 = vmatpush2.msra.mxu0 0.0
  %8669 = vmatprep.subr.mxu0 0.0
  %8670 = vmatpush2.msra.mxu0 0.0
  %8671 = vmatprep.mubr.f32.mxu0 0.0
  %8672 = vmatmul.mubr.f32.gmra.mxu0 %v8605
  %v8673 = vpop.f32.mrf.mxu0
  %v8674 = vadd.f32 0.0, %v8673
  %v8675 = vpop.f32.mrf.mxu0
  %8676 = vdwg.mxu0
  %8677 = vrot.lane.b32.xlu0 %v7432, 64
  %v8678 = vpop.permute.xlu0 %8677
  %v8681 = vsel %vm293, %v8144, 0
  %8683 = vmatprep.subr.mxu0 0.0
  %8684 = vmatpush1.msra.mxu0 0.0
  %8685 = vmatprep.subr.mxu0 0.0
  %8686 = vmatpush1.msra.mxu0 0.0
  %8687 = vmatprep.subr.mxu0 0.0
  %8688 = vmatpush1.msra.mxu0 0.0
  %8689 = vmatprep.subr.mxu0 0.0
  %8690 = vmatpush1.msra.mxu0 0.0
  %8691 = vmatprep.subr.mxu0 0.0
  %8692 = vmatpush1.msra.mxu0 0.0
  %8693 = vmatprep.subr.mxu0 0.0
  %8694 = vmatpush1.msra.mxu0 0.0
  %8695 = vmatprep.subr.mxu0 0.0
  %8696 = vmatpush1.msra.mxu0 0.0
  %8697 = vmatprep.subr.mxu0 0.0
  %8698 = vmatpush1.msra.mxu0 0.0
  %8699 = vmatprep.subr.mxu0 0.0
  %8700 = vmatpush1.msra.mxu0 0.0
  %8701 = vmatprep.subr.mxu0 0.0
  %8702 = vmatpush1.msra.mxu0 0.0
  %8703 = vmatprep.subr.mxu0 0.0
  %8704 = vmatpush1.msra.mxu0 0.0
  %8705 = vmatprep.subr.mxu0 0.0
  %8706 = vmatpush1.msra.mxu0 0.0
  %8707 = vmatprep.subr.mxu0 0.0
  %8708 = vmatpush1.msra.mxu0 0.0
  %8709 = vmatprep.subr.mxu0 0.0
  %8710 = vmatpush1.msra.mxu0 0.0
  %8711 = vmatprep.subr.mxu0 0.0
  %8712 = vmatpush1.msra.mxu0 0.0
  %8713 = vmatprep.subr.mxu0 0.0
  %8714 = vmatpush1.msra.mxu0 %v8678
  %8715 = vmatprep.subr.mxu0 0.0
  %8716 = vmatpush2.msra.mxu0 0.0
  %8717 = vmatprep.subr.mxu0 0.0
  %8718 = vmatpush2.msra.mxu0 0.0
  %8719 = vmatprep.subr.mxu0 0.0
  %8720 = vmatpush2.msra.mxu0 0.0
  %8721 = vmatprep.subr.mxu0 0.0
  %8722 = vmatpush2.msra.mxu0 0.0
  %8723 = vmatprep.subr.mxu0 0.0
  %8724 = vmatpush2.msra.mxu0 0.0
  %8725 = vmatprep.subr.mxu0 0.0
  %8726 = vmatpush2.msra.mxu0 0.0
  %8727 = vmatprep.subr.mxu0 0.0
  %8728 = vmatpush2.msra.mxu0 0.0
  %8729 = vmatprep.subr.mxu0 0.0
  %8730 = vmatpush2.msra.mxu0 0.0
  %8731 = vmatprep.subr.mxu0 0.0
  %8732 = vmatpush2.msra.mxu0 0.0
  %8733 = vmatprep.subr.mxu0 0.0
  %8734 = vmatpush2.msra.mxu0 0.0
  %8735 = vmatprep.subr.mxu0 0.0
  %8736 = vmatpush2.msra.mxu0 0.0
  %8737 = vmatprep.subr.mxu0 0.0
  %8738 = vmatpush2.msra.mxu0 0.0
  %8739 = vmatprep.subr.mxu0 0.0
  %8740 = vmatpush2.msra.mxu0 0.0
  %8741 = vmatprep.subr.mxu0 0.0
  %8742 = vmatpush2.msra.mxu0 0.0
  %8743 = vmatprep.subr.mxu0 0.0
  %8744 = vmatpush2.msra.mxu0 0.0
  %8745 = vmatprep.subr.mxu0 0.0
  %8746 = vmatpush2.msra.mxu0 0.0
  %8747 = vmatprep.mubr.f32.mxu0 0.0
  %8748 = vmatmul.mubr.f32.gmra.mxu0 %v8681
  %v8749 = vpop.f32.mrf.mxu0
  %v8750 = vadd.f32 0.0, %v8749
  %v8751 = vpop.f32.mrf.mxu0
  %8752 = vdwg.mxu0
  %8755 = vrot.lane.b32.xlu0 %v8370, 8
  %v8756 = vpop.permute.xlu0 %8755
  %8757 = vrot.lane.b32.xlu0 %v8446, 8
  %v8758 = vpop.permute.xlu0 %8757
  %8763 = vrot.lane.b32.xlu0 %v8522, 16
  %v8764 = vpop.permute.xlu0 %8763
  %8765 = vrot.lane.b32.xlu0 %v8598, 16
  %v8766 = vpop.permute.xlu0 %8765
  %8771 = vrot.lane.b32.xlu0 %v8674, 24
  %v8772 = vpop.permute.xlu0 %8771
  %8773 = vrot.lane.b32.xlu0 %v8750, 24
  %v8774 = vpop.permute.xlu0 %8773
  %v8777 = vsel %vm293, %v8218, %v8756
  %v8778 = vsel %vm293, %v8294, %v8758
  %v8779 = vsel %vm77, %v8777, %v8764
  %v8780 = vsel %vm77, %v8778, %v8766
  %v8781 = vsel %vm1640, %v8779, %v8772
  %v8782 = vsel %vm1640, %v8780, %v8774
  %v8783 = vpack.c.bf16 %v8782, %v8781
  %s8784 = scalar_lea.vmem %s7, 64
  %v8785 = vld [vmem:[%s8784] sm:$0xf]
  %v8786 = vld [vmem:[%s8784 + $0x4] sm:$0xf]
  %v8787 = vld [vmem:[%s8784 + $0x8] sm:$0xf]
  %v8788 = vld [vmem:[%s8784 + $0xc] sm:$0xf]
  %s8789 = scalar_lea.vmem %s8, 4
  %v8790 = vld [vmem:[%s8789] sm:$0x1]
  %v8792 = vlaneseq
  %v8793 = vshrl.u32 %v8792, 7
  %v8794 = vsub.s32 0, %v8793
  %v8795 = vrot.slane %v8790, %v8794
  %v8801 = vunpack.c.l.b16 %v8785
  %v8802 = vunpack.c.l.b16 %v8786
  %v8803 = vunpack.c.l.b16 %v8787
  %v8804 = vunpack.c.l.b16 %v8788
  %v8805 = vpack.c.b16 %v8802, %v8801
  %v8806 = vpack.c.b16 %v8804, %v8803
  %v8810 = vsel %vm165, %v8783, 0
  %8812 = vmatprep.subr.bf16.mxu0 0
  %8813 = vmatpush1.bf16.msra.mxu0 0
  %8814 = vmatprep.subr.bf16.mxu0 0
  %8815 = vmatpush1.bf16.msra.mxu0 0
  %8816 = vmatprep.subr.bf16.mxu0 0
  %8817 = vmatpush1.bf16.msra.mxu0 0
  %8818 = vmatprep.subr.bf16.mxu0 0
  %8819 = vmatpush1.bf16.msra.mxu0 0
  %8820 = vmatprep.subr.bf16.mxu0 0
  %8821 = vmatpush1.bf16.msra.mxu0 0
  %8822 = vmatprep.subr.bf16.mxu0 0
  %8823 = vmatpush1.bf16.msra.mxu0 0
  %8824 = vmatprep.subr.bf16.mxu0 0
  %8825 = vmatpush1.bf16.msra.mxu0 %v8806
  %8826 = vmatprep.subr.bf16.mxu0 0
  %8827 = vmatpush1.bf16.msra.mxu0 %v8805
  %8828 = vmatprep.subr.bf16.mxu0 0
  %8829 = vmatpush2.bf16.msra.mxu0 0
  %8830 = vmatprep.subr.bf16.mxu0 0
  %8831 = vmatpush2.bf16.msra.mxu0 0
  %8832 = vmatprep.subr.bf16.mxu0 0
  %8833 = vmatpush2.bf16.msra.mxu0 0
  %8834 = vmatprep.subr.bf16.mxu0 0
  %8835 = vmatpush2.bf16.msra.mxu0 0
  %8836 = vmatprep.subr.bf16.mxu0 0
  %8837 = vmatpush2.bf16.msra.mxu0 0
  %8838 = vmatprep.subr.bf16.mxu0 0
  %8839 = vmatpush2.bf16.msra.mxu0 0
  %8840 = vmatprep.subr.bf16.mxu0 0
  %8841 = vmatpush2.bf16.msra.mxu0 0
  %8842 = vmatprep.subr.bf16.mxu0 0
  %8843 = vmatpush2.bf16.msra.mxu0 0
  %8844 = vmatprep.mubr.bf16.mxu0 0
  %8845 = vmatmul.mubr.bf16.gmra.mxu0 %v8810
  %v8846 = vpop.f32.mrf.mxu0
  %v8847 = vadd.f32 %v8795, %v8846
  %v8848 = vpop.f32.mrf.mxu0
  %v8849 = vpop.f32.mrf.mxu0
  %v8850 = vadd.f32 %v8795, %v8849
  %v8851 = vpop.f32.mrf.mxu0
  %8852 = vdwg.mxu0
  %v8853 = vadd.f32 %v7301, %v8847
  %v8854 = vadd.f32 %v7302, %v8850
  %s8855 = scalar_lea.vmem %s9, 4
  %v8856 = vld [vmem:[%s8855] sm:$0x1]
  %s8857 = scalar_lea.vmem %s10, 4
  %v8858 = vld [vmem:[%s8857] sm:$0x1]
  %v8859 = vsel %vm165, %v8853, 0.0
  %8860 = vadd.xlane.f32.xlu0 %v8859
  %v8861 = vpop.xlane.xlu0 %8860
  %v8862 = vsel %vm165, %v8854, 0.0
  %8863 = vadd.xlane.f32.xlu0 %v8862
  %v8864 = vpop.xlane.xlu0 %8863
  %v8865 = vmul.f32 %v8861, %v172
  %v8866 = vmul.f32 %v8864, %v172
  %v8867 = vsub.f32 %v8853, %v8865
  %v8868 = vsub.f32 %v8854, %v8866
  %v8869 = vmul.f32 %v8867, %v8867
  %v8870 = vmul.f32 %v8868, %v8868
  %v8871 = vsel %vm165, %v8869, 0.0
  %8872 = vadd.xlane.f32.xlu0 %v8871
  %v8873 = vpop.xlane.xlu0 %8872
  %v8874 = vsel %vm165, %v8870, 0.0
  %8875 = vadd.xlane.f32.xlu0 %v8874
  %v8876 = vpop.xlane.xlu0 %8875
  %v8877 = vmul.f32 %v8873, 0.032258064
  %v8878 = vmul.f32 %v8876, 0.032258064
  %v8879 = vadd.f32 %v8877, 1e-12
  %v8880 = vadd.f32 %v8878, 1e-12
  %v8881 = vrcp.pop %v8879
  %v8882 = vmul.f32 %v8867, %v8881
  %v8883 = vrcp.pop %v8880
  %v8884 = vmul.f32 %v8868, %v8883
  %v8886 = vlaneseq
  %v8887 = vshrl.u32 %v8886, 7
  %v8888 = vsub.s32 0, %v8887
  %v8889 = vrot.slane %v8856, %v8888
  %v8891 = vmul.f32 %v8889, %v8882
  %v8892 = vmul.f32 %v8889, %v8884
  %v8894 = vlaneseq
  %v8895 = vshrl.u32 %v8894, 7
  %v8896 = vsub.s32 0, %v8895
  %v8897 = vrot.slane %v8858, %v8896
  %v8899 = vadd.f32 %v8891, %v8897
  %v8900 = vadd.f32 %v8892, %v8897
  %v8901 = vpack.c.bf16 %v8900, %v8899
  %s8902 = scalar_lea.vmem %s11, 64
  %v8903 = vld [vmem:[%s8902] sm:$0xf]
  %v8904 = vld [vmem:[%s8902 + $0x4] sm:$0xf]
  %v8905 = vld [vmem:[%s8902 + $0x8] sm:$0xf]
  %v8906 = vld [vmem:[%s8902 + $0xc] sm:$0xf]
  %s8907 = scalar_lea.vmem %s12, 4
  %v8908 = vld [vmem:[%s8907] sm:$0x1]
  %v8910 = vlaneseq
  %v8911 = vshrl.u32 %v8910, 7
  %v8912 = vsub.s32 0, %v8911
  %v8913 = vrot.slane %v8908, %v8912
  %v8919 = vunpack.c.l.b16 %v8903
  %v8920 = vunpack.c.l.b16 %v8904
  %v8921 = vunpack.c.l.b16 %v8905
  %v8922 = vunpack.c.l.b16 %v8906
  %v8923 = vpack.c.b16 %v8920, %v8919
  %v8924 = vpack.c.b16 %v8922, %v8921
  %v8928 = vsel %vm165, %v8901, 0
  %8930 = vmatprep.subr.bf16.mxu0 0
  %8931 = vmatpush1.bf16.msra.mxu0 0
  %8932 = vmatprep.subr.bf16.mxu0 0
  %8933 = vmatpush1.bf16.msra.mxu0 0
  %8934 = vmatprep.subr.bf16.mxu0 0
  %8935 = vmatpush1.bf16.msra.mxu0 0
  %8936 = vmatprep.subr.bf16.mxu0 0
  %8937 = vmatpush1.bf16.msra.mxu0 0
  %8938 = vmatprep.subr.bf16.mxu0 0
  %8939 = vmatpush1.bf16.msra.mxu0 0
  %8940 = vmatprep.subr.bf16.mxu0 0
  %8941 = vmatpush1.bf16.msra.mxu0 0
  %8942 = vmatprep.subr.bf16.mxu0 0
  %8943 = vmatpush1.bf16.msra.mxu0 %v8924
  %8944 = vmatprep.subr.bf16.mxu0 0
  %8945 = vmatpush1.bf16.msra.mxu0 %v8923
  %8946 = vmatprep.subr.bf16.mxu0 0
  %8947 = vmatpush2.bf16.msra.mxu0 0
  %8948 = vmatprep.subr.bf16.mxu0 0
  %8949 = vmatpush2.bf16.msra.mxu0 0
  %8950 = vmatprep.subr.bf16.mxu0 0
  %8951 = vmatpush2.bf16.msra.mxu0 0
  %8952 = vmatprep.subr.bf16.mxu0 0
  %8953 = vmatpush2.bf16.msra.mxu0 0
  %8954 = vmatprep.subr.bf16.mxu0 0
  %8955 = vmatpush2.bf16.msra.mxu0 0
  %8956 = vmatprep.subr.bf16.mxu0 0
  %8957 = vmatpush2.bf16.msra.mxu0 0
  %8958 = vmatprep.subr.bf16.mxu0 0
  %8959 = vmatpush2.bf16.msra.mxu0 0
  %8960 = vmatprep.subr.bf16.mxu0 0
  %8961 = vmatpush2.bf16.msra.mxu0 0
  %8962 = vmatprep.mubr.bf16.mxu0 0
  %8963 = vmatmul.mubr.bf16.gmra.mxu0 %v8928
  %v8964 = vpop.f32.mrf.mxu0
  %v8965 = vadd.f32 %v8913, %v8964
  %v8966 = vpop.f32.mrf.mxu0
  %v8967 = vpop.f32.mrf.mxu0
  %v8968 = vadd.f32 %v8913, %v8967
  %v8969 = vpop.f32.mrf.mxu0
  %8970 = vdwg.mxu0
  %v8971 = vmax.f32 %v8965, 0.0
  %v8972 = vmax.f32 %v8968, 0.0
  %v8973 = vpack.c.bf16 %v8972, %v8971
  %s8974 = scalar_lea.vmem %s13, 256
  %v8975 = vld [vmem:[%s8974] sm:$0xf]
  %v8976 = vld [vmem:[%s8974 + $0x4] sm:$0xf]
  %v8977 = vld [vmem:[%s8974 + $0x8] sm:$0xf]
  %v8978 = vld [vmem:[%s8974 + $0xc] sm:$0xf]
  %v8979 = vld [vmem:[%s8974 + $0x10] sm:$0xf]
  %v8980 = vld [vmem:[%s8974 + $0x14] sm:$0xf]
  %v8981 = vld [vmem:[%s8974 + $0x18] sm:$0xf]
  %v8982 = vld [vmem:[%s8974 + $0x1c] sm:$0xf]
  %v8983 = vld [vmem:[%s8974 + $0x20] sm:$0xf]
  %v8984 = vld [vmem:[%s8974 + $0x24] sm:$0xf]
  %v8985 = vld [vmem:[%s8974 + $0x28] sm:$0xf]
  %v8986 = vld [vmem:[%s8974 + $0x2c] sm:$0xf]
  %v8987 = vld [vmem:[%s8974 + $0x30] sm:$0xf]
  %v8988 = vld [vmem:[%s8974 + $0x34] sm:$0xf]
  %v8989 = vld [vmem:[%s8974 + $0x38] sm:$0xf]
  %v8990 = vld [vmem:[%s8974 + $0x3c] sm:$0xf]
  %s8991 = scalar_lea.vmem %s14, 4
  %v8992 = vld [vmem:[%s8991] sm:$0x1]
  %v8994 = vlaneseq
  %v8995 = vshrl.u32 %v8994, 7
  %v8996 = vsub.s32 0, %v8995
  %v8997 = vrot.slane %v8992, %v8996
  %v9015 = vunpack.c.l.b16 %v8975
  %v9016 = vunpack.c.l.b16 %v8976
  %v9017 = vunpack.c.l.b16 %v8977
  %v9018 = vunpack.c.l.b16 %v8978
  %v9019 = vunpack.c.l.b16 %v8979
  %v9020 = vunpack.c.l.b16 %v8980
  %v9021 = vunpack.c.l.b16 %v8981
  %v9022 = vunpack.c.l.b16 %v8982
  %v9023 = vunpack.c.l.b16 %v8983
  %v9024 = vunpack.c.l.b16 %v8984
  %v9025 = vunpack.c.l.b16 %v8985
  %v9026 = vunpack.c.l.b16 %v8986
  %v9027 = vunpack.c.l.b16 %v8987
  %v9028 = vunpack.c.l.b16 %v8988
  %v9029 = vunpack.c.l.b16 %v8989
  %v9030 = vunpack.c.l.b16 %v8990
  %v9031 = vpack.c.b16 %v9016, %v9015
  %v9032 = vpack.c.b16 %v9018, %v9017
  %v9033 = vpack.c.b16 %v9020, %v9019
  %v9034 = vpack.c.b16 %v9022, %v9021
  %v9035 = vpack.c.b16 %v9024, %v9023
  %v9036 = vpack.c.b16 %v9026, %v9025
  %v9037 = vpack.c.b16 %v9028, %v9027
  %v9038 = vpack.c.b16 %v9030, %v9029
  %9047 = vmatprep.subr.bf16.mxu0 0
  %9048 = vmatpush1.bf16.msra.mxu0 %v9038
  %9049 = vmatprep.subr.bf16.mxu0 0
  %9050 = vmatpush1.bf16.msra.mxu0 %v9037
  %9051 = vmatprep.subr.bf16.mxu0 0
  %9052 = vmatpush1.bf16.msra.mxu0 %v9036
  %9053 = vmatprep.subr.bf16.mxu0 0
  %9054 = vmatpush1.bf16.msra.mxu0 %v9035
  %9055 = vmatprep.subr.bf16.mxu0 0
  %9056 = vmatpush1.bf16.msra.mxu0 %v9034
  %9057 = vmatprep.subr.bf16.mxu0 0
  %9058 = vmatpush1.bf16.msra.mxu0 %v9033
  %9059 = vmatprep.subr.bf16.mxu0 0
  %9060 = vmatpush1.bf16.msra.mxu0 %v9032
  %9061 = vmatprep.subr.bf16.mxu0 0
  %9062 = vmatpush1.bf16.msra.mxu0 %v9031
  %9063 = vmatprep.subr.bf16.mxu0 0
  %9064 = vmatpush2.bf16.msra.mxu0 0
  %9065 = vmatprep.subr.bf16.mxu0 0
  %9066 = vmatpush2.bf16.msra.mxu0 0
  %9067 = vmatprep.subr.bf16.mxu0 0
  %9068 = vmatpush2.bf16.msra.mxu0 0
  %9069 = vmatprep.subr.bf16.mxu0 0
  %9070 = vmatpush2.bf16.msra.mxu0 0
  %9071 = vmatprep.subr.bf16.mxu0 0
  %9072 = vmatpush2.bf16.msra.mxu0 0
  %9073 = vmatprep.subr.bf16.mxu0 0
  %9074 = vmatpush2.bf16.msra.mxu0 0
  %9075 = vmatprep.subr.bf16.mxu0 0
  %9076 = vmatpush2.bf16.msra.mxu0 0
  %9077 = vmatprep.subr.bf16.mxu0 0
  %9078 = vmatpush2.bf16.msra.mxu0 0
  %9079 = vmatprep.mubr.bf16.mxu0 0
  %9080 = vmatmul.mubr.bf16.gmra.mxu0 %v8973
  %v9081 = vpop.f32.mrf.mxu0
  %v9082 = vadd.f32 %v8997, %v9081
  %v9083 = vpop.f32.mrf.mxu0
  %v9084 = vpop.f32.mrf.mxu0
  %v9085 = vadd.f32 %v8997, %v9084
  %v9086 = vpop.f32.mrf.mxu0
  %9087 = vdwg.mxu0
  %v9088 = vadd.f32 %v7301, %v9082
  %v9089 = vadd.f32 %v7302, %v9085
  %s9090 = scalar_lea.vmem %s3, 5
  %v9091 = vld [vmem:[%s9090] sm:$0x1]
  %s9092 = scalar_lea.vmem %s4, 5
  %v9093 = vld [vmem:[%s9092] sm:$0x1]
  %v9094 = vsel %vm165, %v9088, 0.0
  %9095 = vadd.xlane.f32.xlu0 %v9094
  %v9096 = vpop.xlane.xlu0 %9095
  %v9097 = vsel %vm165, %v9089, 0.0
  %9098 = vadd.xlane.f32.xlu0 %v9097
  %v9099 = vpop.xlane.xlu0 %9098
  %v9100 = vmul.f32 %v9096, %v172
  %v9101 = vmul.f32 %v9099, %v172
  %v9102 = vsub.f32 %v9088, %v9100
  %v9103 = vsub.f32 %v9089, %v9101
  %v9104 = vmul.f32 %v9102, %v9102
  %v9105 = vmul.f32 %v9103, %v9103
  %v9106 = vsel %vm165, %v9104, 0.0
  %9107 = vadd.xlane.f32.xlu0 %v9106
  %v9108 = vpop.xlane.xlu0 %9107
  %v9109 = vsel %vm165, %v9105, 0.0
  %9110 = vadd.xlane.f32.xlu0 %v9109
  %v9111 = vpop.xlane.xlu0 %9110
  %v9112 = vmul.f32 %v9108, 0.032258064
  %v9113 = vmul.f32 %v9111, 0.032258064
  %v9114 = vadd.f32 %v9112, 1e-12
  %v9115 = vadd.f32 %v9113, 1e-12
  %v9116 = vrcp.pop %v9114
  %v9117 = vmul.f32 %v9102, %v9116
  %v9118 = vrcp.pop %v9115
  %v9119 = vmul.f32 %v9103, %v9118
  %v9121 = vlaneseq
  %v9122 = vshrl.u32 %v9121, 7
  %v9123 = vsub.s32 0, %v9122
  %v9124 = vrot.slane %v9091, %v9123
  %v9126 = vmul.f32 %v9124, %v9117
  %v9127 = vmul.f32 %v9124, %v9119
  %v9129 = vlaneseq
  %v9130 = vshrl.u32 %v9129, 7
  %v9131 = vsub.s32 0, %v9130
  %v9132 = vrot.slane %v9093, %v9131
  %v9134 = vadd.f32 %v9126, %v9132
  %v9135 = vadd.f32 %v9127, %v9132
  %v9136 = vpack.c.bf16 %v9135, %v9134
  %s9137 = scalar_lea.vmem %s5, 80
  %v9138 = vld [vmem:[%s9137] sm:$0xf]
  %v9139 = vld [vmem:[%s9137 + $0x4] sm:$0xf]
  %v9140 = vld [vmem:[%s9137 + $0x8] sm:$0xf]
  %v9141 = vld [vmem:[%s9137 + $0xc] sm:$0xf]
  %s9142 = scalar_lea.vmem %s6, 5
  %v9143 = vld [vmem:[%s9142] sm:$0x1]
  %v9145 = vlaneseq
  %v9146 = vshrl.u32 %v9145, 7
  %v9147 = vsub.s32 0, %v9146
  %v9148 = vrot.slane %v9143, %v9147
  %v9154 = vunpack.c.l.b16 %v9138
  %v9155 = vunpack.c.l.b16 %v9139
  %v9156 = vunpack.c.l.b16 %v9140
  %v9157 = vunpack.c.l.b16 %v9141
  %v9158 = vpack.c.b16 %v9155, %v9154
  %v9159 = vpack.c.b16 %v9157, %v9156
  %v9163 = vsel %vm165, %v9136, 0
  %9165 = vmatprep.subr.bf16.mxu0 0
  %9166 = vmatpush1.bf16.msra.mxu0 0
  %9167 = vmatprep.subr.bf16.mxu0 0
  %9168 = vmatpush1.bf16.msra.mxu0 0
  %9169 = vmatprep.subr.bf16.mxu0 0
  %9170 = vmatpush1.bf16.msra.mxu0 0
  %9171 = vmatprep.subr.bf16.mxu0 0
  %9172 = vmatpush1.bf16.msra.mxu0 0
  %9173 = vmatprep.subr.bf16.mxu0 0
  %9174 = vmatpush1.bf16.msra.mxu0 0
  %9175 = vmatprep.subr.bf16.mxu0 0
  %9176 = vmatpush1.bf16.msra.mxu0 0
  %9177 = vmatprep.subr.bf16.mxu0 0
  %9178 = vmatpush1.bf16.msra.mxu0 %v9159
  %9179 = vmatprep.subr.bf16.mxu0 0
  %9180 = vmatpush1.bf16.msra.mxu0 %v9158
  %9181 = vmatprep.subr.bf16.mxu0 0
  %9182 = vmatpush2.bf16.msra.mxu0 0
  %9183 = vmatprep.subr.bf16.mxu0 0
  %9184 = vmatpush2.bf16.msra.mxu0 0
  %9185 = vmatprep.subr.bf16.mxu0 0
  %9186 = vmatpush2.bf16.msra.mxu0 0
  %9187 = vmatprep.subr.bf16.mxu0 0
  %9188 = vmatpush2.bf16.msra.mxu0 0
  %9189 = vmatprep.subr.bf16.mxu0 0
  %9190 = vmatpush2.bf16.msra.mxu0 0
  %9191 = vmatprep.subr.bf16.mxu0 0
  %9192 = vmatpush2.bf16.msra.mxu0 0
  %9193 = vmatprep.subr.bf16.mxu0 0
  %9194 = vmatpush2.bf16.msra.mxu0 0
  %9195 = vmatprep.subr.bf16.mxu0 0
  %9196 = vmatpush2.bf16.msra.mxu0 0
  %9197 = vmatprep.mubr.bf16.mxu0 0
  %9198 = vmatmul.mubr.bf16.gmra.mxu0 %v9163
  %v9199 = vpop.f32.mrf.mxu0
  %v9200 = vadd.f32 %v9148, %v9199
  %v9201 = vpop.f32.mrf.mxu0
  %v9202 = vpop.f32.mrf.mxu0
  %v9203 = vadd.f32 %v9148, %v9202
  %v9204 = vpop.f32.mrf.mxu0
  %9205 = vdwg.mxu0
  %9208 = vrot.lane.b32.xlu0 %v9200, 120
  %v9209 = vpop.permute.xlu0 %9208
  %9210 = vrot.lane.b32.xlu0 %v9203, 120
  %v9211 = vpop.permute.xlu0 %9210
  %9212 = vrot.lane.b32.xlu0 %v9200, 112
  %v9213 = vpop.permute.xlu0 %9212
  %9214 = vrot.lane.b32.xlu0 %v9203, 112
  %v9215 = vpop.permute.xlu0 %9214
  %9216 = vrot.lane.b32.xlu0 %v9200, 104
  %v9217 = vpop.permute.xlu0 %9216
  %9218 = vrot.lane.b32.xlu0 %v9203, 104
  %v9219 = vpop.permute.xlu0 %9218
  %9220 = vrot.lane.b32.xlu0 %v9200, 96
  %v9221 = vpop.permute.xlu0 %9220
  %v9222 = vsel %vm293, %v9200, 0
  %v9224 = vsel %vm293, %v9221, 0
  %9226 = vmatprep.subr.mxu0 0.0
  %9227 = vmatpush1.xpose.msra.mxu0 0.0
  %9228 = vmatprep.subr.mxu0 0.0
  %9229 = vmatpush1.xpose.msra.mxu0 0.0
  %9230 = vmatprep.subr.mxu0 0.0
  %9231 = vmatpush1.xpose.msra.mxu0 0.0
  %9232 = vmatprep.subr.mxu0 0.0
  %9233 = vmatpush1.xpose.msra.mxu0 0.0
  %9234 = vmatprep.subr.mxu0 0.0
  %9235 = vmatpush1.xpose.msra.mxu0 0.0
  %9236 = vmatprep.subr.mxu0 0.0
  %9237 = vmatpush1.xpose.msra.mxu0 0.0
  %9238 = vmatprep.subr.mxu0 0.0
  %9239 = vmatpush1.xpose.msra.mxu0 0.0
  %9240 = vmatprep.subr.mxu0 0.0
  %9241 = vmatpush1.xpose.msra.mxu0 0.0
  %9242 = vmatprep.subr.mxu0 0.0
  %9243 = vmatpush1.xpose.msra.mxu0 0.0
  %9244 = vmatprep.subr.mxu0 0.0
  %9245 = vmatpush1.xpose.msra.mxu0 0.0
  %9246 = vmatprep.subr.mxu0 0.0
  %9247 = vmatpush1.xpose.msra.mxu0 0.0
  %9248 = vmatprep.subr.mxu0 0.0
  %9249 = vmatpush1.xpose.msra.mxu0 0.0
  %9250 = vmatprep.subr.mxu0 0.0
  %9251 = vmatpush1.xpose.msra.mxu0 0.0
  %9252 = vmatprep.subr.mxu0 0.0
  %9253 = vmatpush1.xpose.msra.mxu0 0.0
  %9254 = vmatprep.subr.mxu0 0.0
  %9255 = vmatpush1.xpose.msra.mxu0 0.0
  %9256 = vmatprep.subr.mxu0 0.0
  %9257 = vmatpush1.xpose.msra.mxu0 %v9224
  %9258 = vmatprep.subr.mxu0 0.0
  %9259 = vmatpush2.xpose.msra.mxu0 0.0
  %9260 = vmatprep.subr.mxu0 0.0
  %9261 = vmatpush2.xpose.msra.mxu0 0.0
  %9262 = vmatprep.subr.mxu0 0.0
  %9263 = vmatpush2.xpose.msra.mxu0 0.0
  %9264 = vmatprep.subr.mxu0 0.0
  %9265 = vmatpush2.xpose.msra.mxu0 0.0
  %9266 = vmatprep.subr.mxu0 0.0
  %9267 = vmatpush2.xpose.msra.mxu0 0.0
  %9268 = vmatprep.subr.mxu0 0.0
  %9269 = vmatpush2.xpose.msra.mxu0 0.0
  %9270 = vmatprep.subr.mxu0 0.0
  %9271 = vmatpush2.xpose.msra.mxu0 0.0
  %9272 = vmatprep.subr.mxu0 0.0
  %9273 = vmatpush2.xpose.msra.mxu0 0.0
  %9274 = vmatprep.subr.mxu0 0.0
  %9275 = vmatpush2.xpose.msra.mxu0 0.0
  %9276 = vmatprep.subr.mxu0 0.0
  %9277 = vmatpush2.xpose.msra.mxu0 0.0
  %9278 = vmatprep.subr.mxu0 0.0
  %9279 = vmatpush2.xpose.msra.mxu0 0.0
  %9280 = vmatprep.subr.mxu0 0.0
  %9281 = vmatpush2.xpose.msra.mxu0 0.0
  %9282 = vmatprep.subr.mxu0 0.0
  %9283 = vmatpush2.xpose.msra.mxu0 0.0
  %9284 = vmatprep.subr.mxu0 0.0
  %9285 = vmatpush2.xpose.msra.mxu0 0.0
  %9286 = vmatprep.subr.mxu0 0.0
  %9287 = vmatpush2.xpose.msra.mxu0 0.0
  %9288 = vmatprep.subr.mxu0 0.0
  %9289 = vmatpush2.xpose.msra.mxu0 0.0
  %9290 = vmatprep.mubr.f32.mxu0 0.0
  %9291 = vmatmul.mubr.f32.gmra.mxu0 %v9222
  %v9292 = vpop.f32.mrf.mxu0
  %v9293 = vadd.f32 0.0, %v9292
  %v9294 = vpop.f32.mrf.mxu0
  %9295 = vdwg.mxu0
  %9296 = vrot.lane.b32.xlu0 %v9203, 96
  %v9297 = vpop.permute.xlu0 %9296
  %v9298 = vsel %vm293, %v9203, 0
  %v9300 = vsel %vm293, %v9297, 0
  %9302 = vmatprep.subr.mxu0 0.0
  %9303 = vmatpush1.xpose.msra.mxu0 0.0
  %9304 = vmatprep.subr.mxu0 0.0
  %9305 = vmatpush1.xpose.msra.mxu0 0.0
  %9306 = vmatprep.subr.mxu0 0.0
  %9307 = vmatpush1.xpose.msra.mxu0 0.0
  %9308 = vmatprep.subr.mxu0 0.0
  %9309 = vmatpush1.xpose.msra.mxu0 0.0
  %9310 = vmatprep.subr.mxu0 0.0
  %9311 = vmatpush1.xpose.msra.mxu0 0.0
  %9312 = vmatprep.subr.mxu0 0.0
  %9313 = vmatpush1.xpose.msra.mxu0 0.0
  %9314 = vmatprep.subr.mxu0 0.0
  %9315 = vmatpush1.xpose.msra.mxu0 0.0
  %9316 = vmatprep.subr.mxu0 0.0
  %9317 = vmatpush1.xpose.msra.mxu0 0.0
  %9318 = vmatprep.subr.mxu0 0.0
  %9319 = vmatpush1.xpose.msra.mxu0 0.0
  %9320 = vmatprep.subr.mxu0 0.0
  %9321 = vmatpush1.xpose.msra.mxu0 0.0
  %9322 = vmatprep.subr.mxu0 0.0
  %9323 = vmatpush1.xpose.msra.mxu0 0.0
  %9324 = vmatprep.subr.mxu0 0.0
  %9325 = vmatpush1.xpose.msra.mxu0 0.0
  %9326 = vmatprep.subr.mxu0 0.0
  %9327 = vmatpush1.xpose.msra.mxu0 0.0
  %9328 = vmatprep.subr.mxu0 0.0
  %9329 = vmatpush1.xpose.msra.mxu0 0.0
  %9330 = vmatprep.subr.mxu0 0.0
  %9331 = vmatpush1.xpose.msra.mxu0 0.0
  %9332 = vmatprep.subr.mxu0 0.0
  %9333 = vmatpush1.xpose.msra.mxu0 %v9300
  %9334 = vmatprep.subr.mxu0 0.0
  %9335 = vmatpush2.xpose.msra.mxu0 0.0
  %9336 = vmatprep.subr.mxu0 0.0
  %9337 = vmatpush2.xpose.msra.mxu0 0.0
  %9338 = vmatprep.subr.mxu0 0.0
  %9339 = vmatpush2.xpose.msra.mxu0 0.0
  %9340 = vmatprep.subr.mxu0 0.0
  %9341 = vmatpush2.xpose.msra.mxu0 0.0
  %9342 = vmatprep.subr.mxu0 0.0
  %9343 = vmatpush2.xpose.msra.mxu0 0.0
  %9344 = vmatprep.subr.mxu0 0.0
  %9345 = vmatpush2.xpose.msra.mxu0 0.0
  %9346 = vmatprep.subr.mxu0 0.0
  %9347 = vmatpush2.xpose.msra.mxu0 0.0
  %9348 = vmatprep.subr.mxu0 0.0
  %9349 = vmatpush2.xpose.msra.mxu0 0.0
  %9350 = vmatprep.subr.mxu0 0.0
  %9351 = vmatpush2.xpose.msra.mxu0 0.0
  %9352 = vmatprep.subr.mxu0 0.0
  %9353 = vmatpush2.xpose.msra.mxu0 0.0
  %9354 = vmatprep.subr.mxu0 0.0
  %9355 = vmatpush2.xpose.msra.mxu0 0.0
  %9356 = vmatprep.subr.mxu0 0.0
  %9357 = vmatpush2.xpose.msra.mxu0 0.0
  %9358 = vmatprep.subr.mxu0 0.0
  %9359 = vmatpush2.xpose.msra.mxu0 0.0
  %9360 = vmatprep.subr.mxu0 0.0
  %9361 = vmatpush2.xpose.msra.mxu0 0.0
  %9362 = vmatprep.subr.mxu0 0.0
  %9363 = vmatpush2.xpose.msra.mxu0 0.0
  %9364 = vmatprep.subr.mxu0 0.0
  %9365 = vmatpush2.xpose.msra.mxu0 0.0
  %9366 = vmatprep.mubr.f32.mxu0 0.0
  %9367 = vmatmul.mubr.f32.gmra.mxu0 %v9298
  %v9368 = vpop.f32.mrf.mxu0
  %v9369 = vadd.f32 0.0, %v9368
  %v9370 = vpop.f32.mrf.mxu0
  %9371 = vdwg.mxu0
  %9372 = vrot.lane.b32.xlu0 %v9209, 96
  %v9373 = vpop.permute.xlu0 %9372
  %v9374 = vsel %vm293, %v9209, 0
  %v9376 = vsel %vm293, %v9373, 0
  %9378 = vmatprep.subr.mxu0 0.0
  %9379 = vmatpush1.xpose.msra.mxu0 0.0
  %9380 = vmatprep.subr.mxu0 0.0
  %9381 = vmatpush1.xpose.msra.mxu0 0.0
  %9382 = vmatprep.subr.mxu0 0.0
  %9383 = vmatpush1.xpose.msra.mxu0 0.0
  %9384 = vmatprep.subr.mxu0 0.0
  %9385 = vmatpush1.xpose.msra.mxu0 0.0
  %9386 = vmatprep.subr.mxu0 0.0
  %9387 = vmatpush1.xpose.msra.mxu0 0.0
  %9388 = vmatprep.subr.mxu0 0.0
  %9389 = vmatpush1.xpose.msra.mxu0 0.0
  %9390 = vmatprep.subr.mxu0 0.0
  %9391 = vmatpush1.xpose.msra.mxu0 0.0
  %9392 = vmatprep.subr.mxu0 0.0
  %9393 = vmatpush1.xpose.msra.mxu0 0.0
  %9394 = vmatprep.subr.mxu0 0.0
  %9395 = vmatpush1.xpose.msra.mxu0 0.0
  %9396 = vmatprep.subr.mxu0 0.0
  %9397 = vmatpush1.xpose.msra.mxu0 0.0
  %9398 = vmatprep.subr.mxu0 0.0
  %9399 = vmatpush1.xpose.msra.mxu0 0.0
  %9400 = vmatprep.subr.mxu0 0.0
  %9401 = vmatpush1.xpose.msra.mxu0 0.0
  %9402 = vmatprep.subr.mxu0 0.0
  %9403 = vmatpush1.xpose.msra.mxu0 0.0
  %9404 = vmatprep.subr.mxu0 0.0
  %9405 = vmatpush1.xpose.msra.mxu0 0.0
  %9406 = vmatprep.subr.mxu0 0.0
  %9407 = vmatpush1.xpose.msra.mxu0 0.0
  %9408 = vmatprep.subr.mxu0 0.0
  %9409 = vmatpush1.xpose.msra.mxu0 %v9376
  %9410 = vmatprep.subr.mxu0 0.0
  %9411 = vmatpush2.xpose.msra.mxu0 0.0
  %9412 = vmatprep.subr.mxu0 0.0
  %9413 = vmatpush2.xpose.msra.mxu0 0.0
  %9414 = vmatprep.subr.mxu0 0.0
  %9415 = vmatpush2.xpose.msra.mxu0 0.0
  %9416 = vmatprep.subr.mxu0 0.0
  %9417 = vmatpush2.xpose.msra.mxu0 0.0
  %9418 = vmatprep.subr.mxu0 0.0
  %9419 = vmatpush2.xpose.msra.mxu0 0.0
  %9420 = vmatprep.subr.mxu0 0.0
  %9421 = vmatpush2.xpose.msra.mxu0 0.0
  %9422 = vmatprep.subr.mxu0 0.0
  %9423 = vmatpush2.xpose.msra.mxu0 0.0
  %9424 = vmatprep.subr.mxu0 0.0
  %9425 = vmatpush2.xpose.msra.mxu0 0.0
  %9426 = vmatprep.subr.mxu0 0.0
  %9427 = vmatpush2.xpose.msra.mxu0 0.0
  %9428 = vmatprep.subr.mxu0 0.0
  %9429 = vmatpush2.xpose.msra.mxu0 0.0
  %9430 = vmatprep.subr.mxu0 0.0
  %9431 = vmatpush2.xpose.msra.mxu0 0.0
  %9432 = vmatprep.subr.mxu0 0.0
  %9433 = vmatpush2.xpose.msra.mxu0 0.0
  %9434 = vmatprep.subr.mxu0 0.0
  %9435 = vmatpush2.xpose.msra.mxu0 0.0
  %9436 = vmatprep.subr.mxu0 0.0
  %9437 = vmatpush2.xpose.msra.mxu0 0.0
  %9438 = vmatprep.subr.mxu0 0.0
  %9439 = vmatpush2.xpose.msra.mxu0 0.0
  %9440 = vmatprep.subr.mxu0 0.0
  %9441 = vmatpush2.xpose.msra.mxu0 0.0
  %9442 = vmatprep.mubr.f32.mxu0 0.0
  %9443 = vmatmul.mubr.f32.gmra.mxu0 %v9374
  %v9444 = vpop.f32.mrf.mxu0
  %v9445 = vadd.f32 0.0, %v9444
  %v9446 = vpop.f32.mrf.mxu0
  %9447 = vdwg.mxu0
  %9448 = vrot.lane.b32.xlu0 %v9211, 96
  %v9449 = vpop.permute.xlu0 %9448
  %v9450 = vsel %vm293, %v9211, 0
  %v9452 = vsel %vm293, %v9449, 0
  %9454 = vmatprep.subr.mxu0 0.0
  %9455 = vmatpush1.xpose.msra.mxu0 0.0
  %9456 = vmatprep.subr.mxu0 0.0
  %9457 = vmatpush1.xpose.msra.mxu0 0.0
  %9458 = vmatprep.subr.mxu0 0.0
  %9459 = vmatpush1.xpose.msra.mxu0 0.0
  %9460 = vmatprep.subr.mxu0 0.0
  %9461 = vmatpush1.xpose.msra.mxu0 0.0
  %9462 = vmatprep.subr.mxu0 0.0
  %9463 = vmatpush1.xpose.msra.mxu0 0.0
  %9464 = vmatprep.subr.mxu0 0.0
  %9465 = vmatpush1.xpose.msra.mxu0 0.0
  %9466 = vmatprep.subr.mxu0 0.0
  %9467 = vmatpush1.xpose.msra.mxu0 0.0
  %9468 = vmatprep.subr.mxu0 0.0
  %9469 = vmatpush1.xpose.msra.mxu0 0.0
  %9470 = vmatprep.subr.mxu0 0.0
  %9471 = vmatpush1.xpose.msra.mxu0 0.0
  %9472 = vmatprep.subr.mxu0 0.0
  %9473 = vmatpush1.xpose.msra.mxu0 0.0
  %9474 = vmatprep.subr.mxu0 0.0
  %9475 = vmatpush1.xpose.msra.mxu0 0.0
  %9476 = vmatprep.subr.mxu0 0.0
  %9477 = vmatpush1.xpose.msra.mxu0 0.0
  %9478 = vmatprep.subr.mxu0 0.0
  %9479 = vmatpush1.xpose.msra.mxu0 0.0
  %9480 = vmatprep.subr.mxu0 0.0
  %9481 = vmatpush1.xpose.msra.mxu0 0.0
  %9482 = vmatprep.subr.mxu0 0.0
  %9483 = vmatpush1.xpose.msra.mxu0 0.0
  %9484 = vmatprep.subr.mxu0 0.0
  %9485 = vmatpush1.xpose.msra.mxu0 %v9452
  %9486 = vmatprep.subr.mxu0 0.0
  %9487 = vmatpush2.xpose.msra.mxu0 0.0
  %9488 = vmatprep.subr.mxu0 0.0
  %9489 = vmatpush2.xpose.msra.mxu0 0.0
  %9490 = vmatprep.subr.mxu0 0.0
  %9491 = vmatpush2.xpose.msra.mxu0 0.0
  %9492 = vmatprep.subr.mxu0 0.0
  %9493 = vmatpush2.xpose.msra.mxu0 0.0
  %9494 = vmatprep.subr.mxu0 0.0
  %9495 = vmatpush2.xpose.msra.mxu0 0.0
  %9496 = vmatprep.subr.mxu0 0.0
  %9497 = vmatpush2.xpose.msra.mxu0 0.0
  %9498 = vmatprep.subr.mxu0 0.0
  %9499 = vmatpush2.xpose.msra.mxu0 0.0
  %9500 = vmatprep.subr.mxu0 0.0
  %9501 = vmatpush2.xpose.msra.mxu0 0.0
  %9502 = vmatprep.subr.mxu0 0.0
  %9503 = vmatpush2.xpose.msra.mxu0 0.0
  %9504 = vmatprep.subr.mxu0 0.0
  %9505 = vmatpush2.xpose.msra.mxu0 0.0
  %9506 = vmatprep.subr.mxu0 0.0
  %9507 = vmatpush2.xpose.msra.mxu0 0.0
  %9508 = vmatprep.subr.mxu0 0.0
  %9509 = vmatpush2.xpose.msra.mxu0 0.0
  %9510 = vmatprep.subr.mxu0 0.0
  %9511 = vmatpush2.xpose.msra.mxu0 0.0
  %9512 = vmatprep.subr.mxu0 0.0
  %9513 = vmatpush2.xpose.msra.mxu0 0.0
  %9514 = vmatprep.subr.mxu0 0.0
  %9515 = vmatpush2.xpose.msra.mxu0 0.0
  %9516 = vmatprep.subr.mxu0 0.0
  %9517 = vmatpush2.xpose.msra.mxu0 0.0
  %9518 = vmatprep.mubr.f32.mxu0 0.0
  %9519 = vmatmul.mubr.f32.gmra.mxu0 %v9450
  %v9520 = vpop.f32.mrf.mxu0
  %v9521 = vadd.f32 0.0, %v9520
  %v9522 = vpop.f32.mrf.mxu0
  %9523 = vdwg.mxu0
  %9524 = vrot.lane.b32.xlu0 %v9213, 96
  %v9525 = vpop.permute.xlu0 %9524
  %v9526 = vsel %vm293, %v9213, 0
  %v9528 = vsel %vm293, %v9525, 0
  %9530 = vmatprep.subr.mxu0 0.0
  %9531 = vmatpush1.xpose.msra.mxu0 0.0
  %9532 = vmatprep.subr.mxu0 0.0
  %9533 = vmatpush1.xpose.msra.mxu0 0.0
  %9534 = vmatprep.subr.mxu0 0.0
  %9535 = vmatpush1.xpose.msra.mxu0 0.0
  %9536 = vmatprep.subr.mxu0 0.0
  %9537 = vmatpush1.xpose.msra.mxu0 0.0
  %9538 = vmatprep.subr.mxu0 0.0
  %9539 = vmatpush1.xpose.msra.mxu0 0.0
  %9540 = vmatprep.subr.mxu0 0.0
  %9541 = vmatpush1.xpose.msra.mxu0 0.0
  %9542 = vmatprep.subr.mxu0 0.0
  %9543 = vmatpush1.xpose.msra.mxu0 0.0
  %9544 = vmatprep.subr.mxu0 0.0
  %9545 = vmatpush1.xpose.msra.mxu0 0.0
  %9546 = vmatprep.subr.mxu0 0.0
  %9547 = vmatpush1.xpose.msra.mxu0 0.0
  %9548 = vmatprep.subr.mxu0 0.0
  %9549 = vmatpush1.xpose.msra.mxu0 0.0
  %9550 = vmatprep.subr.mxu0 0.0
  %9551 = vmatpush1.xpose.msra.mxu0 0.0
  %9552 = vmatprep.subr.mxu0 0.0
  %9553 = vmatpush1.xpose.msra.mxu0 0.0
  %9554 = vmatprep.subr.mxu0 0.0
  %9555 = vmatpush1.xpose.msra.mxu0 0.0
  %9556 = vmatprep.subr.mxu0 0.0
  %9557 = vmatpush1.xpose.msra.mxu0 0.0
  %9558 = vmatprep.subr.mxu0 0.0
  %9559 = vmatpush1.xpose.msra.mxu0 0.0
  %9560 = vmatprep.subr.mxu0 0.0
  %9561 = vmatpush1.xpose.msra.mxu0 %v9528
  %9562 = vmatprep.subr.mxu0 0.0
  %9563 = vmatpush2.xpose.msra.mxu0 0.0
  %9564 = vmatprep.subr.mxu0 0.0
  %9565 = vmatpush2.xpose.msra.mxu0 0.0
  %9566 = vmatprep.subr.mxu0 0.0
  %9567 = vmatpush2.xpose.msra.mxu0 0.0
  %9568 = vmatprep.subr.mxu0 0.0
  %9569 = vmatpush2.xpose.msra.mxu0 0.0
  %9570 = vmatprep.subr.mxu0 0.0
  %9571 = vmatpush2.xpose.msra.mxu0 0.0
  %9572 = vmatprep.subr.mxu0 0.0
  %9573 = vmatpush2.xpose.msra.mxu0 0.0
  %9574 = vmatprep.subr.mxu0 0.0
  %9575 = vmatpush2.xpose.msra.mxu0 0.0
  %9576 = vmatprep.subr.mxu0 0.0
  %9577 = vmatpush2.xpose.msra.mxu0 0.0
  %9578 = vmatprep.subr.mxu0 0.0
  %9579 = vmatpush2.xpose.msra.mxu0 0.0
  %9580 = vmatprep.subr.mxu0 0.0
  %9581 = vmatpush2.xpose.msra.mxu0 0.0
  %9582 = vmatprep.subr.mxu0 0.0
  %9583 = vmatpush2.xpose.msra.mxu0 0.0
  %9584 = vmatprep.subr.mxu0 0.0
  %9585 = vmatpush2.xpose.msra.mxu0 0.0
  %9586 = vmatprep.subr.mxu0 0.0
  %9587 = vmatpush2.xpose.msra.mxu0 0.0
  %9588 = vmatprep.subr.mxu0 0.0
  %9589 = vmatpush2.xpose.msra.mxu0 0.0
  %9590 = vmatprep.subr.mxu0 0.0
  %9591 = vmatpush2.xpose.msra.mxu0 0.0
  %9592 = vmatprep.subr.mxu0 0.0
  %9593 = vmatpush2.xpose.msra.mxu0 0.0
  %9594 = vmatprep.mubr.f32.mxu0 0.0
  %9595 = vmatmul.mubr.f32.gmra.mxu0 %v9526
  %v9596 = vpop.f32.mrf.mxu0
  %v9597 = vadd.f32 0.0, %v9596
  %v9598 = vpop.f32.mrf.mxu0
  %9599 = vdwg.mxu0
  %9600 = vrot.lane.b32.xlu0 %v9215, 96
  %v9601 = vpop.permute.xlu0 %9600
  %v9602 = vsel %vm293, %v9215, 0
  %v9604 = vsel %vm293, %v9601, 0
  %9606 = vmatprep.subr.mxu0 0.0
  %9607 = vmatpush1.xpose.msra.mxu0 0.0
  %9608 = vmatprep.subr.mxu0 0.0
  %9609 = vmatpush1.xpose.msra.mxu0 0.0
  %9610 = vmatprep.subr.mxu0 0.0
  %9611 = vmatpush1.xpose.msra.mxu0 0.0
  %9612 = vmatprep.subr.mxu0 0.0
  %9613 = vmatpush1.xpose.msra.mxu0 0.0
  %9614 = vmatprep.subr.mxu0 0.0
  %9615 = vmatpush1.xpose.msra.mxu0 0.0
  %9616 = vmatprep.subr.mxu0 0.0
  %9617 = vmatpush1.xpose.msra.mxu0 0.0
  %9618 = vmatprep.subr.mxu0 0.0
  %9619 = vmatpush1.xpose.msra.mxu0 0.0
  %9620 = vmatprep.subr.mxu0 0.0
  %9621 = vmatpush1.xpose.msra.mxu0 0.0
  %9622 = vmatprep.subr.mxu0 0.0
  %9623 = vmatpush1.xpose.msra.mxu0 0.0
  %9624 = vmatprep.subr.mxu0 0.0
  %9625 = vmatpush1.xpose.msra.mxu0 0.0
  %9626 = vmatprep.subr.mxu0 0.0
  %9627 = vmatpush1.xpose.msra.mxu0 0.0
  %9628 = vmatprep.subr.mxu0 0.0
  %9629 = vmatpush1.xpose.msra.mxu0 0.0
  %9630 = vmatprep.subr.mxu0 0.0
  %9631 = vmatpush1.xpose.msra.mxu0 0.0
  %9632 = vmatprep.subr.mxu0 0.0
  %9633 = vmatpush1.xpose.msra.mxu0 0.0
  %9634 = vmatprep.subr.mxu0 0.0
  %9635 = vmatpush1.xpose.msra.mxu0 0.0
  %9636 = vmatprep.subr.mxu0 0.0
  %9637 = vmatpush1.xpose.msra.mxu0 %v9604
  %9638 = vmatprep.subr.mxu0 0.0
  %9639 = vmatpush2.xpose.msra.mxu0 0.0
  %9640 = vmatprep.subr.mxu0 0.0
  %9641 = vmatpush2.xpose.msra.mxu0 0.0
  %9642 = vmatprep.subr.mxu0 0.0
  %9643 = vmatpush2.xpose.msra.mxu0 0.0
  %9644 = vmatprep.subr.mxu0 0.0
  %9645 = vmatpush2.xpose.msra.mxu0 0.0
  %9646 = vmatprep.subr.mxu0 0.0
  %9647 = vmatpush2.xpose.msra.mxu0 0.0
  %9648 = vmatprep.subr.mxu0 0.0
  %9649 = vmatpush2.xpose.msra.mxu0 0.0
  %9650 = vmatprep.subr.mxu0 0.0
  %9651 = vmatpush2.xpose.msra.mxu0 0.0
  %9652 = vmatprep.subr.mxu0 0.0
  %9653 = vmatpush2.xpose.msra.mxu0 0.0
  %9654 = vmatprep.subr.mxu0 0.0
  %9655 = vmatpush2.xpose.msra.mxu0 0.0
  %9656 = vmatprep.subr.mxu0 0.0
  %9657 = vmatpush2.xpose.msra.mxu0 0.0
  %9658 = vmatprep.subr.mxu0 0.0
  %9659 = vmatpush2.xpose.msra.mxu0 0.0
  %9660 = vmatprep.subr.mxu0 0.0
  %9661 = vmatpush2.xpose.msra.mxu0 0.0
  %9662 = vmatprep.subr.mxu0 0.0
  %9663 = vmatpush2.xpose.msra.mxu0 0.0
  %9664 = vmatprep.subr.mxu0 0.0
  %9665 = vmatpush2.xpose.msra.mxu0 0.0
  %9666 = vmatprep.subr.mxu0 0.0
  %9667 = vmatpush2.xpose.msra.mxu0 0.0
  %9668 = vmatprep.subr.mxu0 0.0
  %9669 = vmatpush2.xpose.msra.mxu0 0.0
  %9670 = vmatprep.mubr.f32.mxu0 0.0
  %9671 = vmatmul.mubr.f32.gmra.mxu0 %v9602
  %v9672 = vpop.f32.mrf.mxu0
  %v9673 = vadd.f32 0.0, %v9672
  %v9674 = vpop.f32.mrf.mxu0
  %9675 = vdwg.mxu0
  %9676 = vrot.lane.b32.xlu0 %v9217, 96
  %v9677 = vpop.permute.xlu0 %9676
  %v9678 = vsel %vm293, %v9217, 0
  %v9680 = vsel %vm293, %v9677, 0
  %9682 = vmatprep.subr.mxu0 0.0
  %9683 = vmatpush1.xpose.msra.mxu0 0.0
  %9684 = vmatprep.subr.mxu0 0.0
  %9685 = vmatpush1.xpose.msra.mxu0 0.0
  %9686 = vmatprep.subr.mxu0 0.0
  %9687 = vmatpush1.xpose.msra.mxu0 0.0
  %9688 = vmatprep.subr.mxu0 0.0
  %9689 = vmatpush1.xpose.msra.mxu0 0.0
  %9690 = vmatprep.subr.mxu0 0.0
  %9691 = vmatpush1.xpose.msra.mxu0 0.0
  %9692 = vmatprep.subr.mxu0 0.0
  %9693 = vmatpush1.xpose.msra.mxu0 0.0
  %9694 = vmatprep.subr.mxu0 0.0
  %9695 = vmatpush1.xpose.msra.mxu0 0.0
  %9696 = vmatprep.subr.mxu0 0.0
  %9697 = vmatpush1.xpose.msra.mxu0 0.0
  %9698 = vmatprep.subr.mxu0 0.0
  %9699 = vmatpush1.xpose.msra.mxu0 0.0
  %9700 = vmatprep.subr.mxu0 0.0
  %9701 = vmatpush1.xpose.msra.mxu0 0.0
  %9702 = vmatprep.subr.mxu0 0.0
  %9703 = vmatpush1.xpose.msra.mxu0 0.0
  %9704 = vmatprep.subr.mxu0 0.0
  %9705 = vmatpush1.xpose.msra.mxu0 0.0
  %9706 = vmatprep.subr.mxu0 0.0
  %9707 = vmatpush1.xpose.msra.mxu0 0.0
  %9708 = vmatprep.subr.mxu0 0.0
  %9709 = vmatpush1.xpose.msra.mxu0 0.0
  %9710 = vmatprep.subr.mxu0 0.0
  %9711 = vmatpush1.xpose.msra.mxu0 0.0
  %9712 = vmatprep.subr.mxu0 0.0
  %9713 = vmatpush1.xpose.msra.mxu0 %v9680
  %9714 = vmatprep.subr.mxu0 0.0
  %9715 = vmatpush2.xpose.msra.mxu0 0.0
  %9716 = vmatprep.subr.mxu0 0.0
  %9717 = vmatpush2.xpose.msra.mxu0 0.0
  %9718 = vmatprep.subr.mxu0 0.0
  %9719 = vmatpush2.xpose.msra.mxu0 0.0
  %9720 = vmatprep.subr.mxu0 0.0
  %9721 = vmatpush2.xpose.msra.mxu0 0.0
  %9722 = vmatprep.subr.mxu0 0.0
  %9723 = vmatpush2.xpose.msra.mxu0 0.0
  %9724 = vmatprep.subr.mxu0 0.0
  %9725 = vmatpush2.xpose.msra.mxu0 0.0
  %9726 = vmatprep.subr.mxu0 0.0
  %9727 = vmatpush2.xpose.msra.mxu0 0.0
  %9728 = vmatprep.subr.mxu0 0.0
  %9729 = vmatpush2.xpose.msra.mxu0 0.0
  %9730 = vmatprep.subr.mxu0 0.0
  %9731 = vmatpush2.xpose.msra.mxu0 0.0
  %9732 = vmatprep.subr.mxu0 0.0
  %9733 = vmatpush2.xpose.msra.mxu0 0.0
  %9734 = vmatprep.subr.mxu0 0.0
  %9735 = vmatpush2.xpose.msra.mxu0 0.0
  %9736 = vmatprep.subr.mxu0 0.0
  %9737 = vmatpush2.xpose.msra.mxu0 0.0
  %9738 = vmatprep.subr.mxu0 0.0
  %9739 = vmatpush2.xpose.msra.mxu0 0.0
  %9740 = vmatprep.subr.mxu0 0.0
  %9741 = vmatpush2.xpose.msra.mxu0 0.0
  %9742 = vmatprep.subr.mxu0 0.0
  %9743 = vmatpush2.xpose.msra.mxu0 0.0
  %9744 = vmatprep.subr.mxu0 0.0
  %9745 = vmatpush2.xpose.msra.mxu0 0.0
  %9746 = vmatprep.mubr.f32.mxu0 0.0
  %9747 = vmatmul.mubr.f32.gmra.mxu0 %v9678
  %v9748 = vpop.f32.mrf.mxu0
  %v9749 = vadd.f32 0.0, %v9748
  %v9750 = vpop.f32.mrf.mxu0
  %9751 = vdwg.mxu0
  %9752 = vrot.lane.b32.xlu0 %v9219, 96
  %v9753 = vpop.permute.xlu0 %9752
  %v9754 = vsel %vm293, %v9219, 0
  %v9756 = vsel %vm293, %v9753, 0
  %9758 = vmatprep.subr.mxu0 0.0
  %9759 = vmatpush1.xpose.msra.mxu0 0.0
  %9760 = vmatprep.subr.mxu0 0.0
  %9761 = vmatpush1.xpose.msra.mxu0 0.0
  %9762 = vmatprep.subr.mxu0 0.0
  %9763 = vmatpush1.xpose.msra.mxu0 0.0
  %9764 = vmatprep.subr.mxu0 0.0
  %9765 = vmatpush1.xpose.msra.mxu0 0.0
  %9766 = vmatprep.subr.mxu0 0.0
  %9767 = vmatpush1.xpose.msra.mxu0 0.0
  %9768 = vmatprep.subr.mxu0 0.0
  %9769 = vmatpush1.xpose.msra.mxu0 0.0
  %9770 = vmatprep.subr.mxu0 0.0
  %9771 = vmatpush1.xpose.msra.mxu0 0.0
  %9772 = vmatprep.subr.mxu0 0.0
  %9773 = vmatpush1.xpose.msra.mxu0 0.0
  %9774 = vmatprep.subr.mxu0 0.0
  %9775 = vmatpush1.xpose.msra.mxu0 0.0
  %9776 = vmatprep.subr.mxu0 0.0
  %9777 = vmatpush1.xpose.msra.mxu0 0.0
  %9778 = vmatprep.subr.mxu0 0.0
  %9779 = vmatpush1.xpose.msra.mxu0 0.0
  %9780 = vmatprep.subr.mxu0 0.0
  %9781 = vmatpush1.xpose.msra.mxu0 0.0
  %9782 = vmatprep.subr.mxu0 0.0
  %9783 = vmatpush1.xpose.msra.mxu0 0.0
  %9784 = vmatprep.subr.mxu0 0.0
  %9785 = vmatpush1.xpose.msra.mxu0 0.0
  %9786 = vmatprep.subr.mxu0 0.0
  %9787 = vmatpush1.xpose.msra.mxu0 0.0
  %9788 = vmatprep.subr.mxu0 0.0
  %9789 = vmatpush1.xpose.msra.mxu0 %v9756
  %9790 = vmatprep.subr.mxu0 0.0
  %9791 = vmatpush2.xpose.msra.mxu0 0.0
  %9792 = vmatprep.subr.mxu0 0.0
  %9793 = vmatpush2.xpose.msra.mxu0 0.0
  %9794 = vmatprep.subr.mxu0 0.0
  %9795 = vmatpush2.xpose.msra.mxu0 0.0
  %9796 = vmatprep.subr.mxu0 0.0
  %9797 = vmatpush2.xpose.msra.mxu0 0.0
  %9798 = vmatprep.subr.mxu0 0.0
  %9799 = vmatpush2.xpose.msra.mxu0 0.0
  %9800 = vmatprep.subr.mxu0 0.0
  %9801 = vmatpush2.xpose.msra.mxu0 0.0
  %9802 = vmatprep.subr.mxu0 0.0
  %9803 = vmatpush2.xpose.msra.mxu0 0.0
  %9804 = vmatprep.subr.mxu0 0.0
  %9805 = vmatpush2.xpose.msra.mxu0 0.0
  %9806 = vmatprep.subr.mxu0 0.0
  %9807 = vmatpush2.xpose.msra.mxu0 0.0
  %9808 = vmatprep.subr.mxu0 0.0
  %9809 = vmatpush2.xpose.msra.mxu0 0.0
  %9810 = vmatprep.subr.mxu0 0.0
  %9811 = vmatpush2.xpose.msra.mxu0 0.0
  %9812 = vmatprep.subr.mxu0 0.0
  %9813 = vmatpush2.xpose.msra.mxu0 0.0
  %9814 = vmatprep.subr.mxu0 0.0
  %9815 = vmatpush2.xpose.msra.mxu0 0.0
  %9816 = vmatprep.subr.mxu0 0.0
  %9817 = vmatpush2.xpose.msra.mxu0 0.0
  %9818 = vmatprep.subr.mxu0 0.0
  %9819 = vmatpush2.xpose.msra.mxu0 0.0
  %9820 = vmatprep.subr.mxu0 0.0
  %9821 = vmatpush2.xpose.msra.mxu0 0.0
  %9822 = vmatprep.mubr.f32.mxu0 0.0
  %9823 = vmatmul.mubr.f32.gmra.mxu0 %v9754
  %v9824 = vpop.f32.mrf.mxu0
  %v9825 = vadd.f32 0.0, %v9824
  %v9826 = vpop.f32.mrf.mxu0
  %9827 = vdwg.mxu0
  %v9828 = vmul.f32 %v9293, 0.17677669
  %v9829 = vmul.f32 %v9369, 0.17677669
  %v9830 = vmul.f32 %v9445, 0.17677669
  %v9831 = vmul.f32 %v9521, 0.17677669
  %v9832 = vmul.f32 %v9597, 0.17677669
  %v9833 = vmul.f32 %v9673, 0.17677669
  %v9834 = vmul.f32 %v9749, 0.17677669
  %v9835 = vmul.f32 %v9825, 0.17677669
  %v9836 = vadd.f32 %v9828, %v162
  %v9837 = vadd.f32 %v9829, %v162
  %v9838 = vadd.f32 %v9830, %v162
  %v9839 = vadd.f32 %v9831, %v162
  %v9840 = vadd.f32 %v9832, %v162
  %v9841 = vadd.f32 %v9833, %v162
  %v9842 = vadd.f32 %v9834, %v162
  %v9843 = vadd.f32 %v9835, %v162
  %v9844 = vsel %vm293, %v9836, -inf
  %9845 = vmax.xlane.f32.xlu0 %v9844
  %v9846 = vpop.xlane.xlu0 %9845
  %v9847 = vsel %vm293, %v9837, -inf
  %9848 = vmax.xlane.f32.xlu0 %v9847
  %v9849 = vpop.xlane.xlu0 %9848
  %v9850 = vsel %vm293, %v9838, -inf
  %9851 = vmax.xlane.f32.xlu0 %v9850
  %v9852 = vpop.xlane.xlu0 %9851
  %v9853 = vsel %vm293, %v9839, -inf
  %9854 = vmax.xlane.f32.xlu0 %v9853
  %v9855 = vpop.xlane.xlu0 %9854
  %v9856 = vsel %vm293, %v9840, -inf
  %9857 = vmax.xlane.f32.xlu0 %v9856
  %v9858 = vpop.xlane.xlu0 %9857
  %v9859 = vsel %vm293, %v9841, -inf
  %9860 = vmax.xlane.f32.xlu0 %v9859
  %v9861 = vpop.xlane.xlu0 %9860
  %v9862 = vsel %vm293, %v9842, -inf
  %9863 = vmax.xlane.f32.xlu0 %v9862
  %v9864 = vpop.xlane.xlu0 %9863
  %v9865 = vsel %vm293, %v9843, -inf
  %9866 = vmax.xlane.f32.xlu0 %v9865
  %v9867 = vpop.xlane.xlu0 %9866
  %v9868 = vsub.f32 %v9836, %v9846
  %v9869 = vsub.f32 %v9837, %v9849
  %v9870 = vsub.f32 %v9838, %v9852
  %v9871 = vsub.f32 %v9839, %v9855
  %v9872 = vsub.f32 %v9840, %v9858
  %v9873 = vsub.f32 %v9841, %v9861
  %v9874 = vsub.f32 %v9842, %v9864
  %v9875 = vsub.f32 %v9843, %v9867
  %v9876 = vmul.f32 %v9868, 1.442695
  %v9877 = vpow.pop %v9876
  %v9878 = vmul.f32 %v9869, 1.442695
  %v9879 = vpow.pop %v9878
  %v9880 = vmul.f32 %v9870, 1.442695
  %v9881 = vpow.pop %v9880
  %v9882 = vmul.f32 %v9871, 1.442695
  %v9883 = vpow.pop %v9882
  %v9884 = vmul.f32 %v9872, 1.442695
  %v9885 = vpow.pop %v9884
  %v9886 = vmul.f32 %v9873, 1.442695
  %v9887 = vpow.pop %v9886
  %v9888 = vmul.f32 %v9874, 1.442695
  %v9889 = vpow.pop %v9888
  %v9890 = vmul.f32 %v9875, 1.442695
  %v9891 = vpow.pop %v9890
  %v9892 = vsel %vm293, %v9877, 0.0
  %9893 = vadd.xlane.f32.xlu0 %v9892
  %v9894 = vpop.xlane.xlu0 %9893
  %v9895 = vsel %vm293, %v9879, 0.0
  %9896 = vadd.xlane.f32.xlu0 %v9895
  %v9897 = vpop.xlane.xlu0 %9896
  %v9898 = vsel %vm293, %v9881, 0.0
  %9899 = vadd.xlane.f32.xlu0 %v9898
  %v9900 = vpop.xlane.xlu0 %9899
  %v9901 = vsel %vm293, %v9883, 0.0
  %9902 = vadd.xlane.f32.xlu0 %v9901
  %v9903 = vpop.xlane.xlu0 %9902
  %v9904 = vsel %vm293, %v9885, 0.0
  %9905 = vadd.xlane.f32.xlu0 %v9904
  %v9906 = vpop.xlane.xlu0 %9905
  %v9907 = vsel %vm293, %v9887, 0.0
  %9908 = vadd.xlane.f32.xlu0 %v9907
  %v9909 = vpop.xlane.xlu0 %9908
  %v9910 = vsel %vm293, %v9889, 0.0
  %9911 = vadd.xlane.f32.xlu0 %v9910
  %v9912 = vpop.xlane.xlu0 %9911
  %v9913 = vsel %vm293, %v9891, 0.0
  %9914 = vadd.xlane.f32.xlu0 %v9913
  %v9915 = vpop.xlane.xlu0 %9914
  %v9916 = vrcp.pop %v9894
  %v9917 = vmul.f32 %v9877, %v9916
  %v9918 = vrcp.pop %v9897
  %v9919 = vmul.f32 %v9879, %v9918
  %v9920 = vrcp.pop %v9900
  %v9921 = vmul.f32 %v9881, %v9920
  %v9922 = vrcp.pop %v9903
  %v9923 = vmul.f32 %v9883, %v9922
  %v9924 = vrcp.pop %v9906
  %v9925 = vmul.f32 %v9885, %v9924
  %v9926 = vrcp.pop %v9909
  %v9927 = vmul.f32 %v9887, %v9926
  %v9928 = vrcp.pop %v9912
  %v9929 = vmul.f32 %v9889, %v9928
  %v9930 = vrcp.pop %v9915
  %v9931 = vmul.f32 %v9891, %v9930
  %9932 = vrot.lane.b32.xlu0 %v9200, 64
  %v9933 = vpop.permute.xlu0 %9932
  %v9936 = vsel %vm293, %v9917, 0
  %9938 = vmatprep.subr.mxu0 0.0
  %9939 = vmatpush1.msra.mxu0 0.0
  %9940 = vmatprep.subr.mxu0 0.0
  %9941 = vmatpush1.msra.mxu0 0.0
  %9942 = vmatprep.subr.mxu0 0.0
  %9943 = vmatpush1.msra.mxu0 0.0
  %9944 = vmatprep.subr.mxu0 0.0
  %9945 = vmatpush1.msra.mxu0 0.0
  %9946 = vmatprep.subr.mxu0 0.0
  %9947 = vmatpush1.msra.mxu0 0.0
  %9948 = vmatprep.subr.mxu0 0.0
  %9949 = vmatpush1.msra.mxu0 0.0
  %9950 = vmatprep.subr.mxu0 0.0
  %9951 = vmatpush1.msra.mxu0 0.0
  %9952 = vmatprep.subr.mxu0 0.0
  %9953 = vmatpush1.msra.mxu0 0.0
  %9954 = vmatprep.subr.mxu0 0.0
  %9955 = vmatpush1.msra.mxu0 0.0
  %9956 = vmatprep.subr.mxu0 0.0
  %9957 = vmatpush1.msra.mxu0 0.0
  %9958 = vmatprep.subr.mxu0 0.0
  %9959 = vmatpush1.msra.mxu0 0.0
  %9960 = vmatprep.subr.mxu0 0.0
  %9961 = vmatpush1.msra.mxu0 0.0
  %9962 = vmatprep.subr.mxu0 0.0
  %9963 = vmatpush1.msra.mxu0 0.0
  %9964 = vmatprep.subr.mxu0 0.0
  %9965 = vmatpush1.msra.mxu0 0.0
  %9966 = vmatprep.subr.mxu0 0.0
  %9967 = vmatpush1.msra.mxu0 0.0
  %9968 = vmatprep.subr.mxu0 0.0
  %9969 = vmatpush1.msra.mxu0 %v9933
  %9970 = vmatprep.subr.mxu0 0.0
  %9971 = vmatpush2.msra.mxu0 0.0
  %9972 = vmatprep.subr.mxu0 0.0
  %9973 = vmatpush2.msra.mxu0 0.0
  %9974 = vmatprep.subr.mxu0 0.0
  %9975 = vmatpush2.msra.mxu0 0.0
  %9976 = vmatprep.subr.mxu0 0.0
  %9977 = vmatpush2.msra.mxu0 0.0
  %9978 = vmatprep.subr.mxu0 0.0
  %9979 = vmatpush2.msra.mxu0 0.0
  %9980 = vmatprep.subr.mxu0 0.0
  %9981 = vmatpush2.msra.mxu0 0.0
  %9982 = vmatprep.subr.mxu0 0.0
  %9983 = vmatpush2.msra.mxu0 0.0
  %9984 = vmatprep.subr.mxu0 0.0
  %9985 = vmatpush2.msra.mxu0 0.0
  %9986 = vmatprep.subr.mxu0 0.0
  %9987 = vmatpush2.msra.mxu0 0.0
  %9988 = vmatprep.subr.mxu0 0.0
  %9989 = vmatpush2.msra.mxu0 0.0
  %9990 = vmatprep.subr.mxu0 0.0
  %9991 = vmatpush2.msra.mxu0 0.0
  %9992 = vmatprep.subr.mxu0 0.0
  %9993 = vmatpush2.msra.mxu0 0.0
  %9994 = vmatprep.subr.mxu0 0.0
  %9995 = vmatpush2.msra.mxu0 0.0
  %9996 = vmatprep.subr.mxu0 0.0
  %9997 = vmatpush2.msra.mxu0 0.0
  %9998 = vmatprep.subr.mxu0 0.0
  %9999 = vmatpush2.msra.mxu0 0.0
  %10000 = vmatprep.subr.mxu0 0.0
  %10001 = vmatpush2.msra.mxu0 0.0
  %10002 = vmatprep.mubr.f32.mxu0 0.0
  %10003 = vmatmul.mubr.f32.gmra.mxu0 %v9936
  %v10004 = vpop.f32.mrf.mxu0
  %v10005 = vadd.f32 0.0, %v10004
  %v10006 = vpop.f32.mrf.mxu0
  %10007 = vdwg.mxu0
  %10008 = vrot.lane.b32.xlu0 %v9203, 64
  %v10009 = vpop.permute.xlu0 %10008
  %v10012 = vsel %vm293, %v9919, 0
  %10014 = vmatprep.subr.mxu0 0.0
  %10015 = vmatpush1.msra.mxu0 0.0
  %10016 = vmatprep.subr.mxu0 0.0
  %10017 = vmatpush1.msra.mxu0 0.0
  %10018 = vmatprep.subr.mxu0 0.0
  %10019 = vmatpush1.msra.mxu0 0.0
  %10020 = vmatprep.subr.mxu0 0.0
  %10021 = vmatpush1.msra.mxu0 0.0
  %10022 = vmatprep.subr.mxu0 0.0
  %10023 = vmatpush1.msra.mxu0 0.0
  %10024 = vmatprep.subr.mxu0 0.0
  %10025 = vmatpush1.msra.mxu0 0.0
  %10026 = vmatprep.subr.mxu0 0.0
  %10027 = vmatpush1.msra.mxu0 0.0
  %10028 = vmatprep.subr.mxu0 0.0
  %10029 = vmatpush1.msra.mxu0 0.0
  %10030 = vmatprep.subr.mxu0 0.0
  %10031 = vmatpush1.msra.mxu0 0.0
  %10032 = vmatprep.subr.mxu0 0.0
  %10033 = vmatpush1.msra.mxu0 0.0
  %10034 = vmatprep.subr.mxu0 0.0
  %10035 = vmatpush1.msra.mxu0 0.0
  %10036 = vmatprep.subr.mxu0 0.0
  %10037 = vmatpush1.msra.mxu0 0.0
  %10038 = vmatprep.subr.mxu0 0.0
  %10039 = vmatpush1.msra.mxu0 0.0
  %10040 = vmatprep.subr.mxu0 0.0
  %10041 = vmatpush1.msra.mxu0 0.0
  %10042 = vmatprep.subr.mxu0 0.0
  %10043 = vmatpush1.msra.mxu0 0.0
  %10044 = vmatprep.subr.mxu0 0.0
  %10045 = vmatpush1.msra.mxu0 %v10009
  %10046 = vmatprep.subr.mxu0 0.0
  %10047 = vmatpush2.msra.mxu0 0.0
  %10048 = vmatprep.subr.mxu0 0.0
  %10049 = vmatpush2.msra.mxu0 0.0
  %10050 = vmatprep.subr.mxu0 0.0
  %10051 = vmatpush2.msra.mxu0 0.0
  %10052 = vmatprep.subr.mxu0 0.0
  %10053 = vmatpush2.msra.mxu0 0.0
  %10054 = vmatprep.subr.mxu0 0.0
  %10055 = vmatpush2.msra.mxu0 0.0
  %10056 = vmatprep.subr.mxu0 0.0
  %10057 = vmatpush2.msra.mxu0 0.0
  %10058 = vmatprep.subr.mxu0 0.0
  %10059 = vmatpush2.msra.mxu0 0.0
  %10060 = vmatprep.subr.mxu0 0.0
  %10061 = vmatpush2.msra.mxu0 0.0
  %10062 = vmatprep.subr.mxu0 0.0
  %10063 = vmatpush2.msra.mxu0 0.0
  %10064 = vmatprep.subr.mxu0 0.0
  %10065 = vmatpush2.msra.mxu0 0.0
  %10066 = vmatprep.subr.mxu0 0.0
  %10067 = vmatpush2.msra.mxu0 0.0
  %10068 = vmatprep.subr.mxu0 0.0
  %10069 = vmatpush2.msra.mxu0 0.0
  %10070 = vmatprep.subr.mxu0 0.0
  %10071 = vmatpush2.msra.mxu0 0.0
  %10072 = vmatprep.subr.mxu0 0.0
  %10073 = vmatpush2.msra.mxu0 0.0
  %10074 = vmatprep.subr.mxu0 0.0
  %10075 = vmatpush2.msra.mxu0 0.0
  %10076 = vmatprep.subr.mxu0 0.0
  %10077 = vmatpush2.msra.mxu0 0.0
  %10078 = vmatprep.mubr.f32.mxu0 0.0
  %10079 = vmatmul.mubr.f32.gmra.mxu0 %v10012
  %v10080 = vpop.f32.mrf.mxu0
  %v10081 = vadd.f32 0.0, %v10080
  %v10082 = vpop.f32.mrf.mxu0
  %10083 = vdwg.mxu0
  %10084 = vrot.lane.b32.xlu0 %v9209, 64
  %v10085 = vpop.permute.xlu0 %10084
  %v10088 = vsel %vm293, %v9921, 0
  %10090 = vmatprep.subr.mxu0 0.0
  %10091 = vmatpush1.msra.mxu0 0.0
  %10092 = vmatprep.subr.mxu0 0.0
  %10093 = vmatpush1.msra.mxu0 0.0
  %10094 = vmatprep.subr.mxu0 0.0
  %10095 = vmatpush1.msra.mxu0 0.0
  %10096 = vmatprep.subr.mxu0 0.0
  %10097 = vmatpush1.msra.mxu0 0.0
  %10098 = vmatprep.subr.mxu0 0.0
  %10099 = vmatpush1.msra.mxu0 0.0
  %10100 = vmatprep.subr.mxu0 0.0
  %10101 = vmatpush1.msra.mxu0 0.0
  %10102 = vmatprep.subr.mxu0 0.0
  %10103 = vmatpush1.msra.mxu0 0.0
  %10104 = vmatprep.subr.mxu0 0.0
  %10105 = vmatpush1.msra.mxu0 0.0
  %10106 = vmatprep.subr.mxu0 0.0
  %10107 = vmatpush1.msra.mxu0 0.0
  %10108 = vmatprep.subr.mxu0 0.0
  %10109 = vmatpush1.msra.mxu0 0.0
  %10110 = vmatprep.subr.mxu0 0.0
  %10111 = vmatpush1.msra.mxu0 0.0
  %10112 = vmatprep.subr.mxu0 0.0
  %10113 = vmatpush1.msra.mxu0 0.0
  %10114 = vmatprep.subr.mxu0 0.0
  %10115 = vmatpush1.msra.mxu0 0.0
  %10116 = vmatprep.subr.mxu0 0.0
  %10117 = vmatpush1.msra.mxu0 0.0
  %10118 = vmatprep.subr.mxu0 0.0
  %10119 = vmatpush1.msra.mxu0 0.0
  %10120 = vmatprep.subr.mxu0 0.0
  %10121 = vmatpush1.msra.mxu0 %v10085
  %10122 = vmatprep.subr.mxu0 0.0
  %10123 = vmatpush2.msra.mxu0 0.0
  %10124 = vmatprep.subr.mxu0 0.0
  %10125 = vmatpush2.msra.mxu0 0.0
  %10126 = vmatprep.subr.mxu0 0.0
  %10127 = vmatpush2.msra.mxu0 0.0
  %10128 = vmatprep.subr.mxu0 0.0
  %10129 = vmatpush2.msra.mxu0 0.0
  %10130 = vmatprep.subr.mxu0 0.0
  %10131 = vmatpush2.msra.mxu0 0.0
  %10132 = vmatprep.subr.mxu0 0.0
  %10133 = vmatpush2.msra.mxu0 0.0
  %10134 = vmatprep.subr.mxu0 0.0
  %10135 = vmatpush2.msra.mxu0 0.0
  %10136 = vmatprep.subr.mxu0 0.0
  %10137 = vmatpush2.msra.mxu0 0.0
  %10138 = vmatprep.subr.mxu0 0.0
  %10139 = vmatpush2.msra.mxu0 0.0
  %10140 = vmatprep.subr.mxu0 0.0
  %10141 = vmatpush2.msra.mxu0 0.0
  %10142 = vmatprep.subr.mxu0 0.0
  %10143 = vmatpush2.msra.mxu0 0.0
  %10144 = vmatprep.subr.mxu0 0.0
  %10145 = vmatpush2.msra.mxu0 0.0
  %10146 = vmatprep.subr.mxu0 0.0
  %10147 = vmatpush2.msra.mxu0 0.0
  %10148 = vmatprep.subr.mxu0 0.0
  %10149 = vmatpush2.msra.mxu0 0.0
  %10150 = vmatprep.subr.mxu0 0.0
  %10151 = vmatpush2.msra.mxu0 0.0
  %10152 = vmatprep.subr.mxu0 0.0
  %10153 = vmatpush2.msra.mxu0 0.0
  %10154 = vmatprep.mubr.f32.mxu0 0.0
  %10155 = vmatmul.mubr.f32.gmra.mxu0 %v10088
  %v10156 = vpop.f32.mrf.mxu0
  %v10157 = vadd.f32 0.0, %v10156
  %v10158 = vpop.f32.mrf.mxu0
  %10159 = vdwg.mxu0
  %10160 = vrot.lane.b32.xlu0 %v9211, 64
  %v10161 = vpop.permute.xlu0 %10160
  %v10164 = vsel %vm293, %v9923, 0
  %10166 = vmatprep.subr.mxu0 0.0
  %10167 = vmatpush1.msra.mxu0 0.0
  %10168 = vmatprep.subr.mxu0 0.0
  %10169 = vmatpush1.msra.mxu0 0.0
  %10170 = vmatprep.subr.mxu0 0.0
  %10171 = vmatpush1.msra.mxu0 0.0
  %10172 = vmatprep.subr.mxu0 0.0
  %10173 = vmatpush1.msra.mxu0 0.0
  %10174 = vmatprep.subr.mxu0 0.0
  %10175 = vmatpush1.msra.mxu0 0.0
  %10176 = vmatprep.subr.mxu0 0.0
  %10177 = vmatpush1.msra.mxu0 0.0
  %10178 = vmatprep.subr.mxu0 0.0
  %10179 = vmatpush1.msra.mxu0 0.0
  %10180 = vmatprep.subr.mxu0 0.0
  %10181 = vmatpush1.msra.mxu0 0.0
  %10182 = vmatprep.subr.mxu0 0.0
  %10183 = vmatpush1.msra.mxu0 0.0
  %10184 = vmatprep.subr.mxu0 0.0
  %10185 = vmatpush1.msra.mxu0 0.0
  %10186 = vmatprep.subr.mxu0 0.0
  %10187 = vmatpush1.msra.mxu0 0.0
  %10188 = vmatprep.subr.mxu0 0.0
  %10189 = vmatpush1.msra.mxu0 0.0
  %10190 = vmatprep.subr.mxu0 0.0
  %10191 = vmatpush1.msra.mxu0 0.0
  %10192 = vmatprep.subr.mxu0 0.0
  %10193 = vmatpush1.msra.mxu0 0.0
  %10194 = vmatprep.subr.mxu0 0.0
  %10195 = vmatpush1.msra.mxu0 0.0
  %10196 = vmatprep.subr.mxu0 0.0
  %10197 = vmatpush1.msra.mxu0 %v10161
  %10198 = vmatprep.subr.mxu0 0.0
  %10199 = vmatpush2.msra.mxu0 0.0
  %10200 = vmatprep.subr.mxu0 0.0
  %10201 = vmatpush2.msra.mxu0 0.0
  %10202 = vmatprep.subr.mxu0 0.0
  %10203 = vmatpush2.msra.mxu0 0.0
  %10204 = vmatprep.subr.mxu0 0.0
  %10205 = vmatpush2.msra.mxu0 0.0
  %10206 = vmatprep.subr.mxu0 0.0
  %10207 = vmatpush2.msra.mxu0 0.0
  %10208 = vmatprep.subr.mxu0 0.0
  %10209 = vmatpush2.msra.mxu0 0.0
  %10210 = vmatprep.subr.mxu0 0.0
  %10211 = vmatpush2.msra.mxu0 0.0
  %10212 = vmatprep.subr.mxu0 0.0
  %10213 = vmatpush2.msra.mxu0 0.0
  %10214 = vmatprep.subr.mxu0 0.0
  %10215 = vmatpush2.msra.mxu0 0.0
  %10216 = vmatprep.subr.mxu0 0.0
  %10217 = vmatpush2.msra.mxu0 0.0
  %10218 = vmatprep.subr.mxu0 0.0
  %10219 = vmatpush2.msra.mxu0 0.0
  %10220 = vmatprep.subr.mxu0 0.0
  %10221 = vmatpush2.msra.mxu0 0.0
  %10222 = vmatprep.subr.mxu0 0.0
  %10223 = vmatpush2.msra.mxu0 0.0
  %10224 = vmatprep.subr.mxu0 0.0
  %10225 = vmatpush2.msra.mxu0 0.0
  %10226 = vmatprep.subr.mxu0 0.0
  %10227 = vmatpush2.msra.mxu0 0.0
  %10228 = vmatprep.subr.mxu0 0.0
  %10229 = vmatpush2.msra.mxu0 0.0
  %10230 = vmatprep.mubr.f32.mxu0 0.0
  %10231 = vmatmul.mubr.f32.gmra.mxu0 %v10164
  %v10232 = vpop.f32.mrf.mxu0
  %v10233 = vadd.f32 0.0, %v10232
  %v10234 = vpop.f32.mrf.mxu0
  %10235 = vdwg.mxu0
  %10236 = vrot.lane.b32.xlu0 %v9213, 64
  %v10237 = vpop.permute.xlu0 %10236
  %v10240 = vsel %vm293, %v9925, 0
  %10242 = vmatprep.subr.mxu0 0.0
  %10243 = vmatpush1.msra.mxu0 0.0
  %10244 = vmatprep.subr.mxu0 0.0
  %10245 = vmatpush1.msra.mxu0 0.0
  %10246 = vmatprep.subr.mxu0 0.0
  %10247 = vmatpush1.msra.mxu0 0.0
  %10248 = vmatprep.subr.mxu0 0.0
  %10249 = vmatpush1.msra.mxu0 0.0
  %10250 = vmatprep.subr.mxu0 0.0
  %10251 = vmatpush1.msra.mxu0 0.0
  %10252 = vmatprep.subr.mxu0 0.0
  %10253 = vmatpush1.msra.mxu0 0.0
  %10254 = vmatprep.subr.mxu0 0.0
  %10255 = vmatpush1.msra.mxu0 0.0
  %10256 = vmatprep.subr.mxu0 0.0
  %10257 = vmatpush1.msra.mxu0 0.0
  %10258 = vmatprep.subr.mxu0 0.0
  %10259 = vmatpush1.msra.mxu0 0.0
  %10260 = vmatprep.subr.mxu0 0.0
  %10261 = vmatpush1.msra.mxu0 0.0
  %10262 = vmatprep.subr.mxu0 0.0
  %10263 = vmatpush1.msra.mxu0 0.0
  %10264 = vmatprep.subr.mxu0 0.0
  %10265 = vmatpush1.msra.mxu0 0.0
  %10266 = vmatprep.subr.mxu0 0.0
  %10267 = vmatpush1.msra.mxu0 0.0
  %10268 = vmatprep.subr.mxu0 0.0
  %10269 = vmatpush1.msra.mxu0 0.0
  %10270 = vmatprep.subr.mxu0 0.0
  %10271 = vmatpush1.msra.mxu0 0.0
  %10272 = vmatprep.subr.mxu0 0.0
  %10273 = vmatpush1.msra.mxu0 %v10237
  %10274 = vmatprep.subr.mxu0 0.0
  %10275 = vmatpush2.msra.mxu0 0.0
  %10276 = vmatprep.subr.mxu0 0.0
  %10277 = vmatpush2.msra.mxu0 0.0
  %10278 = vmatprep.subr.mxu0 0.0
  %10279 = vmatpush2.msra.mxu0 0.0
  %10280 = vmatprep.subr.mxu0 0.0
  %10281 = vmatpush2.msra.mxu0 0.0
  %10282 = vmatprep.subr.mxu0 0.0
  %10283 = vmatpush2.msra.mxu0 0.0
  %10284 = vmatprep.subr.mxu0 0.0
  %10285 = vmatpush2.msra.mxu0 0.0
  %10286 = vmatprep.subr.mxu0 0.0
  %10287 = vmatpush2.msra.mxu0 0.0
  %10288 = vmatprep.subr.mxu0 0.0
  %10289 = vmatpush2.msra.mxu0 0.0
  %10290 = vmatprep.subr.mxu0 0.0
  %10291 = vmatpush2.msra.mxu0 0.0
  %10292 = vmatprep.subr.mxu0 0.0
  %10293 = vmatpush2.msra.mxu0 0.0
  %10294 = vmatprep.subr.mxu0 0.0
  %10295 = vmatpush2.msra.mxu0 0.0
  %10296 = vmatprep.subr.mxu0 0.0
  %10297 = vmatpush2.msra.mxu0 0.0
  %10298 = vmatprep.subr.mxu0 0.0
  %10299 = vmatpush2.msra.mxu0 0.0
  %10300 = vmatprep.subr.mxu0 0.0
  %10301 = vmatpush2.msra.mxu0 0.0
  %10302 = vmatprep.subr.mxu0 0.0
  %10303 = vmatpush2.msra.mxu0 0.0
  %10304 = vmatprep.subr.mxu0 0.0
  %10305 = vmatpush2.msra.mxu0 0.0
  %10306 = vmatprep.mubr.f32.mxu0 0.0
  %10307 = vmatmul.mubr.f32.gmra.mxu0 %v10240
  %v10308 = vpop.f32.mrf.mxu0
  %v10309 = vadd.f32 0.0, %v10308
  %v10310 = vpop.f32.mrf.mxu0
  %10311 = vdwg.mxu0
  %10312 = vrot.lane.b32.xlu0 %v9215, 64
  %v10313 = vpop.permute.xlu0 %10312
  %v10316 = vsel %vm293, %v9927, 0
  %10318 = vmatprep.subr.mxu0 0.0
  %10319 = vmatpush1.msra.mxu0 0.0
  %10320 = vmatprep.subr.mxu0 0.0
  %10321 = vmatpush1.msra.mxu0 0.0
  %10322 = vmatprep.subr.mxu0 0.0
  %10323 = vmatpush1.msra.mxu0 0.0
  %10324 = vmatprep.subr.mxu0 0.0
  %10325 = vmatpush1.msra.mxu0 0.0
  %10326 = vmatprep.subr.mxu0 0.0
  %10327 = vmatpush1.msra.mxu0 0.0
  %10328 = vmatprep.subr.mxu0 0.0
  %10329 = vmatpush1.msra.mxu0 0.0
  %10330 = vmatprep.subr.mxu0 0.0
  %10331 = vmatpush1.msra.mxu0 0.0
  %10332 = vmatprep.subr.mxu0 0.0
  %10333 = vmatpush1.msra.mxu0 0.0
  %10334 = vmatprep.subr.mxu0 0.0
  %10335 = vmatpush1.msra.mxu0 0.0
  %10336 = vmatprep.subr.mxu0 0.0
  %10337 = vmatpush1.msra.mxu0 0.0
  %10338 = vmatprep.subr.mxu0 0.0
  %10339 = vmatpush1.msra.mxu0 0.0
  %10340 = vmatprep.subr.mxu0 0.0
  %10341 = vmatpush1.msra.mxu0 0.0
  %10342 = vmatprep.subr.mxu0 0.0
  %10343 = vmatpush1.msra.mxu0 0.0
  %10344 = vmatprep.subr.mxu0 0.0
  %10345 = vmatpush1.msra.mxu0 0.0
  %10346 = vmatprep.subr.mxu0 0.0
  %10347 = vmatpush1.msra.mxu0 0.0
  %10348 = vmatprep.subr.mxu0 0.0
  %10349 = vmatpush1.msra.mxu0 %v10313
  %10350 = vmatprep.subr.mxu0 0.0
  %10351 = vmatpush2.msra.mxu0 0.0
  %10352 = vmatprep.subr.mxu0 0.0
  %10353 = vmatpush2.msra.mxu0 0.0
  %10354 = vmatprep.subr.mxu0 0.0
  %10355 = vmatpush2.msra.mxu0 0.0
  %10356 = vmatprep.subr.mxu0 0.0
  %10357 = vmatpush2.msra.mxu0 0.0
  %10358 = vmatprep.subr.mxu0 0.0
  %10359 = vmatpush2.msra.mxu0 0.0
  %10360 = vmatprep.subr.mxu0 0.0
  %10361 = vmatpush2.msra.mxu0 0.0
  %10362 = vmatprep.subr.mxu0 0.0
  %10363 = vmatpush2.msra.mxu0 0.0
  %10364 = vmatprep.subr.mxu0 0.0
  %10365 = vmatpush2.msra.mxu0 0.0
  %10366 = vmatprep.subr.mxu0 0.0
  %10367 = vmatpush2.msra.mxu0 0.0
  %10368 = vmatprep.subr.mxu0 0.0
  %10369 = vmatpush2.msra.mxu0 0.0
  %10370 = vmatprep.subr.mxu0 0.0
  %10371 = vmatpush2.msra.mxu0 0.0
  %10372 = vmatprep.subr.mxu0 0.0
  %10373 = vmatpush2.msra.mxu0 0.0
  %10374 = vmatprep.subr.mxu0 0.0
  %10375 = vmatpush2.msra.mxu0 0.0
  %10376 = vmatprep.subr.mxu0 0.0
  %10377 = vmatpush2.msra.mxu0 0.0
  %10378 = vmatprep.subr.mxu0 0.0
  %10379 = vmatpush2.msra.mxu0 0.0
  %10380 = vmatprep.subr.mxu0 0.0
  %10381 = vmatpush2.msra.mxu0 0.0
  %10382 = vmatprep.mubr.f32.mxu0 0.0
  %10383 = vmatmul.mubr.f32.gmra.mxu0 %v10316
  %v10384 = vpop.f32.mrf.mxu0
  %v10385 = vadd.f32 0.0, %v10384
  %v10386 = vpop.f32.mrf.mxu0
  %10387 = vdwg.mxu0
  %10388 = vrot.lane.b32.xlu0 %v9217, 64
  %v10389 = vpop.permute.xlu0 %10388
  %v10392 = vsel %vm293, %v9929, 0
  %10394 = vmatprep.subr.mxu0 0.0
  %10395 = vmatpush1.msra.mxu0 0.0
  %10396 = vmatprep.subr.mxu0 0.0
  %10397 = vmatpush1.msra.mxu0 0.0
  %10398 = vmatprep.subr.mxu0 0.0
  %10399 = vmatpush1.msra.mxu0 0.0
  %10400 = vmatprep.subr.mxu0 0.0
  %10401 = vmatpush1.msra.mxu0 0.0
  %10402 = vmatprep.subr.mxu0 0.0
  %10403 = vmatpush1.msra.mxu0 0.0
  %10404 = vmatprep.subr.mxu0 0.0
  %10405 = vmatpush1.msra.mxu0 0.0
  %10406 = vmatprep.subr.mxu0 0.0
  %10407 = vmatpush1.msra.mxu0 0.0
  %10408 = vmatprep.subr.mxu0 0.0
  %10409 = vmatpush1.msra.mxu0 0.0
  %10410 = vmatprep.subr.mxu0 0.0
  %10411 = vmatpush1.msra.mxu0 0.0
  %10412 = vmatprep.subr.mxu0 0.0
  %10413 = vmatpush1.msra.mxu0 0.0
  %10414 = vmatprep.subr.mxu0 0.0
  %10415 = vmatpush1.msra.mxu0 0.0
  %10416 = vmatprep.subr.mxu0 0.0
  %10417 = vmatpush1.msra.mxu0 0.0
  %10418 = vmatprep.subr.mxu0 0.0
  %10419 = vmatpush1.msra.mxu0 0.0
  %10420 = vmatprep.subr.mxu0 0.0
  %10421 = vmatpush1.msra.mxu0 0.0
  %10422 = vmatprep.subr.mxu0 0.0
  %10423 = vmatpush1.msra.mxu0 0.0
  %10424 = vmatprep.subr.mxu0 0.0
  %10425 = vmatpush1.msra.mxu0 %v10389
  %10426 = vmatprep.subr.mxu0 0.0
  %10427 = vmatpush2.msra.mxu0 0.0
  %10428 = vmatprep.subr.mxu0 0.0
  %10429 = vmatpush2.msra.mxu0 0.0
  %10430 = vmatprep.subr.mxu0 0.0
  %10431 = vmatpush2.msra.mxu0 0.0
  %10432 = vmatprep.subr.mxu0 0.0
  %10433 = vmatpush2.msra.mxu0 0.0
  %10434 = vmatprep.subr.mxu0 0.0
  %10435 = vmatpush2.msra.mxu0 0.0
  %10436 = vmatprep.subr.mxu0 0.0
  %10437 = vmatpush2.msra.mxu0 0.0
  %10438 = vmatprep.subr.mxu0 0.0
  %10439 = vmatpush2.msra.mxu0 0.0
  %10440 = vmatprep.subr.mxu0 0.0
  %10441 = vmatpush2.msra.mxu0 0.0
  %10442 = vmatprep.subr.mxu0 0.0
  %10443 = vmatpush2.msra.mxu0 0.0
  %10444 = vmatprep.subr.mxu0 0.0
  %10445 = vmatpush2.msra.mxu0 0.0
  %10446 = vmatprep.subr.mxu0 0.0
  %10447 = vmatpush2.msra.mxu0 0.0
  %10448 = vmatprep.subr.mxu0 0.0
  %10449 = vmatpush2.msra.mxu0 0.0
  %10450 = vmatprep.subr.mxu0 0.0
  %10451 = vmatpush2.msra.mxu0 0.0
  %10452 = vmatprep.subr.mxu0 0.0
  %10453 = vmatpush2.msra.mxu0 0.0
  %10454 = vmatprep.subr.mxu0 0.0
  %10455 = vmatpush2.msra.mxu0 0.0
  %10456 = vmatprep.subr.mxu0 0.0
  %10457 = vmatpush2.msra.mxu0 0.0
  %10458 = vmatprep.mubr.f32.mxu0 0.0
  %10459 = vmatmul.mubr.f32.gmra.mxu0 %v10392
  %v10460 = vpop.f32.mrf.mxu0
  %v10461 = vadd.f32 0.0, %v10460
  %v10462 = vpop.f32.mrf.mxu0
  %10463 = vdwg.mxu0
  %10464 = vrot.lane.b32.xlu0 %v9219, 64
  %v10465 = vpop.permute.xlu0 %10464
  %v10468 = vsel %vm293, %v9931, 0
  %10470 = vmatprep.subr.mxu0 0.0
  %10471 = vmatpush1.msra.mxu0 0.0
  %10472 = vmatprep.subr.mxu0 0.0
  %10473 = vmatpush1.msra.mxu0 0.0
  %10474 = vmatprep.subr.mxu0 0.0
  %10475 = vmatpush1.msra.mxu0 0.0
  %10476 = vmatprep.subr.mxu0 0.0
  %10477 = vmatpush1.msra.mxu0 0.0
  %10478 = vmatprep.subr.mxu0 0.0
  %10479 = vmatpush1.msra.mxu0 0.0
  %10480 = vmatprep.subr.mxu0 0.0
  %10481 = vmatpush1.msra.mxu0 0.0
  %10482 = vmatprep.subr.mxu0 0.0
  %10483 = vmatpush1.msra.mxu0 0.0
  %10484 = vmatprep.subr.mxu0 0.0
  %10485 = vmatpush1.msra.mxu0 0.0
  %10486 = vmatprep.subr.mxu0 0.0
  %10487 = vmatpush1.msra.mxu0 0.0
  %10488 = vmatprep.subr.mxu0 0.0
  %10489 = vmatpush1.msra.mxu0 0.0
  %10490 = vmatprep.subr.mxu0 0.0
  %10491 = vmatpush1.msra.mxu0 0.0
  %10492 = vmatprep.subr.mxu0 0.0
  %10493 = vmatpush1.msra.mxu0 0.0
  %10494 = vmatprep.subr.mxu0 0.0
  %10495 = vmatpush1.msra.mxu0 0.0
  %10496 = vmatprep.subr.mxu0 0.0
  %10497 = vmatpush1.msra.mxu0 0.0
  %10498 = vmatprep.subr.mxu0 0.0
  %10499 = vmatpush1.msra.mxu0 0.0
  %10500 = vmatprep.subr.mxu0 0.0
  %10501 = vmatpush1.msra.mxu0 %v10465
  %10502 = vmatprep.subr.mxu0 0.0
  %10503 = vmatpush2.msra.mxu0 0.0
  %10504 = vmatprep.subr.mxu0 0.0
  %10505 = vmatpush2.msra.mxu0 0.0
  %10506 = vmatprep.subr.mxu0 0.0
  %10507 = vmatpush2.msra.mxu0 0.0
  %10508 = vmatprep.subr.mxu0 0.0
  %10509 = vmatpush2.msra.mxu0 0.0
  %10510 = vmatprep.subr.mxu0 0.0
  %10511 = vmatpush2.msra.mxu0 0.0
  %10512 = vmatprep.subr.mxu0 0.0
  %10513 = vmatpush2.msra.mxu0 0.0
  %10514 = vmatprep.subr.mxu0 0.0
  %10515 = vmatpush2.msra.mxu0 0.0
  %10516 = vmatprep.subr.mxu0 0.0
  %10517 = vmatpush2.msra.mxu0 0.0
  %10518 = vmatprep.subr.mxu0 0.0
  %10519 = vmatpush2.msra.mxu0 0.0
  %10520 = vmatprep.subr.mxu0 0.0
  %10521 = vmatpush2.msra.mxu0 0.0
  %10522 = vmatprep.subr.mxu0 0.0
  %10523 = vmatpush2.msra.mxu0 0.0
  %10524 = vmatprep.subr.mxu0 0.0
  %10525 = vmatpush2.msra.mxu0 0.0
  %10526 = vmatprep.subr.mxu0 0.0
  %10527 = vmatpush2.msra.mxu0 0.0
  %10528 = vmatprep.subr.mxu0 0.0
  %10529 = vmatpush2.msra.mxu0 0.0
  %10530 = vmatprep.subr.mxu0 0.0
  %10531 = vmatpush2.msra.mxu0 0.0
  %10532 = vmatprep.subr.mxu0 0.0
  %10533 = vmatpush2.msra.mxu0 0.0
  %10534 = vmatprep.mubr.f32.mxu0 0.0
  %10535 = vmatmul.mubr.f32.gmra.mxu0 %v10468
  %v10536 = vpop.f32.mrf.mxu0
  %v10537 = vadd.f32 0.0, %v10536
  %v10538 = vpop.f32.mrf.mxu0
  %10539 = vdwg.mxu0
  %10542 = vrot.lane.b32.xlu0 %v10157, 8
  %v10543 = vpop.permute.xlu0 %10542
  %10544 = vrot.lane.b32.xlu0 %v10233, 8
  %v10545 = vpop.permute.xlu0 %10544
  %10550 = vrot.lane.b32.xlu0 %v10309, 16
  %v10551 = vpop.permute.xlu0 %10550
  %10552 = vrot.lane.b32.xlu0 %v10385, 16
  %v10553 = vpop.permute.xlu0 %10552
  %10558 = vrot.lane.b32.xlu0 %v10461, 24
  %v10559 = vpop.permute.xlu0 %10558
  %10560 = vrot.lane.b32.xlu0 %v10537, 24
  %v10561 = vpop.permute.xlu0 %10560
  %v10564 = vsel %vm293, %v10005, %v10543
  %v10565 = vsel %vm293, %v10081, %v10545
  %v10566 = vsel %vm77, %v10564, %v10551
  %v10567 = vsel %vm77, %v10565, %v10553
  %v10568 = vsel %vm1640, %v10566, %v10559
  %v10569 = vsel %vm1640, %v10567, %v10561
  %v10570 = vpack.c.bf16 %v10569, %v10568
  %s10571 = scalar_lea.vmem %s7, 80
  %v10572 = vld [vmem:[%s10571] sm:$0xf]
  %v10573 = vld [vmem:[%s10571 + $0x4] sm:$0xf]
  %v10574 = vld [vmem:[%s10571 + $0x8] sm:$0xf]
  %v10575 = vld [vmem:[%s10571 + $0xc] sm:$0xf]
  %s10576 = scalar_lea.vmem %s8, 5
  %v10577 = vld [vmem:[%s10576] sm:$0x1]
  %v10579 = vlaneseq
  %v10580 = vshrl.u32 %v10579, 7
  %v10581 = vsub.s32 0, %v10580
  %v10582 = vrot.slane %v10577, %v10581
  %v10588 = vunpack.c.l.b16 %v10572
  %v10589 = vunpack.c.l.b16 %v10573
  %v10590 = vunpack.c.l.b16 %v10574
  %v10591 = vunpack.c.l.b16 %v10575
  %v10592 = vpack.c.b16 %v10589, %v10588
  %v10593 = vpack.c.b16 %v10591, %v10590
  %v10597 = vsel %vm165, %v10570, 0
  %10599 = vmatprep.subr.bf16.mxu0 0
  %10600 = vmatpush1.bf16.msra.mxu0 0
  %10601 = vmatprep.subr.bf16.mxu0 0
  %10602 = vmatpush1.bf16.msra.mxu0 0
  %10603 = vmatprep.subr.bf16.mxu0 0
  %10604 = vmatpush1.bf16.msra.mxu0 0
  %10605 = vmatprep.subr.bf16.mxu0 0
  %10606 = vmatpush1.bf16.msra.mxu0 0
  %10607 = vmatprep.subr.bf16.mxu0 0
  %10608 = vmatpush1.bf16.msra.mxu0 0
  %10609 = vmatprep.subr.bf16.mxu0 0
  %10610 = vmatpush1.bf16.msra.mxu0 0
  %10611 = vmatprep.subr.bf16.mxu0 0
  %10612 = vmatpush1.bf16.msra.mxu0 %v10593
  %10613 = vmatprep.subr.bf16.mxu0 0
  %10614 = vmatpush1.bf16.msra.mxu0 %v10592
  %10615 = vmatprep.subr.bf16.mxu0 0
  %10616 = vmatpush2.bf16.msra.mxu0 0
  %10617 = vmatprep.subr.bf16.mxu0 0
  %10618 = vmatpush2.bf16.msra.mxu0 0
  %10619 = vmatprep.subr.bf16.mxu0 0
  %10620 = vmatpush2.bf16.msra.mxu0 0
  %10621 = vmatprep.subr.bf16.mxu0 0
  %10622 = vmatpush2.bf16.msra.mxu0 0
  %10623 = vmatprep.subr.bf16.mxu0 0
  %10624 = vmatpush2.bf16.msra.mxu0 0
  %10625 = vmatprep.subr.bf16.mxu0 0
  %10626 = vmatpush2.bf16.msra.mxu0 0
  %10627 = vmatprep.subr.bf16.mxu0 0
  %10628 = vmatpush2.bf16.msra.mxu0 0
  %10629 = vmatprep.subr.bf16.mxu0 0
  %10630 = vmatpush2.bf16.msra.mxu0 0
  %10631 = vmatprep.mubr.bf16.mxu0 0
  %10632 = vmatmul.mubr.bf16.gmra.mxu0 %v10597
  %v10633 = vpop.f32.mrf.mxu0
  %v10634 = vadd.f32 %v10582, %v10633
  %v10635 = vpop.f32.mrf.mxu0
  %v10636 = vpop.f32.mrf.mxu0
  %v10637 = vadd.f32 %v10582, %v10636
  %v10638 = vpop.f32.mrf.mxu0
  %10639 = vdwg.mxu0
  %v10640 = vadd.f32 %v9088, %v10634
  %v10641 = vadd.f32 %v9089, %v10637
  %s10642 = scalar_lea.vmem %s9, 5
  %v10643 = vld [vmem:[%s10642] sm:$0x1]
  %s10644 = scalar_lea.vmem %s10, 5
  %v10645 = vld [vmem:[%s10644] sm:$0x1]
  %v10646 = vsel %vm165, %v10640, 0.0
  %10647 = vadd.xlane.f32.xlu0 %v10646
  %v10648 = vpop.xlane.xlu0 %10647
  %v10649 = vsel %vm165, %v10641, 0.0
  %10650 = vadd.xlane.f32.xlu0 %v10649
  %v10651 = vpop.xlane.xlu0 %10650
  %v10652 = vmul.f32 %v10648, %v172
  %v10653 = vmul.f32 %v10651, %v172
  %v10654 = vsub.f32 %v10640, %v10652
  %v10655 = vsub.f32 %v10641, %v10653
  %v10656 = vmul.f32 %v10654, %v10654
  %v10657 = vmul.f32 %v10655, %v10655
  %v10658 = vsel %vm165, %v10656, 0.0
  %10659 = vadd.xlane.f32.xlu0 %v10658
  %v10660 = vpop.xlane.xlu0 %10659
  %v10661 = vsel %vm165, %v10657, 0.0
  %10662 = vadd.xlane.f32.xlu0 %v10661
  %v10663 = vpop.xlane.xlu0 %10662
  %v10664 = vmul.f32 %v10660, 0.032258064
  %v10665 = vmul.f32 %v10663, 0.032258064
  %v10666 = vadd.f32 %v10664, 1e-12
  %v10667 = vadd.f32 %v10665, 1e-12
  %v10668 = vrcp.pop %v10666
  %v10669 = vmul.f32 %v10654, %v10668
  %v10670 = vrcp.pop %v10667
  %v10671 = vmul.f32 %v10655, %v10670
  %v10673 = vlaneseq
  %v10674 = vshrl.u32 %v10673, 7
  %v10675 = vsub.s32 0, %v10674
  %v10676 = vrot.slane %v10643, %v10675
  %v10678 = vmul.f32 %v10676, %v10669
  %v10679 = vmul.f32 %v10676, %v10671
  %v10681 = vlaneseq
  %v10682 = vshrl.u32 %v10681, 7
  %v10683 = vsub.s32 0, %v10682
  %v10684 = vrot.slane %v10645, %v10683
  %v10686 = vadd.f32 %v10678, %v10684
  %v10687 = vadd.f32 %v10679, %v10684
  %v10688 = vpack.c.bf16 %v10687, %v10686
  %s10689 = scalar_lea.vmem %s11, 80
  %v10690 = vld [vmem:[%s10689] sm:$0xf]
  %v10691 = vld [vmem:[%s10689 + $0x4] sm:$0xf]
  %v10692 = vld [vmem:[%s10689 + $0x8] sm:$0xf]
  %v10693 = vld [vmem:[%s10689 + $0xc] sm:$0xf]
  %s10694 = scalar_lea.vmem %s12, 5
  %v10695 = vld [vmem:[%s10694] sm:$0x1]
  %v10697 = vlaneseq
  %v10698 = vshrl.u32 %v10697, 7
  %v10699 = vsub.s32 0, %v10698
  %v10700 = vrot.slane %v10695, %v10699
  %v10706 = vunpack.c.l.b16 %v10690
  %v10707 = vunpack.c.l.b16 %v10691
  %v10708 = vunpack.c.l.b16 %v10692
  %v10709 = vunpack.c.l.b16 %v10693
  %v10710 = vpack.c.b16 %v10707, %v10706
  %v10711 = vpack.c.b16 %v10709, %v10708
  %v10715 = vsel %vm165, %v10688, 0
  %10717 = vmatprep.subr.bf16.mxu0 0
  %10718 = vmatpush1.bf16.msra.mxu0 0
  %10719 = vmatprep.subr.bf16.mxu0 0
  %10720 = vmatpush1.bf16.msra.mxu0 0
  %10721 = vmatprep.subr.bf16.mxu0 0
  %10722 = vmatpush1.bf16.msra.mxu0 0
  %10723 = vmatprep.subr.bf16.mxu0 0
  %10724 = vmatpush1.bf16.msra.mxu0 0
  %10725 = vmatprep.subr.bf16.mxu0 0
  %10726 = vmatpush1.bf16.msra.mxu0 0
  %10727 = vmatprep.subr.bf16.mxu0 0
  %10728 = vmatpush1.bf16.msra.mxu0 0
  %10729 = vmatprep.subr.bf16.mxu0 0
  %10730 = vmatpush1.bf16.msra.mxu0 %v10711
  %10731 = vmatprep.subr.bf16.mxu0 0
  %10732 = vmatpush1.bf16.msra.mxu0 %v10710
  %10733 = vmatprep.subr.bf16.mxu0 0
  %10734 = vmatpush2.bf16.msra.mxu0 0
  %10735 = vmatprep.subr.bf16.mxu0 0
  %10736 = vmatpush2.bf16.msra.mxu0 0
  %10737 = vmatprep.subr.bf16.mxu0 0
  %10738 = vmatpush2.bf16.msra.mxu0 0
  %10739 = vmatprep.subr.bf16.mxu0 0
  %10740 = vmatpush2.bf16.msra.mxu0 0
  %10741 = vmatprep.subr.bf16.mxu0 0
  %10742 = vmatpush2.bf16.msra.mxu0 0
  %10743 = vmatprep.subr.bf16.mxu0 0
  %10744 = vmatpush2.bf16.msra.mxu0 0
  %10745 = vmatprep.subr.bf16.mxu0 0
  %10746 = vmatpush2.bf16.msra.mxu0 0
  %10747 = vmatprep.subr.bf16.mxu0 0
  %10748 = vmatpush2.bf16.msra.mxu0 0
  %10749 = vmatprep.mubr.bf16.mxu0 0
  %10750 = vmatmul.mubr.bf16.gmra.mxu0 %v10715
  %v10751 = vpop.f32.mrf.mxu0
  %v10752 = vadd.f32 %v10700, %v10751
  %v10753 = vpop.f32.mrf.mxu0
  %v10754 = vpop.f32.mrf.mxu0
  %v10755 = vadd.f32 %v10700, %v10754
  %v10756 = vpop.f32.mrf.mxu0
  %10757 = vdwg.mxu0
  %v10758 = vmax.f32 %v10752, 0.0
  %v10759 = vmax.f32 %v10755, 0.0
  %v10760 = vpack.c.bf16 %v10759, %v10758
  %s10761 = scalar_lea.vmem %s13, 320
  %v10762 = vld [vmem:[%s10761] sm:$0xf]
  %v10763 = vld [vmem:[%s10761 + $0x4] sm:$0xf]
  %v10764 = vld [vmem:[%s10761 + $0x8] sm:$0xf]
  %v10765 = vld [vmem:[%s10761 + $0xc] sm:$0xf]
  %v10766 = vld [vmem:[%s10761 + $0x10] sm:$0xf]
  %v10767 = vld [vmem:[%s10761 + $0x14] sm:$0xf]
  %v10768 = vld [vmem:[%s10761 + $0x18] sm:$0xf]
  %v10769 = vld [vmem:[%s10761 + $0x1c] sm:$0xf]
  %v10770 = vld [vmem:[%s10761 + $0x20] sm:$0xf]
  %v10771 = vld [vmem:[%s10761 + $0x24] sm:$0xf]
  %v10772 = vld [vmem:[%s10761 + $0x28] sm:$0xf]
  %v10773 = vld [vmem:[%s10761 + $0x2c] sm:$0xf]
  %v10774 = vld [vmem:[%s10761 + $0x30] sm:$0xf]
  %v10775 = vld [vmem:[%s10761 + $0x34] sm:$0xf]
  %v10776 = vld [vmem:[%s10761 + $0x38] sm:$0xf]
  %v10777 = vld [vmem:[%s10761 + $0x3c] sm:$0xf]
  %s10778 = scalar_lea.vmem %s14, 5
  %v10779 = vld [vmem:[%s10778] sm:$0x1]
  %v10781 = vlaneseq
  %v10782 = vshrl.u32 %v10781, 7
  %v10783 = vsub.s32 0, %v10782
  %v10784 = vrot.slane %v10779, %v10783
  %v10802 = vunpack.c.l.b16 %v10762
  %v10803 = vunpack.c.l.b16 %v10763
  %v10804 = vunpack.c.l.b16 %v10764
  %v10805 = vunpack.c.l.b16 %v10765
  %v10806 = vunpack.c.l.b16 %v10766
  %v10807 = vunpack.c.l.b16 %v10767
  %v10808 = vunpack.c.l.b16 %v10768
  %v10809 = vunpack.c.l.b16 %v10769
  %v10810 = vunpack.c.l.b16 %v10770
  %v10811 = vunpack.c.l.b16 %v10771
  %v10812 = vunpack.c.l.b16 %v10772
  %v10813 = vunpack.c.l.b16 %v10773
  %v10814 = vunpack.c.l.b16 %v10774
  %v10815 = vunpack.c.l.b16 %v10775
  %v10816 = vunpack.c.l.b16 %v10776
  %v10817 = vunpack.c.l.b16 %v10777
  %v10818 = vpack.c.b16 %v10803, %v10802
  %v10819 = vpack.c.b16 %v10805, %v10804
  %v10820 = vpack.c.b16 %v10807, %v10806
  %v10821 = vpack.c.b16 %v10809, %v10808
  %v10822 = vpack.c.b16 %v10811, %v10810
  %v10823 = vpack.c.b16 %v10813, %v10812
  %v10824 = vpack.c.b16 %v10815, %v10814
  %v10825 = vpack.c.b16 %v10817, %v10816
  %10834 = vmatprep.subr.bf16.mxu0 0
  %10835 = vmatpush1.bf16.msra.mxu0 %v10825
  %10836 = vmatprep.subr.bf16.mxu0 0
  %10837 = vmatpush1.bf16.msra.mxu0 %v10824
  %10838 = vmatprep.subr.bf16.mxu0 0
  %10839 = vmatpush1.bf16.msra.mxu0 %v10823
  %10840 = vmatprep.subr.bf16.mxu0 0
  %10841 = vmatpush1.bf16.msra.mxu0 %v10822
  %10842 = vmatprep.subr.bf16.mxu0 0
  %10843 = vmatpush1.bf16.msra.mxu0 %v10821
  %10844 = vmatprep.subr.bf16.mxu0 0
  %10845 = vmatpush1.bf16.msra.mxu0 %v10820
  %10846 = vmatprep.subr.bf16.mxu0 0
  %10847 = vmatpush1.bf16.msra.mxu0 %v10819
  %10848 = vmatprep.subr.bf16.mxu0 0
  %10849 = vmatpush1.bf16.msra.mxu0 %v10818
  %10850 = vmatprep.subr.bf16.mxu0 0
  %10851 = vmatpush2.bf16.msra.mxu0 0
  %10852 = vmatprep.subr.bf16.mxu0 0
  %10853 = vmatpush2.bf16.msra.mxu0 0
  %10854 = vmatprep.subr.bf16.mxu0 0
  %10855 = vmatpush2.bf16.msra.mxu0 0
  %10856 = vmatprep.subr.bf16.mxu0 0
  %10857 = vmatpush2.bf16.msra.mxu0 0
  %10858 = vmatprep.subr.bf16.mxu0 0
  %10859 = vmatpush2.bf16.msra.mxu0 0
  %10860 = vmatprep.subr.bf16.mxu0 0
  %10861 = vmatpush2.bf16.msra.mxu0 0
  %10862 = vmatprep.subr.bf16.mxu0 0
  %10863 = vmatpush2.bf16.msra.mxu0 0
  %10864 = vmatprep.subr.bf16.mxu0 0
  %10865 = vmatpush2.bf16.msra.mxu0 0
  %10866 = vmatprep.mubr.bf16.mxu0 0
  %10867 = vmatmul.mubr.bf16.gmra.mxu0 %v10760
  %v10868 = vpop.f32.mrf.mxu0
  %v10869 = vadd.f32 %v10784, %v10868
  %v10870 = vpop.f32.mrf.mxu0
  %v10871 = vpop.f32.mrf.mxu0
  %v10872 = vadd.f32 %v10784, %v10871
  %v10873 = vpop.f32.mrf.mxu0
  %10874 = vdwg.mxu0
  %v10875 = vadd.f32 %v9088, %v10869
  %v10876 = vadd.f32 %v9089, %v10872
  %v10877 = vpack.c.bf16 %v10876, %v10875
  %v10878 = vld [vmem:[%s15] sm:$0xf]
  %v10879 = vld [vmem:[%s15 + $0x4] sm:$0xf]
  %v10880 = vld [vmem:[%s15 + $0x8] sm:$0xf]
  %v10881 = vld [vmem:[%s15 + $0xc] sm:$0xf]
  %v10882 = vld [vmem:[%s16] sm:$0x1]
  %v10884 = vlaneseq
  %v10885 = vshrl.u32 %v10884, 7
  %v10886 = vsub.s32 0, %v10885
  %v10887 = vrot.slane %v10882, %v10886
  %v10893 = vunpack.c.l.b16 %v10878
  %v10894 = vunpack.c.l.b16 %v10879
  %v10895 = vunpack.c.l.b16 %v10880
  %v10896 = vunpack.c.l.b16 %v10881
  %v10897 = vpack.c.b16 %v10894, %v10893
  %v10898 = vpack.c.b16 %v10896, %v10895
  %v10902 = vsel %vm165, %v10877, 0
  %10904 = vmatprep.subr.bf16.mxu0 0
  %10905 = vmatpush1.bf16.msra.mxu0 0
  %10906 = vmatprep.subr.bf16.mxu0 0
  %10907 = vmatpush1.bf16.msra.mxu0 0
  %10908 = vmatprep.subr.bf16.mxu0 0
  %10909 = vmatpush1.bf16.msra.mxu0 0
  %10910 = vmatprep.subr.bf16.mxu0 0
  %10911 = vmatpush1.bf16.msra.mxu0 0
  %10912 = vmatprep.subr.bf16.mxu0 0
  %10913 = vmatpush1.bf16.msra.mxu0 0
  %10914 = vmatprep.subr.bf16.mxu0 0
  %10915 = vmatpush1.bf16.msra.mxu0 0
  %10916 = vmatprep.subr.bf16.mxu0 0
  %10917 = vmatpush1.bf16.msra.mxu0 %v10898
  %10918 = vmatprep.subr.bf16.mxu0 0
  %10919 = vmatpush1.bf16.msra.mxu0 %v10897
  %10920 = vmatprep.subr.bf16.mxu0 0
  %10921 = vmatpush2.bf16.msra.mxu0 0
  %10922 = vmatprep.subr.bf16.mxu0 0
  %10923 = vmatpush2.bf16.msra.mxu0 0
  %10924 = vmatprep.subr.bf16.mxu0 0
  %10925 = vmatpush2.bf16.msra.mxu0 0
  %10926 = vmatprep.subr.bf16.mxu0 0
  %10927 = vmatpush2.bf16.msra.mxu0 0
  %10928 = vmatprep.subr.bf16.mxu0 0
  %10929 = vmatpush2.bf16.msra.mxu0 0
  %10930 = vmatprep.subr.bf16.mxu0 0
  %10931 = vmatpush2.bf16.msra.mxu0 0
  %10932 = vmatprep.subr.bf16.mxu0 0
  %10933 = vmatpush2.bf16.msra.mxu0 0
  %10934 = vmatprep.subr.bf16.mxu0 0
  %10935 = vmatpush2.bf16.msra.mxu0 0
  %10936 = vmatprep.mubr.bf16.mxu0 0
  %10937 = vmatmul.mubr.bf16.gmra.mxu0 %v10902
  %v10938 = vpop.f32.mrf.mxu0
  %v10939 = vadd.f32 %v10887, %v10938
  %v10940 = vpop.f32.mrf.mxu0
  %v10941 = vpop.f32.mrf.mxu0
  %v10942 = vadd.f32 %v10887, %v10941
  %v10943 = vpop.f32.mrf.mxu0
  %10944 = vdwg.mxu0
  %10945 = vst [vmem:[%s17] sm:$0xff] %v10939
  %10946 = vst [vmem:[%s17 + $0x8] sm:$0xff] %v10942
  // Predicated region
  $region70: #{gpt_forward.1} parent=0 // pred_check
    _
  $region71: #{gpt_forward.1} parent=0 // pred_check_branch
    %10948 = sbr.rel (0) target = $region73
  $region72: #{gpt_forward.1} parent=0 // pred_region
    _
  $region73: #{gpt_forward.1} parent=0 // pred_fallthru
    _
  // Predicated region
  $region74: #{gpt_forward.1} parent=0 // pred_check
    _
  $region75: #{gpt_forward.1} parent=0 // pred_check_branch
    %10950 = sbr.rel (0) target = $region77
  $region76: #{gpt_forward.1} parent=0 // pred_region
    _
  $region77: #{gpt_forward.1} parent=0 // pred_fallthru
    _

</llo_original>
